<compile_context>
chip_gen: v7x
topology: tpu7x:2x2x1
jax: 0.10.0
libtpu: 0.0.40
codegen_flags: <defaults>
</compile_context>

<pallas_src>
import jax
import jax.numpy as jnp
from jax import lax
from jax.experimental import pallas as pl
from jax.experimental.pallas import tpu as pltpu


# ---------------------------------------------------------------------------
# Fused conv1+pool1+conv2+pool2 kernel (one batch tile per grid step)
# ---------------------------------------------------------------------------
def conv_pool_kernel(p1_ref, w1_ref, b1_ref, w2_ref, b2_ref, o_ref,
                     s1_ref, s2_ref, s3_ref):
    """Per batch tile of TB samples.

    p1_ref : (TB, 28*40, 9) bf16  conv1 im2col patches on a 28 x 40 output grid
                                  (rows ordered (h, ws); conv column w = ws - 2,
                                  so ws in [2, 30) are the 28 real columns)
    w1_ref : (9, 32)   bf16       conv1 weight, rows ordered (kh, kw)
    b1_ref : (1, 32)   f32
    w2_ref : (288, 64) bf16       conv2 weight, rows ordered (kh, kw, cin)
    b2_ref : (1, 64)   f32
    o_ref  : (TB, 7, 7, 64) bf16  pooled conv2 output (NHWC)
    s1_ref : (TB, 28, 40, 32) f32 conv1 pre-activations (padded w grid)
    s2_ref : (TB, 16, 18, 32) f32 zero-padded pool1 output (conv2 input window)
    s3_ref : (TB, 14, 16, 64) f32 conv2 pre-activations (2 junk columns)
    """
    TB = p1_ref.shape[0]

    # ---- conv1 as a single GEMM over every (h, w) of the padded grid --------
    lhs1 = p1_ref[...].reshape(TB * 28 * 40, 9)                       # trivial reshape
    c1 = jnp.dot(lhs1, w1_ref[...], preferred_element_type=jnp.float32)
    s1_ref[...] = c1.reshape(TB, 28, 40, 32)                          # (40,32) tiles -> trivial

    # ---- 2x2 max-pool, then bias + ReLU (hoisted: max/+b/ReLU commute) ------
    # pooled column j corresponds to conv columns {2(j-1), 2(j-1)+1}; j=0 and
    # j>=15 are the zero-padding / junk columns of the conv2 input window.
    m = None
    for oy in range(2):
        for ox in range(2):
            p = s1_ref[:, pl.ds(oy, 14, stride=2), pl.ds(ox, 18, stride=2), :]
            m = p if m is None else jnp.maximum(m, p)
    y1 = jnp.maximum(m + b1_ref[...], 0.0)                            # (TB,14,18,32)
    col = lax.broadcasted_iota(jnp.int32, y1.shape, 2)
    y1 = jnp.where((col >= 1) & (col <= 14), y1, 0.0)                 # zero-pad columns

    # ---- zero-padded conv2 input slab: (TB, 16, 18, 32) ---------------------
    zrow = jnp.zeros((TB, 1, 18, 32), jnp.float32)
    s2_ref[...] = jnp.concatenate([zrow, y1, zrow], axis=1)

    # ---- conv2: in-kernel im2col via 9 shifted VMEM window reads, one GEMM --
    parts = []
    for dy in range(3):
        for dx in range(3):
            parts.append(s2_ref[:, dy:dy + 14, dx:dx + 16, :])        # (TB,14,16,32)
    lhs2 = jnp.concatenate(parts, axis=-1).reshape(TB * 14 * 16, 288)  # trivial reshape
    c2 = jnp.dot(lhs2.astype(jnp.bfloat16), w2_ref[...],
                 preferred_element_type=jnp.float32)                  # (TB*224, 64)
    s3_ref[...] = c2.reshape(TB, 14, 16, 64)

    # ---- second 2x2 max-pool + bias + ReLU ----------------------------------
    m2 = None
    for oy in range(2):
        for ox in range(2):
            q = s3_ref[:, pl.ds(oy, 7, stride=2), pl.ds(ox, 7, stride=2), :]
            m2 = q if m2 is None else jnp.maximum(m2, q)
    y2 = jnp.maximum(m2 + b2_ref[...], 0.0)                           # (TB,7,7,64)
    o_ref[...] = y2.astype(o_ref.dtype)


def linear_kernel(x_ref, w_ref, b_ref, o_ref):
    """o = x @ w + b (bf16 operands, f32 accumulation)."""
    o_ref[...] = (jnp.dot(x_ref[...], w_ref[...],
                          preferred_element_type=jnp.float32)
                  + b_ref[...]).astype(o_ref.dtype)


# ---------------------------------------------------------------------------
# pallas_call wrappers
# ---------------------------------------------------------------------------
def conv_pool(p1, w1, b1, w2, b2):
    B = p1.shape[0]
    TB = 4 if B % 4 == 0 else (2 if B % 2 == 0 else 1)
    return pl.pallas_call(
        conv_pool_kernel,
        out_shape=jax.ShapeDtypeStruct((B, 7, 7, 64), jnp.bfloat16),
        grid_spec=pltpu.PrefetchScalarGridSpec(
            num_scalar_prefetch=0,
            grid=(B // TB,),
            in_specs=[
                pl.BlockSpec((TB, 28 * 40, 9), lambda i: (i, 0, 0)),
                pl.BlockSpec((9, 32), lambda i: (0, 0)),
                pl.BlockSpec((1, 32), lambda i: (0, 0)),
                pl.BlockSpec((288, 64), lambda i: (0, 0)),
                pl.BlockSpec((1, 64), lambda i: (0, 0)),
            ],
            out_specs=pl.BlockSpec((TB, 7, 7, 64), lambda i: (i, 0, 0, 0)),
            scratch_shapes=[
                pltpu.VMEM((TB, 28, 40, 32), jnp.float32),
                pltpu.VMEM((TB, 16, 18, 32), jnp.float32),
                pltpu.VMEM((TB, 14, 16, 64), jnp.float32),
            ],
        ),
        compiler_params=pltpu.CompilerParams(
            dimension_semantics=("parallel",),
            vmem_limit_bytes=32 * 1024 * 1024,
        ),
    )(p1, w1, b1, w2, b2)


def linear(x, w, b):
    M, K = x.shape
    N = w.shape[1]
    tm = M if M <= 256 else 256
    pad = (-M) % tm
    if pad:
        x = jnp.pad(x, ((0, pad), (0, 0)))
    Mp = x.shape[0]
    out = pl.pallas_call(
        linear_kernel,
        out_shape=jax.ShapeDtypeStruct((Mp, N), jnp.float32),
        grid_spec=pltpu.PrefetchScalarGridSpec(
            num_scalar_prefetch=0,
            grid=(Mp // tm,),
            in_specs=[
                pl.BlockSpec((tm, K), lambda i: (i, 0)),
                pl.BlockSpec((K, N), lambda i: (0, 0)),
                pl.BlockSpec((1, N), lambda i: (0, 0)),
            ],
            out_specs=pl.BlockSpec((tm, N), lambda i: (i, 0)),
        ),
        compiler_params=pltpu.CompilerParams(
            dimension_semantics=("parallel",),
            vmem_limit_bytes=32 * 1024 * 1024,
        ),
    )(x, w, b)
    return out[:M]


# ---------------------------------------------------------------------------
# JAX glue: tiny conv1 im2col (9 taps, Cin=1) on the padded 28 x 40 output grid
# ---------------------------------------------------------------------------
def _conv1_patches(x):
    """x: (B, 28, 28) f32 -> (B, 28*40, 9) bf16; taps ordered (kh, kw)."""
    B = x.shape[0]
    xp = jnp.pad(x, ((0, 0), (1, 1), (3, 11)))                 # (B, 30, 42)
    cols = [xp[:, dy:dy + 28, dx:dx + 40]
            for dy in range(3) for dx in range(3)]
    p = jnp.stack(cols, axis=-1)                               # (B, 28, 40, 9)
    return p.reshape(B, 28 * 40, 9).astype(jnp.bfloat16)


# ---------------------------------------------------------------------------
# SimpleEncoder forward (Pallas path)
# ---------------------------------------------------------------------------
def simple_encoder_forward(x_nchw, pparams):
    B = x_nchw.shape[0]
    x = x_nchw.reshape(B, 28, 28)                              # Cin = 1
    p1 = _conv1_patches(x)
    y2 = conv_pool(p1, pparams["w1"], pparams["b1"],
                   pparams["w2"], pparams["b2"])               # (B,7,7,64) bf16
    flat = y2.reshape(B, 7 * 7 * 64)                           # NHWC flatten (h,w,c)
    return linear(flat, pparams["wf"], pparams["bf"])          # (B,128) f32


# ---------------------------------------------------------------------------
# Parameter init (PyTorch-style uniform(+-1/sqrt(fan_in))) + Pallas-side prep
# Conv weights stored HWIO (kh, kw, cin, cout); fc weight (in, out) with rows in
# PyTorch NCHW-flatten order (c*49 + h*7 + w).
# ---------------------------------------------------------------------------
def init_params(key):
    ks = jax.random.split(key, 6)

    def u(k, shape, fan_in):
        bound = 1.0 / jnp.sqrt(jnp.float32(fan_in))
        return jax.random.uniform(k, shape, jnp.float32, -bound, bound)

    return {
        "w1": u(ks[0], (3, 3, 1, 32), 9),
        "b1": u(ks[1], (32,), 9),
        "w2": u(ks[2], (3, 3, 32, 64), 288),
        "b2": u(ks[3], (64,), 288),
        "wf": u(ks[4], (64 * 7 * 7, 128), 3136),
        "bf": u(ks[5], (128,), 3136),
    }


def prepare_pallas_params(params):
    # One-time fc-row permutation: NCHW-flatten order -> NHWC-flatten order,
    # so the forward pass needs no transpose of y2.
    wf_nhwc = (params["wf"].reshape(64, 7, 7, 128)
               .transpose(1, 2, 0, 3).reshape(64 * 7 * 7, 128))
    return {
        "w1": params["w1"].reshape(9, 32).astype(jnp.bfloat16),
        "b1": params["b1"].reshape(1, 32),
        "w2": params["w2"].reshape(9 * 32, 64).astype(jnp.bfloat16),
        "b2": params["b2"].reshape(1, 64),
        "wf": wf_nhwc.astype(jnp.bfloat16),
        "bf": params["bf"].reshape(1, 128),
    }


# ---------------------------------------------------------------------------
# Pure-JAX reference reproducing the PyTorch forward (f32, for correctness)
# ---------------------------------------------------------------------------
def reference_forward(x_nchw, params):
    w1 = jnp.transpose(params["w1"], (3, 2, 0, 1))    # -> OIHW
    w2 = jnp.transpose(params["w2"], (3, 2, 0, 1))

    def conv(x, w, b):
        y = lax.conv_general_dilated(
            x, w, (1, 1), ((1, 1), (1, 1)),
            dimension_numbers=("NCHW", "OIHW", "NCHW"),
            precision=lax.Precision.HIGHEST)
        return y + b.reshape(1, -1, 1, 1)

    def pool(x):
        return lax.reduce_window(x, -jnp.inf, lax.max,
                                 (1, 1, 2, 2), (1, 1, 2, 2), "VALID")

    y = pool(jax.nn.relu(conv(x_nchw, w1, params["b1"])))
    y = pool(jax.nn.relu(conv(y, w2, params["b2"])))
    flat = y.reshape(y.shape[0], -1)
    return jnp.dot(flat, params["wf"], precision=lax.Precision.HIGHEST) + params["bf"]


if __name__ == "__main__":
    key = jax.random.PRNGKey(0)
    pkey, xkey = jax.random.split(key)
    params = init_params(pkey)
    pparams = prepare_pallas_params(params)

    # fc = Linear(64*7*7, 128) implies a 28x28 single-channel input (MNIST-like)
    x = jax.random.normal(xkey, (2, 1, 28, 28), jnp.float32)

    fwd = jax.jit(simple_encoder_forward)
    out = jax.block_until_ready(fwd(x, pparams))
    assert out.shape == (2, 128), out.shape

    ref = jax.block_until_ready(reference_forward(x, params))
    if not jnp.allclose(out, ref, rtol=2e-2, atol=2e-2):
        err = float(jnp.max(jnp.abs(out - ref)))
        raise AssertionError(
            f"Pallas output mismatch vs JAX reference (max abs err {err})")

    print("KERNEL_OK")
</pallas_src>

<mosaic_0001>
module attributes {stable_mosaic.version = 11 : i64} {
  func.func @conv_pool_kernel(%arg0: i32, %arg1: memref<2x1120x9xbf16, #tpu.memory_space<vmem>>, %arg2: memref<9x32xbf16, #tpu.memory_space<vmem>>, %arg3: memref<1x32xf32, #tpu.memory_space<vmem>>, %arg4: memref<288x64xbf16, #tpu.memory_space<vmem>>, %arg5: memref<1x64xf32, #tpu.memory_space<vmem>>, %arg6: memref<2x7x7x64xbf16, #tpu.memory_space<vmem>>, %arg7: memref<2x28x40x32xf32, #tpu.memory_space<vmem>>, %arg8: memref<2x16x18x32xf32, #tpu.memory_space<vmem>>, %arg9: memref<2x14x16x64xf32, #tpu.memory_space<vmem>>) attributes {dimension_semantics = [#tpu.dimension_semantics<parallel>], iteration_bounds = array<i64: 1>, scalar_prefetch = 0 : i64, scratch_operands = 3 : i64, tpu.core_type = #tpu.core_type<tc>, window_params = [{transform_indices = @transform_0, window_bounds = array<i64: 2, 1120, 9>}, {pipeline_mode = #tpu.pipeline_mode<synchronous>, transform_indices = @transform_1, window_bounds = array<i64: 9, 32>}, {pipeline_mode = #tpu.pipeline_mode<synchronous>, transform_indices = @transform_2, window_bounds = array<i64: 1, 32>}, {pipeline_mode = #tpu.pipeline_mode<synchronous>, transform_indices = @transform_3, window_bounds = array<i64: 288, 64>}, {pipeline_mode = #tpu.pipeline_mode<synchronous>, transform_indices = @transform_4, window_bounds = array<i64: 1, 64>}, {transform_indices = @transform_5, window_bounds = array<i64: 2, 7, 7, 64>}]} {
    %c0 = arith.constant 0 : index
    %c0_0 = arith.constant 0 : index
    %c0_1 = arith.constant 0 : index
    %0 = vector.load %arg1[%c0, %c0_0, %c0_1] : memref<2x1120x9xbf16, #tpu.memory_space<vmem>>, vector<2x1120x9xbf16>
    %1 = vector.shape_cast %0 : vector<2x1120x9xbf16> to vector<2240x9xbf16>
    %c0_2 = arith.constant 0 : index
    %c0_3 = arith.constant 0 : index
    %2 = vector.load %arg2[%c0_2, %c0_3] : memref<9x32xbf16, #tpu.memory_space<vmem>>, vector<9x32xbf16>
    %cst = arith.constant dense<0.000000e+00> : vector<2240x32xf32>
    %3 = tpu.matmul %1, %2, %cst {dimension_numbers = #tpu.dot_dimension_numbers<[1], [0], [0], [1], [0, 0, 1, 1], [], []>} : vector<2240x9xbf16>, vector<9x32xbf16>, vector<2240x32xf32> -> vector<2240x32xf32>
    %4 = vector.shape_cast %3 : vector<2240x32xf32> to vector<2x28x40x32xf32>
    %c0_4 = arith.constant 0 : index
    %c0_5 = arith.constant 0 : index
    %c0_6 = arith.constant 0 : index
    %c0_7 = arith.constant 0 : index
    %5 = vector.load %arg7[%c0_4, %c0_5, %c0_6, %c0_7] : memref<2x28x40x32xf32, #tpu.memory_space<vmem>>, vector<2x28x40x32xf32>
    tpu.vector_store %arg7[%c0_4, %c0_5, %c0_6, %c0_7], %4 {strides = array<i32>} : memref<2x28x40x32xf32, #tpu.memory_space<vmem>>, vector<2x28x40x32xf32>,
    %c0_8 = arith.constant 0 : index
    %c0_9 = arith.constant 0 : index
    %c0_10 = arith.constant 0 : index
    %c0_11 = arith.constant 0 : index
    %6 = tpu.strided_load %arg7[%c0_8, %c0_9, %c0_10, %c0_11] {strides = array<i32: 1, 2, 2, 1>} : memref<2x28x40x32xf32, #tpu.memory_space<vmem>>, vector<2x14x18x32xf32>
    %c0_12 = arith.constant 0 : index
    %c0_13 = arith.constant 0 : index
    %c1 = arith.constant 1 : index
    %c0_14 = arith.constant 0 : index
    %7 = tpu.strided_load %arg7[%c0_12, %c0_13, %c1, %c0_14] {strides = array<i32: 1, 2, 2, 1>} : memref<2x28x40x32xf32, #tpu.memory_space<vmem>>, vector<2x14x18x32xf32>
    %8 = arith.maximumf %6, %7 : vector<2x14x18x32xf32>
    %c0_15 = arith.constant 0 : index
    %c1_16 = arith.constant 1 : index
    %c0_17 = arith.constant 0 : index
    %c0_18 = arith.constant 0 : index
    %9 = tpu.strided_load %arg7[%c0_15, %c1_16, %c0_17, %c0_18] {strides = array<i32: 1, 2, 2, 1>} : memref<2x28x40x32xf32, #tpu.memory_space<vmem>>, vector<2x14x18x32xf32>
    %10 = arith.maximumf %8, %9 : vector<2x14x18x32xf32>
    %c0_19 = arith.constant 0 : index
    %c1_20 = arith.constant 1 : index
    %c1_21 = arith.constant 1 : index
    %c0_22 = arith.constant 0 : index
    %11 = tpu.strided_load %arg7[%c0_19, %c1_20, %c1_21, %c0_22] {strides = array<i32: 1, 2, 2, 1>} : memref<2x28x40x32xf32, #tpu.memory_space<vmem>>, vector<2x14x18x32xf32>
    %12 = arith.maximumf %10, %11 : vector<2x14x18x32xf32>
    %c0_23 = arith.constant 0 : index
    %c0_24 = arith.constant 0 : index
    %13 = vector.load %arg3[%c0_23, %c0_24] : memref<1x32xf32, #tpu.memory_space<vmem>>, vector<1x32xf32>
    %14 = vector.shape_cast %13 : vector<1x32xf32> to vector<1x1x1x32xf32>
    %15 = vector.broadcast %14 : vector<1x1x1x32xf32> to vector<2x14x18x32xf32>
    %16 = arith.addf %12, %15 : vector<2x14x18x32xf32>
    %cst_25 = arith.constant 0.000000e+00 : f32
    %17 = vector.broadcast %cst_25 : f32 to vector<2x14x18x32xf32>
    %18 = arith.maximumf %16, %17 : vector<2x14x18x32xf32>
    %19 = tpu.iota {dimensions = array<i32: 2>} : vector<2x14x18x32xi32>
    %c1_i32 = arith.constant 1 : i32
    %20 = vector.broadcast %c1_i32 : i32 to vector<2x14x18x32xi32>
    %21 = arith.cmpi sge, %19, %20 : vector<2x14x18x32xi32>
    %c14_i32 = arith.constant 14 : i32
    %22 = vector.broadcast %c14_i32 : i32 to vector<2x14x18x32xi32>
    %23 = arith.cmpi sle, %19, %22 : vector<2x14x18x32xi32>
    %24 = arith.andi %21, %23 : vector<2x14x18x32xi1>
    %cst_26 = arith.constant 0.000000e+00 : f32
    %25 = vector.broadcast %cst_26 : f32 to vector<2x14x18x32xf32>
    %26 = arith.select %24, %18, %25 : vector<2x14x18x32xi1>, vector<2x14x18x32xf32>
    %cst_27 = arith.constant 0.000000e+00 : f32
    %27 = vector.broadcast %cst_27 : f32 to vector<2x1x18x32xf32>
    %28 = tpu.concatenate %27, %26, %27 in 1 : vector<2x1x18x32xf32>, vector<2x14x18x32xf32>, vector<2x1x18x32xf32> -> vector<2x16x18x32xf32>
    %c0_28 = arith.constant 0 : index
    %c0_29 = arith.constant 0 : index
    %c0_30 = arith.constant 0 : index
    %c0_31 = arith.constant 0 : index
    %29 = vector.load %arg8[%c0_28, %c0_29, %c0_30, %c0_31] : memref<2x16x18x32xf32, #tpu.memory_space<vmem>>, vector<2x16x18x32xf32>
    tpu.vector_store %arg8[%c0_28, %c0_29, %c0_30, %c0_31], %28 {strides = array<i32>} : memref<2x16x18x32xf32, #tpu.memory_space<vmem>>, vector<2x16x18x32xf32>,
    %c0_32 = arith.constant 0 : index
    %c0_33 = arith.constant 0 : index
    %c0_34 = arith.constant 0 : index
    %c0_35 = arith.constant 0 : index
    %30 = vector.load %arg8[%c0_32, %c0_33, %c0_34, %c0_35] : memref<2x16x18x32xf32, #tpu.memory_space<vmem>>, vector<2x14x16x32xf32>
    %c0_36 = arith.constant 0 : index
    %c0_37 = arith.constant 0 : index
    %c1_38 = arith.constant 1 : index
    %c0_39 = arith.constant 0 : index
    %31 = vector.load %arg8[%c0_36, %c0_37, %c1_38, %c0_39] : memref<2x16x18x32xf32, #tpu.memory_space<vmem>>, vector<2x14x16x32xf32>
    %c0_40 = arith.constant 0 : index
    %c0_41 = arith.constant 0 : index
    %c2 = arith.constant 2 : index
    %c0_42 = arith.constant 0 : index
    %32 = vector.load %arg8[%c0_40, %c0_41, %c2, %c0_42] : memref<2x16x18x32xf32, #tpu.memory_space<vmem>>, vector<2x14x16x32xf32>
    %c0_43 = arith.constant 0 : index
    %c1_44 = arith.constant 1 : index
    %c0_45 = arith.constant 0 : index
    %c0_46 = arith.constant 0 : index
    %33 = vector.load %arg8[%c0_43, %c1_44, %c0_45, %c0_46] : memref<2x16x18x32xf32, #tpu.memory_space<vmem>>, vector<2x14x16x32xf32>
    %c0_47 = arith.constant 0 : index
    %c1_48 = arith.constant 1 : index
    %c1_49 = arith.constant 1 : index
    %c0_50 = arith.constant 0 : index
    %34 = vector.load %arg8[%c0_47, %c1_48, %c1_49, %c0_50] : memref<2x16x18x32xf32, #tpu.memory_space<vmem>>, vector<2x14x16x32xf32>
    %c0_51 = arith.constant 0 : index
    %c1_52 = arith.constant 1 : index
    %c2_53 = arith.constant 2 : index
    %c0_54 = arith.constant 0 : index
    %35 = vector.load %arg8[%c0_51, %c1_52, %c2_53, %c0_54] : memref<2x16x18x32xf32, #tpu.memory_space<vmem>>, vector<2x14x16x32xf32>
    %c0_55 = arith.constant 0 : index
    %c2_56 = arith.constant 2 : index
    %c0_57 = arith.constant 0 : index
    %c0_58 = arith.constant 0 : index
    %36 = vector.load %arg8[%c0_55, %c2_56, %c0_57, %c0_58] : memref<2x16x18x32xf32, #tpu.memory_space<vmem>>, vector<2x14x16x32xf32>
    %c0_59 = arith.constant 0 : index
    %c2_60 = arith.constant 2 : index
    %c1_61 = arith.constant 1 : index
    %c0_62 = arith.constant 0 : index
    %37 = vector.load %arg8[%c0_59, %c2_60, %c1_61, %c0_62] : memref<2x16x18x32xf32, #tpu.memory_space<vmem>>, vector<2x14x16x32xf32>
    %c0_63 = arith.constant 0 : index
    %c2_64 = arith.constant 2 : index
    %c2_65 = arith.constant 2 : index
    %c0_66 = arith.constant 0 : index
    %38 = vector.load %arg8[%c0_63, %c2_64, %c2_65, %c0_66] : memref<2x16x18x32xf32, #tpu.memory_space<vmem>>, vector<2x14x16x32xf32>
    %39 = tpu.concatenate %30, %31, %32, %33, %34, %35, %36, %37, %38 in 3 : vector<2x14x16x32xf32>, vector<2x14x16x32xf32>, vector<2x14x16x32xf32>, vector<2x14x16x32xf32>, vector<2x14x16x32xf32>, vector<2x14x16x32xf32>, vector<2x14x16x32xf32>, vector<2x14x16x32xf32>, vector<2x14x16x32xf32> -> vector<2x14x16x288xf32>
    %40 = vector.shape_cast %39 : vector<2x14x16x288xf32> to vector<448x288xf32>
    %41 = arith.truncf %40 : vector<448x288xf32> to vector<448x288xbf16>
    %c0_67 = arith.constant 0 : index
    %c0_68 = arith.constant 0 : index
    %42 = vector.load %arg4[%c0_67, %c0_68] : memref<288x64xbf16, #tpu.memory_space<vmem>>, vector<288x64xbf16>
    %cst_69 = arith.constant dense<0.000000e+00> : vector<448x64xf32>
    %43 = tpu.matmul %41, %42, %cst_69 {dimension_numbers = #tpu.dot_dimension_numbers<[1], [0], [0], [1], [0, 0, 1, 1], [], []>} : vector<448x288xbf16>, vector<288x64xbf16>, vector<448x64xf32> -> vector<448x64xf32>
    %44 = vector.shape_cast %43 : vector<448x64xf32> to vector<2x14x16x64xf32>
    %c0_70 = arith.constant 0 : index
    %c0_71 = arith.constant 0 : index
    %c0_72 = arith.constant 0 : index
    %c0_73 = arith.constant 0 : index
    %45 = vector.load %arg9[%c0_70, %c0_71, %c0_72, %c0_73] : memref<2x14x16x64xf32, #tpu.memory_space<vmem>>, vector<2x14x16x64xf32>
    tpu.vector_store %arg9[%c0_70, %c0_71, %c0_72, %c0_73], %44 {strides = array<i32>} : memref<2x14x16x64xf32, #tpu.memory_space<vmem>>, vector<2x14x16x64xf32>,
    %c0_74 = arith.constant 0 : index
    %c0_75 = arith.constant 0 : index
    %c0_76 = arith.constant 0 : index
    %c0_77 = arith.constant 0 : index
    %46 = tpu.strided_load %arg9[%c0_74, %c0_75, %c0_76, %c0_77] {strides = array<i32: 1, 2, 2, 1>} : memref<2x14x16x64xf32, #tpu.memory_space<vmem>>, vector<2x7x7x64xf32>
    %c0_78 = arith.constant 0 : index
    %c0_79 = arith.constant 0 : index
    %c1_80 = arith.constant 1 : index
    %c0_81 = arith.constant 0 : index
    %47 = tpu.strided_load %arg9[%c0_78, %c0_79, %c1_80, %c0_81] {strides = array<i32: 1, 2, 2, 1>} : memref<2x14x16x64xf32, #tpu.memory_space<vmem>>, vector<2x7x7x64xf32>
    %48 = arith.maximumf %46, %47 : vector<2x7x7x64xf32>
    %c0_82 = arith.constant 0 : index
    %c1_83 = arith.constant 1 : index
    %c0_84 = arith.constant 0 : index
    %c0_85 = arith.constant 0 : index
    %49 = tpu.strided_load %arg9[%c0_82, %c1_83, %c0_84, %c0_85] {strides = array<i32: 1, 2, 2, 1>} : memref<2x14x16x64xf32, #tpu.memory_space<vmem>>, vector<2x7x7x64xf32>
    %50 = arith.maximumf %48, %49 : vector<2x7x7x64xf32>
    %c0_86 = arith.constant 0 : index
    %c1_87 = arith.constant 1 : index
    %c1_88 = arith.constant 1 : index
    %c0_89 = arith.constant 0 : index
    %51 = tpu.strided_load %arg9[%c0_86, %c1_87, %c1_88, %c0_89] {strides = array<i32: 1, 2, 2, 1>} : memref<2x14x16x64xf32, #tpu.memory_space<vmem>>, vector<2x7x7x64xf32>
    %52 = arith.maximumf %50, %51 : vector<2x7x7x64xf32>
    %c0_90 = arith.constant 0 : index
    %c0_91 = arith.constant 0 : index
    %53 = vector.load %arg5[%c0_90, %c0_91] : memref<1x64xf32, #tpu.memory_space<vmem>>, vector<1x64xf32>
    %54 = vector.shape_cast %53 : vector<1x64xf32> to vector<1x1x1x64xf32>
    %55 = vector.broadcast %54 : vector<1x1x1x64xf32> to vector<2x7x7x64xf32>
    %56 = arith.addf %52, %55 : vector<2x7x7x64xf32>
    %cst_92 = arith.constant 0.000000e+00 : f32
    %57 = vector.broadcast %cst_92 : f32 to vector<2x7x7x64xf32>
    %58 = arith.maximumf %56, %57 : vector<2x7x7x64xf32>
    %59 = arith.truncf %58 : vector<2x7x7x64xf32> to vector<2x7x7x64xbf16>
    %c0_93 = arith.constant 0 : index
    %c0_94 = arith.constant 0 : index
    %c0_95 = arith.constant 0 : index
    %c0_96 = arith.constant 0 : index
    %60 = vector.load %arg6[%c0_93, %c0_94, %c0_95, %c0_96] : memref<2x7x7x64xbf16, #tpu.memory_space<vmem>>, vector<2x7x7x64xbf16>
    tpu.vector_store %arg6[%c0_93, %c0_94, %c0_95, %c0_96], %59 {strides = array<i32>} : memref<2x7x7x64xbf16, #tpu.memory_space<vmem>>, vector<2x7x7x64xbf16>,
    return
  }
  func.func @transform_0(%arg0: i32) -> (i32, i32, i32) {
    %c0_i32 = arith.constant 0 : i32
    %c0_i32_0 = arith.constant 0 : i32
    %c0_i32_1 = arith.constant 0 : i32
    return %arg0, %c0_i32, %c0_i32_0 : i32, i32, i32
  }
  func.func @transform_1(%arg0: i32) -> (i32, i32) {
    %c0_i32 = arith.constant 0 : i32
    %c0_i32_0 = arith.constant 0 : i32
    %c0_i32_1 = arith.constant 0 : i32
    return %c0_i32, %c0_i32_0 : i32, i32
  }
  func.func @transform_2(%arg0: i32) -> (i32, i32) {
    %c0_i32 = arith.constant 0 : i32
    %c0_i32_0 = arith.constant 0 : i32
    %c0_i32_1 = arith.constant 0 : i32
    return %c0_i32, %c0_i32_0 : i32, i32
  }
  func.func @transform_3(%arg0: i32) -> (i32, i32) {
    %c0_i32 = arith.constant 0 : i32
    %c0_i32_0 = arith.constant 0 : i32
    %c0_i32_1 = arith.constant 0 : i32
    return %c0_i32, %c0_i32_0 : i32, i32
  }
  func.func @transform_4(%arg0: i32) -> (i32, i32) {
    %c0_i32 = arith.constant 0 : i32
    %c0_i32_0 = arith.constant 0 : i32
    %c0_i32_1 = arith.constant 0 : i32
    return %c0_i32, %c0_i32_0 : i32, i32
  }
  func.func @transform_5(%arg0: i32) -> (i32, i32, i32, i32) {
    %c0_i32 = arith.constant 0 : i32
    %c0_i32_0 = arith.constant 0 : i32
    %c0_i32_1 = arith.constant 0 : i32
    %c0_i32_2 = arith.constant 0 : i32
    return %arg0, %c0_i32, %c0_i32_0, %c0_i32_1 : i32, i32, i32, i32
  }
}

module attributes {stable_mosaic.version = 11 : i64} {
  func.func @linear_kernel(%arg0: i32, %arg1: memref<2x3136xbf16, #tpu.memory_space<vmem>>, %arg2: memref<3136x128xbf16, #tpu.memory_space<vmem>>, %arg3: memref<1x128xf32, #tpu.memory_space<vmem>>, %arg4: memref<2x128xf32, #tpu.memory_space<vmem>>) attributes {dimension_semantics = [#tpu.dimension_semantics<parallel>], iteration_bounds = array<i64: 1>, scalar_prefetch = 0 : i64, scratch_operands = 0 : i64, tpu.core_type = #tpu.core_type<tc>, window_params = [{transform_indices = @transform_0, window_bounds = array<i64: 2, 3136>}, {pipeline_mode = #tpu.pipeline_mode<synchronous>, transform_indices = @transform_1, window_bounds = array<i64: 3136, 128>}, {pipeline_mode = #tpu.pipeline_mode<synchronous>, transform_indices = @transform_2, window_bounds = array<i64: 1, 128>}, {transform_indices = @transform_3, window_bounds = array<i64: 2, 128>}]} {
    %c0 = arith.constant 0 : index
    %c0_0 = arith.constant 0 : index
    %0 = vector.load %arg1[%c0, %c0_0] : memref<2x3136xbf16, #tpu.memory_space<vmem>>, vector<2x3136xbf16>
    %c0_1 = arith.constant 0 : index
    %c0_2 = arith.constant 0 : index
    %1 = vector.load %arg2[%c0_1, %c0_2] : memref<3136x128xbf16, #tpu.memory_space<vmem>>, vector<3136x128xbf16>
    %cst = arith.constant dense<0.000000e+00> : vector<2x128xf32>
    %2 = tpu.matmul %0, %1, %cst {dimension_numbers = #tpu.dot_dimension_numbers<[1], [0], [0], [1], [0, 0, 1, 1], [], []>} : vector<2x3136xbf16>, vector<3136x128xbf16>, vector<2x128xf32> -> vector<2x128xf32>
    %c0_3 = arith.constant 0 : index
    %c0_4 = arith.constant 0 : index
    %3 = vector.load %arg3[%c0_3, %c0_4] : memref<1x128xf32, #tpu.memory_space<vmem>>, vector<1x128xf32>
    %4 = vector.broadcast %3 : vector<1x128xf32> to vector<2x128xf32>
    %5 = arith.addf %2, %4 : vector<2x128xf32>
    %c0_5 = arith.constant 0 : index
    %c0_6 = arith.constant 0 : index
    %6 = vector.load %arg4[%c0_5, %c0_6] : memref<2x128xf32, #tpu.memory_space<vmem>>, vector<2x128xf32>
    tpu.vector_store %arg4[%c0_5, %c0_6], %5 {strides = array<i32>} : memref<2x128xf32, #tpu.memory_space<vmem>>, vector<2x128xf32>,
    return
  }
  func.func @transform_0(%arg0: i32) -> (i32, i32) {
    %c0_i32 = arith.constant 0 : i32
    %c0_i32_0 = arith.constant 0 : i32
    return %arg0, %c0_i32 : i32, i32
  }
  func.func @transform_1(%arg0: i32) -> (i32, i32) {
    %c0_i32 = arith.constant 0 : i32
    %c0_i32_0 = arith.constant 0 : i32
    %c0_i32_1 = arith.constant 0 : i32
    return %c0_i32, %c0_i32_0 : i32, i32
  }
  func.func @transform_2(%arg0: i32) -> (i32, i32) {
    %c0_i32 = arith.constant 0 : i32
    %c0_i32_0 = arith.constant 0 : i32
    %c0_i32_1 = arith.constant 0 : i32
    return %c0_i32, %c0_i32_0 : i32, i32
  }
  func.func @transform_3(%arg0: i32) -> (i32, i32) {
    %c0_i32 = arith.constant 0 : i32
    %c0_i32_0 = arith.constant 0 : i32
    return %arg0, %c0_i32 : i32, i32
  }
}

</mosaic_0001>

<llo_original>
// kernel: simple_encoder_forward.3
$region0: #{simple_encoder_forward.3}
  #allocation0 [shape = 'u32[]', space=smem, size = 0x4, offset = 0x4, fixed_abs, tag = 'smem constant byte address 0x4 - core index']
  #allocation1 [shape = 'u32[144,128]{1,0:T(1,128)}', space=vmem, size = 0x12000, scoped, tag = 'internal scratch']
  %s0 = inlined_call_operand.vmem [shape: bf16[2,3136], index: 0, kind: input, shape index: {}]
  %s1 = inlined_call_operand.vmem [shape: bf16[3136,128], index: 1, kind: input, shape index: {}]
  %s2 = inlined_call_operand.vmem [shape: f32[1,128], index: 2, kind: input, shape index: {}]
  %s3 = inlined_call_operand.hbm [shape: f32[2,128], index: 3, kind: output, shape index: {}]
  %s4 = sld [smem:[#allocation0]]
  $region22: #{simple_encoder_forward.3} parent=0
    _
  %s6 = ssub.s32 1, %s4
  %s7 = scalar_select 0, %s6, %s4
  $region1: #{simple_encoder_forward.3} parent=0
    #allocation2 [shape = 'u8[1024]{0}', space=vmem, size = 0x400, scoped, tag = 'output window, operand 0, single buffered']
    #allocation3 [shape = 's32[1]{0}', space=sflag, size = 0x4, scoped, tag = 'scoped memory for simple_encoder_forward.3']
    %8 = vsyncpa [#allocation3], 0
    // Predicated region
    $region2: #{simple_encoder_forward.3} parent=1 // pred_check
      _
    $region3: #{simple_encoder_forward.3} parent=1 // pred_check_branch
      %10 = sbr.rel (0) target = $region5
    $region4: #{simple_encoder_forward.3} parent=1 // pred_region
      _
    $region5: #{simple_encoder_forward.3} parent=1 // pred_fallthru
      _
    // Predicated region
    $region6: #{simple_encoder_forward.3} parent=1 // pred_check
      _
    $region7: #{simple_encoder_forward.3} parent=1 // pred_check_branch
      %12 = sbr.rel (0) target = $region9
    $region8: #{simple_encoder_forward.3} parent=1 // pred_region
      _
    $region9: #{simple_encoder_forward.3} parent=1 // pred_fallthru
      _
    // Predicated region
    $region10: #{simple_encoder_forward.3} parent=1 // pred_check
      _
    $region11: #{simple_encoder_forward.3} parent=1 // pred_check_branch
      %14 = sbr.rel (0) target = $region13
    $region12: #{simple_encoder_forward.3} parent=1 // pred_region
      _
    $region13: #{simple_encoder_forward.3} parent=1 // pred_fallthru
      _
    %v16 = vld [vmem:[%s0] sm:$0xff]
    %v17 = vld [vmem:[%s0 + $0x8] sm:$0xff]
    %v18 = vld [vmem:[%s0 + $0x10] sm:$0xff]
    %v19 = vld [vmem:[%s0 + $0x18] sm:$0x1]
    %v20 = vld [vmem:[%s1] sm:$0xf]
    %v21 = vld [vmem:[%s1 + $0x4] sm:$0xf]
    %v22 = vld [vmem:[%s1 + $0x8] sm:$0xf]
    %v23 = vld [vmem:[%s1 + $0xc] sm:$0xf]
    %v24 = vld [vmem:[%s1 + $0x10] sm:$0xf]
    %v25 = vld [vmem:[%s1 + $0x14] sm:$0xf]
    %v26 = vld [vmem:[%s1 + $0x18] sm:$0xf]
    %v27 = vld [vmem:[%s1 + $0x1c] sm:$0xf]
    %v28 = vld [vmem:[%s1 + $0x20] sm:$0xf]
    %v29 = vld [vmem:[%s1 + $0x24] sm:$0xf]
    %v30 = vld [vmem:[%s1 + $0x28] sm:$0xf]
    %v31 = vld [vmem:[%s1 + $0x2c] sm:$0xf]
    %v32 = vld [vmem:[%s1 + $0x30] sm:$0xf]
    %v33 = vld [vmem:[%s1 + $0x34] sm:$0xf]
    %v34 = vld [vmem:[%s1 + $0x38] sm:$0xf]
    %v35 = vld [vmem:[%s1 + $0x3c] sm:$0xf]
    %v36 = vld [vmem:[%s1 + $0x40] sm:$0xf]
    %v37 = vld [vmem:[%s1 + $0x44] sm:$0xf]
    %v38 = vld [vmem:[%s1 + $0x48] sm:$0xf]
    %v39 = vld [vmem:[%s1 + $0x4c] sm:$0xf]
    %v40 = vld [vmem:[%s1 + $0x50] sm:$0xf]
    %v41 = vld [vmem:[%s1 + $0x54] sm:$0xf]
    %v42 = vld [vmem:[%s1 + $0x58] sm:$0xf]
    %v43 = vld [vmem:[%s1 + $0x5c] sm:$0xf]
    %v44 = vld [vmem:[%s1 + $0x60] sm:$0xf]
    %v45 = vld [vmem:[%s1 + $0x64] sm:$0xf]
    %v46 = vld [vmem:[%s1 + $0x68] sm:$0xf]
    %v47 = vld [vmem:[%s1 + $0x6c] sm:$0xf]
    %v48 = vld [vmem:[%s1 + $0x70] sm:$0xf]
    %v49 = vld [vmem:[%s1 + $0x74] sm:$0xf]
    %v50 = vld [vmem:[%s1 + $0x78] sm:$0xf]
    %v51 = vld [vmem:[%s1 + $0x7c] sm:$0xf]
    %v52 = vld [vmem:[%s1 + $0x80] sm:$0xf]
    %v53 = vld [vmem:[%s1 + $0x84] sm:$0xf]
    %v54 = vld [vmem:[%s1 + $0x88] sm:$0xf]
    %v55 = vld [vmem:[%s1 + $0x8c] sm:$0xf]
    %v56 = vld [vmem:[%s1 + $0x90] sm:$0xf]
    %v57 = vld [vmem:[%s1 + $0x94] sm:$0xf]
    %v58 = vld [vmem:[%s1 + $0x98] sm:$0xf]
    %v59 = vld [vmem:[%s1 + $0x9c] sm:$0xf]
    %v60 = vld [vmem:[%s1 + $0xa0] sm:$0xf]
    %v61 = vld [vmem:[%s1 + $0xa4] sm:$0xf]
    %v62 = vld [vmem:[%s1 + $0xa8] sm:$0xf]
    %v63 = vld [vmem:[%s1 + $0xac] sm:$0xf]
    %v64 = vld [vmem:[%s1 + $0xb0] sm:$0xf]
    %v65 = vld [vmem:[%s1 + $0xb4] sm:$0xf]
    %v66 = vld [vmem:[%s1 + $0xb8] sm:$0xf]
    %v67 = vld [vmem:[%s1 + $0xbc] sm:$0xf]
    %v68 = vld [vmem:[%s1 + $0xc0] sm:$0xf]
    %v69 = vld [vmem:[%s1 + $0xc4] sm:$0xf]
    %v70 = vld [vmem:[%s1 + $0xc8] sm:$0xf]
    %v71 = vld [vmem:[%s1 + $0xcc] sm:$0xf]
    %v72 = vld [vmem:[%s1 + $0xd0] sm:$0xf]
    %v73 = vld [vmem:[%s1 + $0xd4] sm:$0xf]
    %v74 = vld [vmem:[%s1 + $0xd8] sm:$0xf]
    %v75 = vld [vmem:[%s1 + $0xdc] sm:$0xf]
    %v76 = vld [vmem:[%s1 + $0xe0] sm:$0xf]
    %v77 = vld [vmem:[%s1 + $0xe4] sm:$0xf]
    %v78 = vld [vmem:[%s1 + $0xe8] sm:$0xf]
    %v79 = vld [vmem:[%s1 + $0xec] sm:$0xf]
    %v80 = vld [vmem:[%s1 + $0xf0] sm:$0xf]
    %v81 = vld [vmem:[%s1 + $0xf4] sm:$0xf]
    %v82 = vld [vmem:[%s1 + $0xf8] sm:$0xf]
    %v83 = vld [vmem:[%s1 + $0xfc] sm:$0xf]
    %v84 = vld [vmem:[%s1 + $0x100] sm:$0xf]
    %v85 = vld [vmem:[%s1 + $0x104] sm:$0xf]
    %v86 = vld [vmem:[%s1 + $0x108] sm:$0xf]
    %v87 = vld [vmem:[%s1 + $0x10c] sm:$0xf]
    %v88 = vld [vmem:[%s1 + $0x110] sm:$0xf]
    %v89 = vld [vmem:[%s1 + $0x114] sm:$0xf]
    %v90 = vld [vmem:[%s1 + $0x118] sm:$0xf]
    %v91 = vld [vmem:[%s1 + $0x11c] sm:$0xf]
    %v92 = vld [vmem:[%s1 + $0x120] sm:$0xf]
    %v93 = vld [vmem:[%s1 + $0x124] sm:$0xf]
    %v94 = vld [vmem:[%s1 + $0x128] sm:$0xf]
    %v95 = vld [vmem:[%s1 + $0x12c] sm:$0xf]
    %v96 = vld [vmem:[%s1 + $0x130] sm:$0xf]
    %v97 = vld [vmem:[%s1 + $0x134] sm:$0xf]
    %v98 = vld [vmem:[%s1 + $0x138] sm:$0xf]
    %v99 = vld [vmem:[%s1 + $0x13c] sm:$0xf]
    %v100 = vld [vmem:[%s1 + $0x140] sm:$0xf]
    %v101 = vld [vmem:[%s1 + $0x144] sm:$0xf]
    %v102 = vld [vmem:[%s1 + $0x148] sm:$0xf]
    %v103 = vld [vmem:[%s1 + $0x14c] sm:$0xf]
    %v104 = vld [vmem:[%s1 + $0x150] sm:$0xf]
    %v105 = vld [vmem:[%s1 + $0x154] sm:$0xf]
    %v106 = vld [vmem:[%s1 + $0x158] sm:$0xf]
    %v107 = vld [vmem:[%s1 + $0x15c] sm:$0xf]
    %v108 = vld [vmem:[%s1 + $0x160] sm:$0xf]
    %v109 = vld [vmem:[%s1 + $0x164] sm:$0xf]
    %v110 = vld [vmem:[%s1 + $0x168] sm:$0xf]
    %v111 = vld [vmem:[%s1 + $0x16c] sm:$0xf]
    %v112 = vld [vmem:[%s1 + $0x170] sm:$0xf]
    %v113 = vld [vmem:[%s1 + $0x174] sm:$0xf]
    %v114 = vld [vmem:[%s1 + $0x178] sm:$0xf]
    %v115 = vld [vmem:[%s1 + $0x17c] sm:$0xf]
    %v116 = vld [vmem:[%s1 + $0x180] sm:$0xf]
    %v117 = vld [vmem:[%s1 + $0x184] sm:$0xf]
    %v118 = vld [vmem:[%s1 + $0x188] sm:$0xf]
    %v119 = vld [vmem:[%s1 + $0x18c] sm:$0xf]
    %v120 = vld [vmem:[%s1 + $0x190] sm:$0xf]
    %v121 = vld [vmem:[%s1 + $0x194] sm:$0xf]
    %v122 = vld [vmem:[%s1 + $0x198] sm:$0xf]
    %v123 = vld [vmem:[%s1 + $0x19c] sm:$0xf]
    %v124 = vld [vmem:[%s1 + $0x1a0] sm:$0xf]
    %v125 = vld [vmem:[%s1 + $0x1a4] sm:$0xf]
    %v126 = vld [vmem:[%s1 + $0x1a8] sm:$0xf]
    %v127 = vld [vmem:[%s1 + $0x1ac] sm:$0xf]
    %v128 = vld [vmem:[%s1 + $0x1b0] sm:$0xf]
    %v129 = vld [vmem:[%s1 + $0x1b4] sm:$0xf]
    %v130 = vld [vmem:[%s1 + $0x1b8] sm:$0xf]
    %v131 = vld [vmem:[%s1 + $0x1bc] sm:$0xf]
    %v132 = vld [vmem:[%s1 + $0x1c0] sm:$0xf]
    %v133 = vld [vmem:[%s1 + $0x1c4] sm:$0xf]
    %v134 = vld [vmem:[%s1 + $0x1c8] sm:$0xf]
    %v135 = vld [vmem:[%s1 + $0x1cc] sm:$0xf]
    %v136 = vld [vmem:[%s1 + $0x1d0] sm:$0xf]
    %v137 = vld [vmem:[%s1 + $0x1d4] sm:$0xf]
    %v138 = vld [vmem:[%s1 + $0x1d8] sm:$0xf]
    %v139 = vld [vmem:[%s1 + $0x1dc] sm:$0xf]
    %v140 = vld [vmem:[%s1 + $0x1e0] sm:$0xf]
    %v141 = vld [vmem:[%s1 + $0x1e4] sm:$0xf]
    %v142 = vld [vmem:[%s1 + $0x1e8] sm:$0xf]
    %v143 = vld [vmem:[%s1 + $0x1ec] sm:$0xf]
    %v144 = vld [vmem:[%s1 + $0x1f0] sm:$0xf]
    %v145 = vld [vmem:[%s1 + $0x1f4] sm:$0xf]
    %v146 = vld [vmem:[%s1 + $0x1f8] sm:$0xf]
    %v147 = vld [vmem:[%s1 + $0x1fc] sm:$0xf]
    %v148 = vld [vmem:[%s1 + $0x200] sm:$0xf]
    %v149 = vld [vmem:[%s1 + $0x204] sm:$0xf]
    %v150 = vld [vmem:[%s1 + $0x208] sm:$0xf]
    %v151 = vld [vmem:[%s1 + $0x20c] sm:$0xf]
    %v152 = vld [vmem:[%s1 + $0x210] sm:$0xf]
    %v153 = vld [vmem:[%s1 + $0x214] sm:$0xf]
    %v154 = vld [vmem:[%s1 + $0x218] sm:$0xf]
    %v155 = vld [vmem:[%s1 + $0x21c] sm:$0xf]
    %v156 = vld [vmem:[%s1 + $0x220] sm:$0xf]
    %v157 = vld [vmem:[%s1 + $0x224] sm:$0xf]
    %v158 = vld [vmem:[%s1 + $0x228] sm:$0xf]
    %v159 = vld [vmem:[%s1 + $0x22c] sm:$0xf]
    %v160 = vld [vmem:[%s1 + $0x230] sm:$0xf]
    %v161 = vld [vmem:[%s1 + $0x234] sm:$0xf]
    %v162 = vld [vmem:[%s1 + $0x238] sm:$0xf]
    %v163 = vld [vmem:[%s1 + $0x23c] sm:$0xf]
    %v164 = vld [vmem:[%s1 + $0x240] sm:$0xf]
    %v165 = vld [vmem:[%s1 + $0x244] sm:$0xf]
    %v166 = vld [vmem:[%s1 + $0x248] sm:$0xf]
    %v167 = vld [vmem:[%s1 + $0x24c] sm:$0xf]
    %v168 = vld [vmem:[%s1 + $0x250] sm:$0xf]
    %v169 = vld [vmem:[%s1 + $0x254] sm:$0xf]
    %v170 = vld [vmem:[%s1 + $0x258] sm:$0xf]
    %v171 = vld [vmem:[%s1 + $0x25c] sm:$0xf]
    %v172 = vld [vmem:[%s1 + $0x260] sm:$0xf]
    %v173 = vld [vmem:[%s1 + $0x264] sm:$0xf]
    %v174 = vld [vmem:[%s1 + $0x268] sm:$0xf]
    %v175 = vld [vmem:[%s1 + $0x26c] sm:$0xf]
    %v176 = vld [vmem:[%s1 + $0x270] sm:$0xf]
    %v177 = vld [vmem:[%s1 + $0x274] sm:$0xf]
    %v178 = vld [vmem:[%s1 + $0x278] sm:$0xf]
    %v179 = vld [vmem:[%s1 + $0x27c] sm:$0xf]
    %v180 = vld [vmem:[%s1 + $0x280] sm:$0xf]
    %v181 = vld [vmem:[%s1 + $0x284] sm:$0xf]
    %v182 = vld [vmem:[%s1 + $0x288] sm:$0xf]
    %v183 = vld [vmem:[%s1 + $0x28c] sm:$0xf]
    %v184 = vld [vmem:[%s1 + $0x290] sm:$0xf]
    %v185 = vld [vmem:[%s1 + $0x294] sm:$0xf]
    %v186 = vld [vmem:[%s1 + $0x298] sm:$0xf]
    %v187 = vld [vmem:[%s1 + $0x29c] sm:$0xf]
    %v188 = vld [vmem:[%s1 + $0x2a0] sm:$0xf]
    %v189 = vld [vmem:[%s1 + $0x2a4] sm:$0xf]
    %v190 = vld [vmem:[%s1 + $0x2a8] sm:$0xf]
    %v191 = vld [vmem:[%s1 + $0x2ac] sm:$0xf]
    %v192 = vld [vmem:[%s1 + $0x2b0] sm:$0xf]
    %v193 = vld [vmem:[%s1 + $0x2b4] sm:$0xf]
    %v194 = vld [vmem:[%s1 + $0x2b8] sm:$0xf]
    %v195 = vld [vmem:[%s1 + $0x2bc] sm:$0xf]
    %v196 = vld [vmem:[%s1 + $0x2c0] sm:$0xf]
    %v197 = vld [vmem:[%s1 + $0x2c4] sm:$0xf]
    %v198 = vld [vmem:[%s1 + $0x2c8] sm:$0xf]
    %v199 = vld [vmem:[%s1 + $0x2cc] sm:$0xf]
    %v200 = vld [vmem:[%s1 + $0x2d0] sm:$0xf]
    %v201 = vld [vmem:[%s1 + $0x2d4] sm:$0xf]
    %v202 = vld [vmem:[%s1 + $0x2d8] sm:$0xf]
    %v203 = vld [vmem:[%s1 + $0x2dc] sm:$0xf]
    %v204 = vld [vmem:[%s1 + $0x2e0] sm:$0xf]
    %v205 = vld [vmem:[%s1 + $0x2e4] sm:$0xf]
    %v206 = vld [vmem:[%s1 + $0x2e8] sm:$0xf]
    %v207 = vld [vmem:[%s1 + $0x2ec] sm:$0xf]
    %v208 = vld [vmem:[%s1 + $0x2f0] sm:$0xf]
    %v209 = vld [vmem:[%s1 + $0x2f4] sm:$0xf]
    %v210 = vld [vmem:[%s1 + $0x2f8] sm:$0xf]
    %v211 = vld [vmem:[%s1 + $0x2fc] sm:$0xf]
    %v212 = vld [vmem:[%s1 + $0x300] sm:$0xf]
    %v213 = vld [vmem:[%s1 + $0x304] sm:$0xf]
    %v214 = vld [vmem:[%s1 + $0x308] sm:$0xf]
    %v215 = vld [vmem:[%s1 + $0x30c] sm:$0xf]
    %v216 = vld [vmem:[%s1 + $0x310] sm:$0xf]
    %v217 = vld [vmem:[%s1 + $0x314] sm:$0xf]
    %v218 = vld [vmem:[%s1 + $0x318] sm:$0xf]
    %v219 = vld [vmem:[%s1 + $0x31c] sm:$0xf]
    %v220 = vld [vmem:[%s1 + $0x320] sm:$0xf]
    %v221 = vld [vmem:[%s1 + $0x324] sm:$0xf]
    %v222 = vld [vmem:[%s1 + $0x328] sm:$0xf]
    %v223 = vld [vmem:[%s1 + $0x32c] sm:$0xf]
    %v224 = vld [vmem:[%s1 + $0x330] sm:$0xf]
    %v225 = vld [vmem:[%s1 + $0x334] sm:$0xf]
    %v226 = vld [vmem:[%s1 + $0x338] sm:$0xf]
    %v227 = vld [vmem:[%s1 + $0x33c] sm:$0xf]
    %v228 = vld [vmem:[%s1 + $0x340] sm:$0xf]
    %v229 = vld [vmem:[%s1 + $0x344] sm:$0xf]
    %v230 = vld [vmem:[%s1 + $0x348] sm:$0xf]
    %v231 = vld [vmem:[%s1 + $0x34c] sm:$0xf]
    %v232 = vld [vmem:[%s1 + $0x350] sm:$0xf]
    %v233 = vld [vmem:[%s1 + $0x354] sm:$0xf]
    %v234 = vld [vmem:[%s1 + $0x358] sm:$0xf]
    %v235 = vld [vmem:[%s1 + $0x35c] sm:$0xf]
    %v236 = vld [vmem:[%s1 + $0x360] sm:$0xf]
    %v237 = vld [vmem:[%s1 + $0x364] sm:$0xf]
    %v238 = vld [vmem:[%s1 + $0x368] sm:$0xf]
    %v239 = vld [vmem:[%s1 + $0x36c] sm:$0xf]
    %v240 = vld [vmem:[%s1 + $0x370] sm:$0xf]
    %v241 = vld [vmem:[%s1 + $0x374] sm:$0xf]
    %v242 = vld [vmem:[%s1 + $0x378] sm:$0xf]
    %v243 = vld [vmem:[%s1 + $0x37c] sm:$0xf]
    %v244 = vld [vmem:[%s1 + $0x380] sm:$0xf]
    %v245 = vld [vmem:[%s1 + $0x384] sm:$0xf]
    %v246 = vld [vmem:[%s1 + $0x388] sm:$0xf]
    %v247 = vld [vmem:[%s1 + $0x38c] sm:$0xf]
    %v248 = vld [vmem:[%s1 + $0x390] sm:$0xf]
    %v249 = vld [vmem:[%s1 + $0x394] sm:$0xf]
    %v250 = vld [vmem:[%s1 + $0x398] sm:$0xf]
    %v251 = vld [vmem:[%s1 + $0x39c] sm:$0xf]
    %v252 = vld [vmem:[%s1 + $0x3a0] sm:$0xf]
    %v253 = vld [vmem:[%s1 + $0x3a4] sm:$0xf]
    %v254 = vld [vmem:[%s1 + $0x3a8] sm:$0xf]
    %v255 = vld [vmem:[%s1 + $0x3ac] sm:$0xf]
    %v256 = vld [vmem:[%s1 + $0x3b0] sm:$0xf]
    %v257 = vld [vmem:[%s1 + $0x3b4] sm:$0xf]
    %v258 = vld [vmem:[%s1 + $0x3b8] sm:$0xf]
    %v259 = vld [vmem:[%s1 + $0x3bc] sm:$0xf]
    %v260 = vld [vmem:[%s1 + $0x3c0] sm:$0xf]
    %v261 = vld [vmem:[%s1 + $0x3c4] sm:$0xf]
    %v262 = vld [vmem:[%s1 + $0x3c8] sm:$0xf]
    %v263 = vld [vmem:[%s1 + $0x3cc] sm:$0xf]
    %v264 = vld [vmem:[%s1 + $0x3d0] sm:$0xf]
    %v265 = vld [vmem:[%s1 + $0x3d4] sm:$0xf]
    %v266 = vld [vmem:[%s1 + $0x3d8] sm:$0xf]
    %v267 = vld [vmem:[%s1 + $0x3dc] sm:$0xf]
    %v268 = vld [vmem:[%s1 + $0x3e0] sm:$0xf]
    %v269 = vld [vmem:[%s1 + $0x3e4] sm:$0xf]
    %v270 = vld [vmem:[%s1 + $0x3e8] sm:$0xf]
    %v271 = vld [vmem:[%s1 + $0x3ec] sm:$0xf]
    %v272 = vld [vmem:[%s1 + $0x3f0] sm:$0xf]
    %v273 = vld [vmem:[%s1 + $0x3f4] sm:$0xf]
    %v274 = vld [vmem:[%s1 + $0x3f8] sm:$0xf]
    %v275 = vld [vmem:[%s1 + $0x3fc] sm:$0xf]
    %v276 = vld [vmem:[%s1 + $0x400] sm:$0xf]
    %v277 = vld [vmem:[%s1 + $0x404] sm:$0xf]
    %v278 = vld [vmem:[%s1 + $0x408] sm:$0xf]
    %v279 = vld [vmem:[%s1 + $0x40c] sm:$0xf]
    %v280 = vld [vmem:[%s1 + $0x410] sm:$0xf]
    %v281 = vld [vmem:[%s1 + $0x414] sm:$0xf]
    %v282 = vld [vmem:[%s1 + $0x418] sm:$0xf]
    %v283 = vld [vmem:[%s1 + $0x41c] sm:$0xf]
    %v284 = vld [vmem:[%s1 + $0x420] sm:$0xf]
    %v285 = vld [vmem:[%s1 + $0x424] sm:$0xf]
    %v286 = vld [vmem:[%s1 + $0x428] sm:$0xf]
    %v287 = vld [vmem:[%s1 + $0x42c] sm:$0xf]
    %v288 = vld [vmem:[%s1 + $0x430] sm:$0xf]
    %v289 = vld [vmem:[%s1 + $0x434] sm:$0xf]
    %v290 = vld [vmem:[%s1 + $0x438] sm:$0xf]
    %v291 = vld [vmem:[%s1 + $0x43c] sm:$0xf]
    %v292 = vld [vmem:[%s1 + $0x440] sm:$0xf]
    %v293 = vld [vmem:[%s1 + $0x444] sm:$0xf]
    %v294 = vld [vmem:[%s1 + $0x448] sm:$0xf]
    %v295 = vld [vmem:[%s1 + $0x44c] sm:$0xf]
    %v296 = vld [vmem:[%s1 + $0x450] sm:$0xf]
    %v297 = vld [vmem:[%s1 + $0x454] sm:$0xf]
    %v298 = vld [vmem:[%s1 + $0x458] sm:$0xf]
    %v299 = vld [vmem:[%s1 + $0x45c] sm:$0xf]
    %v300 = vld [vmem:[%s1 + $0x460] sm:$0xf]
    %v301 = vld [vmem:[%s1 + $0x464] sm:$0xf]
    %v302 = vld [vmem:[%s1 + $0x468] sm:$0xf]
    %v303 = vld [vmem:[%s1 + $0x46c] sm:$0xf]
    %v304 = vld [vmem:[%s1 + $0x470] sm:$0xf]
    %v305 = vld [vmem:[%s1 + $0x474] sm:$0xf]
    %v306 = vld [vmem:[%s1 + $0x478] sm:$0xf]
    %v307 = vld [vmem:[%s1 + $0x47c] sm:$0xf]
    %v308 = vld [vmem:[%s1 + $0x480] sm:$0xf]
    %v309 = vld [vmem:[%s1 + $0x484] sm:$0xf]
    %v310 = vld [vmem:[%s1 + $0x488] sm:$0xf]
    %v311 = vld [vmem:[%s1 + $0x48c] sm:$0xf]
    %v312 = vld [vmem:[%s1 + $0x490] sm:$0xf]
    %v313 = vld [vmem:[%s1 + $0x494] sm:$0xf]
    %v314 = vld [vmem:[%s1 + $0x498] sm:$0xf]
    %v315 = vld [vmem:[%s1 + $0x49c] sm:$0xf]
    %v316 = vld [vmem:[%s1 + $0x4a0] sm:$0xf]
    %v317 = vld [vmem:[%s1 + $0x4a4] sm:$0xf]
    %v318 = vld [vmem:[%s1 + $0x4a8] sm:$0xf]
    %v319 = vld [vmem:[%s1 + $0x4ac] sm:$0xf]
    %v320 = vld [vmem:[%s1 + $0x4b0] sm:$0xf]
    %v321 = vld [vmem:[%s1 + $0x4b4] sm:$0xf]
    %v322 = vld [vmem:[%s1 + $0x4b8] sm:$0xf]
    %v323 = vld [vmem:[%s1 + $0x4bc] sm:$0xf]
    %v324 = vld [vmem:[%s1 + $0x4c0] sm:$0xf]
    %v325 = vld [vmem:[%s1 + $0x4c4] sm:$0xf]
    %v326 = vld [vmem:[%s1 + $0x4c8] sm:$0xf]
    %v327 = vld [vmem:[%s1 + $0x4cc] sm:$0xf]
    %v328 = vld [vmem:[%s1 + $0x4d0] sm:$0xf]
    %v329 = vld [vmem:[%s1 + $0x4d4] sm:$0xf]
    %v330 = vld [vmem:[%s1 + $0x4d8] sm:$0xf]
    %v331 = vld [vmem:[%s1 + $0x4dc] sm:$0xf]
    %v332 = vld [vmem:[%s1 + $0x4e0] sm:$0xf]
    %v333 = vld [vmem:[%s1 + $0x4e4] sm:$0xf]
    %v334 = vld [vmem:[%s1 + $0x4e8] sm:$0xf]
    %v335 = vld [vmem:[%s1 + $0x4ec] sm:$0xf]
    %v336 = vld [vmem:[%s1 + $0x4f0] sm:$0xf]
    %v337 = vld [vmem:[%s1 + $0x4f4] sm:$0xf]
    %v338 = vld [vmem:[%s1 + $0x4f8] sm:$0xf]
    %v339 = vld [vmem:[%s1 + $0x4fc] sm:$0xf]
    %v340 = vld [vmem:[%s1 + $0x500] sm:$0xf]
    %v341 = vld [vmem:[%s1 + $0x504] sm:$0xf]
    %v342 = vld [vmem:[%s1 + $0x508] sm:$0xf]
    %v343 = vld [vmem:[%s1 + $0x50c] sm:$0xf]
    %v344 = vld [vmem:[%s1 + $0x510] sm:$0xf]
    %v345 = vld [vmem:[%s1 + $0x514] sm:$0xf]
    %v346 = vld [vmem:[%s1 + $0x518] sm:$0xf]
    %v347 = vld [vmem:[%s1 + $0x51c] sm:$0xf]
    %v348 = vld [vmem:[%s1 + $0x520] sm:$0xf]
    %v349 = vld [vmem:[%s1 + $0x524] sm:$0xf]
    %v350 = vld [vmem:[%s1 + $0x528] sm:$0xf]
    %v351 = vld [vmem:[%s1 + $0x52c] sm:$0xf]
    %v352 = vld [vmem:[%s1 + $0x530] sm:$0xf]
    %v353 = vld [vmem:[%s1 + $0x534] sm:$0xf]
    %v354 = vld [vmem:[%s1 + $0x538] sm:$0xf]
    %v355 = vld [vmem:[%s1 + $0x53c] sm:$0xf]
    %v356 = vld [vmem:[%s1 + $0x540] sm:$0xf]
    %v357 = vld [vmem:[%s1 + $0x544] sm:$0xf]
    %v358 = vld [vmem:[%s1 + $0x548] sm:$0xf]
    %v359 = vld [vmem:[%s1 + $0x54c] sm:$0xf]
    %v360 = vld [vmem:[%s1 + $0x550] sm:$0xf]
    %v361 = vld [vmem:[%s1 + $0x554] sm:$0xf]
    %v362 = vld [vmem:[%s1 + $0x558] sm:$0xf]
    %v363 = vld [vmem:[%s1 + $0x55c] sm:$0xf]
    %v364 = vld [vmem:[%s1 + $0x560] sm:$0xf]
    %v365 = vld [vmem:[%s1 + $0x564] sm:$0xf]
    %v366 = vld [vmem:[%s1 + $0x568] sm:$0xf]
    %v367 = vld [vmem:[%s1 + $0x56c] sm:$0xf]
    %v368 = vld [vmem:[%s1 + $0x570] sm:$0xf]
    %v369 = vld [vmem:[%s1 + $0x574] sm:$0xf]
    %v370 = vld [vmem:[%s1 + $0x578] sm:$0xf]
    %v371 = vld [vmem:[%s1 + $0x57c] sm:$0xf]
    %v372 = vld [vmem:[%s1 + $0x580] sm:$0xf]
    %v373 = vld [vmem:[%s1 + $0x584] sm:$0xf]
    %v374 = vld [vmem:[%s1 + $0x588] sm:$0xf]
    %v375 = vld [vmem:[%s1 + $0x58c] sm:$0xf]
    %v376 = vld [vmem:[%s1 + $0x590] sm:$0xf]
    %v377 = vld [vmem:[%s1 + $0x594] sm:$0xf]
    %v378 = vld [vmem:[%s1 + $0x598] sm:$0xf]
    %v379 = vld [vmem:[%s1 + $0x59c] sm:$0xf]
    %v380 = vld [vmem:[%s1 + $0x5a0] sm:$0xf]
    %v381 = vld [vmem:[%s1 + $0x5a4] sm:$0xf]
    %v382 = vld [vmem:[%s1 + $0x5a8] sm:$0xf]
    %v383 = vld [vmem:[%s1 + $0x5ac] sm:$0xf]
    %v384 = vld [vmem:[%s1 + $0x5b0] sm:$0xf]
    %v385 = vld [vmem:[%s1 + $0x5b4] sm:$0xf]
    %v386 = vld [vmem:[%s1 + $0x5b8] sm:$0xf]
    %v387 = vld [vmem:[%s1 + $0x5bc] sm:$0xf]
    %v388 = vld [vmem:[%s1 + $0x5c0] sm:$0xf]
    %v389 = vld [vmem:[%s1 + $0x5c4] sm:$0xf]
    %v390 = vld [vmem:[%s1 + $0x5c8] sm:$0xf]
    %v391 = vld [vmem:[%s1 + $0x5cc] sm:$0xf]
    %v392 = vld [vmem:[%s1 + $0x5d0] sm:$0xf]
    %v393 = vld [vmem:[%s1 + $0x5d4] sm:$0xf]
    %v394 = vld [vmem:[%s1 + $0x5d8] sm:$0xf]
    %v395 = vld [vmem:[%s1 + $0x5dc] sm:$0xf]
    %v396 = vld [vmem:[%s1 + $0x5e0] sm:$0xf]
    %v397 = vld [vmem:[%s1 + $0x5e4] sm:$0xf]
    %v398 = vld [vmem:[%s1 + $0x5e8] sm:$0xf]
    %v399 = vld [vmem:[%s1 + $0x5ec] sm:$0xf]
    %v400 = vld [vmem:[%s1 + $0x5f0] sm:$0xf]
    %v401 = vld [vmem:[%s1 + $0x5f4] sm:$0xf]
    %v402 = vld [vmem:[%s1 + $0x5f8] sm:$0xf]
    %v403 = vld [vmem:[%s1 + $0x5fc] sm:$0xf]
    %v404 = vld [vmem:[%s1 + $0x600] sm:$0xf]
    %v405 = vld [vmem:[%s1 + $0x604] sm:$0xf]
    %v406 = vld [vmem:[%s1 + $0x608] sm:$0xf]
    %v407 = vld [vmem:[%s1 + $0x60c] sm:$0xf]
    %v408 = vld [vmem:[%s1 + $0x610] sm:$0xf]
    %v409 = vld [vmem:[%s1 + $0x614] sm:$0xf]
    %v410 = vld [vmem:[%s1 + $0x618] sm:$0xf]
    %v411 = vld [vmem:[%s1 + $0x61c] sm:$0xf]
    %v412 = vld [vmem:[%s2] sm:$0x1]
    %v414 = vlaneseq
    %v415 = vshrl.u32 %v414, 7
    %v416 = vsub.s32 0, %v415
    %v417 = vrot.slane %v412, %v416
    %v423 = vcombine.high %v16, %v16
    %v425 = vunpack.c.l.s4 1966171168
    %v426 = vunpack.c.0.s8 %v425
    %v427 = vlaneseq
    %v428 = vshrl.u32 %v427, 7
    %v429 = vsub.s32 %v426, %v428
    %v430 = vrot.slane %v16, %v429
    %v432 = vunpack.c.l.s4 1966171168
    %v433 = vunpack.c.0.s8 %v432
    %v434 = vlaneseq
    %v435 = vshrl.u32 %v434, 7
    %v436 = vsub.s32 %v433, %v435
    %v437 = vrot.slane %v423, %v436
    %v438 = vcombine.high %v430, %v430
    %v439 = vcombine.high %v437, %v437
    %v441 = vunpack.c.l.s4 1966171168
    %v442 = vunpack.c.0.s8 %v441
    %v443 = vlaneseq
    %v444 = vshrl.u32 %v443, 7
    %v445 = vsub.s32 %v442, %v444
    %v446 = vrot.slane %v430, %v445
    %v448 = vunpack.c.l.s4 1966171168
    %v449 = vunpack.c.0.s8 %v448
    %v450 = vlaneseq
    %v451 = vshrl.u32 %v450, 7
    %v452 = vsub.s32 %v449, %v451
    %v453 = vrot.slane %v437, %v452
    %v455 = vunpack.c.l.s4 1966171168
    %v456 = vunpack.c.0.s8 %v455
    %v457 = vlaneseq
    %v458 = vshrl.u32 %v457, 7
    %v459 = vsub.s32 %v456, %v458
    %v460 = vrot.slane %v438, %v459
    %v462 = vunpack.c.l.s4 1966171168
    %v463 = vunpack.c.0.s8 %v462
    %v464 = vlaneseq
    %v465 = vshrl.u32 %v464, 7
    %v466 = vsub.s32 %v463, %v465
    %v467 = vrot.slane %v439, %v466
    %v468 = vcombine.high %v446, %v446
    %v469 = vcombine.high %v453, %v453
    %v470 = vcombine.high %v460, %v460
    %v471 = vcombine.high %v467, %v467
    %v472 = vcombine.high %v17, %v17
    %v474 = vunpack.c.l.s4 1966171168
    %v475 = vunpack.c.0.s8 %v474
    %v476 = vlaneseq
    %v477 = vshrl.u32 %v476, 7
    %v478 = vsub.s32 %v475, %v477
    %v479 = vrot.slane %v17, %v478
    %v481 = vunpack.c.l.s4 1966171168
    %v482 = vunpack.c.0.s8 %v481
    %v483 = vlaneseq
    %v484 = vshrl.u32 %v483, 7
    %v485 = vsub.s32 %v482, %v484
    %v486 = vrot.slane %v472, %v485
    %v487 = vcombine.high %v479, %v479
    %v488 = vcombine.high %v486, %v486
    %v490 = vunpack.c.l.s4 1966171168
    %v491 = vunpack.c.0.s8 %v490
    %v492 = vlaneseq
    %v493 = vshrl.u32 %v492, 7
    %v494 = vsub.s32 %v491, %v493
    %v495 = vrot.slane %v479, %v494
    %v497 = vunpack.c.l.s4 1966171168
    %v498 = vunpack.c.0.s8 %v497
    %v499 = vlaneseq
    %v500 = vshrl.u32 %v499, 7
    %v501 = vsub.s32 %v498, %v500
    %v502 = vrot.slane %v486, %v501
    %v504 = vunpack.c.l.s4 1966171168
    %v505 = vunpack.c.0.s8 %v504
    %v506 = vlaneseq
    %v507 = vshrl.u32 %v506, 7
    %v508 = vsub.s32 %v505, %v507
    %v509 = vrot.slane %v487, %v508
    %v511 = vunpack.c.l.s4 1966171168
    %v512 = vunpack.c.0.s8 %v511
    %v513 = vlaneseq
    %v514 = vshrl.u32 %v513, 7
    %v515 = vsub.s32 %v512, %v514
    %v516 = vrot.slane %v488, %v515
    %v517 = vcombine.high %v495, %v495
    %v518 = vcombine.high %v502, %v502
    %v519 = vcombine.high %v509, %v509
    %v520 = vcombine.high %v516, %v516
    %v521 = vcombine.high %v18, %v18
    %v523 = vunpack.c.l.s4 1966171168
    %v524 = vunpack.c.0.s8 %v523
    %v525 = vlaneseq
    %v526 = vshrl.u32 %v525, 7
    %v527 = vsub.s32 %v524, %v526
    %v528 = vrot.slane %v18, %v527
    %v530 = vunpack.c.l.s4 1966171168
    %v531 = vunpack.c.0.s8 %v530
    %v532 = vlaneseq
    %v533 = vshrl.u32 %v532, 7
    %v534 = vsub.s32 %v531, %v533
    %v535 = vrot.slane %v521, %v534
    %v536 = vcombine.high %v528, %v528
    %v537 = vcombine.high %v535, %v535
    %v539 = vunpack.c.l.s4 1966171168
    %v540 = vunpack.c.0.s8 %v539
    %v541 = vlaneseq
    %v542 = vshrl.u32 %v541, 7
    %v543 = vsub.s32 %v540, %v542
    %v544 = vrot.slane %v528, %v543
    %v546 = vunpack.c.l.s4 1966171168
    %v547 = vunpack.c.0.s8 %v546
    %v548 = vlaneseq
    %v549 = vshrl.u32 %v548, 7
    %v550 = vsub.s32 %v547, %v549
    %v551 = vrot.slane %v535, %v550
    %v553 = vunpack.c.l.s4 1966171168
    %v554 = vunpack.c.0.s8 %v553
    %v555 = vlaneseq
    %v556 = vshrl.u32 %v555, 7
    %v557 = vsub.s32 %v554, %v556
    %v558 = vrot.slane %v536, %v557
    %v560 = vunpack.c.l.s4 1966171168
    %v561 = vunpack.c.0.s8 %v560
    %v562 = vlaneseq
    %v563 = vshrl.u32 %v562, 7
    %v564 = vsub.s32 %v561, %v563
    %v565 = vrot.slane %v537, %v564
    %v566 = vcombine.high %v544, %v544
    %v567 = vcombine.high %v551, %v551
    %v568 = vcombine.high %v558, %v558
    %v569 = vcombine.high %v565, %v565
    %v571 = vunpack.c.l.s4 1966171168
    %v572 = vunpack.c.0.s8 %v571
    %v573 = vlaneseq
    %v574 = vshrl.u32 %v573, 7
    %v575 = vsub.s32 %v572, %v574
    %v576 = vrot.slane %v19, %v575
    %v578 = vunpack.c.l.s4 1966171168
    %v579 = vunpack.c.0.s8 %v578
    %v580 = vlaneseq
    %v581 = vshrl.u32 %v580, 7
    %v582 = vsub.s32 %v579, %v581
    %v583 = vrot.slane %v576, %v582
    %v1000 = vunpack.c.l.b16 %v20
    %v1001 = vunpack.c.l.b16 %v21
    %v1002 = vunpack.c.l.b16 %v22
    %v1003 = vunpack.c.l.b16 %v23
    %v1004 = vunpack.c.l.b16 %v24
    %v1005 = vunpack.c.l.b16 %v25
    %v1006 = vunpack.c.l.b16 %v26
    %v1007 = vunpack.c.l.b16 %v27
    %v1008 = vunpack.c.l.b16 %v28
    %v1009 = vunpack.c.l.b16 %v29
    %v1010 = vunpack.c.l.b16 %v30
    %v1011 = vunpack.c.l.b16 %v31
    %v1012 = vunpack.c.l.b16 %v32
    %v1013 = vunpack.c.l.b16 %v33
    %v1014 = vunpack.c.l.b16 %v34
    %v1015 = vunpack.c.l.b16 %v35
    %v1016 = vunpack.c.l.b16 %v36
    %v1017 = vunpack.c.l.b16 %v37
    %v1018 = vunpack.c.l.b16 %v38
    %v1019 = vunpack.c.l.b16 %v39
    %v1020 = vunpack.c.l.b16 %v40
    %v1021 = vunpack.c.l.b16 %v41
    %v1022 = vunpack.c.l.b16 %v42
    %v1023 = vunpack.c.l.b16 %v43
    %v1024 = vunpack.c.l.b16 %v44
    %v1025 = vunpack.c.l.b16 %v45
    %v1026 = vunpack.c.l.b16 %v46
    %v1027 = vunpack.c.l.b16 %v47
    %v1028 = vunpack.c.l.b16 %v48
    %v1029 = vunpack.c.l.b16 %v49
    %v1030 = vunpack.c.l.b16 %v50
    %v1031 = vunpack.c.l.b16 %v51
    %v1032 = vunpack.c.l.b16 %v52
    %v1033 = vunpack.c.l.b16 %v53
    %v1034 = vunpack.c.l.b16 %v54
    %v1035 = vunpack.c.l.b16 %v55
    %v1036 = vunpack.c.l.b16 %v56
    %v1037 = vunpack.c.l.b16 %v57
    %v1038 = vunpack.c.l.b16 %v58
    %v1039 = vunpack.c.l.b16 %v59
    %v1040 = vunpack.c.l.b16 %v60
    %v1041 = vunpack.c.l.b16 %v61
    %v1042 = vunpack.c.l.b16 %v62
    %v1043 = vunpack.c.l.b16 %v63
    %v1044 = vunpack.c.l.b16 %v64
    %v1045 = vunpack.c.l.b16 %v65
    %v1046 = vunpack.c.l.b16 %v66
    %v1047 = vunpack.c.l.b16 %v67
    %v1048 = vunpack.c.l.b16 %v68
    %v1049 = vunpack.c.l.b16 %v69
    %v1050 = vunpack.c.l.b16 %v70
    %v1051 = vunpack.c.l.b16 %v71
    %v1052 = vunpack.c.l.b16 %v72
    %v1053 = vunpack.c.l.b16 %v73
    %v1054 = vunpack.c.l.b16 %v74
    %v1055 = vunpack.c.l.b16 %v75
    %v1056 = vunpack.c.l.b16 %v76
    %v1057 = vunpack.c.l.b16 %v77
    %v1058 = vunpack.c.l.b16 %v78
    %v1059 = vunpack.c.l.b16 %v79
    %v1060 = vunpack.c.l.b16 %v80
    %v1061 = vunpack.c.l.b16 %v81
    %v1062 = vunpack.c.l.b16 %v82
    %v1063 = vunpack.c.l.b16 %v83
    %v1064 = vunpack.c.l.b16 %v84
    %v1065 = vunpack.c.l.b16 %v85
    %v1066 = vunpack.c.l.b16 %v86
    %v1067 = vunpack.c.l.b16 %v87
    %v1068 = vunpack.c.l.b16 %v88
    %v1069 = vunpack.c.l.b16 %v89
    %v1070 = vunpack.c.l.b16 %v90
    %v1071 = vunpack.c.l.b16 %v91
    %v1072 = vunpack.c.l.b16 %v92
    %v1073 = vunpack.c.l.b16 %v93
    %v1074 = vunpack.c.l.b16 %v94
    %v1075 = vunpack.c.l.b16 %v95
    %v1076 = vunpack.c.l.b16 %v96
    %v1077 = vunpack.c.l.b16 %v97
    %v1078 = vunpack.c.l.b16 %v98
    %v1079 = vunpack.c.l.b16 %v99
    %v1080 = vunpack.c.l.b16 %v100
    %v1081 = vunpack.c.l.b16 %v101
    %v1082 = vunpack.c.l.b16 %v102
    %v1083 = vunpack.c.l.b16 %v103
    %v1084 = vunpack.c.l.b16 %v104
    %v1085 = vunpack.c.l.b16 %v105
    %v1086 = vunpack.c.l.b16 %v106
    %v1087 = vunpack.c.l.b16 %v107
    %v1088 = vunpack.c.l.b16 %v108
    %v1089 = vunpack.c.l.b16 %v109
    %v1090 = vunpack.c.l.b16 %v110
    %v1091 = vunpack.c.l.b16 %v111
    %v1092 = vunpack.c.l.b16 %v112
    %v1093 = vunpack.c.l.b16 %v113
    %v1094 = vunpack.c.l.b16 %v114
    %v1095 = vunpack.c.l.b16 %v115
    %v1096 = vunpack.c.l.b16 %v116
    %v1097 = vunpack.c.l.b16 %v117
    %v1098 = vunpack.c.l.b16 %v118
    %v1099 = vunpack.c.l.b16 %v119
    %v1100 = vunpack.c.l.b16 %v120
    %v1101 = vunpack.c.l.b16 %v121
    %v1102 = vunpack.c.l.b16 %v122
    %v1103 = vunpack.c.l.b16 %v123
    %v1104 = vunpack.c.l.b16 %v124
    %v1105 = vunpack.c.l.b16 %v125
    %v1106 = vunpack.c.l.b16 %v126
    %v1107 = vunpack.c.l.b16 %v127
    %v1108 = vunpack.c.l.b16 %v128
    %v1109 = vunpack.c.l.b16 %v129
    %v1110 = vunpack.c.l.b16 %v130
    %v1111 = vunpack.c.l.b16 %v131
    %v1112 = vunpack.c.l.b16 %v132
    %v1113 = vunpack.c.l.b16 %v133
    %v1114 = vunpack.c.l.b16 %v134
    %v1115 = vunpack.c.l.b16 %v135
    %v1116 = vunpack.c.l.b16 %v136
    %v1117 = vunpack.c.l.b16 %v137
    %v1118 = vunpack.c.l.b16 %v138
    %v1119 = vunpack.c.l.b16 %v139
    %v1120 = vunpack.c.l.b16 %v140
    %v1121 = vunpack.c.l.b16 %v141
    %v1122 = vunpack.c.l.b16 %v142
    %v1123 = vunpack.c.l.b16 %v143
    %v1124 = vunpack.c.l.b16 %v144
    %v1125 = vunpack.c.l.b16 %v145
    %v1126 = vunpack.c.l.b16 %v146
    %v1127 = vunpack.c.l.b16 %v147
    %v1128 = vunpack.c.l.b16 %v148
    %v1129 = vunpack.c.l.b16 %v149
    %v1130 = vunpack.c.l.b16 %v150
    %v1131 = vunpack.c.l.b16 %v151
    %v1132 = vunpack.c.l.b16 %v152
    %v1133 = vunpack.c.l.b16 %v153
    %v1134 = vunpack.c.l.b16 %v154
    %v1135 = vunpack.c.l.b16 %v155
    %v1136 = vunpack.c.l.b16 %v156
    %v1137 = vunpack.c.l.b16 %v157
    %v1138 = vunpack.c.l.b16 %v158
    %v1139 = vunpack.c.l.b16 %v159
    %v1140 = vunpack.c.l.b16 %v160
    %v1141 = vunpack.c.l.b16 %v161
    %v1142 = vunpack.c.l.b16 %v162
    %v1143 = vunpack.c.l.b16 %v163
    %v1144 = vunpack.c.l.b16 %v164
    %v1145 = vunpack.c.l.b16 %v165
    %v1146 = vunpack.c.l.b16 %v166
    %v1147 = vunpack.c.l.b16 %v167
    %v1148 = vunpack.c.l.b16 %v168
    %v1149 = vunpack.c.l.b16 %v169
    %v1150 = vunpack.c.l.b16 %v170
    %v1151 = vunpack.c.l.b16 %v171
    %v1152 = vunpack.c.l.b16 %v172
    %v1153 = vunpack.c.l.b16 %v173
    %v1154 = vunpack.c.l.b16 %v174
    %v1155 = vunpack.c.l.b16 %v175
    %v1156 = vunpack.c.l.b16 %v176
    %v1157 = vunpack.c.l.b16 %v177
    %v1158 = vunpack.c.l.b16 %v178
    %v1159 = vunpack.c.l.b16 %v179
    %v1160 = vunpack.c.l.b16 %v180
    %v1161 = vunpack.c.l.b16 %v181
    %v1162 = vunpack.c.l.b16 %v182
    %v1163 = vunpack.c.l.b16 %v183
    %v1164 = vunpack.c.l.b16 %v184
    %v1165 = vunpack.c.l.b16 %v185
    %v1166 = vunpack.c.l.b16 %v186
    %v1167 = vunpack.c.l.b16 %v187
    %v1168 = vunpack.c.l.b16 %v188
    %v1169 = vunpack.c.l.b16 %v189
    %v1170 = vunpack.c.l.b16 %v190
    %v1171 = vunpack.c.l.b16 %v191
    %v1172 = vunpack.c.l.b16 %v192
    %v1173 = vunpack.c.l.b16 %v193
    %v1174 = vunpack.c.l.b16 %v194
    %v1175 = vunpack.c.l.b16 %v195
    %v1176 = vunpack.c.l.b16 %v196
    %v1177 = vunpack.c.l.b16 %v197
    %v1178 = vunpack.c.l.b16 %v198
    %v1179 = vunpack.c.l.b16 %v199
    %v1180 = vunpack.c.l.b16 %v200
    %v1181 = vunpack.c.l.b16 %v201
    %v1182 = vunpack.c.l.b16 %v202
    %v1183 = vunpack.c.l.b16 %v203
    %v1184 = vunpack.c.l.b16 %v204
    %v1185 = vunpack.c.l.b16 %v205
    %v1186 = vunpack.c.l.b16 %v206
    %v1187 = vunpack.c.l.b16 %v207
    %v1188 = vunpack.c.l.b16 %v208
    %v1189 = vunpack.c.l.b16 %v209
    %v1190 = vunpack.c.l.b16 %v210
    %v1191 = vunpack.c.l.b16 %v211
    %v1192 = vunpack.c.l.b16 %v212
    %v1193 = vunpack.c.l.b16 %v213
    %v1194 = vunpack.c.l.b16 %v214
    %v1195 = vunpack.c.l.b16 %v215
    %v1196 = vunpack.c.l.b16 %v216
    %v1197 = vunpack.c.l.b16 %v217
    %v1198 = vunpack.c.l.b16 %v218
    %v1199 = vunpack.c.l.b16 %v219
    %v1200 = vunpack.c.l.b16 %v220
    %v1201 = vunpack.c.l.b16 %v221
    %v1202 = vunpack.c.l.b16 %v222
    %v1203 = vunpack.c.l.b16 %v223
    %v1204 = vunpack.c.l.b16 %v224
    %v1205 = vunpack.c.l.b16 %v225
    %v1206 = vunpack.c.l.b16 %v226
    %v1207 = vunpack.c.l.b16 %v227
    %v1208 = vunpack.c.l.b16 %v228
    %v1209 = vunpack.c.l.b16 %v229
    %v1210 = vunpack.c.l.b16 %v230
    %v1211 = vunpack.c.l.b16 %v231
    %v1212 = vunpack.c.l.b16 %v232
    %v1213 = vunpack.c.l.b16 %v233
    %v1214 = vunpack.c.l.b16 %v234
    %v1215 = vunpack.c.l.b16 %v235
    %v1216 = vunpack.c.l.b16 %v236
    %v1217 = vunpack.c.l.b16 %v237
    %v1218 = vunpack.c.l.b16 %v238
    %v1219 = vunpack.c.l.b16 %v239
    %v1220 = vunpack.c.l.b16 %v240
    %v1221 = vunpack.c.l.b16 %v241
    %v1222 = vunpack.c.l.b16 %v242
    %v1223 = vunpack.c.l.b16 %v243
    %v1224 = vunpack.c.l.b16 %v244
    %v1225 = vunpack.c.l.b16 %v245
    %v1226 = vunpack.c.l.b16 %v246
    %v1227 = vunpack.c.l.b16 %v247
    %v1228 = vunpack.c.l.b16 %v248
    %v1229 = vunpack.c.l.b16 %v249
    %v1230 = vunpack.c.l.b16 %v250
    %v1231 = vunpack.c.l.b16 %v251
    %v1232 = vunpack.c.l.b16 %v252
    %v1233 = vunpack.c.l.b16 %v253
    %v1234 = vunpack.c.l.b16 %v254
    %v1235 = vunpack.c.l.b16 %v255
    %v1236 = vunpack.c.l.b16 %v256
    %v1237 = vunpack.c.l.b16 %v257
    %v1238 = vunpack.c.l.b16 %v258
    %v1239 = vunpack.c.l.b16 %v259
    %v1240 = vunpack.c.l.b16 %v260
    %v1241 = vunpack.c.l.b16 %v261
    %v1242 = vunpack.c.l.b16 %v262
    %v1243 = vunpack.c.l.b16 %v263
    %v1244 = vunpack.c.l.b16 %v264
    %v1245 = vunpack.c.l.b16 %v265
    %v1246 = vunpack.c.l.b16 %v266
    %v1247 = vunpack.c.l.b16 %v267
    %v1248 = vunpack.c.l.b16 %v268
    %v1249 = vunpack.c.l.b16 %v269
    %v1250 = vunpack.c.l.b16 %v270
    %v1251 = vunpack.c.l.b16 %v271
    %v1252 = vunpack.c.l.b16 %v272
    %v1253 = vunpack.c.l.b16 %v273
    %v1254 = vunpack.c.l.b16 %v274
    %v1255 = vunpack.c.l.b16 %v275
    %v1256 = vunpack.c.l.b16 %v276
    %v1257 = vunpack.c.l.b16 %v277
    %v1258 = vunpack.c.l.b16 %v278
    %v1259 = vunpack.c.l.b16 %v279
    %v1260 = vunpack.c.l.b16 %v280
    %v1261 = vunpack.c.l.b16 %v281
    %v1262 = vunpack.c.l.b16 %v282
    %v1263 = vunpack.c.l.b16 %v283
    %v1264 = vunpack.c.l.b16 %v284
    %v1265 = vunpack.c.l.b16 %v285
    %v1266 = vunpack.c.l.b16 %v286
    %v1267 = vunpack.c.l.b16 %v287
    %v1268 = vunpack.c.l.b16 %v288
    %v1269 = vunpack.c.l.b16 %v289
    %v1270 = vunpack.c.l.b16 %v290
    %v1271 = vunpack.c.l.b16 %v291
    %v1272 = vunpack.c.l.b16 %v292
    %v1273 = vunpack.c.l.b16 %v293
    %v1274 = vunpack.c.l.b16 %v294
    %v1275 = vunpack.c.l.b16 %v295
    %v1276 = vunpack.c.l.b16 %v296
    %v1277 = vunpack.c.l.b16 %v297
    %v1278 = vunpack.c.l.b16 %v298
    %v1279 = vunpack.c.l.b16 %v299
    %v1280 = vunpack.c.l.b16 %v300
    %v1281 = vunpack.c.l.b16 %v301
    %v1282 = vunpack.c.l.b16 %v302
    %v1283 = vunpack.c.l.b16 %v303
    %v1284 = vunpack.c.l.b16 %v304
    %v1285 = vunpack.c.l.b16 %v305
    %v1286 = vunpack.c.l.b16 %v306
    %v1287 = vunpack.c.l.b16 %v307
    %v1288 = vunpack.c.l.b16 %v308
    %v1289 = vunpack.c.l.b16 %v309
    %v1290 = vunpack.c.l.b16 %v310
    %v1291 = vunpack.c.l.b16 %v311
    %v1292 = vunpack.c.l.b16 %v312
    %v1293 = vunpack.c.l.b16 %v313
    %v1294 = vunpack.c.l.b16 %v314
    %v1295 = vunpack.c.l.b16 %v315
    %v1296 = vunpack.c.l.b16 %v316
    %v1297 = vunpack.c.l.b16 %v317
    %v1298 = vunpack.c.l.b16 %v318
    %v1299 = vunpack.c.l.b16 %v319
    %v1300 = vunpack.c.l.b16 %v320
    %v1301 = vunpack.c.l.b16 %v321
    %v1302 = vunpack.c.l.b16 %v322
    %v1303 = vunpack.c.l.b16 %v323
    %v1304 = vunpack.c.l.b16 %v324
    %v1305 = vunpack.c.l.b16 %v325
    %v1306 = vunpack.c.l.b16 %v326
    %v1307 = vunpack.c.l.b16 %v327
    %v1308 = vunpack.c.l.b16 %v328
    %v1309 = vunpack.c.l.b16 %v329
    %v1310 = vunpack.c.l.b16 %v330
    %v1311 = vunpack.c.l.b16 %v331
    %v1312 = vunpack.c.l.b16 %v332
    %v1313 = vunpack.c.l.b16 %v333
    %v1314 = vunpack.c.l.b16 %v334
    %v1315 = vunpack.c.l.b16 %v335
    %v1316 = vunpack.c.l.b16 %v336
    %v1317 = vunpack.c.l.b16 %v337
    %v1318 = vunpack.c.l.b16 %v338
    %v1319 = vunpack.c.l.b16 %v339
    %v1320 = vunpack.c.l.b16 %v340
    %v1321 = vunpack.c.l.b16 %v341
    %v1322 = vunpack.c.l.b16 %v342
    %v1323 = vunpack.c.l.b16 %v343
    %v1324 = vunpack.c.l.b16 %v344
    %v1325 = vunpack.c.l.b16 %v345
    %v1326 = vunpack.c.l.b16 %v346
    %v1327 = vunpack.c.l.b16 %v347
    %v1328 = vunpack.c.l.b16 %v348
    %v1329 = vunpack.c.l.b16 %v349
    %v1330 = vunpack.c.l.b16 %v350
    %v1331 = vunpack.c.l.b16 %v351
    %v1332 = vunpack.c.l.b16 %v352
    %v1333 = vunpack.c.l.b16 %v353
    %v1334 = vunpack.c.l.b16 %v354
    %v1335 = vunpack.c.l.b16 %v355
    %v1336 = vunpack.c.l.b16 %v356
    %v1337 = vunpack.c.l.b16 %v357
    %v1338 = vunpack.c.l.b16 %v358
    %v1339 = vunpack.c.l.b16 %v359
    %v1340 = vunpack.c.l.b16 %v360
    %v1341 = vunpack.c.l.b16 %v361
    %v1342 = vunpack.c.l.b16 %v362
    %v1343 = vunpack.c.l.b16 %v363
    %v1344 = vunpack.c.l.b16 %v364
    %v1345 = vunpack.c.l.b16 %v365
    %v1346 = vunpack.c.l.b16 %v366
    %v1347 = vunpack.c.l.b16 %v367
    %v1348 = vunpack.c.l.b16 %v368
    %v1349 = vunpack.c.l.b16 %v369
    %v1350 = vunpack.c.l.b16 %v370
    %v1351 = vunpack.c.l.b16 %v371
    %v1352 = vunpack.c.l.b16 %v372
    %v1353 = vunpack.c.l.b16 %v373
    %v1354 = vunpack.c.l.b16 %v374
    %v1355 = vunpack.c.l.b16 %v375
    %v1356 = vunpack.c.l.b16 %v376
    %v1357 = vunpack.c.l.b16 %v377
    %v1358 = vunpack.c.l.b16 %v378
    %v1359 = vunpack.c.l.b16 %v379
    %v1360 = vunpack.c.l.b16 %v380
    %v1361 = vunpack.c.l.b16 %v381
    %v1362 = vunpack.c.l.b16 %v382
    %v1363 = vunpack.c.l.b16 %v383
    %v1364 = vunpack.c.l.b16 %v384
    %v1365 = vunpack.c.l.b16 %v385
    %v1366 = vunpack.c.l.b16 %v386
    %v1367 = vunpack.c.l.b16 %v387
    %v1368 = vunpack.c.l.b16 %v388
    %v1369 = vunpack.c.l.b16 %v389
    %v1370 = vunpack.c.l.b16 %v390
    %v1371 = vunpack.c.l.b16 %v391
    %v1372 = vunpack.c.l.b16 %v392
    %v1373 = vunpack.c.l.b16 %v393
    %v1374 = vunpack.c.l.b16 %v394
    %v1375 = vunpack.c.l.b16 %v395
    %v1376 = vunpack.c.l.b16 %v396
    %v1377 = vunpack.c.l.b16 %v397
    %v1378 = vunpack.c.l.b16 %v398
    %v1379 = vunpack.c.l.b16 %v399
    %v1380 = vunpack.c.l.b16 %v400
    %v1381 = vunpack.c.l.b16 %v401
    %v1382 = vunpack.c.l.b16 %v402
    %v1383 = vunpack.c.l.b16 %v403
    %v1384 = vunpack.c.l.b16 %v404
    %v1385 = vunpack.c.l.b16 %v405
    %v1386 = vunpack.c.l.b16 %v406
    %v1387 = vunpack.c.l.b16 %v407
    %v1388 = vunpack.c.l.b16 %v408
    %v1389 = vunpack.c.l.b16 %v409
    %v1390 = vunpack.c.l.b16 %v410
    %v1391 = vunpack.c.l.b16 %v411
    %v1392 = vpack.c.b16 %v1001, %v1000
    %v1393 = vpack.c.b16 %v1003, %v1002
    %v1394 = vpack.c.b16 %v1005, %v1004
    %v1395 = vpack.c.b16 %v1007, %v1006
    %v1396 = vpack.c.b16 %v1009, %v1008
    %v1397 = vpack.c.b16 %v1011, %v1010
    %v1398 = vpack.c.b16 %v1013, %v1012
    %v1399 = vpack.c.b16 %v1015, %v1014
    %v1400 = vpack.c.b16 %v1017, %v1016
    %v1401 = vpack.c.b16 %v1019, %v1018
    %v1402 = vpack.c.b16 %v1021, %v1020
    %v1403 = vpack.c.b16 %v1023, %v1022
    %v1404 = vpack.c.b16 %v1025, %v1024
    %v1405 = vpack.c.b16 %v1027, %v1026
    %v1406 = vpack.c.b16 %v1029, %v1028
    %v1407 = vpack.c.b16 %v1031, %v1030
    %v1408 = vpack.c.b16 %v1033, %v1032
    %v1409 = vpack.c.b16 %v1035, %v1034
    %v1410 = vpack.c.b16 %v1037, %v1036
    %v1411 = vpack.c.b16 %v1039, %v1038
    %v1412 = vpack.c.b16 %v1041, %v1040
    %v1413 = vpack.c.b16 %v1043, %v1042
    %v1414 = vpack.c.b16 %v1045, %v1044
    %v1415 = vpack.c.b16 %v1047, %v1046
    %v1416 = vpack.c.b16 %v1049, %v1048
    %v1417 = vpack.c.b16 %v1051, %v1050
    %v1418 = vpack.c.b16 %v1053, %v1052
    %v1419 = vpack.c.b16 %v1055, %v1054
    %v1420 = vpack.c.b16 %v1057, %v1056
    %v1421 = vpack.c.b16 %v1059, %v1058
    %v1422 = vpack.c.b16 %v1061, %v1060
    %v1423 = vpack.c.b16 %v1063, %v1062
    %v1424 = vpack.c.b16 %v1065, %v1064
    %v1425 = vpack.c.b16 %v1067, %v1066
    %v1426 = vpack.c.b16 %v1069, %v1068
    %v1427 = vpack.c.b16 %v1071, %v1070
    %v1428 = vpack.c.b16 %v1073, %v1072
    %v1429 = vpack.c.b16 %v1075, %v1074
    %v1430 = vpack.c.b16 %v1077, %v1076
    %v1431 = vpack.c.b16 %v1079, %v1078
    %v1432 = vpack.c.b16 %v1081, %v1080
    %v1433 = vpack.c.b16 %v1083, %v1082
    %v1434 = vpack.c.b16 %v1085, %v1084
    %v1435 = vpack.c.b16 %v1087, %v1086
    %v1436 = vpack.c.b16 %v1089, %v1088
    %v1437 = vpack.c.b16 %v1091, %v1090
    %v1438 = vpack.c.b16 %v1093, %v1092
    %v1439 = vpack.c.b16 %v1095, %v1094
    %v1440 = vpack.c.b16 %v1097, %v1096
    %v1441 = vpack.c.b16 %v1099, %v1098
    %v1442 = vpack.c.b16 %v1101, %v1100
    %v1443 = vpack.c.b16 %v1103, %v1102
    %v1444 = vpack.c.b16 %v1105, %v1104
    %v1445 = vpack.c.b16 %v1107, %v1106
    %v1446 = vpack.c.b16 %v1109, %v1108
    %v1447 = vpack.c.b16 %v1111, %v1110
    %v1448 = vpack.c.b16 %v1113, %v1112
    %v1449 = vpack.c.b16 %v1115, %v1114
    %v1450 = vpack.c.b16 %v1117, %v1116
    %v1451 = vpack.c.b16 %v1119, %v1118
    %v1452 = vpack.c.b16 %v1121, %v1120
    %v1453 = vpack.c.b16 %v1123, %v1122
    %v1454 = vpack.c.b16 %v1125, %v1124
    %v1455 = vpack.c.b16 %v1127, %v1126
    %v1456 = vpack.c.b16 %v1129, %v1128
    %v1457 = vpack.c.b16 %v1131, %v1130
    %v1458 = vpack.c.b16 %v1133, %v1132
    %v1459 = vpack.c.b16 %v1135, %v1134
    %v1460 = vpack.c.b16 %v1137, %v1136
    %v1461 = vpack.c.b16 %v1139, %v1138
    %v1462 = vpack.c.b16 %v1141, %v1140
    %v1463 = vpack.c.b16 %v1143, %v1142
    %v1464 = vpack.c.b16 %v1145, %v1144
    %v1465 = vpack.c.b16 %v1147, %v1146
    %v1466 = vpack.c.b16 %v1149, %v1148
    %v1467 = vpack.c.b16 %v1151, %v1150
    %v1468 = vpack.c.b16 %v1153, %v1152
    %v1469 = vpack.c.b16 %v1155, %v1154
    %v1470 = vpack.c.b16 %v1157, %v1156
    %v1471 = vpack.c.b16 %v1159, %v1158
    %v1472 = vpack.c.b16 %v1161, %v1160
    %v1473 = vpack.c.b16 %v1163, %v1162
    %v1474 = vpack.c.b16 %v1165, %v1164
    %v1475 = vpack.c.b16 %v1167, %v1166
    %v1476 = vpack.c.b16 %v1169, %v1168
    %v1477 = vpack.c.b16 %v1171, %v1170
    %v1478 = vpack.c.b16 %v1173, %v1172
    %v1479 = vpack.c.b16 %v1175, %v1174
    %v1480 = vpack.c.b16 %v1177, %v1176
    %v1481 = vpack.c.b16 %v1179, %v1178
    %v1482 = vpack.c.b16 %v1181, %v1180
    %v1483 = vpack.c.b16 %v1183, %v1182
    %v1484 = vpack.c.b16 %v1185, %v1184
    %v1485 = vpack.c.b16 %v1187, %v1186
    %v1486 = vpack.c.b16 %v1189, %v1188
    %v1487 = vpack.c.b16 %v1191, %v1190
    %v1488 = vpack.c.b16 %v1193, %v1192
    %v1489 = vpack.c.b16 %v1195, %v1194
    %v1490 = vpack.c.b16 %v1197, %v1196
    %v1491 = vpack.c.b16 %v1199, %v1198
    %v1492 = vpack.c.b16 %v1201, %v1200
    %v1493 = vpack.c.b16 %v1203, %v1202
    %v1494 = vpack.c.b16 %v1205, %v1204
    %v1495 = vpack.c.b16 %v1207, %v1206
    %v1496 = vpack.c.b16 %v1209, %v1208
    %v1497 = vpack.c.b16 %v1211, %v1210
    %v1498 = vpack.c.b16 %v1213, %v1212
    %v1499 = vpack.c.b16 %v1215, %v1214
    %v1500 = vpack.c.b16 %v1217, %v1216
    %v1501 = vpack.c.b16 %v1219, %v1218
    %v1502 = vpack.c.b16 %v1221, %v1220
    %v1503 = vpack.c.b16 %v1223, %v1222
    %v1504 = vpack.c.b16 %v1225, %v1224
    %v1505 = vpack.c.b16 %v1227, %v1226
    %v1506 = vpack.c.b16 %v1229, %v1228
    %v1507 = vpack.c.b16 %v1231, %v1230
    %v1508 = vpack.c.b16 %v1233, %v1232
    %v1509 = vpack.c.b16 %v1235, %v1234
    %v1510 = vpack.c.b16 %v1237, %v1236
    %v1511 = vpack.c.b16 %v1239, %v1238
    %v1512 = vpack.c.b16 %v1241, %v1240
    %v1513 = vpack.c.b16 %v1243, %v1242
    %v1514 = vpack.c.b16 %v1245, %v1244
    %v1515 = vpack.c.b16 %v1247, %v1246
    %v1516 = vpack.c.b16 %v1249, %v1248
    %v1517 = vpack.c.b16 %v1251, %v1250
    %v1518 = vpack.c.b16 %v1253, %v1252
    %v1519 = vpack.c.b16 %v1255, %v1254
    %v1520 = vpack.c.b16 %v1257, %v1256
    %v1521 = vpack.c.b16 %v1259, %v1258
    %v1522 = vpack.c.b16 %v1261, %v1260
    %v1523 = vpack.c.b16 %v1263, %v1262
    %v1524 = vpack.c.b16 %v1265, %v1264
    %v1525 = vpack.c.b16 %v1267, %v1266
    %v1526 = vpack.c.b16 %v1269, %v1268
    %v1527 = vpack.c.b16 %v1271, %v1270
    %v1528 = vpack.c.b16 %v1273, %v1272
    %v1529 = vpack.c.b16 %v1275, %v1274
    %v1530 = vpack.c.b16 %v1277, %v1276
    %v1531 = vpack.c.b16 %v1279, %v1278
    %v1532 = vpack.c.b16 %v1281, %v1280
    %v1533 = vpack.c.b16 %v1283, %v1282
    %v1534 = vpack.c.b16 %v1285, %v1284
    %v1535 = vpack.c.b16 %v1287, %v1286
    %v1536 = vpack.c.b16 %v1289, %v1288
    %v1537 = vpack.c.b16 %v1291, %v1290
    %v1538 = vpack.c.b16 %v1293, %v1292
    %v1539 = vpack.c.b16 %v1295, %v1294
    %v1540 = vpack.c.b16 %v1297, %v1296
    %v1541 = vpack.c.b16 %v1299, %v1298
    %v1542 = vpack.c.b16 %v1301, %v1300
    %v1543 = vpack.c.b16 %v1303, %v1302
    %v1544 = vpack.c.b16 %v1305, %v1304
    %v1545 = vpack.c.b16 %v1307, %v1306
    %v1546 = vpack.c.b16 %v1309, %v1308
    %v1547 = vpack.c.b16 %v1311, %v1310
    %v1548 = vpack.c.b16 %v1313, %v1312
    %v1549 = vpack.c.b16 %v1315, %v1314
    %v1550 = vpack.c.b16 %v1317, %v1316
    %v1551 = vpack.c.b16 %v1319, %v1318
    %v1552 = vpack.c.b16 %v1321, %v1320
    %v1553 = vpack.c.b16 %v1323, %v1322
    %v1554 = vpack.c.b16 %v1325, %v1324
    %v1555 = vpack.c.b16 %v1327, %v1326
    %v1556 = vpack.c.b16 %v1329, %v1328
    %v1557 = vpack.c.b16 %v1331, %v1330
    %v1558 = vpack.c.b16 %v1333, %v1332
    %v1559 = vpack.c.b16 %v1335, %v1334
    %v1560 = vpack.c.b16 %v1337, %v1336
    %v1561 = vpack.c.b16 %v1339, %v1338
    %v1562 = vpack.c.b16 %v1341, %v1340
    %v1563 = vpack.c.b16 %v1343, %v1342
    %v1564 = vpack.c.b16 %v1345, %v1344
    %v1565 = vpack.c.b16 %v1347, %v1346
    %v1566 = vpack.c.b16 %v1349, %v1348
    %v1567 = vpack.c.b16 %v1351, %v1350
    %v1568 = vpack.c.b16 %v1353, %v1352
    %v1569 = vpack.c.b16 %v1355, %v1354
    %v1570 = vpack.c.b16 %v1357, %v1356
    %v1571 = vpack.c.b16 %v1359, %v1358
    %v1572 = vpack.c.b16 %v1361, %v1360
    %v1573 = vpack.c.b16 %v1363, %v1362
    %v1574 = vpack.c.b16 %v1365, %v1364
    %v1575 = vpack.c.b16 %v1367, %v1366
    %v1576 = vpack.c.b16 %v1369, %v1368
    %v1577 = vpack.c.b16 %v1371, %v1370
    %v1578 = vpack.c.b16 %v1373, %v1372
    %v1579 = vpack.c.b16 %v1375, %v1374
    %v1580 = vpack.c.b16 %v1377, %v1376
    %v1581 = vpack.c.b16 %v1379, %v1378
    %v1582 = vpack.c.b16 %v1381, %v1380
    %v1583 = vpack.c.b16 %v1383, %v1382
    %v1584 = vpack.c.b16 %v1385, %v1384
    %v1585 = vpack.c.b16 %v1387, %v1386
    %v1586 = vpack.c.b16 %v1389, %v1388
    %v1587 = vpack.c.b16 %v1391, %v1390
    %vm1784 = vcmask 523264
    %v1786 = vsel %vm1784, %v583, 0
    %1788 = vmatprep.subr.bf16.mxu0 0
    %1789 = vmatpush1.bf16.msra.mxu0 %v1392
    %1790 = vmatprep.subr.bf16.mxu0 0
    %1791 = vmatpush1.bf16.msra.mxu0 %v1393
    %1792 = vmatprep.subr.bf16.mxu0 0
    %1793 = vmatpush1.bf16.msra.mxu0 %v1394
    %1794 = vmatprep.subr.bf16.mxu0 0
    %1795 = vmatpush1.bf16.msra.mxu0 %v1395
    %1796 = vmatprep.subr.bf16.mxu0 0
    %1797 = vmatpush1.bf16.msra.mxu0 %v1396
    %1798 = vmatprep.subr.bf16.mxu0 0
    %1799 = vmatpush1.bf16.msra.mxu0 %v1397
    %1800 = vmatprep.subr.bf16.mxu0 0
    %1801 = vmatpush1.bf16.msra.mxu0 %v1398
    %1802 = vmatprep.subr.bf16.mxu0 0
    %1803 = vmatpush1.bf16.msra.mxu0 %v1399
    %1804 = vmatprep.subr.bf16.mxu0 0
    %1805 = vmatpush1.bf16.msra.mxu0 %v1400
    %1806 = vmatprep.subr.bf16.mxu0 0
    %1807 = vmatpush1.bf16.msra.mxu0 %v1401
    %1808 = vmatprep.subr.bf16.mxu0 0
    %1809 = vmatpush1.bf16.msra.mxu0 %v1402
    %1810 = vmatprep.subr.bf16.mxu0 0
    %1811 = vmatpush1.bf16.msra.mxu0 %v1403
    %1812 = vmatprep.subr.bf16.mxu0 0
    %1813 = vmatpush1.bf16.msra.mxu0 %v1404
    %1814 = vmatprep.subr.bf16.mxu0 0
    %1815 = vmatpush1.bf16.msra.mxu0 %v1405
    %1816 = vmatprep.subr.bf16.mxu0 0
    %1817 = vmatpush1.bf16.msra.mxu0 %v1406
    %1818 = vmatprep.subr.bf16.mxu0 0
    %1819 = vmatpush1.bf16.msra.mxu0 %v1407
    %1820 = vmatprep.mubr.bf16.mxu0 %v460
    %1821 = vmatmul.mubr.bf16.gmra.mrb[0].mxu0 %v446
    %v1822 = vpop.f32.mrb[0].mxu0
    %v1823 = vadd.f32 %v417, %v1822
    %v1824 = vpop.f32.mrb[0].mxu0
    %v1825 = vpop.f32.mrb[0].mxu0
    %v1826 = vpop.f32.mrb[0].mxu0
    %1827 = vdwg.mxu0
    %1828 = vmatprep.subr.bf16.mxu0 0
    %1829 = vmatpush1.bf16.msra.mxu0 %v1408
    %1830 = vmatprep.subr.bf16.mxu0 0
    %1831 = vmatpush1.bf16.msra.mxu0 %v1409
    %1832 = vmatprep.subr.bf16.mxu0 0
    %1833 = vmatpush1.bf16.msra.mxu0 %v1410
    %1834 = vmatprep.subr.bf16.mxu0 0
    %1835 = vmatpush1.bf16.msra.mxu0 %v1411
    %1836 = vmatprep.subr.bf16.mxu0 0
    %1837 = vmatpush1.bf16.msra.mxu0 %v1412
    %1838 = vmatprep.subr.bf16.mxu0 0
    %1839 = vmatpush1.bf16.msra.mxu0 %v1413
    %1840 = vmatprep.subr.bf16.mxu0 0
    %1841 = vmatpush1.bf16.msra.mxu0 %v1414
    %1842 = vmatprep.subr.bf16.mxu0 0
    %1843 = vmatpush1.bf16.msra.mxu0 %v1415
    %1844 = vmatprep.subr.bf16.mxu0 0
    %1845 = vmatpush1.bf16.msra.mxu0 %v1416
    %1846 = vmatprep.subr.bf16.mxu0 0
    %1847 = vmatpush1.bf16.msra.mxu0 %v1417
    %1848 = vmatprep.subr.bf16.mxu0 0
    %1849 = vmatpush1.bf16.msra.mxu0 %v1418
    %1850 = vmatprep.subr.bf16.mxu0 0
    %1851 = vmatpush1.bf16.msra.mxu0 %v1419
    %1852 = vmatprep.subr.bf16.mxu0 0
    %1853 = vmatpush1.bf16.msra.mxu0 %v1420
    %1854 = vmatprep.subr.bf16.mxu0 0
    %1855 = vmatpush1.bf16.msra.mxu0 %v1421
    %1856 = vmatprep.subr.bf16.mxu0 0
    %1857 = vmatpush1.bf16.msra.mxu0 %v1422
    %1858 = vmatprep.subr.bf16.mxu0 0
    %1859 = vmatpush1.bf16.msra.mxu0 %v1423
    %1860 = vmatprep.mubr.bf16.mxu0 %v470
    %1861 = vmatmul.mubr.bf16.gmra.mrb[0].mxu0 %v468
    %v1862 = vpop.f32.mrb[0].mxu0
    %v1863 = vadd.f32 %v1823, %v1862
    %v1864 = vpop.f32.mrb[0].mxu0
    %v1865 = vpop.f32.mrb[0].mxu0
    %v1866 = vpop.f32.mrb[0].mxu0
    %1867 = vdwg.mxu0
    %1868 = vmatprep.subr.bf16.mxu0 0
    %1869 = vmatpush1.bf16.msra.mxu0 %v1424
    %1870 = vmatprep.subr.bf16.mxu0 0
    %1871 = vmatpush1.bf16.msra.mxu0 %v1425
    %1872 = vmatprep.subr.bf16.mxu0 0
    %1873 = vmatpush1.bf16.msra.mxu0 %v1426
    %1874 = vmatprep.subr.bf16.mxu0 0
    %1875 = vmatpush1.bf16.msra.mxu0 %v1427
    %1876 = vmatprep.subr.bf16.mxu0 0
    %1877 = vmatpush1.bf16.msra.mxu0 %v1428
    %1878 = vmatprep.subr.bf16.mxu0 0
    %1879 = vmatpush1.bf16.msra.mxu0 %v1429
    %1880 = vmatprep.subr.bf16.mxu0 0
    %1881 = vmatpush1.bf16.msra.mxu0 %v1430
    %1882 = vmatprep.subr.bf16.mxu0 0
    %1883 = vmatpush1.bf16.msra.mxu0 %v1431
    %1884 = vmatprep.subr.bf16.mxu0 0
    %1885 = vmatpush1.bf16.msra.mxu0 %v1432
    %1886 = vmatprep.subr.bf16.mxu0 0
    %1887 = vmatpush1.bf16.msra.mxu0 %v1433
    %1888 = vmatprep.subr.bf16.mxu0 0
    %1889 = vmatpush1.bf16.msra.mxu0 %v1434
    %1890 = vmatprep.subr.bf16.mxu0 0
    %1891 = vmatpush1.bf16.msra.mxu0 %v1435
    %1892 = vmatprep.subr.bf16.mxu0 0
    %1893 = vmatpush1.bf16.msra.mxu0 %v1436
    %1894 = vmatprep.subr.bf16.mxu0 0
    %1895 = vmatpush1.bf16.msra.mxu0 %v1437
    %1896 = vmatprep.subr.bf16.mxu0 0
    %1897 = vmatpush1.bf16.msra.mxu0 %v1438
    %1898 = vmatprep.subr.bf16.mxu0 0
    %1899 = vmatpush1.bf16.msra.mxu0 %v1439
    %1900 = vmatprep.mubr.bf16.mxu0 %v467
    %1901 = vmatmul.mubr.bf16.gmra.mrb[0].mxu0 %v453
    %v1902 = vpop.f32.mrb[0].mxu0
    %v1903 = vadd.f32 %v1863, %v1902
    %v1904 = vpop.f32.mrb[0].mxu0
    %v1905 = vpop.f32.mrb[0].mxu0
    %v1906 = vpop.f32.mrb[0].mxu0
    %1907 = vdwg.mxu0
    %1908 = vmatprep.subr.bf16.mxu0 0
    %1909 = vmatpush1.bf16.msra.mxu0 %v1440
    %1910 = vmatprep.subr.bf16.mxu0 0
    %1911 = vmatpush1.bf16.msra.mxu0 %v1441
    %1912 = vmatprep.subr.bf16.mxu0 0
    %1913 = vmatpush1.bf16.msra.mxu0 %v1442
    %1914 = vmatprep.subr.bf16.mxu0 0
    %1915 = vmatpush1.bf16.msra.mxu0 %v1443
    %1916 = vmatprep.subr.bf16.mxu0 0
    %1917 = vmatpush1.bf16.msra.mxu0 %v1444
    %1918 = vmatprep.subr.bf16.mxu0 0
    %1919 = vmatpush1.bf16.msra.mxu0 %v1445
    %1920 = vmatprep.subr.bf16.mxu0 0
    %1921 = vmatpush1.bf16.msra.mxu0 %v1446
    %1922 = vmatprep.subr.bf16.mxu0 0
    %1923 = vmatpush1.bf16.msra.mxu0 %v1447
    %1924 = vmatprep.subr.bf16.mxu0 0
    %1925 = vmatpush1.bf16.msra.mxu0 %v1448
    %1926 = vmatprep.subr.bf16.mxu0 0
    %1927 = vmatpush1.bf16.msra.mxu0 %v1449
    %1928 = vmatprep.subr.bf16.mxu0 0
    %1929 = vmatpush1.bf16.msra.mxu0 %v1450
    %1930 = vmatprep.subr.bf16.mxu0 0
    %1931 = vmatpush1.bf16.msra.mxu0 %v1451
    %1932 = vmatprep.subr.bf16.mxu0 0
    %1933 = vmatpush1.bf16.msra.mxu0 %v1452
    %1934 = vmatprep.subr.bf16.mxu0 0
    %1935 = vmatpush1.bf16.msra.mxu0 %v1453
    %1936 = vmatprep.subr.bf16.mxu0 0
    %1937 = vmatpush1.bf16.msra.mxu0 %v1454
    %1938 = vmatprep.subr.bf16.mxu0 0
    %1939 = vmatpush1.bf16.msra.mxu0 %v1455
    %1940 = vmatprep.mubr.bf16.mxu0 %v471
    %1941 = vmatmul.mubr.bf16.gmra.mrb[0].mxu0 %v469
    %v1942 = vpop.f32.mrb[0].mxu0
    %v1943 = vadd.f32 %v1903, %v1942
    %v1944 = vpop.f32.mrb[0].mxu0
    %v1945 = vpop.f32.mrb[0].mxu0
    %v1946 = vpop.f32.mrb[0].mxu0
    %1947 = vdwg.mxu0
    %1948 = vmatprep.subr.bf16.mxu0 0
    %1949 = vmatpush1.bf16.msra.mxu0 %v1456
    %1950 = vmatprep.subr.bf16.mxu0 0
    %1951 = vmatpush1.bf16.msra.mxu0 %v1457
    %1952 = vmatprep.subr.bf16.mxu0 0
    %1953 = vmatpush1.bf16.msra.mxu0 %v1458
    %1954 = vmatprep.subr.bf16.mxu0 0
    %1955 = vmatpush1.bf16.msra.mxu0 %v1459
    %1956 = vmatprep.subr.bf16.mxu0 0
    %1957 = vmatpush1.bf16.msra.mxu0 %v1460
    %1958 = vmatprep.subr.bf16.mxu0 0
    %1959 = vmatpush1.bf16.msra.mxu0 %v1461
    %1960 = vmatprep.subr.bf16.mxu0 0
    %1961 = vmatpush1.bf16.msra.mxu0 %v1462
    %1962 = vmatprep.subr.bf16.mxu0 0
    %1963 = vmatpush1.bf16.msra.mxu0 %v1463
    %1964 = vmatprep.subr.bf16.mxu0 0
    %1965 = vmatpush1.bf16.msra.mxu0 %v1464
    %1966 = vmatprep.subr.bf16.mxu0 0
    %1967 = vmatpush1.bf16.msra.mxu0 %v1465
    %1968 = vmatprep.subr.bf16.mxu0 0
    %1969 = vmatpush1.bf16.msra.mxu0 %v1466
    %1970 = vmatprep.subr.bf16.mxu0 0
    %1971 = vmatpush1.bf16.msra.mxu0 %v1467
    %1972 = vmatprep.subr.bf16.mxu0 0
    %1973 = vmatpush1.bf16.msra.mxu0 %v1468
    %1974 = vmatprep.subr.bf16.mxu0 0
    %1975 = vmatpush1.bf16.msra.mxu0 %v1469
    %1976 = vmatprep.subr.bf16.mxu0 0
    %1977 = vmatpush1.bf16.msra.mxu0 %v1470
    %1978 = vmatprep.subr.bf16.mxu0 0
    %1979 = vmatpush1.bf16.msra.mxu0 %v1471
    %1980 = vmatprep.mubr.bf16.mxu0 %v509
    %1981 = vmatmul.mubr.bf16.gmra.mrb[0].mxu0 %v495
    %v1982 = vpop.f32.mrb[0].mxu0
    %v1983 = vadd.f32 %v1943, %v1982
    %v1984 = vpop.f32.mrb[0].mxu0
    %v1985 = vpop.f32.mrb[0].mxu0
    %v1986 = vpop.f32.mrb[0].mxu0
    %1987 = vdwg.mxu0
    %1988 = vmatprep.subr.bf16.mxu0 0
    %1989 = vmatpush1.bf16.msra.mxu0 %v1472
    %1990 = vmatprep.subr.bf16.mxu0 0
    %1991 = vmatpush1.bf16.msra.mxu0 %v1473
    %1992 = vmatprep.subr.bf16.mxu0 0
    %1993 = vmatpush1.bf16.msra.mxu0 %v1474
    %1994 = vmatprep.subr.bf16.mxu0 0
    %1995 = vmatpush1.bf16.msra.mxu0 %v1475
    %1996 = vmatprep.subr.bf16.mxu0 0
    %1997 = vmatpush1.bf16.msra.mxu0 %v1476
    %1998 = vmatprep.subr.bf16.mxu0 0
    %1999 = vmatpush1.bf16.msra.mxu0 %v1477
    %2000 = vmatprep.subr.bf16.mxu0 0
    %2001 = vmatpush1.bf16.msra.mxu0 %v1478
    %2002 = vmatprep.subr.bf16.mxu0 0
    %2003 = vmatpush1.bf16.msra.mxu0 %v1479
    %2004 = vmatprep.subr.bf16.mxu0 0
    %2005 = vmatpush1.bf16.msra.mxu0 %v1480
    %2006 = vmatprep.subr.bf16.mxu0 0
    %2007 = vmatpush1.bf16.msra.mxu0 %v1481
    %2008 = vmatprep.subr.bf16.mxu0 0
    %2009 = vmatpush1.bf16.msra.mxu0 %v1482
    %2010 = vmatprep.subr.bf16.mxu0 0
    %2011 = vmatpush1.bf16.msra.mxu0 %v1483
    %2012 = vmatprep.subr.bf16.mxu0 0
    %2013 = vmatpush1.bf16.msra.mxu0 %v1484
    %2014 = vmatprep.subr.bf16.mxu0 0
    %2015 = vmatpush1.bf16.msra.mxu0 %v1485
    %2016 = vmatprep.subr.bf16.mxu0 0
    %2017 = vmatpush1.bf16.msra.mxu0 %v1486
    %2018 = vmatprep.subr.bf16.mxu0 0
    %2019 = vmatpush1.bf16.msra.mxu0 %v1487
    %2020 = vmatprep.mubr.bf16.mxu0 %v519
    %2021 = vmatmul.mubr.bf16.gmra.mrb[0].mxu0 %v517
    %v2022 = vpop.f32.mrb[0].mxu0
    %v2023 = vadd.f32 %v1983, %v2022
    %v2024 = vpop.f32.mrb[0].mxu0
    %v2025 = vpop.f32.mrb[0].mxu0
    %v2026 = vpop.f32.mrb[0].mxu0
    %2027 = vdwg.mxu0
    %2028 = vmatprep.subr.bf16.mxu0 0
    %2029 = vmatpush1.bf16.msra.mxu0 %v1488
    %2030 = vmatprep.subr.bf16.mxu0 0
    %2031 = vmatpush1.bf16.msra.mxu0 %v1489
    %2032 = vmatprep.subr.bf16.mxu0 0
    %2033 = vmatpush1.bf16.msra.mxu0 %v1490
    %2034 = vmatprep.subr.bf16.mxu0 0
    %2035 = vmatpush1.bf16.msra.mxu0 %v1491
    %2036 = vmatprep.subr.bf16.mxu0 0
    %2037 = vmatpush1.bf16.msra.mxu0 %v1492
    %2038 = vmatprep.subr.bf16.mxu0 0
    %2039 = vmatpush1.bf16.msra.mxu0 %v1493
    %2040 = vmatprep.subr.bf16.mxu0 0
    %2041 = vmatpush1.bf16.msra.mxu0 %v1494
    %2042 = vmatprep.subr.bf16.mxu0 0
    %2043 = vmatpush1.bf16.msra.mxu0 %v1495
    %2044 = vmatprep.subr.bf16.mxu0 0
    %2045 = vmatpush1.bf16.msra.mxu0 %v1496
    %2046 = vmatprep.subr.bf16.mxu0 0
    %2047 = vmatpush1.bf16.msra.mxu0 %v1497
    %2048 = vmatprep.subr.bf16.mxu0 0
    %2049 = vmatpush1.bf16.msra.mxu0 %v1498
    %2050 = vmatprep.subr.bf16.mxu0 0
    %2051 = vmatpush1.bf16.msra.mxu0 %v1499
    %2052 = vmatprep.subr.bf16.mxu0 0
    %2053 = vmatpush1.bf16.msra.mxu0 %v1500
    %2054 = vmatprep.subr.bf16.mxu0 0
    %2055 = vmatpush1.bf16.msra.mxu0 %v1501
    %2056 = vmatprep.subr.bf16.mxu0 0
    %2057 = vmatpush1.bf16.msra.mxu0 %v1502
    %2058 = vmatprep.subr.bf16.mxu0 0
    %2059 = vmatpush1.bf16.msra.mxu0 %v1503
    %2060 = vmatprep.mubr.bf16.mxu0 %v516
    %2061 = vmatmul.mubr.bf16.gmra.mrb[0].mxu0 %v502
    %v2062 = vpop.f32.mrb[0].mxu0
    %v2063 = vadd.f32 %v2023, %v2062
    %v2064 = vpop.f32.mrb[0].mxu0
    %v2065 = vpop.f32.mrb[0].mxu0
    %v2066 = vpop.f32.mrb[0].mxu0
    %2067 = vdwg.mxu0
    %2068 = vmatprep.subr.bf16.mxu0 0
    %2069 = vmatpush1.bf16.msra.mxu0 %v1504
    %2070 = vmatprep.subr.bf16.mxu0 0
    %2071 = vmatpush1.bf16.msra.mxu0 %v1505
    %2072 = vmatprep.subr.bf16.mxu0 0
    %2073 = vmatpush1.bf16.msra.mxu0 %v1506
    %2074 = vmatprep.subr.bf16.mxu0 0
    %2075 = vmatpush1.bf16.msra.mxu0 %v1507
    %2076 = vmatprep.subr.bf16.mxu0 0
    %2077 = vmatpush1.bf16.msra.mxu0 %v1508
    %2078 = vmatprep.subr.bf16.mxu0 0
    %2079 = vmatpush1.bf16.msra.mxu0 %v1509
    %2080 = vmatprep.subr.bf16.mxu0 0
    %2081 = vmatpush1.bf16.msra.mxu0 %v1510
    %2082 = vmatprep.subr.bf16.mxu0 0
    %2083 = vmatpush1.bf16.msra.mxu0 %v1511
    %2084 = vmatprep.subr.bf16.mxu0 0
    %2085 = vmatpush1.bf16.msra.mxu0 %v1512
    %2086 = vmatprep.subr.bf16.mxu0 0
    %2087 = vmatpush1.bf16.msra.mxu0 %v1513
    %2088 = vmatprep.subr.bf16.mxu0 0
    %2089 = vmatpush1.bf16.msra.mxu0 %v1514
    %2090 = vmatprep.subr.bf16.mxu0 0
    %2091 = vmatpush1.bf16.msra.mxu0 %v1515
    %2092 = vmatprep.subr.bf16.mxu0 0
    %2093 = vmatpush1.bf16.msra.mxu0 %v1516
    %2094 = vmatprep.subr.bf16.mxu0 0
    %2095 = vmatpush1.bf16.msra.mxu0 %v1517
    %2096 = vmatprep.subr.bf16.mxu0 0
    %2097 = vmatpush1.bf16.msra.mxu0 %v1518
    %2098 = vmatprep.subr.bf16.mxu0 0
    %2099 = vmatpush1.bf16.msra.mxu0 %v1519
    %2100 = vmatprep.mubr.bf16.mxu0 %v520
    %2101 = vmatmul.mubr.bf16.gmra.mrb[0].mxu0 %v518
    %v2102 = vpop.f32.mrb[0].mxu0
    %v2103 = vadd.f32 %v2063, %v2102
    %v2104 = vpop.f32.mrb[0].mxu0
    %v2105 = vpop.f32.mrb[0].mxu0
    %v2106 = vpop.f32.mrb[0].mxu0
    %2107 = vdwg.mxu0
    %2108 = vmatprep.subr.bf16.mxu0 0
    %2109 = vmatpush1.bf16.msra.mxu0 %v1520
    %2110 = vmatprep.subr.bf16.mxu0 0
    %2111 = vmatpush1.bf16.msra.mxu0 %v1521
    %2112 = vmatprep.subr.bf16.mxu0 0
    %2113 = vmatpush1.bf16.msra.mxu0 %v1522
    %2114 = vmatprep.subr.bf16.mxu0 0
    %2115 = vmatpush1.bf16.msra.mxu0 %v1523
    %2116 = vmatprep.subr.bf16.mxu0 0
    %2117 = vmatpush1.bf16.msra.mxu0 %v1524
    %2118 = vmatprep.subr.bf16.mxu0 0
    %2119 = vmatpush1.bf16.msra.mxu0 %v1525
    %2120 = vmatprep.subr.bf16.mxu0 0
    %2121 = vmatpush1.bf16.msra.mxu0 %v1526
    %2122 = vmatprep.subr.bf16.mxu0 0
    %2123 = vmatpush1.bf16.msra.mxu0 %v1527
    %2124 = vmatprep.subr.bf16.mxu0 0
    %2125 = vmatpush1.bf16.msra.mxu0 %v1528
    %2126 = vmatprep.subr.bf16.mxu0 0
    %2127 = vmatpush1.bf16.msra.mxu0 %v1529
    %2128 = vmatprep.subr.bf16.mxu0 0
    %2129 = vmatpush1.bf16.msra.mxu0 %v1530
    %2130 = vmatprep.subr.bf16.mxu0 0
    %2131 = vmatpush1.bf16.msra.mxu0 %v1531
    %2132 = vmatprep.subr.bf16.mxu0 0
    %2133 = vmatpush1.bf16.msra.mxu0 %v1532
    %2134 = vmatprep.subr.bf16.mxu0 0
    %2135 = vmatpush1.bf16.msra.mxu0 %v1533
    %2136 = vmatprep.subr.bf16.mxu0 0
    %2137 = vmatpush1.bf16.msra.mxu0 %v1534
    %2138 = vmatprep.subr.bf16.mxu0 0
    %2139 = vmatpush1.bf16.msra.mxu0 %v1535
    %2140 = vmatprep.mubr.bf16.mxu0 %v558
    %2141 = vmatmul.mubr.bf16.gmra.mrb[0].mxu0 %v544
    %v2142 = vpop.f32.mrb[0].mxu0
    %v2143 = vadd.f32 %v2103, %v2142
    %v2144 = vpop.f32.mrb[0].mxu0
    %v2145 = vpop.f32.mrb[0].mxu0
    %v2146 = vpop.f32.mrb[0].mxu0
    %2147 = vdwg.mxu0
    %2148 = vmatprep.subr.bf16.mxu0 0
    %2149 = vmatpush1.bf16.msra.mxu0 %v1536
    %2150 = vmatprep.subr.bf16.mxu0 0
    %2151 = vmatpush1.bf16.msra.mxu0 %v1537
    %2152 = vmatprep.subr.bf16.mxu0 0
    %2153 = vmatpush1.bf16.msra.mxu0 %v1538
    %2154 = vmatprep.subr.bf16.mxu0 0
    %2155 = vmatpush1.bf16.msra.mxu0 %v1539
    %2156 = vmatprep.subr.bf16.mxu0 0
    %2157 = vmatpush1.bf16.msra.mxu0 %v1540
    %2158 = vmatprep.subr.bf16.mxu0 0
    %2159 = vmatpush1.bf16.msra.mxu0 %v1541
    %2160 = vmatprep.subr.bf16.mxu0 0
    %2161 = vmatpush1.bf16.msra.mxu0 %v1542
    %2162 = vmatprep.subr.bf16.mxu0 0
    %2163 = vmatpush1.bf16.msra.mxu0 %v1543
    %2164 = vmatprep.subr.bf16.mxu0 0
    %2165 = vmatpush1.bf16.msra.mxu0 %v1544
    %2166 = vmatprep.subr.bf16.mxu0 0
    %2167 = vmatpush1.bf16.msra.mxu0 %v1545
    %2168 = vmatprep.subr.bf16.mxu0 0
    %2169 = vmatpush1.bf16.msra.mxu0 %v1546
    %2170 = vmatprep.subr.bf16.mxu0 0
    %2171 = vmatpush1.bf16.msra.mxu0 %v1547
    %2172 = vmatprep.subr.bf16.mxu0 0
    %2173 = vmatpush1.bf16.msra.mxu0 %v1548
    %2174 = vmatprep.subr.bf16.mxu0 0
    %2175 = vmatpush1.bf16.msra.mxu0 %v1549
    %2176 = vmatprep.subr.bf16.mxu0 0
    %2177 = vmatpush1.bf16.msra.mxu0 %v1550
    %2178 = vmatprep.subr.bf16.mxu0 0
    %2179 = vmatpush1.bf16.msra.mxu0 %v1551
    %2180 = vmatprep.mubr.bf16.mxu0 %v568
    %2181 = vmatmul.mubr.bf16.gmra.mrb[0].mxu0 %v566
    %v2182 = vpop.f32.mrb[0].mxu0
    %v2183 = vadd.f32 %v2143, %v2182
    %v2184 = vpop.f32.mrb[0].mxu0
    %v2185 = vpop.f32.mrb[0].mxu0
    %v2186 = vpop.f32.mrb[0].mxu0
    %2187 = vdwg.mxu0
    %2188 = vmatprep.subr.bf16.mxu0 0
    %2189 = vmatpush1.bf16.msra.mxu0 %v1552
    %2190 = vmatprep.subr.bf16.mxu0 0
    %2191 = vmatpush1.bf16.msra.mxu0 %v1553
    %2192 = vmatprep.subr.bf16.mxu0 0
    %2193 = vmatpush1.bf16.msra.mxu0 %v1554
    %2194 = vmatprep.subr.bf16.mxu0 0
    %2195 = vmatpush1.bf16.msra.mxu0 %v1555
    %2196 = vmatprep.subr.bf16.mxu0 0
    %2197 = vmatpush1.bf16.msra.mxu0 %v1556
    %2198 = vmatprep.subr.bf16.mxu0 0
    %2199 = vmatpush1.bf16.msra.mxu0 %v1557
    %2200 = vmatprep.subr.bf16.mxu0 0
    %2201 = vmatpush1.bf16.msra.mxu0 %v1558
    %2202 = vmatprep.subr.bf16.mxu0 0
    %2203 = vmatpush1.bf16.msra.mxu0 %v1559
    %2204 = vmatprep.subr.bf16.mxu0 0
    %2205 = vmatpush1.bf16.msra.mxu0 %v1560
    %2206 = vmatprep.subr.bf16.mxu0 0
    %2207 = vmatpush1.bf16.msra.mxu0 %v1561
    %2208 = vmatprep.subr.bf16.mxu0 0
    %2209 = vmatpush1.bf16.msra.mxu0 %v1562
    %2210 = vmatprep.subr.bf16.mxu0 0
    %2211 = vmatpush1.bf16.msra.mxu0 %v1563
    %2212 = vmatprep.subr.bf16.mxu0 0
    %2213 = vmatpush1.bf16.msra.mxu0 %v1564
    %2214 = vmatprep.subr.bf16.mxu0 0
    %2215 = vmatpush1.bf16.msra.mxu0 %v1565
    %2216 = vmatprep.subr.bf16.mxu0 0
    %2217 = vmatpush1.bf16.msra.mxu0 %v1566
    %2218 = vmatprep.subr.bf16.mxu0 0
    %2219 = vmatpush1.bf16.msra.mxu0 %v1567
    %2220 = vmatprep.mubr.bf16.mxu0 %v565
    %2221 = vmatmul.mubr.bf16.gmra.mrb[0].mxu0 %v551
    %v2222 = vpop.f32.mrb[0].mxu0
    %v2223 = vadd.f32 %v2183, %v2222
    %v2224 = vpop.f32.mrb[0].mxu0
    %v2225 = vpop.f32.mrb[0].mxu0
    %v2226 = vpop.f32.mrb[0].mxu0
    %2227 = vdwg.mxu0
    %2228 = vmatprep.subr.bf16.mxu0 0
    %2229 = vmatpush1.bf16.msra.mxu0 %v1568
    %2230 = vmatprep.subr.bf16.mxu0 0
    %2231 = vmatpush1.bf16.msra.mxu0 %v1569
    %2232 = vmatprep.subr.bf16.mxu0 0
    %2233 = vmatpush1.bf16.msra.mxu0 %v1570
    %2234 = vmatprep.subr.bf16.mxu0 0
    %2235 = vmatpush1.bf16.msra.mxu0 %v1571
    %2236 = vmatprep.subr.bf16.mxu0 0
    %2237 = vmatpush1.bf16.msra.mxu0 %v1572
    %2238 = vmatprep.subr.bf16.mxu0 0
    %2239 = vmatpush1.bf16.msra.mxu0 %v1573
    %2240 = vmatprep.subr.bf16.mxu0 0
    %2241 = vmatpush1.bf16.msra.mxu0 %v1574
    %2242 = vmatprep.subr.bf16.mxu0 0
    %2243 = vmatpush1.bf16.msra.mxu0 %v1575
    %2244 = vmatprep.subr.bf16.mxu0 0
    %2245 = vmatpush1.bf16.msra.mxu0 %v1576
    %2246 = vmatprep.subr.bf16.mxu0 0
    %2247 = vmatpush1.bf16.msra.mxu0 %v1577
    %2248 = vmatprep.subr.bf16.mxu0 0
    %2249 = vmatpush1.bf16.msra.mxu0 %v1578
    %2250 = vmatprep.subr.bf16.mxu0 0
    %2251 = vmatpush1.bf16.msra.mxu0 %v1579
    %2252 = vmatprep.subr.bf16.mxu0 0
    %2253 = vmatpush1.bf16.msra.mxu0 %v1580
    %2254 = vmatprep.subr.bf16.mxu0 0
    %2255 = vmatpush1.bf16.msra.mxu0 %v1581
    %2256 = vmatprep.subr.bf16.mxu0 0
    %2257 = vmatpush1.bf16.msra.mxu0 %v1582
    %2258 = vmatprep.subr.bf16.mxu0 0
    %2259 = vmatpush1.bf16.msra.mxu0 %v1583
    %2260 = vmatprep.mubr.bf16.mxu0 %v569
    %2261 = vmatmul.mubr.bf16.gmra.mrb[0].mxu0 %v567
    %v2262 = vpop.f32.mrb[0].mxu0
    %v2263 = vadd.f32 %v2223, %v2262
    %v2264 = vpop.f32.mrb[0].mxu0
    %v2265 = vpop.f32.mrb[0].mxu0
    %v2266 = vpop.f32.mrb[0].mxu0
    %2267 = vdwg.mxu0
    %2268 = vmatprep.subr.bf16.mxu0 0
    %2269 = vmatpush1.bf16.msra.mxu0 %v1584
    %2270 = vmatprep.subr.bf16.mxu0 0
    %2271 = vmatpush1.bf16.msra.mxu0 %v1585
    %2272 = vmatprep.subr.bf16.mxu0 0
    %2273 = vmatpush1.bf16.msra.mxu0 %v1586
    %2274 = vmatprep.subr.bf16.mxu0 0
    %2275 = vmatpush1.bf16.msra.mxu0 %v1587
    %2276 = vmatprep.subr.bf16.mxu0 0
    %2277 = vmatpush1.bf16.msra.mxu0 0
    %2278 = vmatprep.subr.bf16.mxu0 0
    %2279 = vmatpush1.bf16.msra.mxu0 0
    %2280 = vmatprep.subr.bf16.mxu0 0
    %2281 = vmatpush1.bf16.msra.mxu0 0
    %2282 = vmatprep.subr.bf16.mxu0 0
    %2283 = vmatpush1.bf16.msra.mxu0 0
    %2284 = vmatprep.subr.bf16.mxu0 0
    %2285 = vmatpush1.bf16.msra.mxu0 0
    %2286 = vmatprep.subr.bf16.mxu0 0
    %2287 = vmatpush1.bf16.msra.mxu0 0
    %2288 = vmatprep.subr.bf16.mxu0 0
    %2289 = vmatpush1.bf16.msra.mxu0 0
    %2290 = vmatprep.subr.bf16.mxu0 0
    %2291 = vmatpush1.bf16.msra.mxu0 0
    %2292 = vmatprep.subr.bf16.mxu0 0
    %2293 = vmatpush1.bf16.msra.mxu0 0
    %2294 = vmatprep.subr.bf16.mxu0 0
    %2295 = vmatpush1.bf16.msra.mxu0 0
    %2296 = vmatprep.subr.bf16.mxu0 0
    %2297 = vmatpush1.bf16.msra.mxu0 0
    %2298 = vmatprep.subr.bf16.mxu0 0
    %2299 = vmatpush1.bf16.msra.mxu0 0
    %2300 = vmatprep.mubr.bf16.mxu0 0
    %2301 = vmatmul.mubr.bf16.gmra.mrb[0].mxu0 %v1786
    %v2302 = vpop.f32.mrb[0].mxu0
    %v2303 = vadd.f32 %v2263, %v2302
    %v2304 = vpop.f32.mrb[0].mxu0
    %v2305 = vpop.f32.mrb[0].mxu0
    %v2306 = vpop.f32.mrb[0].mxu0
    %2307 = vdwg.mxu0
    %2308 = vst [vmem:[#allocation2] sm:$0x3] %v2303
    // Predicated region
    $region14: #{simple_encoder_forward.3} parent=1 // pred_check
      _
    $region15: #{simple_encoder_forward.3} parent=1 // pred_check_branch
      %2310 = sbr.rel (0) target = $region17
    $region16: #{simple_encoder_forward.3} parent=1 // pred_region
      %s2312 = ssub.s32 32, 32
      %2313 = vsyncadd [#allocation3], %s2312
      %s2315 = sshll.u32 [#allocation2], 4
      %s2316 = int_to_ptr.vmem [resolvable:$true] %s2315
      %2318 = dma.vmem_to_hbm [thread:$0]  %s2316, 32, %s3, [#allocation3]
    $region17: #{simple_encoder_forward.3} parent=1 // pred_fallthru
      _
    // Predicated region
    $region18: #{simple_encoder_forward.3} parent=1 // pred_check
      _
    $region19: #{simple_encoder_forward.3} parent=1 // pred_check_branch
      %2320 = sbr.rel (0) target = $region21
    $region20: #{simple_encoder_forward.3} parent=1 // pred_region
      %2321 = dma.done [#allocation3], 32
    $region21: #{simple_encoder_forward.3} parent=1 // pred_fallthru
      _
    %2322 = vsyncpa [#allocation3], 1

// kernel: simple_encoder_forward.2
$region0: #{simple_encoder_forward.2}
  #allocation0 [shape = 'u32[]', space=smem, size = 0x4, offset = 0x4, fixed_abs, tag = 'smem constant byte address 0x4 - core index']
  #allocation1 [shape = 'u32[144,128]{1,0:T(1,128)}', space=vmem, size = 0x12000, scoped, tag = 'internal scratch']
  #allocation2 [shape = 'f32[2,28,40,32]{3,2,1,0:T(8,128)}', space=vmem, size = 0x118000, scoped, tag = 'scratch operand']
  #allocation3 [shape = 'f32[2,16,18,32]{3,2,1,0:T(8,128)}', space=vmem, size = 0x60000, scoped, tag = 'scratch operand']
  #allocation4 [shape = 'f32[2,14,16,64]{3,2,1,0:T(8,128)}', space=vmem, size = 0x38000, scoped, tag = 'scratch operand']
  %s0 = inlined_call_operand.vmem [shape: bf16[2,1120,9], index: 0, kind: input, shape index: {}]
  %s1 = inlined_call_operand.vmem [shape: bf16[9,32], index: 1, kind: input, shape index: {}]
  %s2 = inlined_call_operand.vmem [shape: f32[1,32], index: 2, kind: input, shape index: {}]
  %s3 = inlined_call_operand.vmem [shape: bf16[288,64], index: 3, kind: input, shape index: {}]
  %s4 = inlined_call_operand.vmem [shape: f32[1,64], index: 4, kind: input, shape index: {}]
  %s5 = inlined_call_operand.vmem [shape: bf16[2,7,7,64], index: 5, kind: output, shape index: {}]
  %s6 = sld [smem:[#allocation0]]
  $region30: #{simple_encoder_forward.2} parent=0
    _
  %s8 = ssub.s32 1, %s6
  %s9 = scalar_select 0, %s8, %s6
  // Predicated region
  $region2: #{simple_encoder_forward.2} parent=0 // pred_check
    _
  $region3: #{simple_encoder_forward.2} parent=0 // pred_check_branch
    %11 = sbr.rel (0) target = $region5
  $region4: #{simple_encoder_forward.2} parent=0 // pred_region
    _
  $region5: #{simple_encoder_forward.2} parent=0 // pred_fallthru
    _
  // Predicated region
  $region6: #{simple_encoder_forward.2} parent=0 // pred_check
    _
  $region7: #{simple_encoder_forward.2} parent=0 // pred_check_branch
    %13 = sbr.rel (0) target = $region9
  $region8: #{simple_encoder_forward.2} parent=0 // pred_region
    _
  $region9: #{simple_encoder_forward.2} parent=0 // pred_fallthru
    _
  // Predicated region
  $region10: #{simple_encoder_forward.2} parent=0 // pred_check
    _
  $region11: #{simple_encoder_forward.2} parent=0 // pred_check_branch
    %15 = sbr.rel (0) target = $region13
  $region12: #{simple_encoder_forward.2} parent=0 // pred_region
    _
  $region13: #{simple_encoder_forward.2} parent=0 // pred_fallthru
    _
  // Predicated region
  $region14: #{simple_encoder_forward.2} parent=0 // pred_check
    _
  $region15: #{simple_encoder_forward.2} parent=0 // pred_check_branch
    %17 = sbr.rel (0) target = $region17
  $region16: #{simple_encoder_forward.2} parent=0 // pred_region
    _
  $region17: #{simple_encoder_forward.2} parent=0 // pred_fallthru
    _
  // Predicated region
  $region18: #{simple_encoder_forward.2} parent=0 // pred_check
    _
  $region19: #{simple_encoder_forward.2} parent=0 // pred_check_branch
    %19 = sbr.rel (0) target = $region21
  $region20: #{simple_encoder_forward.2} parent=0 // pred_region
    _
  $region21: #{simple_encoder_forward.2} parent=0 // pred_fallthru
    _
  %v21 = vld [vmem:[%s0] sm:$0xf]
  %v22 = vld [vmem:[%s0 + $0x4] sm:$0xf]
  %v23 = vld [vmem:[%s0 + $0x8] sm:$0xf]
  %v24 = vld [vmem:[%s0 + $0xc] sm:$0xf]
  %v25 = vld [vmem:[%s0 + $0x10] sm:$0xf]
  %v26 = vld [vmem:[%s0 + $0x14] sm:$0xf]
  %v27 = vld [vmem:[%s0 + $0x18] sm:$0xf]
  %v28 = vld [vmem:[%s0 + $0x1c] sm:$0xf]
  %v29 = vld [vmem:[%s0 + $0x20] sm:$0xf]
  %v30 = vld [vmem:[%s0 + $0x24] sm:$0xf]
  %v31 = vld [vmem:[%s0 + $0x28] sm:$0xf]
  %v32 = vld [vmem:[%s0 + $0x2c] sm:$0xf]
  %v33 = vld [vmem:[%s0 + $0x30] sm:$0xf]
  %v34 = vld [vmem:[%s0 + $0x34] sm:$0xf]
  %v35 = vld [vmem:[%s0 + $0x38] sm:$0xf]
  %v36 = vld [vmem:[%s0 + $0x3c] sm:$0xf]
  %v37 = vld [vmem:[%s0 + $0x40] sm:$0xf]
  %v38 = vld [vmem:[%s0 + $0x44] sm:$0xf]
  %v39 = vld [vmem:[%s0 + $0x48] sm:$0xf]
  %v40 = vld [vmem:[%s0 + $0x4c] sm:$0xf]
  %v41 = vld [vmem:[%s0 + $0x50] sm:$0xf]
  %v42 = vld [vmem:[%s0 + $0x54] sm:$0xf]
  %v43 = vld [vmem:[%s0 + $0x58] sm:$0xf]
  %v44 = vld [vmem:[%s0 + $0x5c] sm:$0xf]
  %v45 = vld [vmem:[%s0 + $0x60] sm:$0xf]
  %v46 = vld [vmem:[%s0 + $0x64] sm:$0xf]
  %v47 = vld [vmem:[%s0 + $0x68] sm:$0xf]
  %v48 = vld [vmem:[%s0 + $0x6c] sm:$0xf]
  %v49 = vld [vmem:[%s0 + $0x70] sm:$0xf]
  %v50 = vld [vmem:[%s0 + $0x74] sm:$0xf]
  %v51 = vld [vmem:[%s0 + $0x78] sm:$0xf]
  %v52 = vld [vmem:[%s0 + $0x7c] sm:$0xf]
  %v53 = vld [vmem:[%s0 + $0x80] sm:$0xf]
  %v54 = vld [vmem:[%s0 + $0x84] sm:$0xf]
  %v55 = vld [vmem:[%s0 + $0x88] sm:$0xf]
  %v56 = vld [vmem:[%s0 + $0x8c] sm:$0xf]
  %v57 = vld [vmem:[%s0 + $0x90] sm:$0xf]
  %v58 = vld [vmem:[%s0 + $0x94] sm:$0xf]
  %v59 = vld [vmem:[%s0 + $0x98] sm:$0xf]
  %v60 = vld [vmem:[%s0 + $0x9c] sm:$0xf]
  %v61 = vld [vmem:[%s0 + $0xa0] sm:$0xf]
  %v62 = vld [vmem:[%s0 + $0xa4] sm:$0xf]
  %v63 = vld [vmem:[%s0 + $0xa8] sm:$0xf]
  %v64 = vld [vmem:[%s0 + $0xac] sm:$0xf]
  %v65 = vld [vmem:[%s0 + $0xb0] sm:$0xf]
  %v66 = vld [vmem:[%s0 + $0xb4] sm:$0xf]
  %v67 = vld [vmem:[%s0 + $0xb8] sm:$0xf]
  %v68 = vld [vmem:[%s0 + $0xbc] sm:$0xf]
  %v69 = vld [vmem:[%s0 + $0xc0] sm:$0xf]
  %v70 = vld [vmem:[%s0 + $0xc4] sm:$0xf]
  %v71 = vld [vmem:[%s0 + $0xc8] sm:$0xf]
  %v72 = vld [vmem:[%s0 + $0xcc] sm:$0xf]
  %v73 = vld [vmem:[%s0 + $0xd0] sm:$0xf]
  %v74 = vld [vmem:[%s0 + $0xd4] sm:$0xf]
  %v75 = vld [vmem:[%s0 + $0xd8] sm:$0xf]
  %v76 = vld [vmem:[%s0 + $0xdc] sm:$0xf]
  %v77 = vld [vmem:[%s0 + $0xe0] sm:$0xf]
  %v78 = vld [vmem:[%s0 + $0xe4] sm:$0xf]
  %v79 = vld [vmem:[%s0 + $0xe8] sm:$0xf]
  %v80 = vld [vmem:[%s0 + $0xec] sm:$0xf]
  %v81 = vld [vmem:[%s0 + $0xf0] sm:$0xf]
  %v82 = vld [vmem:[%s0 + $0xf4] sm:$0xf]
  %v83 = vld [vmem:[%s0 + $0xf8] sm:$0xf]
  %v84 = vld [vmem:[%s0 + $0xfc] sm:$0xf]
  %v85 = vld [vmem:[%s0 + $0x100] sm:$0xf]
  %v86 = vld [vmem:[%s0 + $0x104] sm:$0xf]
  %v87 = vld [vmem:[%s0 + $0x108] sm:$0xf]
  %v88 = vld [vmem:[%s0 + $0x10c] sm:$0xf]
  %v89 = vld [vmem:[%s0 + $0x110] sm:$0xf]
  %v90 = vld [vmem:[%s0 + $0x114] sm:$0xf]
  %v91 = vld [vmem:[%s0 + $0x118] sm:$0xf]
  %v92 = vld [vmem:[%s0 + $0x11c] sm:$0xf]
  %v93 = vld [vmem:[%s0 + $0x120] sm:$0xf]
  %v94 = vld [vmem:[%s0 + $0x124] sm:$0xf]
  %v95 = vld [vmem:[%s0 + $0x128] sm:$0xf]
  %v96 = vld [vmem:[%s0 + $0x12c] sm:$0xf]
  %v97 = vld [vmem:[%s0 + $0x130] sm:$0xf]
  %v98 = vld [vmem:[%s0 + $0x134] sm:$0xf]
  %v99 = vld [vmem:[%s0 + $0x138] sm:$0xf]
  %v100 = vld [vmem:[%s0 + $0x13c] sm:$0xf]
  %v101 = vld [vmem:[%s0 + $0x140] sm:$0xf]
  %v102 = vld [vmem:[%s0 + $0x144] sm:$0xf]
  %v103 = vld [vmem:[%s0 + $0x148] sm:$0xf]
  %v104 = vld [vmem:[%s0 + $0x14c] sm:$0xf]
  %v105 = vld [vmem:[%s0 + $0x150] sm:$0xf]
  %v106 = vld [vmem:[%s0 + $0x154] sm:$0xf]
  %v107 = vld [vmem:[%s0 + $0x158] sm:$0xf]
  %v108 = vld [vmem:[%s0 + $0x15c] sm:$0xf]
  %v109 = vld [vmem:[%s0 + $0x160] sm:$0xf]
  %v110 = vld [vmem:[%s0 + $0x164] sm:$0xf]
  %v111 = vld [vmem:[%s0 + $0x168] sm:$0xf]
  %v112 = vld [vmem:[%s0 + $0x16c] sm:$0xf]
  %v113 = vld [vmem:[%s0 + $0x170] sm:$0xf]
  %v114 = vld [vmem:[%s0 + $0x174] sm:$0xf]
  %v115 = vld [vmem:[%s0 + $0x178] sm:$0xf]
  %v116 = vld [vmem:[%s0 + $0x17c] sm:$0xf]
  %v117 = vld [vmem:[%s0 + $0x180] sm:$0xf]
  %v118 = vld [vmem:[%s0 + $0x184] sm:$0xf]
  %v119 = vld [vmem:[%s0 + $0x188] sm:$0xf]
  %v120 = vld [vmem:[%s0 + $0x18c] sm:$0xf]
  %v121 = vld [vmem:[%s0 + $0x190] sm:$0xf]
  %v122 = vld [vmem:[%s0 + $0x194] sm:$0xf]
  %v123 = vld [vmem:[%s0 + $0x198] sm:$0xf]
  %v124 = vld [vmem:[%s0 + $0x19c] sm:$0xf]
  %v125 = vld [vmem:[%s0 + $0x1a0] sm:$0xf]
  %v126 = vld [vmem:[%s0 + $0x1a4] sm:$0xf]
  %v127 = vld [vmem:[%s0 + $0x1a8] sm:$0xf]
  %v128 = vld [vmem:[%s0 + $0x1ac] sm:$0xf]
  %v129 = vld [vmem:[%s0 + $0x1b0] sm:$0xf]
  %v130 = vld [vmem:[%s0 + $0x1b4] sm:$0xf]
  %v131 = vld [vmem:[%s0 + $0x1b8] sm:$0xf]
  %v132 = vld [vmem:[%s0 + $0x1bc] sm:$0xf]
  %v133 = vld [vmem:[%s0 + $0x1c0] sm:$0xf]
  %v134 = vld [vmem:[%s0 + $0x1c4] sm:$0xf]
  %v135 = vld [vmem:[%s0 + $0x1c8] sm:$0xf]
  %v136 = vld [vmem:[%s0 + $0x1cc] sm:$0xf]
  %v137 = vld [vmem:[%s0 + $0x1d0] sm:$0xf]
  %v138 = vld [vmem:[%s0 + $0x1d4] sm:$0xf]
  %v139 = vld [vmem:[%s0 + $0x1d8] sm:$0xf]
  %v140 = vld [vmem:[%s0 + $0x1dc] sm:$0xf]
  %v141 = vld [vmem:[%s0 + $0x1e0] sm:$0xf]
  %v142 = vld [vmem:[%s0 + $0x1e4] sm:$0xf]
  %v143 = vld [vmem:[%s0 + $0x1e8] sm:$0xf]
  %v144 = vld [vmem:[%s0 + $0x1ec] sm:$0xf]
  %v145 = vld [vmem:[%s0 + $0x1f0] sm:$0xf]
  %v146 = vld [vmem:[%s0 + $0x1f4] sm:$0xf]
  %v147 = vld [vmem:[%s0 + $0x1f8] sm:$0xf]
  %v148 = vld [vmem:[%s0 + $0x1fc] sm:$0xf]
  %v149 = vld [vmem:[%s0 + $0x200] sm:$0xf]
  %v150 = vld [vmem:[%s0 + $0x204] sm:$0xf]
  %v151 = vld [vmem:[%s0 + $0x208] sm:$0xf]
  %v152 = vld [vmem:[%s0 + $0x20c] sm:$0xf]
  %v153 = vld [vmem:[%s0 + $0x210] sm:$0xf]
  %v154 = vld [vmem:[%s0 + $0x214] sm:$0xf]
  %v155 = vld [vmem:[%s0 + $0x218] sm:$0xf]
  %v156 = vld [vmem:[%s0 + $0x21c] sm:$0xf]
  %v157 = vld [vmem:[%s0 + $0x220] sm:$0xf]
  %v158 = vld [vmem:[%s0 + $0x224] sm:$0xf]
  %v159 = vld [vmem:[%s0 + $0x228] sm:$0xf]
  %v160 = vld [vmem:[%s0 + $0x22c] sm:$0xf]
  %v161 = vld [vmem:[%s0 + $0x230] sm:$0xf]
  %v162 = vld [vmem:[%s0 + $0x234] sm:$0xf]
  %v163 = vld [vmem:[%s0 + $0x238] sm:$0xf]
  %v164 = vld [vmem:[%s0 + $0x23c] sm:$0xf]
  %v165 = vld [vmem:[%s0 + $0x240] sm:$0xf]
  %v166 = vld [vmem:[%s0 + $0x244] sm:$0xf]
  %v167 = vld [vmem:[%s0 + $0x248] sm:$0xf]
  %v168 = vld [vmem:[%s0 + $0x24c] sm:$0xf]
  %v169 = vld [vmem:[%s0 + $0x250] sm:$0xf]
  %v170 = vld [vmem:[%s0 + $0x254] sm:$0xf]
  %v171 = vld [vmem:[%s0 + $0x258] sm:$0xf]
  %v172 = vld [vmem:[%s0 + $0x25c] sm:$0xf]
  %v173 = vld [vmem:[%s0 + $0x260] sm:$0xf]
  %v174 = vld [vmem:[%s0 + $0x264] sm:$0xf]
  %v175 = vld [vmem:[%s0 + $0x268] sm:$0xf]
  %v176 = vld [vmem:[%s0 + $0x26c] sm:$0xf]
  %v177 = vld [vmem:[%s0 + $0x270] sm:$0xf]
  %v178 = vld [vmem:[%s0 + $0x274] sm:$0xf]
  %v179 = vld [vmem:[%s0 + $0x278] sm:$0xf]
  %v180 = vld [vmem:[%s0 + $0x27c] sm:$0xf]
  %v181 = vld [vmem:[%s0 + $0x280] sm:$0xf]
  %v182 = vld [vmem:[%s0 + $0x284] sm:$0xf]
  %v183 = vld [vmem:[%s0 + $0x288] sm:$0xf]
  %v184 = vld [vmem:[%s0 + $0x28c] sm:$0xf]
  %v185 = vld [vmem:[%s0 + $0x290] sm:$0xf]
  %v186 = vld [vmem:[%s0 + $0x294] sm:$0xf]
  %v187 = vld [vmem:[%s0 + $0x298] sm:$0xf]
  %v188 = vld [vmem:[%s0 + $0x29c] sm:$0xf]
  %v189 = vld [vmem:[%s0 + $0x2a0] sm:$0xf]
  %v190 = vld [vmem:[%s0 + $0x2a4] sm:$0xf]
  %v191 = vld [vmem:[%s0 + $0x2a8] sm:$0xf]
  %v192 = vld [vmem:[%s0 + $0x2ac] sm:$0xf]
  %v193 = vld [vmem:[%s0 + $0x2b0] sm:$0xf]
  %v194 = vld [vmem:[%s0 + $0x2b4] sm:$0xf]
  %v195 = vld [vmem:[%s0 + $0x2b8] sm:$0xf]
  %v196 = vld [vmem:[%s0 + $0x2bc] sm:$0xf]
  %v197 = vld [vmem:[%s0 + $0x2c0] sm:$0xf]
  %v198 = vld [vmem:[%s0 + $0x2c4] sm:$0xf]
  %v199 = vld [vmem:[%s0 + $0x2c8] sm:$0xf]
  %v200 = vld [vmem:[%s0 + $0x2cc] sm:$0xf]
  %v201 = vld [vmem:[%s0 + $0x2d0] sm:$0xf]
  %v202 = vld [vmem:[%s0 + $0x2d4] sm:$0xf]
  %v203 = vld [vmem:[%s0 + $0x2d8] sm:$0xf]
  %v204 = vld [vmem:[%s0 + $0x2dc] sm:$0xf]
  %v205 = vld [vmem:[%s0 + $0x2e0] sm:$0xf]
  %v206 = vld [vmem:[%s0 + $0x2e4] sm:$0xf]
  %v207 = vld [vmem:[%s0 + $0x2e8] sm:$0xf]
  %v208 = vld [vmem:[%s0 + $0x2ec] sm:$0xf]
  %v209 = vld [vmem:[%s0 + $0x2f0] sm:$0xf]
  %v210 = vld [vmem:[%s0 + $0x2f4] sm:$0xf]
  %v211 = vld [vmem:[%s0 + $0x2f8] sm:$0xf]
  %v212 = vld [vmem:[%s0 + $0x2fc] sm:$0xf]
  %v213 = vld [vmem:[%s0 + $0x300] sm:$0xf]
  %v214 = vld [vmem:[%s0 + $0x304] sm:$0xf]
  %v215 = vld [vmem:[%s0 + $0x308] sm:$0xf]
  %v216 = vld [vmem:[%s0 + $0x30c] sm:$0xf]
  %v217 = vld [vmem:[%s0 + $0x310] sm:$0xf]
  %v218 = vld [vmem:[%s0 + $0x314] sm:$0xf]
  %v219 = vld [vmem:[%s0 + $0x318] sm:$0xf]
  %v220 = vld [vmem:[%s0 + $0x31c] sm:$0xf]
  %v221 = vld [vmem:[%s0 + $0x320] sm:$0xf]
  %v222 = vld [vmem:[%s0 + $0x324] sm:$0xf]
  %v223 = vld [vmem:[%s0 + $0x328] sm:$0xf]
  %v224 = vld [vmem:[%s0 + $0x32c] sm:$0xf]
  %v225 = vld [vmem:[%s0 + $0x330] sm:$0xf]
  %v226 = vld [vmem:[%s0 + $0x334] sm:$0xf]
  %v227 = vld [vmem:[%s0 + $0x338] sm:$0xf]
  %v228 = vld [vmem:[%s0 + $0x33c] sm:$0xf]
  %v229 = vld [vmem:[%s0 + $0x340] sm:$0xf]
  %v230 = vld [vmem:[%s0 + $0x344] sm:$0xf]
  %v231 = vld [vmem:[%s0 + $0x348] sm:$0xf]
  %v232 = vld [vmem:[%s0 + $0x34c] sm:$0xf]
  %v233 = vld [vmem:[%s0 + $0x350] sm:$0xf]
  %v234 = vld [vmem:[%s0 + $0x354] sm:$0xf]
  %v235 = vld [vmem:[%s0 + $0x358] sm:$0xf]
  %v236 = vld [vmem:[%s0 + $0x35c] sm:$0xf]
  %v237 = vld [vmem:[%s0 + $0x360] sm:$0xf]
  %v238 = vld [vmem:[%s0 + $0x364] sm:$0xf]
  %v239 = vld [vmem:[%s0 + $0x368] sm:$0xf]
  %v240 = vld [vmem:[%s0 + $0x36c] sm:$0xf]
  %v241 = vld [vmem:[%s0 + $0x370] sm:$0xf]
  %v242 = vld [vmem:[%s0 + $0x374] sm:$0xf]
  %v243 = vld [vmem:[%s0 + $0x378] sm:$0xf]
  %v244 = vld [vmem:[%s0 + $0x37c] sm:$0xf]
  %v245 = vld [vmem:[%s0 + $0x380] sm:$0xf]
  %v246 = vld [vmem:[%s0 + $0x384] sm:$0xf]
  %v247 = vld [vmem:[%s0 + $0x388] sm:$0xf]
  %v248 = vld [vmem:[%s0 + $0x38c] sm:$0xf]
  %v249 = vld [vmem:[%s0 + $0x390] sm:$0xf]
  %v250 = vld [vmem:[%s0 + $0x394] sm:$0xf]
  %v251 = vld [vmem:[%s0 + $0x398] sm:$0xf]
  %v252 = vld [vmem:[%s0 + $0x39c] sm:$0xf]
  %v253 = vld [vmem:[%s0 + $0x3a0] sm:$0xf]
  %v254 = vld [vmem:[%s0 + $0x3a4] sm:$0xf]
  %v255 = vld [vmem:[%s0 + $0x3a8] sm:$0xf]
  %v256 = vld [vmem:[%s0 + $0x3ac] sm:$0xf]
  %v257 = vld [vmem:[%s0 + $0x3b0] sm:$0xf]
  %v258 = vld [vmem:[%s0 + $0x3b4] sm:$0xf]
  %v259 = vld [vmem:[%s0 + $0x3b8] sm:$0xf]
  %v260 = vld [vmem:[%s0 + $0x3bc] sm:$0xf]
  %v261 = vld [vmem:[%s0 + $0x3c0] sm:$0xf]
  %v262 = vld [vmem:[%s0 + $0x3c4] sm:$0xf]
  %v263 = vld [vmem:[%s0 + $0x3c8] sm:$0xf]
  %v264 = vld [vmem:[%s0 + $0x3cc] sm:$0xf]
  %v265 = vld [vmem:[%s0 + $0x3d0] sm:$0xf]
  %v266 = vld [vmem:[%s0 + $0x3d4] sm:$0xf]
  %v267 = vld [vmem:[%s0 + $0x3d8] sm:$0xf]
  %v268 = vld [vmem:[%s0 + $0x3dc] sm:$0xf]
  %v269 = vld [vmem:[%s0 + $0x3e0] sm:$0xf]
  %v270 = vld [vmem:[%s0 + $0x3e4] sm:$0xf]
  %v271 = vld [vmem:[%s0 + $0x3e8] sm:$0xf]
  %v272 = vld [vmem:[%s0 + $0x3ec] sm:$0xf]
  %v273 = vld [vmem:[%s0 + $0x3f0] sm:$0xf]
  %v274 = vld [vmem:[%s0 + $0x3f4] sm:$0xf]
  %v275 = vld [vmem:[%s0 + $0x3f8] sm:$0xf]
  %v276 = vld [vmem:[%s0 + $0x3fc] sm:$0xf]
  %v277 = vld [vmem:[%s0 + $0x400] sm:$0xf]
  %v278 = vld [vmem:[%s0 + $0x404] sm:$0xf]
  %v279 = vld [vmem:[%s0 + $0x408] sm:$0xf]
  %v280 = vld [vmem:[%s0 + $0x40c] sm:$0xf]
  %v281 = vld [vmem:[%s0 + $0x410] sm:$0xf]
  %v282 = vld [vmem:[%s0 + $0x414] sm:$0xf]
  %v283 = vld [vmem:[%s0 + $0x418] sm:$0xf]
  %v284 = vld [vmem:[%s0 + $0x41c] sm:$0xf]
  %v285 = vld [vmem:[%s0 + $0x420] sm:$0xf]
  %v286 = vld [vmem:[%s0 + $0x424] sm:$0xf]
  %v287 = vld [vmem:[%s0 + $0x428] sm:$0xf]
  %v288 = vld [vmem:[%s0 + $0x42c] sm:$0xf]
  %v289 = vld [vmem:[%s0 + $0x430] sm:$0xf]
  %v290 = vld [vmem:[%s0 + $0x434] sm:$0xf]
  %v291 = vld [vmem:[%s0 + $0x438] sm:$0xf]
  %v292 = vld [vmem:[%s0 + $0x43c] sm:$0xf]
  %v293 = vld [vmem:[%s0 + $0x440] sm:$0xf]
  %v294 = vld [vmem:[%s0 + $0x444] sm:$0xf]
  %v295 = vld [vmem:[%s0 + $0x448] sm:$0xf]
  %v296 = vld [vmem:[%s0 + $0x44c] sm:$0xf]
  %v297 = vld [vmem:[%s0 + $0x450] sm:$0xf]
  %v298 = vld [vmem:[%s0 + $0x454] sm:$0xf]
  %v299 = vld [vmem:[%s0 + $0x458] sm:$0xf]
  %v300 = vld [vmem:[%s0 + $0x45c] sm:$0xf]
  %v301 = vld [vmem:[%s1] sm:$0xf]
  %v302 = vld [vmem:[%s1 + $0x4] sm:$0x1]
  %v583 = vunpack.c.l.b16 %v21
  %v584 = vunpack.c.l.b16 %v22
  %v585 = vunpack.c.l.b16 %v23
  %v586 = vunpack.c.l.b16 %v24
  %v587 = vunpack.c.l.b16 %v25
  %v588 = vunpack.c.l.b16 %v26
  %v589 = vunpack.c.l.b16 %v27
  %v590 = vunpack.c.l.b16 %v28
  %v591 = vunpack.c.l.b16 %v29
  %v592 = vunpack.c.l.b16 %v30
  %v593 = vunpack.c.l.b16 %v31
  %v594 = vunpack.c.l.b16 %v32
  %v595 = vunpack.c.l.b16 %v33
  %v596 = vunpack.c.l.b16 %v34
  %v597 = vunpack.c.l.b16 %v35
  %v598 = vunpack.c.l.b16 %v36
  %v599 = vunpack.c.l.b16 %v37
  %v600 = vunpack.c.l.b16 %v38
  %v601 = vunpack.c.l.b16 %v39
  %v602 = vunpack.c.l.b16 %v40
  %v603 = vunpack.c.l.b16 %v41
  %v604 = vunpack.c.l.b16 %v42
  %v605 = vunpack.c.l.b16 %v43
  %v606 = vunpack.c.l.b16 %v44
  %v607 = vunpack.c.l.b16 %v45
  %v608 = vunpack.c.l.b16 %v46
  %v609 = vunpack.c.l.b16 %v47
  %v610 = vunpack.c.l.b16 %v48
  %v611 = vunpack.c.l.b16 %v49
  %v612 = vunpack.c.l.b16 %v50
  %v613 = vunpack.c.l.b16 %v51
  %v614 = vunpack.c.l.b16 %v52
  %v615 = vunpack.c.l.b16 %v53
  %v616 = vunpack.c.l.b16 %v54
  %v617 = vunpack.c.l.b16 %v55
  %v618 = vunpack.c.l.b16 %v56
  %v619 = vunpack.c.l.b16 %v57
  %v620 = vunpack.c.l.b16 %v58
  %v621 = vunpack.c.l.b16 %v59
  %v622 = vunpack.c.l.b16 %v60
  %v623 = vunpack.c.l.b16 %v61
  %v624 = vunpack.c.l.b16 %v62
  %v625 = vunpack.c.l.b16 %v63
  %v626 = vunpack.c.l.b16 %v64
  %v627 = vunpack.c.l.b16 %v65
  %v628 = vunpack.c.l.b16 %v66
  %v629 = vunpack.c.l.b16 %v67
  %v630 = vunpack.c.l.b16 %v68
  %v631 = vunpack.c.l.b16 %v69
  %v632 = vunpack.c.l.b16 %v70
  %v633 = vunpack.c.l.b16 %v71
  %v634 = vunpack.c.l.b16 %v72
  %v635 = vunpack.c.l.b16 %v73
  %v636 = vunpack.c.l.b16 %v74
  %v637 = vunpack.c.l.b16 %v75
  %v638 = vunpack.c.l.b16 %v76
  %v639 = vunpack.c.l.b16 %v77
  %v640 = vunpack.c.l.b16 %v78
  %v641 = vunpack.c.l.b16 %v79
  %v642 = vunpack.c.l.b16 %v80
  %v643 = vunpack.c.l.b16 %v81
  %v644 = vunpack.c.l.b16 %v82
  %v645 = vunpack.c.l.b16 %v83
  %v646 = vunpack.c.l.b16 %v84
  %v647 = vunpack.c.l.b16 %v85
  %v648 = vunpack.c.l.b16 %v86
  %v649 = vunpack.c.l.b16 %v87
  %v650 = vunpack.c.l.b16 %v88
  %v651 = vunpack.c.l.b16 %v89
  %v652 = vunpack.c.l.b16 %v90
  %v653 = vunpack.c.l.b16 %v91
  %v654 = vunpack.c.l.b16 %v92
  %v655 = vunpack.c.l.b16 %v93
  %v656 = vunpack.c.l.b16 %v94
  %v657 = vunpack.c.l.b16 %v95
  %v658 = vunpack.c.l.b16 %v96
  %v659 = vunpack.c.l.b16 %v97
  %v660 = vunpack.c.l.b16 %v98
  %v661 = vunpack.c.l.b16 %v99
  %v662 = vunpack.c.l.b16 %v100
  %v663 = vunpack.c.l.b16 %v101
  %v664 = vunpack.c.l.b16 %v102
  %v665 = vunpack.c.l.b16 %v103
  %v666 = vunpack.c.l.b16 %v104
  %v667 = vunpack.c.l.b16 %v105
  %v668 = vunpack.c.l.b16 %v106
  %v669 = vunpack.c.l.b16 %v107
  %v670 = vunpack.c.l.b16 %v108
  %v671 = vunpack.c.l.b16 %v109
  %v672 = vunpack.c.l.b16 %v110
  %v673 = vunpack.c.l.b16 %v111
  %v674 = vunpack.c.l.b16 %v112
  %v675 = vunpack.c.l.b16 %v113
  %v676 = vunpack.c.l.b16 %v114
  %v677 = vunpack.c.l.b16 %v115
  %v678 = vunpack.c.l.b16 %v116
  %v679 = vunpack.c.l.b16 %v117
  %v680 = vunpack.c.l.b16 %v118
  %v681 = vunpack.c.l.b16 %v119
  %v682 = vunpack.c.l.b16 %v120
  %v683 = vunpack.c.l.b16 %v121
  %v684 = vunpack.c.l.b16 %v122
  %v685 = vunpack.c.l.b16 %v123
  %v686 = vunpack.c.l.b16 %v124
  %v687 = vunpack.c.l.b16 %v125
  %v688 = vunpack.c.l.b16 %v126
  %v689 = vunpack.c.l.b16 %v127
  %v690 = vunpack.c.l.b16 %v128
  %v691 = vunpack.c.l.b16 %v129
  %v692 = vunpack.c.l.b16 %v130
  %v693 = vunpack.c.l.b16 %v131
  %v694 = vunpack.c.l.b16 %v132
  %v695 = vunpack.c.l.b16 %v133
  %v696 = vunpack.c.l.b16 %v134
  %v697 = vunpack.c.l.b16 %v135
  %v698 = vunpack.c.l.b16 %v136
  %v699 = vunpack.c.l.b16 %v137
  %v700 = vunpack.c.l.b16 %v138
  %v701 = vunpack.c.l.b16 %v139
  %v702 = vunpack.c.l.b16 %v140
  %v703 = vunpack.c.l.b16 %v141
  %v704 = vunpack.c.l.b16 %v142
  %v705 = vunpack.c.l.b16 %v143
  %v706 = vunpack.c.l.b16 %v144
  %v707 = vunpack.c.l.b16 %v145
  %v708 = vunpack.c.l.b16 %v146
  %v709 = vunpack.c.l.b16 %v147
  %v710 = vunpack.c.l.b16 %v148
  %v711 = vunpack.c.l.b16 %v149
  %v712 = vunpack.c.l.b16 %v150
  %v713 = vunpack.c.l.b16 %v151
  %v714 = vunpack.c.l.b16 %v152
  %v715 = vunpack.c.l.b16 %v153
  %v716 = vunpack.c.l.b16 %v154
  %v717 = vunpack.c.l.b16 %v155
  %v718 = vunpack.c.l.b16 %v156
  %v719 = vunpack.c.l.b16 %v157
  %v720 = vunpack.c.l.b16 %v158
  %v721 = vunpack.c.l.b16 %v159
  %v722 = vunpack.c.l.b16 %v160
  %v723 = vunpack.c.l.b16 %v161
  %v724 = vunpack.c.l.b16 %v162
  %v725 = vunpack.c.l.b16 %v163
  %v726 = vunpack.c.l.b16 %v164
  %v727 = vunpack.c.l.b16 %v165
  %v728 = vunpack.c.l.b16 %v166
  %v729 = vunpack.c.l.b16 %v167
  %v730 = vunpack.c.l.b16 %v168
  %v731 = vunpack.c.l.b16 %v169
  %v732 = vunpack.c.l.b16 %v170
  %v733 = vunpack.c.l.b16 %v171
  %v734 = vunpack.c.l.b16 %v172
  %v735 = vunpack.c.l.b16 %v173
  %v736 = vunpack.c.l.b16 %v174
  %v737 = vunpack.c.l.b16 %v175
  %v738 = vunpack.c.l.b16 %v176
  %v739 = vunpack.c.l.b16 %v177
  %v740 = vunpack.c.l.b16 %v178
  %v741 = vunpack.c.l.b16 %v179
  %v742 = vunpack.c.l.b16 %v180
  %v743 = vunpack.c.l.b16 %v181
  %v744 = vunpack.c.l.b16 %v182
  %v745 = vunpack.c.l.b16 %v183
  %v746 = vunpack.c.l.b16 %v184
  %v747 = vunpack.c.l.b16 %v185
  %v748 = vunpack.c.l.b16 %v186
  %v749 = vunpack.c.l.b16 %v187
  %v750 = vunpack.c.l.b16 %v188
  %v751 = vunpack.c.l.b16 %v189
  %v752 = vunpack.c.l.b16 %v190
  %v753 = vunpack.c.l.b16 %v191
  %v754 = vunpack.c.l.b16 %v192
  %v755 = vunpack.c.l.b16 %v193
  %v756 = vunpack.c.l.b16 %v194
  %v757 = vunpack.c.l.b16 %v195
  %v758 = vunpack.c.l.b16 %v196
  %v759 = vunpack.c.l.b16 %v197
  %v760 = vunpack.c.l.b16 %v198
  %v761 = vunpack.c.l.b16 %v199
  %v762 = vunpack.c.l.b16 %v200
  %v763 = vunpack.c.l.b16 %v201
  %v764 = vunpack.c.l.b16 %v202
  %v765 = vunpack.c.l.b16 %v203
  %v766 = vunpack.c.l.b16 %v204
  %v767 = vunpack.c.l.b16 %v205
  %v768 = vunpack.c.l.b16 %v206
  %v769 = vunpack.c.l.b16 %v207
  %v770 = vunpack.c.l.b16 %v208
  %v771 = vunpack.c.l.b16 %v209
  %v772 = vunpack.c.l.b16 %v210
  %v773 = vunpack.c.l.b16 %v211
  %v774 = vunpack.c.l.b16 %v212
  %v775 = vunpack.c.l.b16 %v213
  %v776 = vunpack.c.l.b16 %v214
  %v777 = vunpack.c.l.b16 %v215
  %v778 = vunpack.c.l.b16 %v216
  %v779 = vunpack.c.l.b16 %v217
  %v780 = vunpack.c.l.b16 %v218
  %v781 = vunpack.c.l.b16 %v219
  %v782 = vunpack.c.l.b16 %v220
  %v783 = vunpack.c.l.b16 %v221
  %v784 = vunpack.c.l.b16 %v222
  %v785 = vunpack.c.l.b16 %v223
  %v786 = vunpack.c.l.b16 %v224
  %v787 = vunpack.c.l.b16 %v225
  %v788 = vunpack.c.l.b16 %v226
  %v789 = vunpack.c.l.b16 %v227
  %v790 = vunpack.c.l.b16 %v228
  %v791 = vunpack.c.l.b16 %v229
  %v792 = vunpack.c.l.b16 %v230
  %v793 = vunpack.c.l.b16 %v231
  %v794 = vunpack.c.l.b16 %v232
  %v795 = vunpack.c.l.b16 %v233
  %v796 = vunpack.c.l.b16 %v234
  %v797 = vunpack.c.l.b16 %v235
  %v798 = vunpack.c.l.b16 %v236
  %v799 = vunpack.c.l.b16 %v237
  %v800 = vunpack.c.l.b16 %v238
  %v801 = vunpack.c.l.b16 %v239
  %v802 = vunpack.c.l.b16 %v240
  %v803 = vunpack.c.l.b16 %v241
  %v804 = vunpack.c.l.b16 %v242
  %v805 = vunpack.c.l.b16 %v243
  %v806 = vunpack.c.l.b16 %v244
  %v807 = vunpack.c.l.b16 %v245
  %v808 = vunpack.c.l.b16 %v246
  %v809 = vunpack.c.l.b16 %v247
  %v810 = vunpack.c.l.b16 %v248
  %v811 = vunpack.c.l.b16 %v249
  %v812 = vunpack.c.l.b16 %v250
  %v813 = vunpack.c.l.b16 %v251
  %v814 = vunpack.c.l.b16 %v252
  %v815 = vunpack.c.l.b16 %v253
  %v816 = vunpack.c.l.b16 %v254
  %v817 = vunpack.c.l.b16 %v255
  %v818 = vunpack.c.l.b16 %v256
  %v819 = vunpack.c.l.b16 %v257
  %v820 = vunpack.c.l.b16 %v258
  %v821 = vunpack.c.l.b16 %v259
  %v822 = vunpack.c.l.b16 %v260
  %v823 = vunpack.c.l.b16 %v261
  %v824 = vunpack.c.l.b16 %v262
  %v825 = vunpack.c.l.b16 %v263
  %v826 = vunpack.c.l.b16 %v264
  %v827 = vunpack.c.l.b16 %v265
  %v828 = vunpack.c.l.b16 %v266
  %v829 = vunpack.c.l.b16 %v267
  %v830 = vunpack.c.l.b16 %v268
  %v831 = vunpack.c.l.b16 %v269
  %v832 = vunpack.c.l.b16 %v270
  %v833 = vunpack.c.l.b16 %v271
  %v834 = vunpack.c.l.b16 %v272
  %v835 = vunpack.c.l.b16 %v273
  %v836 = vunpack.c.l.b16 %v274
  %v837 = vunpack.c.l.b16 %v275
  %v838 = vunpack.c.l.b16 %v276
  %v839 = vunpack.c.l.b16 %v277
  %v840 = vunpack.c.l.b16 %v278
  %v841 = vunpack.c.l.b16 %v279
  %v842 = vunpack.c.l.b16 %v280
  %v843 = vunpack.c.l.b16 %v281
  %v844 = vunpack.c.l.b16 %v282
  %v845 = vunpack.c.l.b16 %v283
  %v846 = vunpack.c.l.b16 %v284
  %v847 = vunpack.c.l.b16 %v285
  %v848 = vunpack.c.l.b16 %v286
  %v849 = vunpack.c.l.b16 %v287
  %v850 = vunpack.c.l.b16 %v288
  %v851 = vunpack.c.l.b16 %v289
  %v852 = vunpack.c.l.b16 %v290
  %v853 = vunpack.c.l.b16 %v291
  %v854 = vunpack.c.l.b16 %v292
  %v855 = vunpack.c.l.b16 %v293
  %v856 = vunpack.c.l.b16 %v294
  %v857 = vunpack.c.l.b16 %v295
  %v858 = vunpack.c.l.b16 %v296
  %v859 = vunpack.c.l.b16 %v297
  %v860 = vunpack.c.l.b16 %v298
  %v861 = vunpack.c.l.b16 %v299
  %v862 = vunpack.c.l.b16 %v300
  %v863 = vpack.c.b16 %v584, %v583
  %v864 = vpack.c.b16 %v586, %v585
  %v865 = vpack.c.b16 %v588, %v587
  %v866 = vpack.c.b16 %v590, %v589
  %v867 = vpack.c.b16 %v592, %v591
  %v868 = vpack.c.b16 %v594, %v593
  %v869 = vpack.c.b16 %v596, %v595
  %v870 = vpack.c.b16 %v598, %v597
  %v871 = vpack.c.b16 %v600, %v599
  %v872 = vpack.c.b16 %v602, %v601
  %v873 = vpack.c.b16 %v604, %v603
  %v874 = vpack.c.b16 %v606, %v605
  %v875 = vpack.c.b16 %v608, %v607
  %v876 = vpack.c.b16 %v610, %v609
  %v877 = vpack.c.b16 %v612, %v611
  %v878 = vpack.c.b16 %v614, %v613
  %v879 = vpack.c.b16 %v616, %v615
  %v880 = vpack.c.b16 %v618, %v617
  %v881 = vpack.c.b16 %v620, %v619
  %v882 = vpack.c.b16 %v622, %v621
  %v883 = vpack.c.b16 %v624, %v623
  %v884 = vpack.c.b16 %v626, %v625
  %v885 = vpack.c.b16 %v628, %v627
  %v886 = vpack.c.b16 %v630, %v629
  %v887 = vpack.c.b16 %v632, %v631
  %v888 = vpack.c.b16 %v634, %v633
  %v889 = vpack.c.b16 %v636, %v635
  %v890 = vpack.c.b16 %v638, %v637
  %v891 = vpack.c.b16 %v640, %v639
  %v892 = vpack.c.b16 %v642, %v641
  %v893 = vpack.c.b16 %v644, %v643
  %v894 = vpack.c.b16 %v646, %v645
  %v895 = vpack.c.b16 %v648, %v647
  %v896 = vpack.c.b16 %v650, %v649
  %v897 = vpack.c.b16 %v652, %v651
  %v898 = vpack.c.b16 %v654, %v653
  %v899 = vpack.c.b16 %v656, %v655
  %v900 = vpack.c.b16 %v658, %v657
  %v901 = vpack.c.b16 %v660, %v659
  %v902 = vpack.c.b16 %v662, %v661
  %v903 = vpack.c.b16 %v664, %v663
  %v904 = vpack.c.b16 %v666, %v665
  %v905 = vpack.c.b16 %v668, %v667
  %v906 = vpack.c.b16 %v670, %v669
  %v907 = vpack.c.b16 %v672, %v671
  %v908 = vpack.c.b16 %v674, %v673
  %v909 = vpack.c.b16 %v676, %v675
  %v910 = vpack.c.b16 %v678, %v677
  %v911 = vpack.c.b16 %v680, %v679
  %v912 = vpack.c.b16 %v682, %v681
  %v913 = vpack.c.b16 %v684, %v683
  %v914 = vpack.c.b16 %v686, %v685
  %v915 = vpack.c.b16 %v688, %v687
  %v916 = vpack.c.b16 %v690, %v689
  %v917 = vpack.c.b16 %v692, %v691
  %v918 = vpack.c.b16 %v694, %v693
  %v919 = vpack.c.b16 %v696, %v695
  %v920 = vpack.c.b16 %v698, %v697
  %v921 = vpack.c.b16 %v700, %v699
  %v922 = vpack.c.b16 %v702, %v701
  %v923 = vpack.c.b16 %v704, %v703
  %v924 = vpack.c.b16 %v706, %v705
  %v925 = vpack.c.b16 %v708, %v707
  %v926 = vpack.c.b16 %v710, %v709
  %v927 = vpack.c.b16 %v712, %v711
  %v928 = vpack.c.b16 %v714, %v713
  %v929 = vpack.c.b16 %v716, %v715
  %v930 = vpack.c.b16 %v718, %v717
  %v931 = vpack.c.b16 %v720, %v719
  %v932 = vpack.c.b16 %v722, %v721
  %v933 = vpack.c.b16 %v724, %v723
  %v934 = vpack.c.b16 %v726, %v725
  %v935 = vpack.c.b16 %v728, %v727
  %v936 = vpack.c.b16 %v730, %v729
  %v937 = vpack.c.b16 %v732, %v731
  %v938 = vpack.c.b16 %v734, %v733
  %v939 = vpack.c.b16 %v736, %v735
  %v940 = vpack.c.b16 %v738, %v737
  %v941 = vpack.c.b16 %v740, %v739
  %v942 = vpack.c.b16 %v742, %v741
  %v943 = vpack.c.b16 %v744, %v743
  %v944 = vpack.c.b16 %v746, %v745
  %v945 = vpack.c.b16 %v748, %v747
  %v946 = vpack.c.b16 %v750, %v749
  %v947 = vpack.c.b16 %v752, %v751
  %v948 = vpack.c.b16 %v754, %v753
  %v949 = vpack.c.b16 %v756, %v755
  %v950 = vpack.c.b16 %v758, %v757
  %v951 = vpack.c.b16 %v760, %v759
  %v952 = vpack.c.b16 %v762, %v761
  %v953 = vpack.c.b16 %v764, %v763
  %v954 = vpack.c.b16 %v766, %v765
  %v955 = vpack.c.b16 %v768, %v767
  %v956 = vpack.c.b16 %v770, %v769
  %v957 = vpack.c.b16 %v772, %v771
  %v958 = vpack.c.b16 %v774, %v773
  %v959 = vpack.c.b16 %v776, %v775
  %v960 = vpack.c.b16 %v778, %v777
  %v961 = vpack.c.b16 %v780, %v779
  %v962 = vpack.c.b16 %v782, %v781
  %v963 = vpack.c.b16 %v784, %v783
  %v964 = vpack.c.b16 %v786, %v785
  %v965 = vpack.c.b16 %v788, %v787
  %v966 = vpack.c.b16 %v790, %v789
  %v967 = vpack.c.b16 %v792, %v791
  %v968 = vpack.c.b16 %v794, %v793
  %v969 = vpack.c.b16 %v796, %v795
  %v970 = vpack.c.b16 %v798, %v797
  %v971 = vpack.c.b16 %v800, %v799
  %v972 = vpack.c.b16 %v802, %v801
  %v973 = vpack.c.b16 %v804, %v803
  %v974 = vpack.c.b16 %v806, %v805
  %v975 = vpack.c.b16 %v808, %v807
  %v976 = vpack.c.b16 %v810, %v809
  %v977 = vpack.c.b16 %v812, %v811
  %v978 = vpack.c.b16 %v814, %v813
  %v979 = vpack.c.b16 %v816, %v815
  %v980 = vpack.c.b16 %v818, %v817
  %v981 = vpack.c.b16 %v820, %v819
  %v982 = vpack.c.b16 %v822, %v821
  %v983 = vpack.c.b16 %v824, %v823
  %v984 = vpack.c.b16 %v826, %v825
  %v985 = vpack.c.b16 %v828, %v827
  %v986 = vpack.c.b16 %v830, %v829
  %v987 = vpack.c.b16 %v832, %v831
  %v988 = vpack.c.b16 %v834, %v833
  %v989 = vpack.c.b16 %v836, %v835
  %v990 = vpack.c.b16 %v838, %v837
  %v991 = vpack.c.b16 %v840, %v839
  %v992 = vpack.c.b16 %v842, %v841
  %v993 = vpack.c.b16 %v844, %v843
  %v994 = vpack.c.b16 %v846, %v845
  %v995 = vpack.c.b16 %v848, %v847
  %v996 = vpack.c.b16 %v850, %v849
  %v997 = vpack.c.b16 %v852, %v851
  %v998 = vpack.c.b16 %v854, %v853
  %v999 = vpack.c.b16 %v856, %v855
  %v1000 = vpack.c.b16 %v858, %v857
  %v1001 = vpack.c.b16 %v860, %v859
  %v1002 = vpack.c.b16 %v862, %v861
  %v1005 = vunpack.c.l.b16 %v301
  %v1006 = vunpack.c.l.b16 %v302
  %v1007 = vpack.c.b16 %v1006, %v1005
  %vm1008 = vcmask 72704
  %v1010 = vsel %vm1008, %v863, 0
  %v1013 = vsel %vm1008, %v864, 0
  %v1016 = vsel %vm1008, %v865, 0
  %v1019 = vsel %vm1008, %v866, 0
  %v1022 = vsel %vm1008, %v867, 0
  %v1025 = vsel %vm1008, %v868, 0
  %v1028 = vsel %vm1008, %v869, 0
  %v1031 = vsel %vm1008, %v870, 0
  %v1034 = vsel %vm1008, %v871, 0
  %v1037 = vsel %vm1008, %v872, 0
  %v1040 = vsel %vm1008, %v873, 0
  %v1043 = vsel %vm1008, %v874, 0
  %v1046 = vsel %vm1008, %v875, 0
  %v1049 = vsel %vm1008, %v876, 0
  %v1052 = vsel %vm1008, %v877, 0
  %v1055 = vsel %vm1008, %v878, 0
  %v1058 = vsel %vm1008, %v879, 0
  %v1061 = vsel %vm1008, %v880, 0
  %v1064 = vsel %vm1008, %v881, 0
  %v1067 = vsel %vm1008, %v882, 0
  %v1070 = vsel %vm1008, %v883, 0
  %v1073 = vsel %vm1008, %v884, 0
  %v1076 = vsel %vm1008, %v885, 0
  %v1079 = vsel %vm1008, %v886, 0
  %v1082 = vsel %vm1008, %v887, 0
  %v1085 = vsel %vm1008, %v888, 0
  %v1088 = vsel %vm1008, %v889, 0
  %v1091 = vsel %vm1008, %v890, 0
  %v1094 = vsel %vm1008, %v891, 0
  %v1097 = vsel %vm1008, %v892, 0
  %v1100 = vsel %vm1008, %v893, 0
  %v1103 = vsel %vm1008, %v894, 0
  %v1106 = vsel %vm1008, %v895, 0
  %v1109 = vsel %vm1008, %v896, 0
  %v1112 = vsel %vm1008, %v897, 0
  %v1115 = vsel %vm1008, %v898, 0
  %v1118 = vsel %vm1008, %v899, 0
  %v1121 = vsel %vm1008, %v900, 0
  %v1124 = vsel %vm1008, %v901, 0
  %v1127 = vsel %vm1008, %v902, 0
  %v1130 = vsel %vm1008, %v903, 0
  %v1133 = vsel %vm1008, %v904, 0
  %v1136 = vsel %vm1008, %v905, 0
  %v1139 = vsel %vm1008, %v906, 0
  %v1142 = vsel %vm1008, %v907, 0
  %v1145 = vsel %vm1008, %v908, 0
  %v1148 = vsel %vm1008, %v909, 0
  %v1151 = vsel %vm1008, %v910, 0
  %v1154 = vsel %vm1008, %v911, 0
  %v1157 = vsel %vm1008, %v912, 0
  %v1160 = vsel %vm1008, %v913, 0
  %v1163 = vsel %vm1008, %v914, 0
  %v1166 = vsel %vm1008, %v915, 0
  %v1169 = vsel %vm1008, %v916, 0
  %v1172 = vsel %vm1008, %v917, 0
  %v1175 = vsel %vm1008, %v918, 0
  %v1178 = vsel %vm1008, %v919, 0
  %v1181 = vsel %vm1008, %v920, 0
  %v1184 = vsel %vm1008, %v921, 0
  %v1187 = vsel %vm1008, %v922, 0
  %v1190 = vsel %vm1008, %v923, 0
  %v1193 = vsel %vm1008, %v924, 0
  %v1196 = vsel %vm1008, %v925, 0
  %v1199 = vsel %vm1008, %v926, 0
  %v1202 = vsel %vm1008, %v927, 0
  %v1205 = vsel %vm1008, %v928, 0
  %v1208 = vsel %vm1008, %v929, 0
  %v1211 = vsel %vm1008, %v930, 0
  %v1214 = vsel %vm1008, %v931, 0
  %v1217 = vsel %vm1008, %v932, 0
  %v1220 = vsel %vm1008, %v933, 0
  %v1223 = vsel %vm1008, %v934, 0
  %v1226 = vsel %vm1008, %v935, 0
  %v1229 = vsel %vm1008, %v936, 0
  %v1232 = vsel %vm1008, %v937, 0
  %v1235 = vsel %vm1008, %v938, 0
  %v1238 = vsel %vm1008, %v939, 0
  %v1241 = vsel %vm1008, %v940, 0
  %v1244 = vsel %vm1008, %v941, 0
  %v1247 = vsel %vm1008, %v942, 0
  %v1250 = vsel %vm1008, %v943, 0
  %v1253 = vsel %vm1008, %v944, 0
  %v1256 = vsel %vm1008, %v945, 0
  %v1259 = vsel %vm1008, %v946, 0
  %v1262 = vsel %vm1008, %v947, 0
  %v1265 = vsel %vm1008, %v948, 0
  %v1268 = vsel %vm1008, %v949, 0
  %v1271 = vsel %vm1008, %v950, 0
  %v1274 = vsel %vm1008, %v951, 0
  %v1277 = vsel %vm1008, %v952, 0
  %v1280 = vsel %vm1008, %v953, 0
  %v1283 = vsel %vm1008, %v954, 0
  %v1286 = vsel %vm1008, %v955, 0
  %v1289 = vsel %vm1008, %v956, 0
  %v1292 = vsel %vm1008, %v957, 0
  %v1295 = vsel %vm1008, %v958, 0
  %v1298 = vsel %vm1008, %v959, 0
  %v1301 = vsel %vm1008, %v960, 0
  %v1304 = vsel %vm1008, %v961, 0
  %v1307 = vsel %vm1008, %v962, 0
  %v1310 = vsel %vm1008, %v963, 0
  %v1313 = vsel %vm1008, %v964, 0
  %v1316 = vsel %vm1008, %v965, 0
  %v1319 = vsel %vm1008, %v966, 0
  %v1322 = vsel %vm1008, %v967, 0
  %v1325 = vsel %vm1008, %v968, 0
  %v1328 = vsel %vm1008, %v969, 0
  %v1331 = vsel %vm1008, %v970, 0
  %v1334 = vsel %vm1008, %v971, 0
  %v1337 = vsel %vm1008, %v972, 0
  %v1340 = vsel %vm1008, %v973, 0
  %v1343 = vsel %vm1008, %v974, 0
  %v1346 = vsel %vm1008, %v975, 0
  %v1349 = vsel %vm1008, %v976, 0
  %v1352 = vsel %vm1008, %v977, 0
  %v1355 = vsel %vm1008, %v978, 0
  %v1358 = vsel %vm1008, %v979, 0
  %v1361 = vsel %vm1008, %v980, 0
  %v1364 = vsel %vm1008, %v981, 0
  %v1367 = vsel %vm1008, %v982, 0
  %v1370 = vsel %vm1008, %v983, 0
  %v1373 = vsel %vm1008, %v984, 0
  %v1376 = vsel %vm1008, %v985, 0
  %v1379 = vsel %vm1008, %v986, 0
  %v1382 = vsel %vm1008, %v987, 0
  %v1385 = vsel %vm1008, %v988, 0
  %v1388 = vsel %vm1008, %v989, 0
  %v1391 = vsel %vm1008, %v990, 0
  %v1394 = vsel %vm1008, %v991, 0
  %v1397 = vsel %vm1008, %v992, 0
  %v1400 = vsel %vm1008, %v993, 0
  %v1403 = vsel %vm1008, %v994, 0
  %v1406 = vsel %vm1008, %v995, 0
  %v1409 = vsel %vm1008, %v996, 0
  %v1412 = vsel %vm1008, %v997, 0
  %v1415 = vsel %vm1008, %v998, 0
  %v1418 = vsel %vm1008, %v999, 0
  %v1421 = vsel %vm1008, %v1000, 0
  %v1424 = vsel %vm1008, %v1001, 0
  %v1427 = vsel %vm1008, %v1002, 0
  %vm1429 = vcmask 1043456
  %vm1430 = vcmask 1044480
  %v1431 = vsel %vm1429, 4294967295, 65535
  %v1432 = vsel %vm1430, %v1431, 0
  %v1434 = vand.u32 %v1007, %v1432
  %1436 = vmatprep.subr.bf16.mxu0 0
  %1437 = vmatpush1.bf16.msra.mxu0 %v1434
  %1438 = vmatprep.subr.bf16.mxu0 0
  %1439 = vmatpush1.bf16.msra.mxu0 0
  %1440 = vmatprep.subr.bf16.mxu0 0
  %1441 = vmatpush1.bf16.msra.mxu0 0
  %1442 = vmatprep.subr.bf16.mxu0 0
  %1443 = vmatpush1.bf16.msra.mxu0 0
  %1444 = vmatprep.subr.bf16.mxu0 0
  %1445 = vmatpush1.bf16.msra.mxu0 0
  %1446 = vmatprep.subr.bf16.mxu0 0
  %1447 = vmatpush1.bf16.msra.mxu0 0
  %1448 = vmatprep.subr.bf16.mxu0 0
  %1449 = vmatpush1.bf16.msra.mxu0 0
  %1450 = vmatprep.subr.bf16.mxu0 0
  %1451 = vmatpush1.bf16.msra.mxu0 0
  %1452 = vmatprep.subr.bf16.mxu0 0
  %1453 = vmatpush1.bf16.msra.mxu0 0
  %1454 = vmatprep.subr.bf16.mxu0 0
  %1455 = vmatpush1.bf16.msra.mxu0 0
  %1456 = vmatprep.subr.bf16.mxu0 0
  %1457 = vmatpush1.bf16.msra.mxu0 0
  %1458 = vmatprep.subr.bf16.mxu0 0
  %1459 = vmatpush1.bf16.msra.mxu0 0
  %1460 = vmatprep.subr.bf16.mxu0 0
  %1461 = vmatpush1.bf16.msra.mxu0 0
  %1462 = vmatprep.subr.bf16.mxu0 0
  %1463 = vmatpush1.bf16.msra.mxu0 0
  %1464 = vmatprep.subr.bf16.mxu0 0
  %1465 = vmatpush1.bf16.msra.mxu0 0
  %1466 = vmatprep.subr.bf16.mxu0 0
  %1467 = vmatpush1.bf16.msra.mxu0 0
  %1468 = vmatprep.mubr.bf16.mxu0 0
  %1469 = vmatmul.mubr.bf16.gmra.mrb[0].mxu0 %v1010
  %v1470 = vpop.f32.mrb[0].mxu0
  %v1471 = vadd.f32 0.0, %v1470
  %v1472 = vpop.f32.mrb[0].mxu0
  %v1473 = vpop.f32.mrb[0].mxu0
  %v1474 = vadd.f32 0.0, %v1473
  %v1475 = vpop.f32.mrb[0].mxu0
  %1476 = vmatprep.mubr.bf16.mxu0 0
  %1477 = vmatmul.mubr.bf16.gmra.mrb[0].mxu0 %v1013
  %v1478 = vpop.f32.mrb[0].mxu0
  %v1479 = vadd.f32 0.0, %v1478
  %v1480 = vpop.f32.mrb[0].mxu0
  %v1481 = vpop.f32.mrb[0].mxu0
  %v1482 = vadd.f32 0.0, %v1481
  %v1483 = vpop.f32.mrb[0].mxu0
  %1484 = vmatprep.mubr.bf16.mxu0 0
  %1485 = vmatmul.mubr.bf16.gmra.mrb[0].mxu0 %v1016
  %v1486 = vpop.f32.mrb[0].mxu0
  %v1487 = vadd.f32 0.0, %v1486
  %v1488 = vpop.f32.mrb[0].mxu0
  %v1489 = vpop.f32.mrb[0].mxu0
  %v1490 = vadd.f32 0.0, %v1489
  %v1491 = vpop.f32.mrb[0].mxu0
  %1492 = vmatprep.mubr.bf16.mxu0 0
  %1493 = vmatmul.mubr.bf16.gmra.mrb[0].mxu0 %v1019
  %v1494 = vpop.f32.mrb[0].mxu0
  %v1495 = vadd.f32 0.0, %v1494
  %v1496 = vpop.f32.mrb[0].mxu0
  %v1497 = vpop.f32.mrb[0].mxu0
  %v1498 = vadd.f32 0.0, %v1497
  %v1499 = vpop.f32.mrb[0].mxu0
  %1500 = vmatprep.mubr.bf16.mxu0 0
  %1501 = vmatmul.mubr.bf16.gmra.mrb[0].mxu0 %v1022
  %v1502 = vpop.f32.mrb[0].mxu0
  %v1503 = vadd.f32 0.0, %v1502
  %v1504 = vpop.f32.mrb[0].mxu0
  %v1505 = vpop.f32.mrb[0].mxu0
  %v1506 = vadd.f32 0.0, %v1505
  %v1507 = vpop.f32.mrb[0].mxu0
  %1508 = vmatprep.mubr.bf16.mxu0 0
  %1509 = vmatmul.mubr.bf16.gmra.mrb[0].mxu0 %v1025
  %v1510 = vpop.f32.mrb[0].mxu0
  %v1511 = vadd.f32 0.0, %v1510
  %v1512 = vpop.f32.mrb[0].mxu0
  %v1513 = vpop.f32.mrb[0].mxu0
  %v1514 = vadd.f32 0.0, %v1513
  %v1515 = vpop.f32.mrb[0].mxu0
  %1516 = vmatprep.mubr.bf16.mxu0 0
  %1517 = vmatmul.mubr.bf16.gmra.mrb[0].mxu0 %v1028
  %v1518 = vpop.f32.mrb[0].mxu0
  %v1519 = vadd.f32 0.0, %v1518
  %v1520 = vpop.f32.mrb[0].mxu0
  %v1521 = vpop.f32.mrb[0].mxu0
  %v1522 = vadd.f32 0.0, %v1521
  %v1523 = vpop.f32.mrb[0].mxu0
  %1524 = vmatprep.mubr.bf16.mxu0 0
  %1525 = vmatmul.mubr.bf16.gmra.mrb[0].mxu0 %v1031
  %v1526 = vpop.f32.mrb[0].mxu0
  %v1527 = vadd.f32 0.0, %v1526
  %v1528 = vpop.f32.mrb[0].mxu0
  %v1529 = vpop.f32.mrb[0].mxu0
  %v1530 = vadd.f32 0.0, %v1529
  %v1531 = vpop.f32.mrb[0].mxu0
  %1532 = vmatprep.mubr.bf16.mxu0 0
  %1533 = vmatmul.mubr.bf16.gmra.mrb[0].mxu0 %v1034
  %v1534 = vpop.f32.mrb[0].mxu0
  %v1535 = vadd.f32 0.0, %v1534
  %v1536 = vpop.f32.mrb[0].mxu0
  %v1537 = vpop.f32.mrb[0].mxu0
  %v1538 = vadd.f32 0.0, %v1537
  %v1539 = vpop.f32.mrb[0].mxu0
  %1540 = vmatprep.mubr.bf16.mxu0 0
  %1541 = vmatmul.mubr.bf16.gmra.mrb[0].mxu0 %v1037
  %v1542 = vpop.f32.mrb[0].mxu0
  %v1543 = vadd.f32 0.0, %v1542
  %v1544 = vpop.f32.mrb[0].mxu0
  %v1545 = vpop.f32.mrb[0].mxu0
  %v1546 = vadd.f32 0.0, %v1545
  %v1547 = vpop.f32.mrb[0].mxu0
  %1548 = vmatprep.mubr.bf16.mxu0 0
  %1549 = vmatmul.mubr.bf16.gmra.mrb[0].mxu0 %v1040
  %v1550 = vpop.f32.mrb[0].mxu0
  %v1551 = vadd.f32 0.0, %v1550
  %v1552 = vpop.f32.mrb[0].mxu0
  %v1553 = vpop.f32.mrb[0].mxu0
  %v1554 = vadd.f32 0.0, %v1553
  %v1555 = vpop.f32.mrb[0].mxu0
  %1556 = vmatprep.mubr.bf16.mxu0 0
  %1557 = vmatmul.mubr.bf16.gmra.mrb[0].mxu0 %v1043
  %v1558 = vpop.f32.mrb[0].mxu0
  %v1559 = vadd.f32 0.0, %v1558
  %v1560 = vpop.f32.mrb[0].mxu0
  %v1561 = vpop.f32.mrb[0].mxu0
  %v1562 = vadd.f32 0.0, %v1561
  %v1563 = vpop.f32.mrb[0].mxu0
  %1564 = vmatprep.mubr.bf16.mxu0 0
  %1565 = vmatmul.mubr.bf16.gmra.mrb[0].mxu0 %v1046
  %v1566 = vpop.f32.mrb[0].mxu0
  %v1567 = vadd.f32 0.0, %v1566
  %v1568 = vpop.f32.mrb[0].mxu0
  %v1569 = vpop.f32.mrb[0].mxu0
  %v1570 = vadd.f32 0.0, %v1569
  %v1571 = vpop.f32.mrb[0].mxu0
  %1572 = vmatprep.mubr.bf16.mxu0 0
  %1573 = vmatmul.mubr.bf16.gmra.mrb[0].mxu0 %v1049
  %v1574 = vpop.f32.mrb[0].mxu0
  %v1575 = vadd.f32 0.0, %v1574
  %v1576 = vpop.f32.mrb[0].mxu0
  %v1577 = vpop.f32.mrb[0].mxu0
  %v1578 = vadd.f32 0.0, %v1577
  %v1579 = vpop.f32.mrb[0].mxu0
  %1580 = vmatprep.mubr.bf16.mxu0 0
  %1581 = vmatmul.mubr.bf16.gmra.mrb[0].mxu0 %v1052
  %v1582 = vpop.f32.mrb[0].mxu0
  %v1583 = vadd.f32 0.0, %v1582
  %v1584 = vpop.f32.mrb[0].mxu0
  %v1585 = vpop.f32.mrb[0].mxu0
  %v1586 = vadd.f32 0.0, %v1585
  %v1587 = vpop.f32.mrb[0].mxu0
  %1588 = vmatprep.mubr.bf16.mxu0 0
  %1589 = vmatmul.mubr.bf16.gmra.mrb[0].mxu0 %v1055
  %v1590 = vpop.f32.mrb[0].mxu0
  %v1591 = vadd.f32 0.0, %v1590
  %v1592 = vpop.f32.mrb[0].mxu0
  %v1593 = vpop.f32.mrb[0].mxu0
  %v1594 = vadd.f32 0.0, %v1593
  %v1595 = vpop.f32.mrb[0].mxu0
  %1596 = vmatprep.mubr.bf16.mxu0 0
  %1597 = vmatmul.mubr.bf16.gmra.mrb[0].mxu0 %v1058
  %v1598 = vpop.f32.mrb[0].mxu0
  %v1599 = vadd.f32 0.0, %v1598
  %v1600 = vpop.f32.mrb[0].mxu0
  %v1601 = vpop.f32.mrb[0].mxu0
  %v1602 = vadd.f32 0.0, %v1601
  %v1603 = vpop.f32.mrb[0].mxu0
  %1604 = vmatprep.mubr.bf16.mxu0 0
  %1605 = vmatmul.mubr.bf16.gmra.mrb[0].mxu0 %v1061
  %v1606 = vpop.f32.mrb[0].mxu0
  %v1607 = vadd.f32 0.0, %v1606
  %v1608 = vpop.f32.mrb[0].mxu0
  %v1609 = vpop.f32.mrb[0].mxu0
  %v1610 = vadd.f32 0.0, %v1609
  %v1611 = vpop.f32.mrb[0].mxu0
  %1612 = vmatprep.mubr.bf16.mxu0 0
  %1613 = vmatmul.mubr.bf16.gmra.mrb[0].mxu0 %v1064
  %v1614 = vpop.f32.mrb[0].mxu0
  %v1615 = vadd.f32 0.0, %v1614
  %v1616 = vpop.f32.mrb[0].mxu0
  %v1617 = vpop.f32.mrb[0].mxu0
  %v1618 = vadd.f32 0.0, %v1617
  %v1619 = vpop.f32.mrb[0].mxu0
  %1620 = vmatprep.mubr.bf16.mxu0 0
  %1621 = vmatmul.mubr.bf16.gmra.mrb[0].mxu0 %v1067
  %v1622 = vpop.f32.mrb[0].mxu0
  %v1623 = vadd.f32 0.0, %v1622
  %v1624 = vpop.f32.mrb[0].mxu0
  %v1625 = vpop.f32.mrb[0].mxu0
  %v1626 = vadd.f32 0.0, %v1625
  %v1627 = vpop.f32.mrb[0].mxu0
  %1628 = vmatprep.mubr.bf16.mxu0 0
  %1629 = vmatmul.mubr.bf16.gmra.mrb[0].mxu0 %v1070
  %v1630 = vpop.f32.mrb[0].mxu0
  %v1631 = vadd.f32 0.0, %v1630
  %v1632 = vpop.f32.mrb[0].mxu0
  %v1633 = vpop.f32.mrb[0].mxu0
  %v1634 = vadd.f32 0.0, %v1633
  %v1635 = vpop.f32.mrb[0].mxu0
  %1636 = vmatprep.mubr.bf16.mxu0 0
  %1637 = vmatmul.mubr.bf16.gmra.mrb[0].mxu0 %v1073
  %v1638 = vpop.f32.mrb[0].mxu0
  %v1639 = vadd.f32 0.0, %v1638
  %v1640 = vpop.f32.mrb[0].mxu0
  %v1641 = vpop.f32.mrb[0].mxu0
  %v1642 = vadd.f32 0.0, %v1641
  %v1643 = vpop.f32.mrb[0].mxu0
  %1644 = vmatprep.mubr.bf16.mxu0 0
  %1645 = vmatmul.mubr.bf16.gmra.mrb[0].mxu0 %v1076
  %v1646 = vpop.f32.mrb[0].mxu0
  %v1647 = vadd.f32 0.0, %v1646
  %v1648 = vpop.f32.mrb[0].mxu0
  %v1649 = vpop.f32.mrb[0].mxu0
  %v1650 = vadd.f32 0.0, %v1649
  %v1651 = vpop.f32.mrb[0].mxu0
  %1652 = vmatprep.mubr.bf16.mxu0 0
  %1653 = vmatmul.mubr.bf16.gmra.mrb[0].mxu0 %v1079
  %v1654 = vpop.f32.mrb[0].mxu0
  %v1655 = vadd.f32 0.0, %v1654
  %v1656 = vpop.f32.mrb[0].mxu0
  %v1657 = vpop.f32.mrb[0].mxu0
  %v1658 = vadd.f32 0.0, %v1657
  %v1659 = vpop.f32.mrb[0].mxu0
  %1660 = vmatprep.mubr.bf16.mxu0 0
  %1661 = vmatmul.mubr.bf16.gmra.mrb[0].mxu0 %v1082
  %v1662 = vpop.f32.mrb[0].mxu0
  %v1663 = vadd.f32 0.0, %v1662
  %v1664 = vpop.f32.mrb[0].mxu0
  %v1665 = vpop.f32.mrb[0].mxu0
  %v1666 = vadd.f32 0.0, %v1665
  %v1667 = vpop.f32.mrb[0].mxu0
  %1668 = vmatprep.mubr.bf16.mxu0 0
  %1669 = vmatmul.mubr.bf16.gmra.mrb[0].mxu0 %v1085
  %v1670 = vpop.f32.mrb[0].mxu0
  %v1671 = vadd.f32 0.0, %v1670
  %v1672 = vpop.f32.mrb[0].mxu0
  %v1673 = vpop.f32.mrb[0].mxu0
  %v1674 = vadd.f32 0.0, %v1673
  %v1675 = vpop.f32.mrb[0].mxu0
  %1676 = vmatprep.mubr.bf16.mxu0 0
  %1677 = vmatmul.mubr.bf16.gmra.mrb[0].mxu0 %v1088
  %v1678 = vpop.f32.mrb[0].mxu0
  %v1679 = vadd.f32 0.0, %v1678
  %v1680 = vpop.f32.mrb[0].mxu0
  %v1681 = vpop.f32.mrb[0].mxu0
  %v1682 = vadd.f32 0.0, %v1681
  %v1683 = vpop.f32.mrb[0].mxu0
  %1684 = vmatprep.mubr.bf16.mxu0 0
  %1685 = vmatmul.mubr.bf16.gmra.mrb[0].mxu0 %v1091
  %v1686 = vpop.f32.mrb[0].mxu0
  %v1687 = vadd.f32 0.0, %v1686
  %v1688 = vpop.f32.mrb[0].mxu0
  %v1689 = vpop.f32.mrb[0].mxu0
  %v1690 = vadd.f32 0.0, %v1689
  %v1691 = vpop.f32.mrb[0].mxu0
  %1692 = vmatprep.mubr.bf16.mxu0 0
  %1693 = vmatmul.mubr.bf16.gmra.mrb[0].mxu0 %v1094
  %v1694 = vpop.f32.mrb[0].mxu0
  %v1695 = vadd.f32 0.0, %v1694
  %v1696 = vpop.f32.mrb[0].mxu0
  %v1697 = vpop.f32.mrb[0].mxu0
  %v1698 = vadd.f32 0.0, %v1697
  %v1699 = vpop.f32.mrb[0].mxu0
  %1700 = vmatprep.mubr.bf16.mxu0 0
  %1701 = vmatmul.mubr.bf16.gmra.mrb[0].mxu0 %v1097
  %v1702 = vpop.f32.mrb[0].mxu0
  %v1703 = vadd.f32 0.0, %v1702
  %v1704 = vpop.f32.mrb[0].mxu0
  %v1705 = vpop.f32.mrb[0].mxu0
  %v1706 = vadd.f32 0.0, %v1705
  %v1707 = vpop.f32.mrb[0].mxu0
  %1708 = vmatprep.mubr.bf16.mxu0 0
  %1709 = vmatmul.mubr.bf16.gmra.mrb[0].mxu0 %v1100
  %v1710 = vpop.f32.mrb[0].mxu0
  %v1711 = vadd.f32 0.0, %v1710
  %v1712 = vpop.f32.mrb[0].mxu0
  %v1713 = vpop.f32.mrb[0].mxu0
  %v1714 = vadd.f32 0.0, %v1713
  %v1715 = vpop.f32.mrb[0].mxu0
  %1716 = vmatprep.mubr.bf16.mxu0 0
  %1717 = vmatmul.mubr.bf16.gmra.mrb[0].mxu0 %v1103
  %v1718 = vpop.f32.mrb[0].mxu0
  %v1719 = vadd.f32 0.0, %v1718
  %v1720 = vpop.f32.mrb[0].mxu0
  %v1721 = vpop.f32.mrb[0].mxu0
  %v1722 = vadd.f32 0.0, %v1721
  %v1723 = vpop.f32.mrb[0].mxu0
  %1724 = vmatprep.mubr.bf16.mxu0 0
  %1725 = vmatmul.mubr.bf16.gmra.mrb[0].mxu0 %v1106
  %v1726 = vpop.f32.mrb[0].mxu0
  %v1727 = vadd.f32 0.0, %v1726
  %v1728 = vpop.f32.mrb[0].mxu0
  %v1729 = vpop.f32.mrb[0].mxu0
  %v1730 = vadd.f32 0.0, %v1729
  %v1731 = vpop.f32.mrb[0].mxu0
  %1732 = vmatprep.mubr.bf16.mxu0 0
  %1733 = vmatmul.mubr.bf16.gmra.mrb[0].mxu0 %v1109
  %v1734 = vpop.f32.mrb[0].mxu0
  %v1735 = vadd.f32 0.0, %v1734
  %v1736 = vpop.f32.mrb[0].mxu0
  %v1737 = vpop.f32.mrb[0].mxu0
  %v1738 = vadd.f32 0.0, %v1737
  %v1739 = vpop.f32.mrb[0].mxu0
  %1740 = vmatprep.mubr.bf16.mxu0 0
  %1741 = vmatmul.mubr.bf16.gmra.mrb[0].mxu0 %v1112
  %v1742 = vpop.f32.mrb[0].mxu0
  %v1743 = vadd.f32 0.0, %v1742
  %v1744 = vpop.f32.mrb[0].mxu0
  %v1745 = vpop.f32.mrb[0].mxu0
  %v1746 = vadd.f32 0.0, %v1745
  %v1747 = vpop.f32.mrb[0].mxu0
  %1748 = vmatprep.mubr.bf16.mxu0 0
  %1749 = vmatmul.mubr.bf16.gmra.mrb[0].mxu0 %v1115
  %v1750 = vpop.f32.mrb[0].mxu0
  %v1751 = vadd.f32 0.0, %v1750
  %v1752 = vpop.f32.mrb[0].mxu0
  %v1753 = vpop.f32.mrb[0].mxu0
  %v1754 = vadd.f32 0.0, %v1753
  %v1755 = vpop.f32.mrb[0].mxu0
  %1756 = vmatprep.mubr.bf16.mxu0 0
  %1757 = vmatmul.mubr.bf16.gmra.mrb[0].mxu0 %v1118
  %v1758 = vpop.f32.mrb[0].mxu0
  %v1759 = vadd.f32 0.0, %v1758
  %v1760 = vpop.f32.mrb[0].mxu0
  %v1761 = vpop.f32.mrb[0].mxu0
  %v1762 = vadd.f32 0.0, %v1761
  %v1763 = vpop.f32.mrb[0].mxu0
  %1764 = vmatprep.mubr.bf16.mxu0 0
  %1765 = vmatmul.mubr.bf16.gmra.mrb[0].mxu0 %v1121
  %v1766 = vpop.f32.mrb[0].mxu0
  %v1767 = vadd.f32 0.0, %v1766
  %v1768 = vpop.f32.mrb[0].mxu0
  %v1769 = vpop.f32.mrb[0].mxu0
  %v1770 = vadd.f32 0.0, %v1769
  %v1771 = vpop.f32.mrb[0].mxu0
  %1772 = vmatprep.mubr.bf16.mxu0 0
  %1773 = vmatmul.mubr.bf16.gmra.mrb[0].mxu0 %v1124
  %v1774 = vpop.f32.mrb[0].mxu0
  %v1775 = vadd.f32 0.0, %v1774
  %v1776 = vpop.f32.mrb[0].mxu0
  %v1777 = vpop.f32.mrb[0].mxu0
  %v1778 = vadd.f32 0.0, %v1777
  %v1779 = vpop.f32.mrb[0].mxu0
  %1780 = vmatprep.mubr.bf16.mxu0 0
  %1781 = vmatmul.mubr.bf16.gmra.mrb[0].mxu0 %v1127
  %v1782 = vpop.f32.mrb[0].mxu0
  %v1783 = vadd.f32 0.0, %v1782
  %v1784 = vpop.f32.mrb[0].mxu0
  %v1785 = vpop.f32.mrb[0].mxu0
  %v1786 = vadd.f32 0.0, %v1785
  %v1787 = vpop.f32.mrb[0].mxu0
  %1788 = vmatprep.mubr.bf16.mxu0 0
  %1789 = vmatmul.mubr.bf16.gmra.mrb[0].mxu0 %v1130
  %v1790 = vpop.f32.mrb[0].mxu0
  %v1791 = vadd.f32 0.0, %v1790
  %v1792 = vpop.f32.mrb[0].mxu0
  %v1793 = vpop.f32.mrb[0].mxu0
  %v1794 = vadd.f32 0.0, %v1793
  %v1795 = vpop.f32.mrb[0].mxu0
  %1796 = vmatprep.mubr.bf16.mxu0 0
  %1797 = vmatmul.mubr.bf16.gmra.mrb[0].mxu0 %v1133
  %v1798 = vpop.f32.mrb[0].mxu0
  %v1799 = vadd.f32 0.0, %v1798
  %v1800 = vpop.f32.mrb[0].mxu0
  %v1801 = vpop.f32.mrb[0].mxu0
  %v1802 = vadd.f32 0.0, %v1801
  %v1803 = vpop.f32.mrb[0].mxu0
  %1804 = vmatprep.mubr.bf16.mxu0 0
  %1805 = vmatmul.mubr.bf16.gmra.mrb[0].mxu0 %v1136
  %v1806 = vpop.f32.mrb[0].mxu0
  %v1807 = vadd.f32 0.0, %v1806
  %v1808 = vpop.f32.mrb[0].mxu0
  %v1809 = vpop.f32.mrb[0].mxu0
  %v1810 = vadd.f32 0.0, %v1809
  %v1811 = vpop.f32.mrb[0].mxu0
  %1812 = vmatprep.mubr.bf16.mxu0 0
  %1813 = vmatmul.mubr.bf16.gmra.mrb[0].mxu0 %v1139
  %v1814 = vpop.f32.mrb[0].mxu0
  %v1815 = vadd.f32 0.0, %v1814
  %v1816 = vpop.f32.mrb[0].mxu0
  %v1817 = vpop.f32.mrb[0].mxu0
  %v1818 = vadd.f32 0.0, %v1817
  %v1819 = vpop.f32.mrb[0].mxu0
  %1820 = vmatprep.mubr.bf16.mxu0 0
  %1821 = vmatmul.mubr.bf16.gmra.mrb[0].mxu0 %v1142
  %v1822 = vpop.f32.mrb[0].mxu0
  %v1823 = vadd.f32 0.0, %v1822
  %v1824 = vpop.f32.mrb[0].mxu0
  %v1825 = vpop.f32.mrb[0].mxu0
  %v1826 = vadd.f32 0.0, %v1825
  %v1827 = vpop.f32.mrb[0].mxu0
  %1828 = vmatprep.mubr.bf16.mxu0 0
  %1829 = vmatmul.mubr.bf16.gmra.mrb[0].mxu0 %v1145
  %v1830 = vpop.f32.mrb[0].mxu0
  %v1831 = vadd.f32 0.0, %v1830
  %v1832 = vpop.f32.mrb[0].mxu0
  %v1833 = vpop.f32.mrb[0].mxu0
  %v1834 = vadd.f32 0.0, %v1833
  %v1835 = vpop.f32.mrb[0].mxu0
  %1836 = vmatprep.mubr.bf16.mxu0 0
  %1837 = vmatmul.mubr.bf16.gmra.mrb[0].mxu0 %v1148
  %v1838 = vpop.f32.mrb[0].mxu0
  %v1839 = vadd.f32 0.0, %v1838
  %v1840 = vpop.f32.mrb[0].mxu0
  %v1841 = vpop.f32.mrb[0].mxu0
  %v1842 = vadd.f32 0.0, %v1841
  %v1843 = vpop.f32.mrb[0].mxu0
  %1844 = vmatprep.mubr.bf16.mxu0 0
  %1845 = vmatmul.mubr.bf16.gmra.mrb[0].mxu0 %v1151
  %v1846 = vpop.f32.mrb[0].mxu0
  %v1847 = vadd.f32 0.0, %v1846
  %v1848 = vpop.f32.mrb[0].mxu0
  %v1849 = vpop.f32.mrb[0].mxu0
  %v1850 = vadd.f32 0.0, %v1849
  %v1851 = vpop.f32.mrb[0].mxu0
  %1852 = vmatprep.mubr.bf16.mxu0 0
  %1853 = vmatmul.mubr.bf16.gmra.mrb[0].mxu0 %v1154
  %v1854 = vpop.f32.mrb[0].mxu0
  %v1855 = vadd.f32 0.0, %v1854
  %v1856 = vpop.f32.mrb[0].mxu0
  %v1857 = vpop.f32.mrb[0].mxu0
  %v1858 = vadd.f32 0.0, %v1857
  %v1859 = vpop.f32.mrb[0].mxu0
  %1860 = vmatprep.mubr.bf16.mxu0 0
  %1861 = vmatmul.mubr.bf16.gmra.mrb[0].mxu0 %v1157
  %v1862 = vpop.f32.mrb[0].mxu0
  %v1863 = vadd.f32 0.0, %v1862
  %v1864 = vpop.f32.mrb[0].mxu0
  %v1865 = vpop.f32.mrb[0].mxu0
  %v1866 = vadd.f32 0.0, %v1865
  %v1867 = vpop.f32.mrb[0].mxu0
  %1868 = vmatprep.mubr.bf16.mxu0 0
  %1869 = vmatmul.mubr.bf16.gmra.mrb[0].mxu0 %v1160
  %v1870 = vpop.f32.mrb[0].mxu0
  %v1871 = vadd.f32 0.0, %v1870
  %v1872 = vpop.f32.mrb[0].mxu0
  %v1873 = vpop.f32.mrb[0].mxu0
  %v1874 = vadd.f32 0.0, %v1873
  %v1875 = vpop.f32.mrb[0].mxu0
  %1876 = vmatprep.mubr.bf16.mxu0 0
  %1877 = vmatmul.mubr.bf16.gmra.mrb[0].mxu0 %v1163
  %v1878 = vpop.f32.mrb[0].mxu0
  %v1879 = vadd.f32 0.0, %v1878
  %v1880 = vpop.f32.mrb[0].mxu0
  %v1881 = vpop.f32.mrb[0].mxu0
  %v1882 = vadd.f32 0.0, %v1881
  %v1883 = vpop.f32.mrb[0].mxu0
  %1884 = vmatprep.mubr.bf16.mxu0 0
  %1885 = vmatmul.mubr.bf16.gmra.mrb[0].mxu0 %v1166
  %v1886 = vpop.f32.mrb[0].mxu0
  %v1887 = vadd.f32 0.0, %v1886
  %v1888 = vpop.f32.mrb[0].mxu0
  %v1889 = vpop.f32.mrb[0].mxu0
  %v1890 = vadd.f32 0.0, %v1889
  %v1891 = vpop.f32.mrb[0].mxu0
  %1892 = vmatprep.mubr.bf16.mxu0 0
  %1893 = vmatmul.mubr.bf16.gmra.mrb[0].mxu0 %v1169
  %v1894 = vpop.f32.mrb[0].mxu0
  %v1895 = vadd.f32 0.0, %v1894
  %v1896 = vpop.f32.mrb[0].mxu0
  %v1897 = vpop.f32.mrb[0].mxu0
  %v1898 = vadd.f32 0.0, %v1897
  %v1899 = vpop.f32.mrb[0].mxu0
  %1900 = vmatprep.mubr.bf16.mxu0 0
  %1901 = vmatmul.mubr.bf16.gmra.mrb[0].mxu0 %v1172
  %v1902 = vpop.f32.mrb[0].mxu0
  %v1903 = vadd.f32 0.0, %v1902
  %v1904 = vpop.f32.mrb[0].mxu0
  %v1905 = vpop.f32.mrb[0].mxu0
  %v1906 = vadd.f32 0.0, %v1905
  %v1907 = vpop.f32.mrb[0].mxu0
  %1908 = vmatprep.mubr.bf16.mxu0 0
  %1909 = vmatmul.mubr.bf16.gmra.mrb[0].mxu0 %v1175
  %v1910 = vpop.f32.mrb[0].mxu0
  %v1911 = vadd.f32 0.0, %v1910
  %v1912 = vpop.f32.mrb[0].mxu0
  %v1913 = vpop.f32.mrb[0].mxu0
  %v1914 = vadd.f32 0.0, %v1913
  %v1915 = vpop.f32.mrb[0].mxu0
  %1916 = vmatprep.mubr.bf16.mxu0 0
  %1917 = vmatmul.mubr.bf16.gmra.mrb[0].mxu0 %v1178
  %v1918 = vpop.f32.mrb[0].mxu0
  %v1919 = vadd.f32 0.0, %v1918
  %v1920 = vpop.f32.mrb[0].mxu0
  %v1921 = vpop.f32.mrb[0].mxu0
  %v1922 = vadd.f32 0.0, %v1921
  %v1923 = vpop.f32.mrb[0].mxu0
  %1924 = vmatprep.mubr.bf16.mxu0 0
  %1925 = vmatmul.mubr.bf16.gmra.mrb[0].mxu0 %v1181
  %v1926 = vpop.f32.mrb[0].mxu0
  %v1927 = vadd.f32 0.0, %v1926
  %v1928 = vpop.f32.mrb[0].mxu0
  %v1929 = vpop.f32.mrb[0].mxu0
  %v1930 = vadd.f32 0.0, %v1929
  %v1931 = vpop.f32.mrb[0].mxu0
  %1932 = vmatprep.mubr.bf16.mxu0 0
  %1933 = vmatmul.mubr.bf16.gmra.mrb[0].mxu0 %v1184
  %v1934 = vpop.f32.mrb[0].mxu0
  %v1935 = vadd.f32 0.0, %v1934
  %v1936 = vpop.f32.mrb[0].mxu0
  %v1937 = vpop.f32.mrb[0].mxu0
  %v1938 = vadd.f32 0.0, %v1937
  %v1939 = vpop.f32.mrb[0].mxu0
  %1940 = vmatprep.mubr.bf16.mxu0 0
  %1941 = vmatmul.mubr.bf16.gmra.mrb[0].mxu0 %v1187
  %v1942 = vpop.f32.mrb[0].mxu0
  %v1943 = vadd.f32 0.0, %v1942
  %v1944 = vpop.f32.mrb[0].mxu0
  %v1945 = vpop.f32.mrb[0].mxu0
  %v1946 = vadd.f32 0.0, %v1945
  %v1947 = vpop.f32.mrb[0].mxu0
  %1948 = vmatprep.mubr.bf16.mxu0 0
  %1949 = vmatmul.mubr.bf16.gmra.mrb[0].mxu0 %v1190
  %v1950 = vpop.f32.mrb[0].mxu0
  %v1951 = vadd.f32 0.0, %v1950
  %v1952 = vpop.f32.mrb[0].mxu0
  %v1953 = vpop.f32.mrb[0].mxu0
  %v1954 = vadd.f32 0.0, %v1953
  %v1955 = vpop.f32.mrb[0].mxu0
  %1956 = vmatprep.mubr.bf16.mxu0 0
  %1957 = vmatmul.mubr.bf16.gmra.mrb[0].mxu0 %v1193
  %v1958 = vpop.f32.mrb[0].mxu0
  %v1959 = vadd.f32 0.0, %v1958
  %v1960 = vpop.f32.mrb[0].mxu0
  %v1961 = vpop.f32.mrb[0].mxu0
  %v1962 = vadd.f32 0.0, %v1961
  %v1963 = vpop.f32.mrb[0].mxu0
  %1964 = vmatprep.mubr.bf16.mxu0 0
  %1965 = vmatmul.mubr.bf16.gmra.mrb[0].mxu0 %v1196
  %v1966 = vpop.f32.mrb[0].mxu0
  %v1967 = vadd.f32 0.0, %v1966
  %v1968 = vpop.f32.mrb[0].mxu0
  %v1969 = vpop.f32.mrb[0].mxu0
  %v1970 = vadd.f32 0.0, %v1969
  %v1971 = vpop.f32.mrb[0].mxu0
  %1972 = vmatprep.mubr.bf16.mxu0 0
  %1973 = vmatmul.mubr.bf16.gmra.mrb[0].mxu0 %v1199
  %v1974 = vpop.f32.mrb[0].mxu0
  %v1975 = vadd.f32 0.0, %v1974
  %v1976 = vpop.f32.mrb[0].mxu0
  %v1977 = vpop.f32.mrb[0].mxu0
  %v1978 = vadd.f32 0.0, %v1977
  %v1979 = vpop.f32.mrb[0].mxu0
  %1980 = vmatprep.mubr.bf16.mxu0 0
  %1981 = vmatmul.mubr.bf16.gmra.mrb[0].mxu0 %v1202
  %v1982 = vpop.f32.mrb[0].mxu0
  %v1983 = vadd.f32 0.0, %v1982
  %v1984 = vpop.f32.mrb[0].mxu0
  %v1985 = vpop.f32.mrb[0].mxu0
  %v1986 = vadd.f32 0.0, %v1985
  %v1987 = vpop.f32.mrb[0].mxu0
  %1988 = vmatprep.mubr.bf16.mxu0 0
  %1989 = vmatmul.mubr.bf16.gmra.mrb[0].mxu0 %v1205
  %v1990 = vpop.f32.mrb[0].mxu0
  %v1991 = vadd.f32 0.0, %v1990
  %v1992 = vpop.f32.mrb[0].mxu0
  %v1993 = vpop.f32.mrb[0].mxu0
  %v1994 = vadd.f32 0.0, %v1993
  %v1995 = vpop.f32.mrb[0].mxu0
  %1996 = vmatprep.mubr.bf16.mxu0 0
  %1997 = vmatmul.mubr.bf16.gmra.mrb[0].mxu0 %v1208
  %v1998 = vpop.f32.mrb[0].mxu0
  %v1999 = vadd.f32 0.0, %v1998
  %v2000 = vpop.f32.mrb[0].mxu0
  %v2001 = vpop.f32.mrb[0].mxu0
  %v2002 = vadd.f32 0.0, %v2001
  %v2003 = vpop.f32.mrb[0].mxu0
  %2004 = vmatprep.mubr.bf16.mxu0 0
  %2005 = vmatmul.mubr.bf16.gmra.mrb[0].mxu0 %v1211
  %v2006 = vpop.f32.mrb[0].mxu0
  %v2007 = vadd.f32 0.0, %v2006
  %v2008 = vpop.f32.mrb[0].mxu0
  %v2009 = vpop.f32.mrb[0].mxu0
  %v2010 = vadd.f32 0.0, %v2009
  %v2011 = vpop.f32.mrb[0].mxu0
  %2012 = vmatprep.mubr.bf16.mxu0 0
  %2013 = vmatmul.mubr.bf16.gmra.mrb[0].mxu0 %v1214
  %v2014 = vpop.f32.mrb[0].mxu0
  %v2015 = vadd.f32 0.0, %v2014
  %v2016 = vpop.f32.mrb[0].mxu0
  %v2017 = vpop.f32.mrb[0].mxu0
  %v2018 = vadd.f32 0.0, %v2017
  %v2019 = vpop.f32.mrb[0].mxu0
  %2020 = vmatprep.mubr.bf16.mxu0 0
  %2021 = vmatmul.mubr.bf16.gmra.mrb[0].mxu0 %v1217
  %v2022 = vpop.f32.mrb[0].mxu0
  %v2023 = vadd.f32 0.0, %v2022
  %v2024 = vpop.f32.mrb[0].mxu0
  %v2025 = vpop.f32.mrb[0].mxu0
  %v2026 = vadd.f32 0.0, %v2025
  %v2027 = vpop.f32.mrb[0].mxu0
  %2028 = vmatprep.mubr.bf16.mxu0 0
  %2029 = vmatmul.mubr.bf16.gmra.mrb[0].mxu0 %v1220
  %v2030 = vpop.f32.mrb[0].mxu0
  %v2031 = vadd.f32 0.0, %v2030
  %v2032 = vpop.f32.mrb[0].mxu0
  %v2033 = vpop.f32.mrb[0].mxu0
  %v2034 = vadd.f32 0.0, %v2033
  %v2035 = vpop.f32.mrb[0].mxu0
  %2036 = vmatprep.mubr.bf16.mxu0 0
  %2037 = vmatmul.mubr.bf16.gmra.mrb[0].mxu0 %v1223
  %v2038 = vpop.f32.mrb[0].mxu0
  %v2039 = vadd.f32 0.0, %v2038
  %v2040 = vpop.f32.mrb[0].mxu0
  %v2041 = vpop.f32.mrb[0].mxu0
  %v2042 = vadd.f32 0.0, %v2041
  %v2043 = vpop.f32.mrb[0].mxu0
  %2044 = vmatprep.mubr.bf16.mxu0 0
  %2045 = vmatmul.mubr.bf16.gmra.mrb[0].mxu0 %v1226
  %v2046 = vpop.f32.mrb[0].mxu0
  %v2047 = vadd.f32 0.0, %v2046
  %v2048 = vpop.f32.mrb[0].mxu0
  %v2049 = vpop.f32.mrb[0].mxu0
  %v2050 = vadd.f32 0.0, %v2049
  %v2051 = vpop.f32.mrb[0].mxu0
  %2052 = vmatprep.mubr.bf16.mxu0 0
  %2053 = vmatmul.mubr.bf16.gmra.mrb[0].mxu0 %v1229
  %v2054 = vpop.f32.mrb[0].mxu0
  %v2055 = vadd.f32 0.0, %v2054
  %v2056 = vpop.f32.mrb[0].mxu0
  %v2057 = vpop.f32.mrb[0].mxu0
  %v2058 = vadd.f32 0.0, %v2057
  %v2059 = vpop.f32.mrb[0].mxu0
  %2060 = vmatprep.mubr.bf16.mxu0 0
  %2061 = vmatmul.mubr.bf16.gmra.mrb[0].mxu0 %v1232
  %v2062 = vpop.f32.mrb[0].mxu0
  %v2063 = vadd.f32 0.0, %v2062
  %v2064 = vpop.f32.mrb[0].mxu0
  %v2065 = vpop.f32.mrb[0].mxu0
  %v2066 = vadd.f32 0.0, %v2065
  %v2067 = vpop.f32.mrb[0].mxu0
  %2068 = vmatprep.mubr.bf16.mxu0 0
  %2069 = vmatmul.mubr.bf16.gmra.mrb[0].mxu0 %v1235
  %v2070 = vpop.f32.mrb[0].mxu0
  %v2071 = vadd.f32 0.0, %v2070
  %v2072 = vpop.f32.mrb[0].mxu0
  %v2073 = vpop.f32.mrb[0].mxu0
  %v2074 = vadd.f32 0.0, %v2073
  %v2075 = vpop.f32.mrb[0].mxu0
  %2076 = vmatprep.mubr.bf16.mxu0 0
  %2077 = vmatmul.mubr.bf16.gmra.mrb[0].mxu0 %v1238
  %v2078 = vpop.f32.mrb[0].mxu0
  %v2079 = vadd.f32 0.0, %v2078
  %v2080 = vpop.f32.mrb[0].mxu0
  %v2081 = vpop.f32.mrb[0].mxu0
  %v2082 = vadd.f32 0.0, %v2081
  %v2083 = vpop.f32.mrb[0].mxu0
  %2084 = vmatprep.mubr.bf16.mxu0 0
  %2085 = vmatmul.mubr.bf16.gmra.mrb[0].mxu0 %v1241
  %v2086 = vpop.f32.mrb[0].mxu0
  %v2087 = vadd.f32 0.0, %v2086
  %v2088 = vpop.f32.mrb[0].mxu0
  %v2089 = vpop.f32.mrb[0].mxu0
  %v2090 = vadd.f32 0.0, %v2089
  %v2091 = vpop.f32.mrb[0].mxu0
  %2092 = vmatprep.mubr.bf16.mxu0 0
  %2093 = vmatmul.mubr.bf16.gmra.mrb[0].mxu0 %v1244
  %v2094 = vpop.f32.mrb[0].mxu0
  %v2095 = vadd.f32 0.0, %v2094
  %v2096 = vpop.f32.mrb[0].mxu0
  %v2097 = vpop.f32.mrb[0].mxu0
  %v2098 = vadd.f32 0.0, %v2097
  %v2099 = vpop.f32.mrb[0].mxu0
  %2100 = vmatprep.mubr.bf16.mxu0 0
  %2101 = vmatmul.mubr.bf16.gmra.mrb[0].mxu0 %v1247
  %v2102 = vpop.f32.mrb[0].mxu0
  %v2103 = vadd.f32 0.0, %v2102
  %v2104 = vpop.f32.mrb[0].mxu0
  %v2105 = vpop.f32.mrb[0].mxu0
  %v2106 = vadd.f32 0.0, %v2105
  %v2107 = vpop.f32.mrb[0].mxu0
  %2108 = vmatprep.mubr.bf16.mxu0 0
  %2109 = vmatmul.mubr.bf16.gmra.mrb[0].mxu0 %v1250
  %v2110 = vpop.f32.mrb[0].mxu0
  %v2111 = vadd.f32 0.0, %v2110
  %v2112 = vpop.f32.mrb[0].mxu0
  %v2113 = vpop.f32.mrb[0].mxu0
  %v2114 = vadd.f32 0.0, %v2113
  %v2115 = vpop.f32.mrb[0].mxu0
  %2116 = vmatprep.mubr.bf16.mxu0 0
  %2117 = vmatmul.mubr.bf16.gmra.mrb[0].mxu0 %v1253
  %v2118 = vpop.f32.mrb[0].mxu0
  %v2119 = vadd.f32 0.0, %v2118
  %v2120 = vpop.f32.mrb[0].mxu0
  %v2121 = vpop.f32.mrb[0].mxu0
  %v2122 = vadd.f32 0.0, %v2121
  %v2123 = vpop.f32.mrb[0].mxu0
  %2124 = vmatprep.mubr.bf16.mxu0 0
  %2125 = vmatmul.mubr.bf16.gmra.mrb[0].mxu0 %v1256
  %v2126 = vpop.f32.mrb[0].mxu0
  %v2127 = vadd.f32 0.0, %v2126
  %v2128 = vpop.f32.mrb[0].mxu0
  %v2129 = vpop.f32.mrb[0].mxu0
  %v2130 = vadd.f32 0.0, %v2129
  %v2131 = vpop.f32.mrb[0].mxu0
  %2132 = vmatprep.mubr.bf16.mxu0 0
  %2133 = vmatmul.mubr.bf16.gmra.mrb[0].mxu0 %v1259
  %v2134 = vpop.f32.mrb[0].mxu0
  %v2135 = vadd.f32 0.0, %v2134
  %v2136 = vpop.f32.mrb[0].mxu0
  %v2137 = vpop.f32.mrb[0].mxu0
  %v2138 = vadd.f32 0.0, %v2137
  %v2139 = vpop.f32.mrb[0].mxu0
  %2140 = vmatprep.mubr.bf16.mxu0 0
  %2141 = vmatmul.mubr.bf16.gmra.mrb[0].mxu0 %v1262
  %v2142 = vpop.f32.mrb[0].mxu0
  %v2143 = vadd.f32 0.0, %v2142
  %v2144 = vpop.f32.mrb[0].mxu0
  %v2145 = vpop.f32.mrb[0].mxu0
  %v2146 = vadd.f32 0.0, %v2145
  %v2147 = vpop.f32.mrb[0].mxu0
  %2148 = vmatprep.mubr.bf16.mxu0 0
  %2149 = vmatmul.mubr.bf16.gmra.mrb[0].mxu0 %v1265
  %v2150 = vpop.f32.mrb[0].mxu0
  %v2151 = vadd.f32 0.0, %v2150
  %v2152 = vpop.f32.mrb[0].mxu0
  %v2153 = vpop.f32.mrb[0].mxu0
  %v2154 = vadd.f32 0.0, %v2153
  %v2155 = vpop.f32.mrb[0].mxu0
  %2156 = vmatprep.mubr.bf16.mxu0 0
  %2157 = vmatmul.mubr.bf16.gmra.mrb[0].mxu0 %v1268
  %v2158 = vpop.f32.mrb[0].mxu0
  %v2159 = vadd.f32 0.0, %v2158
  %v2160 = vpop.f32.mrb[0].mxu0
  %v2161 = vpop.f32.mrb[0].mxu0
  %v2162 = vadd.f32 0.0, %v2161
  %v2163 = vpop.f32.mrb[0].mxu0
  %2164 = vmatprep.mubr.bf16.mxu0 0
  %2165 = vmatmul.mubr.bf16.gmra.mrb[0].mxu0 %v1271
  %v2166 = vpop.f32.mrb[0].mxu0
  %v2167 = vadd.f32 0.0, %v2166
  %v2168 = vpop.f32.mrb[0].mxu0
  %v2169 = vpop.f32.mrb[0].mxu0
  %v2170 = vadd.f32 0.0, %v2169
  %v2171 = vpop.f32.mrb[0].mxu0
  %2172 = vmatprep.mubr.bf16.mxu0 0
  %2173 = vmatmul.mubr.bf16.gmra.mrb[0].mxu0 %v1274
  %v2174 = vpop.f32.mrb[0].mxu0
  %v2175 = vadd.f32 0.0, %v2174
  %v2176 = vpop.f32.mrb[0].mxu0
  %v2177 = vpop.f32.mrb[0].mxu0
  %v2178 = vadd.f32 0.0, %v2177
  %v2179 = vpop.f32.mrb[0].mxu0
  %2180 = vmatprep.mubr.bf16.mxu0 0
  %2181 = vmatmul.mubr.bf16.gmra.mrb[0].mxu0 %v1277
  %v2182 = vpop.f32.mrb[0].mxu0
  %v2183 = vadd.f32 0.0, %v2182
  %v2184 = vpop.f32.mrb[0].mxu0
  %v2185 = vpop.f32.mrb[0].mxu0
  %v2186 = vadd.f32 0.0, %v2185
  %v2187 = vpop.f32.mrb[0].mxu0
  %2188 = vmatprep.mubr.bf16.mxu0 0
  %2189 = vmatmul.mubr.bf16.gmra.mrb[0].mxu0 %v1280
  %v2190 = vpop.f32.mrb[0].mxu0
  %v2191 = vadd.f32 0.0, %v2190
  %v2192 = vpop.f32.mrb[0].mxu0
  %v2193 = vpop.f32.mrb[0].mxu0
  %v2194 = vadd.f32 0.0, %v2193
  %v2195 = vpop.f32.mrb[0].mxu0
  %2196 = vmatprep.mubr.bf16.mxu0 0
  %2197 = vmatmul.mubr.bf16.gmra.mrb[0].mxu0 %v1283
  %v2198 = vpop.f32.mrb[0].mxu0
  %v2199 = vadd.f32 0.0, %v2198
  %v2200 = vpop.f32.mrb[0].mxu0
  %v2201 = vpop.f32.mrb[0].mxu0
  %v2202 = vadd.f32 0.0, %v2201
  %v2203 = vpop.f32.mrb[0].mxu0
  %2204 = vmatprep.mubr.bf16.mxu0 0
  %2205 = vmatmul.mubr.bf16.gmra.mrb[0].mxu0 %v1286
  %v2206 = vpop.f32.mrb[0].mxu0
  %v2207 = vadd.f32 0.0, %v2206
  %v2208 = vpop.f32.mrb[0].mxu0
  %v2209 = vpop.f32.mrb[0].mxu0
  %v2210 = vadd.f32 0.0, %v2209
  %v2211 = vpop.f32.mrb[0].mxu0
  %2212 = vmatprep.mubr.bf16.mxu0 0
  %2213 = vmatmul.mubr.bf16.gmra.mrb[0].mxu0 %v1289
  %v2214 = vpop.f32.mrb[0].mxu0
  %v2215 = vadd.f32 0.0, %v2214
  %v2216 = vpop.f32.mrb[0].mxu0
  %v2217 = vpop.f32.mrb[0].mxu0
  %v2218 = vadd.f32 0.0, %v2217
  %v2219 = vpop.f32.mrb[0].mxu0
  %2220 = vmatprep.mubr.bf16.mxu0 0
  %2221 = vmatmul.mubr.bf16.gmra.mrb[0].mxu0 %v1292
  %v2222 = vpop.f32.mrb[0].mxu0
  %v2223 = vadd.f32 0.0, %v2222
  %v2224 = vpop.f32.mrb[0].mxu0
  %v2225 = vpop.f32.mrb[0].mxu0
  %v2226 = vadd.f32 0.0, %v2225
  %v2227 = vpop.f32.mrb[0].mxu0
  %2228 = vmatprep.mubr.bf16.mxu0 0
  %2229 = vmatmul.mubr.bf16.gmra.mrb[0].mxu0 %v1295
  %v2230 = vpop.f32.mrb[0].mxu0
  %v2231 = vadd.f32 0.0, %v2230
  %v2232 = vpop.f32.mrb[0].mxu0
  %v2233 = vpop.f32.mrb[0].mxu0
  %v2234 = vadd.f32 0.0, %v2233
  %v2235 = vpop.f32.mrb[0].mxu0
  %2236 = vmatprep.mubr.bf16.mxu0 0
  %2237 = vmatmul.mubr.bf16.gmra.mrb[0].mxu0 %v1298
  %v2238 = vpop.f32.mrb[0].mxu0
  %v2239 = vadd.f32 0.0, %v2238
  %v2240 = vpop.f32.mrb[0].mxu0
  %v2241 = vpop.f32.mrb[0].mxu0
  %v2242 = vadd.f32 0.0, %v2241
  %v2243 = vpop.f32.mrb[0].mxu0
  %2244 = vmatprep.mubr.bf16.mxu0 0
  %2245 = vmatmul.mubr.bf16.gmra.mrb[0].mxu0 %v1301
  %v2246 = vpop.f32.mrb[0].mxu0
  %v2247 = vadd.f32 0.0, %v2246
  %v2248 = vpop.f32.mrb[0].mxu0
  %v2249 = vpop.f32.mrb[0].mxu0
  %v2250 = vadd.f32 0.0, %v2249
  %v2251 = vpop.f32.mrb[0].mxu0
  %2252 = vmatprep.mubr.bf16.mxu0 0
  %2253 = vmatmul.mubr.bf16.gmra.mrb[0].mxu0 %v1304
  %v2254 = vpop.f32.mrb[0].mxu0
  %v2255 = vadd.f32 0.0, %v2254
  %v2256 = vpop.f32.mrb[0].mxu0
  %v2257 = vpop.f32.mrb[0].mxu0
  %v2258 = vadd.f32 0.0, %v2257
  %v2259 = vpop.f32.mrb[0].mxu0
  %2260 = vmatprep.mubr.bf16.mxu0 0
  %2261 = vmatmul.mubr.bf16.gmra.mrb[0].mxu0 %v1307
  %v2262 = vpop.f32.mrb[0].mxu0
  %v2263 = vadd.f32 0.0, %v2262
  %v2264 = vpop.f32.mrb[0].mxu0
  %v2265 = vpop.f32.mrb[0].mxu0
  %v2266 = vadd.f32 0.0, %v2265
  %v2267 = vpop.f32.mrb[0].mxu0
  %2268 = vmatprep.mubr.bf16.mxu0 0
  %2269 = vmatmul.mubr.bf16.gmra.mrb[0].mxu0 %v1310
  %v2270 = vpop.f32.mrb[0].mxu0
  %v2271 = vadd.f32 0.0, %v2270
  %v2272 = vpop.f32.mrb[0].mxu0
  %v2273 = vpop.f32.mrb[0].mxu0
  %v2274 = vadd.f32 0.0, %v2273
  %v2275 = vpop.f32.mrb[0].mxu0
  %2276 = vmatprep.mubr.bf16.mxu0 0
  %2277 = vmatmul.mubr.bf16.gmra.mrb[0].mxu0 %v1313
  %v2278 = vpop.f32.mrb[0].mxu0
  %v2279 = vadd.f32 0.0, %v2278
  %v2280 = vpop.f32.mrb[0].mxu0
  %v2281 = vpop.f32.mrb[0].mxu0
  %v2282 = vadd.f32 0.0, %v2281
  %v2283 = vpop.f32.mrb[0].mxu0
  %2284 = vmatprep.mubr.bf16.mxu0 0
  %2285 = vmatmul.mubr.bf16.gmra.mrb[0].mxu0 %v1316
  %v2286 = vpop.f32.mrb[0].mxu0
  %v2287 = vadd.f32 0.0, %v2286
  %v2288 = vpop.f32.mrb[0].mxu0
  %v2289 = vpop.f32.mrb[0].mxu0
  %v2290 = vadd.f32 0.0, %v2289
  %v2291 = vpop.f32.mrb[0].mxu0
  %2292 = vmatprep.mubr.bf16.mxu0 0
  %2293 = vmatmul.mubr.bf16.gmra.mrb[0].mxu0 %v1319
  %v2294 = vpop.f32.mrb[0].mxu0
  %v2295 = vadd.f32 0.0, %v2294
  %v2296 = vpop.f32.mrb[0].mxu0
  %v2297 = vpop.f32.mrb[0].mxu0
  %v2298 = vadd.f32 0.0, %v2297
  %v2299 = vpop.f32.mrb[0].mxu0
  %2300 = vmatprep.mubr.bf16.mxu0 0
  %2301 = vmatmul.mubr.bf16.gmra.mrb[0].mxu0 %v1322
  %v2302 = vpop.f32.mrb[0].mxu0
  %v2303 = vadd.f32 0.0, %v2302
  %v2304 = vpop.f32.mrb[0].mxu0
  %v2305 = vpop.f32.mrb[0].mxu0
  %v2306 = vadd.f32 0.0, %v2305
  %v2307 = vpop.f32.mrb[0].mxu0
  %2308 = vmatprep.mubr.bf16.mxu0 0
  %2309 = vmatmul.mubr.bf16.gmra.mrb[0].mxu0 %v1325
  %v2310 = vpop.f32.mrb[0].mxu0
  %v2311 = vadd.f32 0.0, %v2310
  %v2312 = vpop.f32.mrb[0].mxu0
  %v2313 = vpop.f32.mrb[0].mxu0
  %v2314 = vadd.f32 0.0, %v2313
  %v2315 = vpop.f32.mrb[0].mxu0
  %2316 = vmatprep.mubr.bf16.mxu0 0
  %2317 = vmatmul.mubr.bf16.gmra.mrb[0].mxu0 %v1328
  %v2318 = vpop.f32.mrb[0].mxu0
  %v2319 = vadd.f32 0.0, %v2318
  %v2320 = vpop.f32.mrb[0].mxu0
  %v2321 = vpop.f32.mrb[0].mxu0
  %v2322 = vadd.f32 0.0, %v2321
  %v2323 = vpop.f32.mrb[0].mxu0
  %2324 = vmatprep.mubr.bf16.mxu0 0
  %2325 = vmatmul.mubr.bf16.gmra.mrb[0].mxu0 %v1331
  %v2326 = vpop.f32.mrb[0].mxu0
  %v2327 = vadd.f32 0.0, %v2326
  %v2328 = vpop.f32.mrb[0].mxu0
  %v2329 = vpop.f32.mrb[0].mxu0
  %v2330 = vadd.f32 0.0, %v2329
  %v2331 = vpop.f32.mrb[0].mxu0
  %2332 = vmatprep.mubr.bf16.mxu0 0
  %2333 = vmatmul.mubr.bf16.gmra.mrb[0].mxu0 %v1334
  %v2334 = vpop.f32.mrb[0].mxu0
  %v2335 = vadd.f32 0.0, %v2334
  %v2336 = vpop.f32.mrb[0].mxu0
  %v2337 = vpop.f32.mrb[0].mxu0
  %v2338 = vadd.f32 0.0, %v2337
  %v2339 = vpop.f32.mrb[0].mxu0
  %2340 = vmatprep.mubr.bf16.mxu0 0
  %2341 = vmatmul.mubr.bf16.gmra.mrb[0].mxu0 %v1337
  %v2342 = vpop.f32.mrb[0].mxu0
  %v2343 = vadd.f32 0.0, %v2342
  %v2344 = vpop.f32.mrb[0].mxu0
  %v2345 = vpop.f32.mrb[0].mxu0
  %v2346 = vadd.f32 0.0, %v2345
  %v2347 = vpop.f32.mrb[0].mxu0
  %2348 = vmatprep.mubr.bf16.mxu0 0
  %2349 = vmatmul.mubr.bf16.gmra.mrb[0].mxu0 %v1340
  %v2350 = vpop.f32.mrb[0].mxu0
  %v2351 = vadd.f32 0.0, %v2350
  %v2352 = vpop.f32.mrb[0].mxu0
  %v2353 = vpop.f32.mrb[0].mxu0
  %v2354 = vadd.f32 0.0, %v2353
  %v2355 = vpop.f32.mrb[0].mxu0
  %2356 = vmatprep.mubr.bf16.mxu0 0
  %2357 = vmatmul.mubr.bf16.gmra.mrb[0].mxu0 %v1343
  %v2358 = vpop.f32.mrb[0].mxu0
  %v2359 = vadd.f32 0.0, %v2358
  %v2360 = vpop.f32.mrb[0].mxu0
  %v2361 = vpop.f32.mrb[0].mxu0
  %v2362 = vadd.f32 0.0, %v2361
  %v2363 = vpop.f32.mrb[0].mxu0
  %2364 = vmatprep.mubr.bf16.mxu0 0
  %2365 = vmatmul.mubr.bf16.gmra.mrb[0].mxu0 %v1346
  %v2366 = vpop.f32.mrb[0].mxu0
  %v2367 = vadd.f32 0.0, %v2366
  %v2368 = vpop.f32.mrb[0].mxu0
  %v2369 = vpop.f32.mrb[0].mxu0
  %v2370 = vadd.f32 0.0, %v2369
  %v2371 = vpop.f32.mrb[0].mxu0
  %2372 = vmatprep.mubr.bf16.mxu0 0
  %2373 = vmatmul.mubr.bf16.gmra.mrb[0].mxu0 %v1349
  %v2374 = vpop.f32.mrb[0].mxu0
  %v2375 = vadd.f32 0.0, %v2374
  %v2376 = vpop.f32.mrb[0].mxu0
  %v2377 = vpop.f32.mrb[0].mxu0
  %v2378 = vadd.f32 0.0, %v2377
  %v2379 = vpop.f32.mrb[0].mxu0
  %2380 = vmatprep.mubr.bf16.mxu0 0
  %2381 = vmatmul.mubr.bf16.gmra.mrb[0].mxu0 %v1352
  %v2382 = vpop.f32.mrb[0].mxu0
  %v2383 = vadd.f32 0.0, %v2382
  %v2384 = vpop.f32.mrb[0].mxu0
  %v2385 = vpop.f32.mrb[0].mxu0
  %v2386 = vadd.f32 0.0, %v2385
  %v2387 = vpop.f32.mrb[0].mxu0
  %2388 = vmatprep.mubr.bf16.mxu0 0
  %2389 = vmatmul.mubr.bf16.gmra.mrb[0].mxu0 %v1355
  %v2390 = vpop.f32.mrb[0].mxu0
  %v2391 = vadd.f32 0.0, %v2390
  %v2392 = vpop.f32.mrb[0].mxu0
  %v2393 = vpop.f32.mrb[0].mxu0
  %v2394 = vadd.f32 0.0, %v2393
  %v2395 = vpop.f32.mrb[0].mxu0
  %2396 = vmatprep.mubr.bf16.mxu0 0
  %2397 = vmatmul.mubr.bf16.gmra.mrb[0].mxu0 %v1358
  %v2398 = vpop.f32.mrb[0].mxu0
  %v2399 = vadd.f32 0.0, %v2398
  %v2400 = vpop.f32.mrb[0].mxu0
  %v2401 = vpop.f32.mrb[0].mxu0
  %v2402 = vadd.f32 0.0, %v2401
  %v2403 = vpop.f32.mrb[0].mxu0
  %2404 = vmatprep.mubr.bf16.mxu0 0
  %2405 = vmatmul.mubr.bf16.gmra.mrb[0].mxu0 %v1361
  %v2406 = vpop.f32.mrb[0].mxu0
  %v2407 = vadd.f32 0.0, %v2406
  %v2408 = vpop.f32.mrb[0].mxu0
  %v2409 = vpop.f32.mrb[0].mxu0
  %v2410 = vadd.f32 0.0, %v2409
  %v2411 = vpop.f32.mrb[0].mxu0
  %2412 = vmatprep.mubr.bf16.mxu0 0
  %2413 = vmatmul.mubr.bf16.gmra.mrb[0].mxu0 %v1364
  %v2414 = vpop.f32.mrb[0].mxu0
  %v2415 = vadd.f32 0.0, %v2414
  %v2416 = vpop.f32.mrb[0].mxu0
  %v2417 = vpop.f32.mrb[0].mxu0
  %v2418 = vadd.f32 0.0, %v2417
  %v2419 = vpop.f32.mrb[0].mxu0
  %2420 = vmatprep.mubr.bf16.mxu0 0
  %2421 = vmatmul.mubr.bf16.gmra.mrb[0].mxu0 %v1367
  %v2422 = vpop.f32.mrb[0].mxu0
  %v2423 = vadd.f32 0.0, %v2422
  %v2424 = vpop.f32.mrb[0].mxu0
  %v2425 = vpop.f32.mrb[0].mxu0
  %v2426 = vadd.f32 0.0, %v2425
  %v2427 = vpop.f32.mrb[0].mxu0
  %2428 = vmatprep.mubr.bf16.mxu0 0
  %2429 = vmatmul.mubr.bf16.gmra.mrb[0].mxu0 %v1370
  %v2430 = vpop.f32.mrb[0].mxu0
  %v2431 = vadd.f32 0.0, %v2430
  %v2432 = vpop.f32.mrb[0].mxu0
  %v2433 = vpop.f32.mrb[0].mxu0
  %v2434 = vadd.f32 0.0, %v2433
  %v2435 = vpop.f32.mrb[0].mxu0
  %2436 = vmatprep.mubr.bf16.mxu0 0
  %2437 = vmatmul.mubr.bf16.gmra.mrb[0].mxu0 %v1373
  %v2438 = vpop.f32.mrb[0].mxu0
  %v2439 = vadd.f32 0.0, %v2438
  %v2440 = vpop.f32.mrb[0].mxu0
  %v2441 = vpop.f32.mrb[0].mxu0
  %v2442 = vadd.f32 0.0, %v2441
  %v2443 = vpop.f32.mrb[0].mxu0
  %2444 = vmatprep.mubr.bf16.mxu0 0
  %2445 = vmatmul.mubr.bf16.gmra.mrb[0].mxu0 %v1376
  %v2446 = vpop.f32.mrb[0].mxu0
  %v2447 = vadd.f32 0.0, %v2446
  %v2448 = vpop.f32.mrb[0].mxu0
  %v2449 = vpop.f32.mrb[0].mxu0
  %v2450 = vadd.f32 0.0, %v2449
  %v2451 = vpop.f32.mrb[0].mxu0
  %2452 = vmatprep.mubr.bf16.mxu0 0
  %2453 = vmatmul.mubr.bf16.gmra.mrb[0].mxu0 %v1379
  %v2454 = vpop.f32.mrb[0].mxu0
  %v2455 = vadd.f32 0.0, %v2454
  %v2456 = vpop.f32.mrb[0].mxu0
  %v2457 = vpop.f32.mrb[0].mxu0
  %v2458 = vadd.f32 0.0, %v2457
  %v2459 = vpop.f32.mrb[0].mxu0
  %2460 = vmatprep.mubr.bf16.mxu0 0
  %2461 = vmatmul.mubr.bf16.gmra.mrb[0].mxu0 %v1382
  %v2462 = vpop.f32.mrb[0].mxu0
  %v2463 = vadd.f32 0.0, %v2462
  %v2464 = vpop.f32.mrb[0].mxu0
  %v2465 = vpop.f32.mrb[0].mxu0
  %v2466 = vadd.f32 0.0, %v2465
  %v2467 = vpop.f32.mrb[0].mxu0
  %2468 = vmatprep.mubr.bf16.mxu0 0
  %2469 = vmatmul.mubr.bf16.gmra.mrb[0].mxu0 %v1385
  %v2470 = vpop.f32.mrb[0].mxu0
  %v2471 = vadd.f32 0.0, %v2470
  %v2472 = vpop.f32.mrb[0].mxu0
  %v2473 = vpop.f32.mrb[0].mxu0
  %v2474 = vadd.f32 0.0, %v2473
  %v2475 = vpop.f32.mrb[0].mxu0
  %2476 = vmatprep.mubr.bf16.mxu0 0
  %2477 = vmatmul.mubr.bf16.gmra.mrb[0].mxu0 %v1388
  %v2478 = vpop.f32.mrb[0].mxu0
  %v2479 = vadd.f32 0.0, %v2478
  %v2480 = vpop.f32.mrb[0].mxu0
  %v2481 = vpop.f32.mrb[0].mxu0
  %v2482 = vadd.f32 0.0, %v2481
  %v2483 = vpop.f32.mrb[0].mxu0
  %2484 = vmatprep.mubr.bf16.mxu0 0
  %2485 = vmatmul.mubr.bf16.gmra.mrb[0].mxu0 %v1391
  %v2486 = vpop.f32.mrb[0].mxu0
  %v2487 = vadd.f32 0.0, %v2486
  %v2488 = vpop.f32.mrb[0].mxu0
  %v2489 = vpop.f32.mrb[0].mxu0
  %v2490 = vadd.f32 0.0, %v2489
  %v2491 = vpop.f32.mrb[0].mxu0
  %2492 = vmatprep.mubr.bf16.mxu0 0
  %2493 = vmatmul.mubr.bf16.gmra.mrb[0].mxu0 %v1394
  %v2494 = vpop.f32.mrb[0].mxu0
  %v2495 = vadd.f32 0.0, %v2494
  %v2496 = vpop.f32.mrb[0].mxu0
  %v2497 = vpop.f32.mrb[0].mxu0
  %v2498 = vadd.f32 0.0, %v2497
  %v2499 = vpop.f32.mrb[0].mxu0
  %2500 = vmatprep.mubr.bf16.mxu0 0
  %2501 = vmatmul.mubr.bf16.gmra.mrb[0].mxu0 %v1397
  %v2502 = vpop.f32.mrb[0].mxu0
  %v2503 = vadd.f32 0.0, %v2502
  %v2504 = vpop.f32.mrb[0].mxu0
  %v2505 = vpop.f32.mrb[0].mxu0
  %v2506 = vadd.f32 0.0, %v2505
  %v2507 = vpop.f32.mrb[0].mxu0
  %2508 = vmatprep.mubr.bf16.mxu0 0
  %2509 = vmatmul.mubr.bf16.gmra.mrb[0].mxu0 %v1400
  %v2510 = vpop.f32.mrb[0].mxu0
  %v2511 = vadd.f32 0.0, %v2510
  %v2512 = vpop.f32.mrb[0].mxu0
  %v2513 = vpop.f32.mrb[0].mxu0
  %v2514 = vadd.f32 0.0, %v2513
  %v2515 = vpop.f32.mrb[0].mxu0
  %2516 = vmatprep.mubr.bf16.mxu0 0
  %2517 = vmatmul.mubr.bf16.gmra.mrb[0].mxu0 %v1403
  %v2518 = vpop.f32.mrb[0].mxu0
  %v2519 = vadd.f32 0.0, %v2518
  %v2520 = vpop.f32.mrb[0].mxu0
  %v2521 = vpop.f32.mrb[0].mxu0
  %v2522 = vadd.f32 0.0, %v2521
  %v2523 = vpop.f32.mrb[0].mxu0
  %2524 = vmatprep.mubr.bf16.mxu0 0
  %2525 = vmatmul.mubr.bf16.gmra.mrb[0].mxu0 %v1406
  %v2526 = vpop.f32.mrb[0].mxu0
  %v2527 = vadd.f32 0.0, %v2526
  %v2528 = vpop.f32.mrb[0].mxu0
  %v2529 = vpop.f32.mrb[0].mxu0
  %v2530 = vadd.f32 0.0, %v2529
  %v2531 = vpop.f32.mrb[0].mxu0
  %2532 = vmatprep.mubr.bf16.mxu0 0
  %2533 = vmatmul.mubr.bf16.gmra.mrb[0].mxu0 %v1409
  %v2534 = vpop.f32.mrb[0].mxu0
  %v2535 = vadd.f32 0.0, %v2534
  %v2536 = vpop.f32.mrb[0].mxu0
  %v2537 = vpop.f32.mrb[0].mxu0
  %v2538 = vadd.f32 0.0, %v2537
  %v2539 = vpop.f32.mrb[0].mxu0
  %2540 = vmatprep.mubr.bf16.mxu0 0
  %2541 = vmatmul.mubr.bf16.gmra.mrb[0].mxu0 %v1412
  %v2542 = vpop.f32.mrb[0].mxu0
  %v2543 = vadd.f32 0.0, %v2542
  %v2544 = vpop.f32.mrb[0].mxu0
  %v2545 = vpop.f32.mrb[0].mxu0
  %v2546 = vadd.f32 0.0, %v2545
  %v2547 = vpop.f32.mrb[0].mxu0
  %2548 = vmatprep.mubr.bf16.mxu0 0
  %2549 = vmatmul.mubr.bf16.gmra.mrb[0].mxu0 %v1415
  %v2550 = vpop.f32.mrb[0].mxu0
  %v2551 = vadd.f32 0.0, %v2550
  %v2552 = vpop.f32.mrb[0].mxu0
  %v2553 = vpop.f32.mrb[0].mxu0
  %v2554 = vadd.f32 0.0, %v2553
  %v2555 = vpop.f32.mrb[0].mxu0
  %2556 = vmatprep.mubr.bf16.mxu0 0
  %2557 = vmatmul.mubr.bf16.gmra.mrb[0].mxu0 %v1418
  %v2558 = vpop.f32.mrb[0].mxu0
  %v2559 = vadd.f32 0.0, %v2558
  %v2560 = vpop.f32.mrb[0].mxu0
  %v2561 = vpop.f32.mrb[0].mxu0
  %v2562 = vadd.f32 0.0, %v2561
  %v2563 = vpop.f32.mrb[0].mxu0
  %2564 = vmatprep.mubr.bf16.mxu0 0
  %2565 = vmatmul.mubr.bf16.gmra.mrb[0].mxu0 %v1421
  %v2566 = vpop.f32.mrb[0].mxu0
  %v2567 = vadd.f32 0.0, %v2566
  %v2568 = vpop.f32.mrb[0].mxu0
  %v2569 = vpop.f32.mrb[0].mxu0
  %v2570 = vadd.f32 0.0, %v2569
  %v2571 = vpop.f32.mrb[0].mxu0
  %2572 = vmatprep.mubr.bf16.mxu0 0
  %2573 = vmatmul.mubr.bf16.gmra.mrb[0].mxu0 %v1424
  %v2574 = vpop.f32.mrb[0].mxu0
  %v2575 = vadd.f32 0.0, %v2574
  %v2576 = vpop.f32.mrb[0].mxu0
  %v2577 = vpop.f32.mrb[0].mxu0
  %v2578 = vadd.f32 0.0, %v2577
  %v2579 = vpop.f32.mrb[0].mxu0
  %2580 = vmatprep.mubr.bf16.mxu0 0
  %2581 = vmatmul.mubr.bf16.gmra.mrb[0].mxu0 %v1427
  %v2582 = vpop.f32.mrb[0].mxu0
  %v2583 = vadd.f32 0.0, %v2582
  %v2584 = vpop.f32.mrb[0].mxu0
  %v2585 = vpop.f32.mrb[0].mxu0
  %v2586 = vadd.f32 0.0, %v2585
  %v2587 = vpop.f32.mrb[0].mxu0
  %2588 = vdwg.mxu0
  %vm2589 = vcmask 261120
  %2590 = vst.msk [vmem:[#allocation2] sm:$0xff] %vm2589, %v1471
  %2591 = vst.msk [vmem:[#allocation2 + $0x8] sm:$0xff] %vm2589, %v1474
  %2592 = vst.msk [vmem:[#allocation2 + $0x10] sm:$0xff] %vm2589, %v1479
  %2593 = vst.msk [vmem:[#allocation2 + $0x18] sm:$0xff] %vm2589, %v1482
  %2594 = vst.msk [vmem:[#allocation2 + $0x20] sm:$0xff] %vm2589, %v1487
  %2595 = vst.msk [vmem:[#allocation2 + $0x28] sm:$0xff] %vm2589, %v1490
  %2596 = vst.msk [vmem:[#allocation2 + $0x30] sm:$0xff] %vm2589, %v1495
  %2597 = vst.msk [vmem:[#allocation2 + $0x38] sm:$0xff] %vm2589, %v1498
  %2598 = vst.msk [vmem:[#allocation2 + $0x40] sm:$0xff] %vm2589, %v1503
  %2599 = vst.msk [vmem:[#allocation2 + $0x48] sm:$0xff] %vm2589, %v1506
  %2600 = vst.msk [vmem:[#allocation2 + $0x50] sm:$0xff] %vm2589, %v1511
  %2601 = vst.msk [vmem:[#allocation2 + $0x58] sm:$0xff] %vm2589, %v1514
  %2602 = vst.msk [vmem:[#allocation2 + $0x60] sm:$0xff] %vm2589, %v1519
  %2603 = vst.msk [vmem:[#allocation2 + $0x68] sm:$0xff] %vm2589, %v1522
  %2604 = vst.msk [vmem:[#allocation2 + $0x70] sm:$0xff] %vm2589, %v1527
  %2605 = vst.msk [vmem:[#allocation2 + $0x78] sm:$0xff] %vm2589, %v1530
  %2606 = vst.msk [vmem:[#allocation2 + $0x80] sm:$0xff] %vm2589, %v1535
  %2607 = vst.msk [vmem:[#allocation2 + $0x88] sm:$0xff] %vm2589, %v1538
  %2608 = vst.msk [vmem:[#allocation2 + $0x90] sm:$0xff] %vm2589, %v1543
  %2609 = vst.msk [vmem:[#allocation2 + $0x98] sm:$0xff] %vm2589, %v1546
  %2610 = vst.msk [vmem:[#allocation2 + $0xa0] sm:$0xff] %vm2589, %v1551
  %2611 = vst.msk [vmem:[#allocation2 + $0xa8] sm:$0xff] %vm2589, %v1554
  %2612 = vst.msk [vmem:[#allocation2 + $0xb0] sm:$0xff] %vm2589, %v1559
  %2613 = vst.msk [vmem:[#allocation2 + $0xb8] sm:$0xff] %vm2589, %v1562
  %2614 = vst.msk [vmem:[#allocation2 + $0xc0] sm:$0xff] %vm2589, %v1567
  %2615 = vst.msk [vmem:[#allocation2 + $0xc8] sm:$0xff] %vm2589, %v1570
  %2616 = vst.msk [vmem:[#allocation2 + $0xd0] sm:$0xff] %vm2589, %v1575
  %2617 = vst.msk [vmem:[#allocation2 + $0xd8] sm:$0xff] %vm2589, %v1578
  %2618 = vst.msk [vmem:[#allocation2 + $0xe0] sm:$0xff] %vm2589, %v1583
  %2619 = vst.msk [vmem:[#allocation2 + $0xe8] sm:$0xff] %vm2589, %v1586
  %2620 = vst.msk [vmem:[#allocation2 + $0xf0] sm:$0xff] %vm2589, %v1591
  %2621 = vst.msk [vmem:[#allocation2 + $0xf8] sm:$0xff] %vm2589, %v1594
  %2622 = vst.msk [vmem:[#allocation2 + $0x100] sm:$0xff] %vm2589, %v1599
  %2623 = vst.msk [vmem:[#allocation2 + $0x108] sm:$0xff] %vm2589, %v1602
  %2624 = vst.msk [vmem:[#allocation2 + $0x110] sm:$0xff] %vm2589, %v1607
  %2625 = vst.msk [vmem:[#allocation2 + $0x118] sm:$0xff] %vm2589, %v1610
  %2626 = vst.msk [vmem:[#allocation2 + $0x120] sm:$0xff] %vm2589, %v1615
  %2627 = vst.msk [vmem:[#allocation2 + $0x128] sm:$0xff] %vm2589, %v1618
  %2628 = vst.msk [vmem:[#allocation2 + $0x130] sm:$0xff] %vm2589, %v1623
  %2629 = vst.msk [vmem:[#allocation2 + $0x138] sm:$0xff] %vm2589, %v1626
  %2630 = vst.msk [vmem:[#allocation2 + $0x140] sm:$0xff] %vm2589, %v1631
  %2631 = vst.msk [vmem:[#allocation2 + $0x148] sm:$0xff] %vm2589, %v1634
  %2632 = vst.msk [vmem:[#allocation2 + $0x150] sm:$0xff] %vm2589, %v1639
  %2633 = vst.msk [vmem:[#allocation2 + $0x158] sm:$0xff] %vm2589, %v1642
  %2634 = vst.msk [vmem:[#allocation2 + $0x160] sm:$0xff] %vm2589, %v1647
  %2635 = vst.msk [vmem:[#allocation2 + $0x168] sm:$0xff] %vm2589, %v1650
  %2636 = vst.msk [vmem:[#allocation2 + $0x170] sm:$0xff] %vm2589, %v1655
  %2637 = vst.msk [vmem:[#allocation2 + $0x178] sm:$0xff] %vm2589, %v1658
  %2638 = vst.msk [vmem:[#allocation2 + $0x180] sm:$0xff] %vm2589, %v1663
  %2639 = vst.msk [vmem:[#allocation2 + $0x188] sm:$0xff] %vm2589, %v1666
  %2640 = vst.msk [vmem:[#allocation2 + $0x190] sm:$0xff] %vm2589, %v1671
  %2641 = vst.msk [vmem:[#allocation2 + $0x198] sm:$0xff] %vm2589, %v1674
  %2642 = vst.msk [vmem:[#allocation2 + $0x1a0] sm:$0xff] %vm2589, %v1679
  %2643 = vst.msk [vmem:[#allocation2 + $0x1a8] sm:$0xff] %vm2589, %v1682
  %2644 = vst.msk [vmem:[#allocation2 + $0x1b0] sm:$0xff] %vm2589, %v1687
  %2645 = vst.msk [vmem:[#allocation2 + $0x1b8] sm:$0xff] %vm2589, %v1690
  %2646 = vst.msk [vmem:[#allocation2 + $0x1c0] sm:$0xff] %vm2589, %v1695
  %2647 = vst.msk [vmem:[#allocation2 + $0x1c8] sm:$0xff] %vm2589, %v1698
  %2648 = vst.msk [vmem:[#allocation2 + $0x1d0] sm:$0xff] %vm2589, %v1703
  %2649 = vst.msk [vmem:[#allocation2 + $0x1d8] sm:$0xff] %vm2589, %v1706
  %2650 = vst.msk [vmem:[#allocation2 + $0x1e0] sm:$0xff] %vm2589, %v1711
  %2651 = vst.msk [vmem:[#allocation2 + $0x1e8] sm:$0xff] %vm2589, %v1714
  %2652 = vst.msk [vmem:[#allocation2 + $0x1f0] sm:$0xff] %vm2589, %v1719
  %2653 = vst.msk [vmem:[#allocation2 + $0x1f8] sm:$0xff] %vm2589, %v1722
  %2654 = vst.msk [vmem:[#allocation2 + $0x200] sm:$0xff] %vm2589, %v1727
  %2655 = vst.msk [vmem:[#allocation2 + $0x208] sm:$0xff] %vm2589, %v1730
  %2656 = vst.msk [vmem:[#allocation2 + $0x210] sm:$0xff] %vm2589, %v1735
  %2657 = vst.msk [vmem:[#allocation2 + $0x218] sm:$0xff] %vm2589, %v1738
  %2658 = vst.msk [vmem:[#allocation2 + $0x220] sm:$0xff] %vm2589, %v1743
  %2659 = vst.msk [vmem:[#allocation2 + $0x228] sm:$0xff] %vm2589, %v1746
  %2660 = vst.msk [vmem:[#allocation2 + $0x230] sm:$0xff] %vm2589, %v1751
  %2661 = vst.msk [vmem:[#allocation2 + $0x238] sm:$0xff] %vm2589, %v1754
  %2662 = vst.msk [vmem:[#allocation2 + $0x240] sm:$0xff] %vm2589, %v1759
  %2663 = vst.msk [vmem:[#allocation2 + $0x248] sm:$0xff] %vm2589, %v1762
  %2664 = vst.msk [vmem:[#allocation2 + $0x250] sm:$0xff] %vm2589, %v1767
  %2665 = vst.msk [vmem:[#allocation2 + $0x258] sm:$0xff] %vm2589, %v1770
  %2666 = vst.msk [vmem:[#allocation2 + $0x260] sm:$0xff] %vm2589, %v1775
  %2667 = vst.msk [vmem:[#allocation2 + $0x268] sm:$0xff] %vm2589, %v1778
  %2668 = vst.msk [vmem:[#allocation2 + $0x270] sm:$0xff] %vm2589, %v1783
  %2669 = vst.msk [vmem:[#allocation2 + $0x278] sm:$0xff] %vm2589, %v1786
  %2670 = vst.msk [vmem:[#allocation2 + $0x280] sm:$0xff] %vm2589, %v1791
  %2671 = vst.msk [vmem:[#allocation2 + $0x288] sm:$0xff] %vm2589, %v1794
  %2672 = vst.msk [vmem:[#allocation2 + $0x290] sm:$0xff] %vm2589, %v1799
  %2673 = vst.msk [vmem:[#allocation2 + $0x298] sm:$0xff] %vm2589, %v1802
  %2674 = vst.msk [vmem:[#allocation2 + $0x2a0] sm:$0xff] %vm2589, %v1807
  %2675 = vst.msk [vmem:[#allocation2 + $0x2a8] sm:$0xff] %vm2589, %v1810
  %2676 = vst.msk [vmem:[#allocation2 + $0x2b0] sm:$0xff] %vm2589, %v1815
  %2677 = vst.msk [vmem:[#allocation2 + $0x2b8] sm:$0xff] %vm2589, %v1818
  %2678 = vst.msk [vmem:[#allocation2 + $0x2c0] sm:$0xff] %vm2589, %v1823
  %2679 = vst.msk [vmem:[#allocation2 + $0x2c8] sm:$0xff] %vm2589, %v1826
  %2680 = vst.msk [vmem:[#allocation2 + $0x2d0] sm:$0xff] %vm2589, %v1831
  %2681 = vst.msk [vmem:[#allocation2 + $0x2d8] sm:$0xff] %vm2589, %v1834
  %2682 = vst.msk [vmem:[#allocation2 + $0x2e0] sm:$0xff] %vm2589, %v1839
  %2683 = vst.msk [vmem:[#allocation2 + $0x2e8] sm:$0xff] %vm2589, %v1842
  %2684 = vst.msk [vmem:[#allocation2 + $0x2f0] sm:$0xff] %vm2589, %v1847
  %2685 = vst.msk [vmem:[#allocation2 + $0x2f8] sm:$0xff] %vm2589, %v1850
  %2686 = vst.msk [vmem:[#allocation2 + $0x300] sm:$0xff] %vm2589, %v1855
  %2687 = vst.msk [vmem:[#allocation2 + $0x308] sm:$0xff] %vm2589, %v1858
  %2688 = vst.msk [vmem:[#allocation2 + $0x310] sm:$0xff] %vm2589, %v1863
  %2689 = vst.msk [vmem:[#allocation2 + $0x318] sm:$0xff] %vm2589, %v1866
  %2690 = vst.msk [vmem:[#allocation2 + $0x320] sm:$0xff] %vm2589, %v1871
  %2691 = vst.msk [vmem:[#allocation2 + $0x328] sm:$0xff] %vm2589, %v1874
  %2692 = vst.msk [vmem:[#allocation2 + $0x330] sm:$0xff] %vm2589, %v1879
  %2693 = vst.msk [vmem:[#allocation2 + $0x338] sm:$0xff] %vm2589, %v1882
  %2694 = vst.msk [vmem:[#allocation2 + $0x340] sm:$0xff] %vm2589, %v1887
  %2695 = vst.msk [vmem:[#allocation2 + $0x348] sm:$0xff] %vm2589, %v1890
  %2696 = vst.msk [vmem:[#allocation2 + $0x350] sm:$0xff] %vm2589, %v1895
  %2697 = vst.msk [vmem:[#allocation2 + $0x358] sm:$0xff] %vm2589, %v1898
  %2698 = vst.msk [vmem:[#allocation2 + $0x360] sm:$0xff] %vm2589, %v1903
  %2699 = vst.msk [vmem:[#allocation2 + $0x368] sm:$0xff] %vm2589, %v1906
  %2700 = vst.msk [vmem:[#allocation2 + $0x370] sm:$0xff] %vm2589, %v1911
  %2701 = vst.msk [vmem:[#allocation2 + $0x378] sm:$0xff] %vm2589, %v1914
  %2702 = vst.msk [vmem:[#allocation2 + $0x380] sm:$0xff] %vm2589, %v1919
  %2703 = vst.msk [vmem:[#allocation2 + $0x388] sm:$0xff] %vm2589, %v1922
  %2704 = vst.msk [vmem:[#allocation2 + $0x390] sm:$0xff] %vm2589, %v1927
  %2705 = vst.msk [vmem:[#allocation2 + $0x398] sm:$0xff] %vm2589, %v1930
  %2706 = vst.msk [vmem:[#allocation2 + $0x3a0] sm:$0xff] %vm2589, %v1935
  %2707 = vst.msk [vmem:[#allocation2 + $0x3a8] sm:$0xff] %vm2589, %v1938
  %2708 = vst.msk [vmem:[#allocation2 + $0x3b0] sm:$0xff] %vm2589, %v1943
  %2709 = vst.msk [vmem:[#allocation2 + $0x3b8] sm:$0xff] %vm2589, %v1946
  %2710 = vst.msk [vmem:[#allocation2 + $0x3c0] sm:$0xff] %vm2589, %v1951
  %2711 = vst.msk [vmem:[#allocation2 + $0x3c8] sm:$0xff] %vm2589, %v1954
  %2712 = vst.msk [vmem:[#allocation2 + $0x3d0] sm:$0xff] %vm2589, %v1959
  %2713 = vst.msk [vmem:[#allocation2 + $0x3d8] sm:$0xff] %vm2589, %v1962
  %2714 = vst.msk [vmem:[#allocation2 + $0x3e0] sm:$0xff] %vm2589, %v1967
  %2715 = vst.msk [vmem:[#allocation2 + $0x3e8] sm:$0xff] %vm2589, %v1970
  %2716 = vst.msk [vmem:[#allocation2 + $0x3f0] sm:$0xff] %vm2589, %v1975
  %2717 = vst.msk [vmem:[#allocation2 + $0x3f8] sm:$0xff] %vm2589, %v1978
  %2718 = vst.msk [vmem:[#allocation2 + $0x400] sm:$0xff] %vm2589, %v1983
  %2719 = vst.msk [vmem:[#allocation2 + $0x408] sm:$0xff] %vm2589, %v1986
  %2720 = vst.msk [vmem:[#allocation2 + $0x410] sm:$0xff] %vm2589, %v1991
  %2721 = vst.msk [vmem:[#allocation2 + $0x418] sm:$0xff] %vm2589, %v1994
  %2722 = vst.msk [vmem:[#allocation2 + $0x420] sm:$0xff] %vm2589, %v1999
  %2723 = vst.msk [vmem:[#allocation2 + $0x428] sm:$0xff] %vm2589, %v2002
  %2724 = vst.msk [vmem:[#allocation2 + $0x430] sm:$0xff] %vm2589, %v2007
  %2725 = vst.msk [vmem:[#allocation2 + $0x438] sm:$0xff] %vm2589, %v2010
  %2726 = vst.msk [vmem:[#allocation2 + $0x440] sm:$0xff] %vm2589, %v2015
  %2727 = vst.msk [vmem:[#allocation2 + $0x448] sm:$0xff] %vm2589, %v2018
  %2728 = vst.msk [vmem:[#allocation2 + $0x450] sm:$0xff] %vm2589, %v2023
  %2729 = vst.msk [vmem:[#allocation2 + $0x458] sm:$0xff] %vm2589, %v2026
  %2730 = vst.msk [vmem:[#allocation2 + $0x460] sm:$0xff] %vm2589, %v2031
  %2731 = vst.msk [vmem:[#allocation2 + $0x468] sm:$0xff] %vm2589, %v2034
  %2732 = vst.msk [vmem:[#allocation2 + $0x470] sm:$0xff] %vm2589, %v2039
  %2733 = vst.msk [vmem:[#allocation2 + $0x478] sm:$0xff] %vm2589, %v2042
  %2734 = vst.msk [vmem:[#allocation2 + $0x480] sm:$0xff] %vm2589, %v2047
  %2735 = vst.msk [vmem:[#allocation2 + $0x488] sm:$0xff] %vm2589, %v2050
  %2736 = vst.msk [vmem:[#allocation2 + $0x490] sm:$0xff] %vm2589, %v2055
  %2737 = vst.msk [vmem:[#allocation2 + $0x498] sm:$0xff] %vm2589, %v2058
  %2738 = vst.msk [vmem:[#allocation2 + $0x4a0] sm:$0xff] %vm2589, %v2063
  %2739 = vst.msk [vmem:[#allocation2 + $0x4a8] sm:$0xff] %vm2589, %v2066
  %2740 = vst.msk [vmem:[#allocation2 + $0x4b0] sm:$0xff] %vm2589, %v2071
  %2741 = vst.msk [vmem:[#allocation2 + $0x4b8] sm:$0xff] %vm2589, %v2074
  %2742 = vst.msk [vmem:[#allocation2 + $0x4c0] sm:$0xff] %vm2589, %v2079
  %2743 = vst.msk [vmem:[#allocation2 + $0x4c8] sm:$0xff] %vm2589, %v2082
  %2744 = vst.msk [vmem:[#allocation2 + $0x4d0] sm:$0xff] %vm2589, %v2087
  %2745 = vst.msk [vmem:[#allocation2 + $0x4d8] sm:$0xff] %vm2589, %v2090
  %2746 = vst.msk [vmem:[#allocation2 + $0x4e0] sm:$0xff] %vm2589, %v2095
  %2747 = vst.msk [vmem:[#allocation2 + $0x4e8] sm:$0xff] %vm2589, %v2098
  %2748 = vst.msk [vmem:[#allocation2 + $0x4f0] sm:$0xff] %vm2589, %v2103
  %2749 = vst.msk [vmem:[#allocation2 + $0x4f8] sm:$0xff] %vm2589, %v2106
  %2750 = vst.msk [vmem:[#allocation2 + $0x500] sm:$0xff] %vm2589, %v2111
  %2751 = vst.msk [vmem:[#allocation2 + $0x508] sm:$0xff] %vm2589, %v2114
  %2752 = vst.msk [vmem:[#allocation2 + $0x510] sm:$0xff] %vm2589, %v2119
  %2753 = vst.msk [vmem:[#allocation2 + $0x518] sm:$0xff] %vm2589, %v2122
  %2754 = vst.msk [vmem:[#allocation2 + $0x520] sm:$0xff] %vm2589, %v2127
  %2755 = vst.msk [vmem:[#allocation2 + $0x528] sm:$0xff] %vm2589, %v2130
  %2756 = vst.msk [vmem:[#allocation2 + $0x530] sm:$0xff] %vm2589, %v2135
  %2757 = vst.msk [vmem:[#allocation2 + $0x538] sm:$0xff] %vm2589, %v2138
  %2758 = vst.msk [vmem:[#allocation2 + $0x540] sm:$0xff] %vm2589, %v2143
  %2759 = vst.msk [vmem:[#allocation2 + $0x548] sm:$0xff] %vm2589, %v2146
  %2760 = vst.msk [vmem:[#allocation2 + $0x550] sm:$0xff] %vm2589, %v2151
  %2761 = vst.msk [vmem:[#allocation2 + $0x558] sm:$0xff] %vm2589, %v2154
  %2762 = vst.msk [vmem:[#allocation2 + $0x560] sm:$0xff] %vm2589, %v2159
  %2763 = vst.msk [vmem:[#allocation2 + $0x568] sm:$0xff] %vm2589, %v2162
  %2764 = vst.msk [vmem:[#allocation2 + $0x570] sm:$0xff] %vm2589, %v2167
  %2765 = vst.msk [vmem:[#allocation2 + $0x578] sm:$0xff] %vm2589, %v2170
  %2766 = vst.msk [vmem:[#allocation2 + $0x580] sm:$0xff] %vm2589, %v2175
  %2767 = vst.msk [vmem:[#allocation2 + $0x588] sm:$0xff] %vm2589, %v2178
  %2768 = vst.msk [vmem:[#allocation2 + $0x590] sm:$0xff] %vm2589, %v2183
  %2769 = vst.msk [vmem:[#allocation2 + $0x598] sm:$0xff] %vm2589, %v2186
  %2770 = vst.msk [vmem:[#allocation2 + $0x5a0] sm:$0xff] %vm2589, %v2191
  %2771 = vst.msk [vmem:[#allocation2 + $0x5a8] sm:$0xff] %vm2589, %v2194
  %2772 = vst.msk [vmem:[#allocation2 + $0x5b0] sm:$0xff] %vm2589, %v2199
  %2773 = vst.msk [vmem:[#allocation2 + $0x5b8] sm:$0xff] %vm2589, %v2202
  %2774 = vst.msk [vmem:[#allocation2 + $0x5c0] sm:$0xff] %vm2589, %v2207
  %2775 = vst.msk [vmem:[#allocation2 + $0x5c8] sm:$0xff] %vm2589, %v2210
  %2776 = vst.msk [vmem:[#allocation2 + $0x5d0] sm:$0xff] %vm2589, %v2215
  %2777 = vst.msk [vmem:[#allocation2 + $0x5d8] sm:$0xff] %vm2589, %v2218
  %2778 = vst.msk [vmem:[#allocation2 + $0x5e0] sm:$0xff] %vm2589, %v2223
  %2779 = vst.msk [vmem:[#allocation2 + $0x5e8] sm:$0xff] %vm2589, %v2226
  %2780 = vst.msk [vmem:[#allocation2 + $0x5f0] sm:$0xff] %vm2589, %v2231
  %2781 = vst.msk [vmem:[#allocation2 + $0x5f8] sm:$0xff] %vm2589, %v2234
  %2782 = vst.msk [vmem:[#allocation2 + $0x600] sm:$0xff] %vm2589, %v2239
  %2783 = vst.msk [vmem:[#allocation2 + $0x608] sm:$0xff] %vm2589, %v2242
  %2784 = vst.msk [vmem:[#allocation2 + $0x610] sm:$0xff] %vm2589, %v2247
  %2785 = vst.msk [vmem:[#allocation2 + $0x618] sm:$0xff] %vm2589, %v2250
  %2786 = vst.msk [vmem:[#allocation2 + $0x620] sm:$0xff] %vm2589, %v2255
  %2787 = vst.msk [vmem:[#allocation2 + $0x628] sm:$0xff] %vm2589, %v2258
  %2788 = vst.msk [vmem:[#allocation2 + $0x630] sm:$0xff] %vm2589, %v2263
  %2789 = vst.msk [vmem:[#allocation2 + $0x638] sm:$0xff] %vm2589, %v2266
  %2790 = vst.msk [vmem:[#allocation2 + $0x640] sm:$0xff] %vm2589, %v2271
  %2791 = vst.msk [vmem:[#allocation2 + $0x648] sm:$0xff] %vm2589, %v2274
  %2792 = vst.msk [vmem:[#allocation2 + $0x650] sm:$0xff] %vm2589, %v2279
  %2793 = vst.msk [vmem:[#allocation2 + $0x658] sm:$0xff] %vm2589, %v2282
  %2794 = vst.msk [vmem:[#allocation2 + $0x660] sm:$0xff] %vm2589, %v2287
  %2795 = vst.msk [vmem:[#allocation2 + $0x668] sm:$0xff] %vm2589, %v2290
  %2796 = vst.msk [vmem:[#allocation2 + $0x670] sm:$0xff] %vm2589, %v2295
  %2797 = vst.msk [vmem:[#allocation2 + $0x678] sm:$0xff] %vm2589, %v2298
  %2798 = vst.msk [vmem:[#allocation2 + $0x680] sm:$0xff] %vm2589, %v2303
  %2799 = vst.msk [vmem:[#allocation2 + $0x688] sm:$0xff] %vm2589, %v2306
  %2800 = vst.msk [vmem:[#allocation2 + $0x690] sm:$0xff] %vm2589, %v2311
  %2801 = vst.msk [vmem:[#allocation2 + $0x698] sm:$0xff] %vm2589, %v2314
  %2802 = vst.msk [vmem:[#allocation2 + $0x6a0] sm:$0xff] %vm2589, %v2319
  %2803 = vst.msk [vmem:[#allocation2 + $0x6a8] sm:$0xff] %vm2589, %v2322
  %2804 = vst.msk [vmem:[#allocation2 + $0x6b0] sm:$0xff] %vm2589, %v2327
  %2805 = vst.msk [vmem:[#allocation2 + $0x6b8] sm:$0xff] %vm2589, %v2330
  %2806 = vst.msk [vmem:[#allocation2 + $0x6c0] sm:$0xff] %vm2589, %v2335
  %2807 = vst.msk [vmem:[#allocation2 + $0x6c8] sm:$0xff] %vm2589, %v2338
  %2808 = vst.msk [vmem:[#allocation2 + $0x6d0] sm:$0xff] %vm2589, %v2343
  %2809 = vst.msk [vmem:[#allocation2 + $0x6d8] sm:$0xff] %vm2589, %v2346
  %2810 = vst.msk [vmem:[#allocation2 + $0x6e0] sm:$0xff] %vm2589, %v2351
  %2811 = vst.msk [vmem:[#allocation2 + $0x6e8] sm:$0xff] %vm2589, %v2354
  %2812 = vst.msk [vmem:[#allocation2 + $0x6f0] sm:$0xff] %vm2589, %v2359
  %2813 = vst.msk [vmem:[#allocation2 + $0x6f8] sm:$0xff] %vm2589, %v2362
  %2814 = vst.msk [vmem:[#allocation2 + $0x700] sm:$0xff] %vm2589, %v2367
  %2815 = vst.msk [vmem:[#allocation2 + $0x708] sm:$0xff] %vm2589, %v2370
  %2816 = vst.msk [vmem:[#allocation2 + $0x710] sm:$0xff] %vm2589, %v2375
  %2817 = vst.msk [vmem:[#allocation2 + $0x718] sm:$0xff] %vm2589, %v2378
  %2818 = vst.msk [vmem:[#allocation2 + $0x720] sm:$0xff] %vm2589, %v2383
  %2819 = vst.msk [vmem:[#allocation2 + $0x728] sm:$0xff] %vm2589, %v2386
  %2820 = vst.msk [vmem:[#allocation2 + $0x730] sm:$0xff] %vm2589, %v2391
  %2821 = vst.msk [vmem:[#allocation2 + $0x738] sm:$0xff] %vm2589, %v2394
  %2822 = vst.msk [vmem:[#allocation2 + $0x740] sm:$0xff] %vm2589, %v2399
  %2823 = vst.msk [vmem:[#allocation2 + $0x748] sm:$0xff] %vm2589, %v2402
  %2824 = vst.msk [vmem:[#allocation2 + $0x750] sm:$0xff] %vm2589, %v2407
  %2825 = vst.msk [vmem:[#allocation2 + $0x758] sm:$0xff] %vm2589, %v2410
  %2826 = vst.msk [vmem:[#allocation2 + $0x760] sm:$0xff] %vm2589, %v2415
  %2827 = vst.msk [vmem:[#allocation2 + $0x768] sm:$0xff] %vm2589, %v2418
  %2828 = vst.msk [vmem:[#allocation2 + $0x770] sm:$0xff] %vm2589, %v2423
  %2829 = vst.msk [vmem:[#allocation2 + $0x778] sm:$0xff] %vm2589, %v2426
  %2830 = vst.msk [vmem:[#allocation2 + $0x780] sm:$0xff] %vm2589, %v2431
  %2831 = vst.msk [vmem:[#allocation2 + $0x788] sm:$0xff] %vm2589, %v2434
  %2832 = vst.msk [vmem:[#allocation2 + $0x790] sm:$0xff] %vm2589, %v2439
  %2833 = vst.msk [vmem:[#allocation2 + $0x798] sm:$0xff] %vm2589, %v2442
  %2834 = vst.msk [vmem:[#allocation2 + $0x7a0] sm:$0xff] %vm2589, %v2447
  %2835 = vst.msk [vmem:[#allocation2 + $0x7a8] sm:$0xff] %vm2589, %v2450
  %2836 = vst.msk [vmem:[#allocation2 + $0x7b0] sm:$0xff] %vm2589, %v2455
  %2837 = vst.msk [vmem:[#allocation2 + $0x7b8] sm:$0xff] %vm2589, %v2458
  %2838 = vst.msk [vmem:[#allocation2 + $0x7c0] sm:$0xff] %vm2589, %v2463
  %2839 = vst.msk [vmem:[#allocation2 + $0x7c8] sm:$0xff] %vm2589, %v2466
  %2840 = vst.msk [vmem:[#allocation2 + $0x7d0] sm:$0xff] %vm2589, %v2471
  %2841 = vst.msk [vmem:[#allocation2 + $0x7d8] sm:$0xff] %vm2589, %v2474
  %2842 = vst.msk [vmem:[#allocation2 + $0x7e0] sm:$0xff] %vm2589, %v2479
  %2843 = vst.msk [vmem:[#allocation2 + $0x7e8] sm:$0xff] %vm2589, %v2482
  %2844 = vst.msk [vmem:[#allocation2 + $0x7f0] sm:$0xff] %vm2589, %v2487
  %2845 = vst.msk [vmem:[#allocation2 + $0x7f8] sm:$0xff] %vm2589, %v2490
  %2846 = vst.msk [vmem:[#allocation2 + $0x800] sm:$0xff] %vm2589, %v2495
  %2847 = vst.msk [vmem:[#allocation2 + $0x808] sm:$0xff] %vm2589, %v2498
  %2848 = vst.msk [vmem:[#allocation2 + $0x810] sm:$0xff] %vm2589, %v2503
  %2849 = vst.msk [vmem:[#allocation2 + $0x818] sm:$0xff] %vm2589, %v2506
  %2850 = vst.msk [vmem:[#allocation2 + $0x820] sm:$0xff] %vm2589, %v2511
  %2851 = vst.msk [vmem:[#allocation2 + $0x828] sm:$0xff] %vm2589, %v2514
  %2852 = vst.msk [vmem:[#allocation2 + $0x830] sm:$0xff] %vm2589, %v2519
  %2853 = vst.msk [vmem:[#allocation2 + $0x838] sm:$0xff] %vm2589, %v2522
  %2854 = vst.msk [vmem:[#allocation2 + $0x840] sm:$0xff] %vm2589, %v2527
  %2855 = vst.msk [vmem:[#allocation2 + $0x848] sm:$0xff] %vm2589, %v2530
  %2856 = vst.msk [vmem:[#allocation2 + $0x850] sm:$0xff] %vm2589, %v2535
  %2857 = vst.msk [vmem:[#allocation2 + $0x858] sm:$0xff] %vm2589, %v2538
  %2858 = vst.msk [vmem:[#allocation2 + $0x860] sm:$0xff] %vm2589, %v2543
  %2859 = vst.msk [vmem:[#allocation2 + $0x868] sm:$0xff] %vm2589, %v2546
  %2860 = vst.msk [vmem:[#allocation2 + $0x870] sm:$0xff] %vm2589, %v2551
  %2861 = vst.msk [vmem:[#allocation2 + $0x878] sm:$0xff] %vm2589, %v2554
  %2862 = vst.msk [vmem:[#allocation2 + $0x880] sm:$0xff] %vm2589, %v2559
  %2863 = vst.msk [vmem:[#allocation2 + $0x888] sm:$0xff] %vm2589, %v2562
  %2864 = vst.msk [vmem:[#allocation2 + $0x890] sm:$0xff] %vm2589, %v2567
  %2865 = vst.msk [vmem:[#allocation2 + $0x898] sm:$0xff] %vm2589, %v2570
  %2866 = vst.msk [vmem:[#allocation2 + $0x8a0] sm:$0xff] %vm2589, %v2575
  %2867 = vst.msk [vmem:[#allocation2 + $0x8a8] sm:$0xff] %vm2589, %v2578
  %2868 = vst.msk [vmem:[#allocation2 + $0x8b0] sm:$0xff] %vm2589, %v2583
  %2869 = vst.msk [vmem:[#allocation2 + $0x8b8] sm:$0xff] %vm2589, %v2586
  %v2870 = vld [vmem:[#allocation2] ss:$2 sm:$0xff]
  %s2871 = scalar_lea.vmem [#allocation2], 16
  %v2872 = vld [vmem:[%s2871] ss:$2 sm:$0xff]
  %s2873 = scalar_lea.vmem [#allocation2], 32
  %v2874 = vld [vmem:[%s2873] ss:$2 sm:$0x3]
  %s2875 = scalar_lea.vmem [#allocation2], 80
  %v2876 = vld [vmem:[%s2875] ss:$2 sm:$0xff]
  %s2877 = scalar_lea.vmem [#allocation2], 96
  %v2878 = vld [vmem:[%s2877] ss:$2 sm:$0xff]
  %s2879 = scalar_lea.vmem [#allocation2], 112
  %v2880 = vld [vmem:[%s2879] ss:$2 sm:$0x3]
  %s2881 = scalar_lea.vmem [#allocation2], 160
  %v2882 = vld [vmem:[%s2881] ss:$2 sm:$0xff]
  %s2883 = scalar_lea.vmem [#allocation2], 176
  %v2884 = vld [vmem:[%s2883] ss:$2 sm:$0xff]
  %s2885 = scalar_lea.vmem [#allocation2], 192
  %v2886 = vld [vmem:[%s2885] ss:$2 sm:$0x3]
  %s2887 = scalar_lea.vmem [#allocation2], 240
  %v2888 = vld [vmem:[%s2887] ss:$2 sm:$0xff]
  %s2889 = scalar_lea.vmem [#allocation2], 256
  %v2890 = vld [vmem:[%s2889] ss:$2 sm:$0xff]
  %s2891 = scalar_lea.vmem [#allocation2], 272
  %v2892 = vld [vmem:[%s2891] ss:$2 sm:$0x3]
  %s2893 = scalar_lea.vmem [#allocation2], 320
  %v2894 = vld [vmem:[%s2893] ss:$2 sm:$0xff]
  %s2895 = scalar_lea.vmem [#allocation2], 336
  %v2896 = vld [vmem:[%s2895] ss:$2 sm:$0xff]
  %s2897 = scalar_lea.vmem [#allocation2], 352
  %v2898 = vld [vmem:[%s2897] ss:$2 sm:$0x3]
  %s2899 = scalar_lea.vmem [#allocation2], 400
  %v2900 = vld [vmem:[%s2899] ss:$2 sm:$0xff]
  %s2901 = scalar_lea.vmem [#allocation2], 416
  %v2902 = vld [vmem:[%s2901] ss:$2 sm:$0xff]
  %s2903 = scalar_lea.vmem [#allocation2], 432
  %v2904 = vld [vmem:[%s2903] ss:$2 sm:$0x3]
  %s2905 = scalar_lea.vmem [#allocation2], 480
  %v2906 = vld [vmem:[%s2905] ss:$2 sm:$0xff]
  %s2907 = scalar_lea.vmem [#allocation2], 496
  %v2908 = vld [vmem:[%s2907] ss:$2 sm:$0xff]
  %s2909 = scalar_lea.vmem [#allocation2], 512
  %v2910 = vld [vmem:[%s2909] ss:$2 sm:$0x3]
  %s2911 = scalar_lea.vmem [#allocation2], 560
  %v2912 = vld [vmem:[%s2911] ss:$2 sm:$0xff]
  %s2913 = scalar_lea.vmem [#allocation2], 576
  %v2914 = vld [vmem:[%s2913] ss:$2 sm:$0xff]
  %s2915 = scalar_lea.vmem [#allocation2], 592
  %v2916 = vld [vmem:[%s2915] ss:$2 sm:$0x3]
  %s2917 = scalar_lea.vmem [#allocation2], 640
  %v2918 = vld [vmem:[%s2917] ss:$2 sm:$0xff]
  %s2919 = scalar_lea.vmem [#allocation2], 656
  %v2920 = vld [vmem:[%s2919] ss:$2 sm:$0xff]
  %s2921 = scalar_lea.vmem [#allocation2], 672
  %v2922 = vld [vmem:[%s2921] ss:$2 sm:$0x3]
  %s2923 = scalar_lea.vmem [#allocation2], 720
  %v2924 = vld [vmem:[%s2923] ss:$2 sm:$0xff]
  %s2925 = scalar_lea.vmem [#allocation2], 736
  %v2926 = vld [vmem:[%s2925] ss:$2 sm:$0xff]
  %s2927 = scalar_lea.vmem [#allocation2], 752
  %v2928 = vld [vmem:[%s2927] ss:$2 sm:$0x3]
  %s2929 = scalar_lea.vmem [#allocation2], 800
  %v2930 = vld [vmem:[%s2929] ss:$2 sm:$0xff]
  %s2931 = scalar_lea.vmem [#allocation2], 816
  %v2932 = vld [vmem:[%s2931] ss:$2 sm:$0xff]
  %s2933 = scalar_lea.vmem [#allocation2], 832
  %v2934 = vld [vmem:[%s2933] ss:$2 sm:$0x3]
  %s2935 = scalar_lea.vmem [#allocation2], 880
  %v2936 = vld [vmem:[%s2935] ss:$2 sm:$0xff]
  %s2937 = scalar_lea.vmem [#allocation2], 896
  %v2938 = vld [vmem:[%s2937] ss:$2 sm:$0xff]
  %s2939 = scalar_lea.vmem [#allocation2], 912
  %v2940 = vld [vmem:[%s2939] ss:$2 sm:$0x3]
  %s2941 = scalar_lea.vmem [#allocation2], 960
  %v2942 = vld [vmem:[%s2941] ss:$2 sm:$0xff]
  %s2943 = scalar_lea.vmem [#allocation2], 976
  %v2944 = vld [vmem:[%s2943] ss:$2 sm:$0xff]
  %s2945 = scalar_lea.vmem [#allocation2], 992
  %v2946 = vld [vmem:[%s2945] ss:$2 sm:$0x3]
  %s2947 = scalar_lea.vmem [#allocation2], 1040
  %v2948 = vld [vmem:[%s2947] ss:$2 sm:$0xff]
  %s2949 = scalar_lea.vmem [#allocation2], 1056
  %v2950 = vld [vmem:[%s2949] ss:$2 sm:$0xff]
  %s2951 = scalar_lea.vmem [#allocation2], 1072
  %v2952 = vld [vmem:[%s2951] ss:$2 sm:$0x3]
  %s2953 = scalar_lea.vmem [#allocation2], 1120
  %v2954 = vld [vmem:[%s2953] ss:$2 sm:$0xff]
  %s2955 = scalar_lea.vmem [#allocation2], 1136
  %v2956 = vld [vmem:[%s2955] ss:$2 sm:$0xff]
  %s2957 = scalar_lea.vmem [#allocation2], 1152
  %v2958 = vld [vmem:[%s2957] ss:$2 sm:$0x3]
  %s2959 = scalar_lea.vmem [#allocation2], 1200
  %v2960 = vld [vmem:[%s2959] ss:$2 sm:$0xff]
  %s2961 = scalar_lea.vmem [#allocation2], 1216
  %v2962 = vld [vmem:[%s2961] ss:$2 sm:$0xff]
  %s2963 = scalar_lea.vmem [#allocation2], 1232
  %v2964 = vld [vmem:[%s2963] ss:$2 sm:$0x3]
  %s2965 = scalar_lea.vmem [#allocation2], 1280
  %v2966 = vld [vmem:[%s2965] ss:$2 sm:$0xff]
  %s2967 = scalar_lea.vmem [#allocation2], 1296
  %v2968 = vld [vmem:[%s2967] ss:$2 sm:$0xff]
  %s2969 = scalar_lea.vmem [#allocation2], 1312
  %v2970 = vld [vmem:[%s2969] ss:$2 sm:$0x3]
  %s2971 = scalar_lea.vmem [#allocation2], 1360
  %v2972 = vld [vmem:[%s2971] ss:$2 sm:$0xff]
  %s2973 = scalar_lea.vmem [#allocation2], 1376
  %v2974 = vld [vmem:[%s2973] ss:$2 sm:$0xff]
  %s2975 = scalar_lea.vmem [#allocation2], 1392
  %v2976 = vld [vmem:[%s2975] ss:$2 sm:$0x3]
  %s2977 = scalar_lea.vmem [#allocation2], 1440
  %v2978 = vld [vmem:[%s2977] ss:$2 sm:$0xff]
  %s2979 = scalar_lea.vmem [#allocation2], 1456
  %v2980 = vld [vmem:[%s2979] ss:$2 sm:$0xff]
  %s2981 = scalar_lea.vmem [#allocation2], 1472
  %v2982 = vld [vmem:[%s2981] ss:$2 sm:$0x3]
  %s2983 = scalar_lea.vmem [#allocation2], 1520
  %v2984 = vld [vmem:[%s2983] ss:$2 sm:$0xff]
  %s2985 = scalar_lea.vmem [#allocation2], 1536
  %v2986 = vld [vmem:[%s2985] ss:$2 sm:$0xff]
  %s2987 = scalar_lea.vmem [#allocation2], 1552
  %v2988 = vld [vmem:[%s2987] ss:$2 sm:$0x3]
  %s2989 = scalar_lea.vmem [#allocation2], 1600
  %v2990 = vld [vmem:[%s2989] ss:$2 sm:$0xff]
  %s2991 = scalar_lea.vmem [#allocation2], 1616
  %v2992 = vld [vmem:[%s2991] ss:$2 sm:$0xff]
  %s2993 = scalar_lea.vmem [#allocation2], 1632
  %v2994 = vld [vmem:[%s2993] ss:$2 sm:$0x3]
  %s2995 = scalar_lea.vmem [#allocation2], 1680
  %v2996 = vld [vmem:[%s2995] ss:$2 sm:$0xff]
  %s2997 = scalar_lea.vmem [#allocation2], 1696
  %v2998 = vld [vmem:[%s2997] ss:$2 sm:$0xff]
  %s2999 = scalar_lea.vmem [#allocation2], 1712
  %v3000 = vld [vmem:[%s2999] ss:$2 sm:$0x3]
  %s3001 = scalar_lea.vmem [#allocation2], 1760
  %v3002 = vld [vmem:[%s3001] ss:$2 sm:$0xff]
  %s3003 = scalar_lea.vmem [#allocation2], 1776
  %v3004 = vld [vmem:[%s3003] ss:$2 sm:$0xff]
  %s3005 = scalar_lea.vmem [#allocation2], 1792
  %v3006 = vld [vmem:[%s3005] ss:$2 sm:$0x3]
  %s3007 = scalar_lea.vmem [#allocation2], 1840
  %v3008 = vld [vmem:[%s3007] ss:$2 sm:$0xff]
  %s3009 = scalar_lea.vmem [#allocation2], 1856
  %v3010 = vld [vmem:[%s3009] ss:$2 sm:$0xff]
  %s3011 = scalar_lea.vmem [#allocation2], 1872
  %v3012 = vld [vmem:[%s3011] ss:$2 sm:$0x3]
  %s3013 = scalar_lea.vmem [#allocation2], 1920
  %v3014 = vld [vmem:[%s3013] ss:$2 sm:$0xff]
  %s3015 = scalar_lea.vmem [#allocation2], 1936
  %v3016 = vld [vmem:[%s3015] ss:$2 sm:$0xff]
  %s3017 = scalar_lea.vmem [#allocation2], 1952
  %v3018 = vld [vmem:[%s3017] ss:$2 sm:$0x3]
  %s3019 = scalar_lea.vmem [#allocation2], 2000
  %v3020 = vld [vmem:[%s3019] ss:$2 sm:$0xff]
  %s3021 = scalar_lea.vmem [#allocation2], 2016
  %v3022 = vld [vmem:[%s3021] ss:$2 sm:$0xff]
  %s3023 = scalar_lea.vmem [#allocation2], 2032
  %v3024 = vld [vmem:[%s3023] ss:$2 sm:$0x3]
  %s3025 = scalar_lea.vmem [#allocation2], 2080
  %v3026 = vld [vmem:[%s3025] ss:$2 sm:$0xff]
  %s3027 = scalar_lea.vmem [#allocation2], 2096
  %v3028 = vld [vmem:[%s3027] ss:$2 sm:$0xff]
  %s3029 = scalar_lea.vmem [#allocation2], 2112
  %v3030 = vld [vmem:[%s3029] ss:$2 sm:$0x3]
  %s3031 = scalar_lea.vmem [#allocation2], 2160
  %v3032 = vld [vmem:[%s3031] ss:$2 sm:$0xff]
  %s3033 = scalar_lea.vmem [#allocation2], 2176
  %v3034 = vld [vmem:[%s3033] ss:$2 sm:$0xff]
  %s3035 = scalar_lea.vmem [#allocation2], 2192
  %v3036 = vld [vmem:[%s3035] ss:$2 sm:$0x3]
  %s3037 = scalar_lea.vmem [#allocation2], 1
  %v3038 = vld [vmem:[%s3037] ss:$2 sm:$0xff]
  %s3039 = scalar_lea.vmem [#allocation2], 17
  %v3040 = vld [vmem:[%s3039] ss:$2 sm:$0xff]
  %s3041 = scalar_lea.vmem [#allocation2], 33
  %v3042 = vld [vmem:[%s3041] ss:$2 sm:$0x3]
  %s3043 = scalar_lea.vmem [#allocation2], 81
  %v3044 = vld [vmem:[%s3043] ss:$2 sm:$0xff]
  %s3045 = scalar_lea.vmem [#allocation2], 97
  %v3046 = vld [vmem:[%s3045] ss:$2 sm:$0xff]
  %s3047 = scalar_lea.vmem [#allocation2], 113
  %v3048 = vld [vmem:[%s3047] ss:$2 sm:$0x3]
  %s3049 = scalar_lea.vmem [#allocation2], 161
  %v3050 = vld [vmem:[%s3049] ss:$2 sm:$0xff]
  %s3051 = scalar_lea.vmem [#allocation2], 177
  %v3052 = vld [vmem:[%s3051] ss:$2 sm:$0xff]
  %s3053 = scalar_lea.vmem [#allocation2], 193
  %v3054 = vld [vmem:[%s3053] ss:$2 sm:$0x3]
  %s3055 = scalar_lea.vmem [#allocation2], 241
  %v3056 = vld [vmem:[%s3055] ss:$2 sm:$0xff]
  %s3057 = scalar_lea.vmem [#allocation2], 257
  %v3058 = vld [vmem:[%s3057] ss:$2 sm:$0xff]
  %s3059 = scalar_lea.vmem [#allocation2], 273
  %v3060 = vld [vmem:[%s3059] ss:$2 sm:$0x3]
  %s3061 = scalar_lea.vmem [#allocation2], 321
  %v3062 = vld [vmem:[%s3061] ss:$2 sm:$0xff]
  %s3063 = scalar_lea.vmem [#allocation2], 337
  %v3064 = vld [vmem:[%s3063] ss:$2 sm:$0xff]
  %s3065 = scalar_lea.vmem [#allocation2], 353
  %v3066 = vld [vmem:[%s3065] ss:$2 sm:$0x3]
  %s3067 = scalar_lea.vmem [#allocation2], 401
  %v3068 = vld [vmem:[%s3067] ss:$2 sm:$0xff]
  %s3069 = scalar_lea.vmem [#allocation2], 417
  %v3070 = vld [vmem:[%s3069] ss:$2 sm:$0xff]
  %s3071 = scalar_lea.vmem [#allocation2], 433
  %v3072 = vld [vmem:[%s3071] ss:$2 sm:$0x3]
  %s3073 = scalar_lea.vmem [#allocation2], 481
  %v3074 = vld [vmem:[%s3073] ss:$2 sm:$0xff]
  %s3075 = scalar_lea.vmem [#allocation2], 497
  %v3076 = vld [vmem:[%s3075] ss:$2 sm:$0xff]
  %s3077 = scalar_lea.vmem [#allocation2], 513
  %v3078 = vld [vmem:[%s3077] ss:$2 sm:$0x3]
  %s3079 = scalar_lea.vmem [#allocation2], 561
  %v3080 = vld [vmem:[%s3079] ss:$2 sm:$0xff]
  %s3081 = scalar_lea.vmem [#allocation2], 577
  %v3082 = vld [vmem:[%s3081] ss:$2 sm:$0xff]
  %s3083 = scalar_lea.vmem [#allocation2], 593
  %v3084 = vld [vmem:[%s3083] ss:$2 sm:$0x3]
  %s3085 = scalar_lea.vmem [#allocation2], 641
  %v3086 = vld [vmem:[%s3085] ss:$2 sm:$0xff]
  %s3087 = scalar_lea.vmem [#allocation2], 657
  %v3088 = vld [vmem:[%s3087] ss:$2 sm:$0xff]
  %s3089 = scalar_lea.vmem [#allocation2], 673
  %v3090 = vld [vmem:[%s3089] ss:$2 sm:$0x3]
  %s3091 = scalar_lea.vmem [#allocation2], 721
  %v3092 = vld [vmem:[%s3091] ss:$2 sm:$0xff]
  %s3093 = scalar_lea.vmem [#allocation2], 737
  %v3094 = vld [vmem:[%s3093] ss:$2 sm:$0xff]
  %s3095 = scalar_lea.vmem [#allocation2], 753
  %v3096 = vld [vmem:[%s3095] ss:$2 sm:$0x3]
  %s3097 = scalar_lea.vmem [#allocation2], 801
  %v3098 = vld [vmem:[%s3097] ss:$2 sm:$0xff]
  %s3099 = scalar_lea.vmem [#allocation2], 817
  %v3100 = vld [vmem:[%s3099] ss:$2 sm:$0xff]
  %s3101 = scalar_lea.vmem [#allocation2], 833
  %v3102 = vld [vmem:[%s3101] ss:$2 sm:$0x3]
  %s3103 = scalar_lea.vmem [#allocation2], 881
  %v3104 = vld [vmem:[%s3103] ss:$2 sm:$0xff]
  %s3105 = scalar_lea.vmem [#allocation2], 897
  %v3106 = vld [vmem:[%s3105] ss:$2 sm:$0xff]
  %s3107 = scalar_lea.vmem [#allocation2], 913
  %v3108 = vld [vmem:[%s3107] ss:$2 sm:$0x3]
  %s3109 = scalar_lea.vmem [#allocation2], 961
  %v3110 = vld [vmem:[%s3109] ss:$2 sm:$0xff]
  %s3111 = scalar_lea.vmem [#allocation2], 977
  %v3112 = vld [vmem:[%s3111] ss:$2 sm:$0xff]
  %s3113 = scalar_lea.vmem [#allocation2], 993
  %v3114 = vld [vmem:[%s3113] ss:$2 sm:$0x3]
  %s3115 = scalar_lea.vmem [#allocation2], 1041
  %v3116 = vld [vmem:[%s3115] ss:$2 sm:$0xff]
  %s3117 = scalar_lea.vmem [#allocation2], 1057
  %v3118 = vld [vmem:[%s3117] ss:$2 sm:$0xff]
  %s3119 = scalar_lea.vmem [#allocation2], 1073
  %v3120 = vld [vmem:[%s3119] ss:$2 sm:$0x3]
  %s3121 = scalar_lea.vmem [#allocation2], 1121
  %v3122 = vld [vmem:[%s3121] ss:$2 sm:$0xff]
  %s3123 = scalar_lea.vmem [#allocation2], 1137
  %v3124 = vld [vmem:[%s3123] ss:$2 sm:$0xff]
  %s3125 = scalar_lea.vmem [#allocation2], 1153
  %v3126 = vld [vmem:[%s3125] ss:$2 sm:$0x3]
  %s3127 = scalar_lea.vmem [#allocation2], 1201
  %v3128 = vld [vmem:[%s3127] ss:$2 sm:$0xff]
  %s3129 = scalar_lea.vmem [#allocation2], 1217
  %v3130 = vld [vmem:[%s3129] ss:$2 sm:$0xff]
  %s3131 = scalar_lea.vmem [#allocation2], 1233
  %v3132 = vld [vmem:[%s3131] ss:$2 sm:$0x3]
  %s3133 = scalar_lea.vmem [#allocation2], 1281
  %v3134 = vld [vmem:[%s3133] ss:$2 sm:$0xff]
  %s3135 = scalar_lea.vmem [#allocation2], 1297
  %v3136 = vld [vmem:[%s3135] ss:$2 sm:$0xff]
  %s3137 = scalar_lea.vmem [#allocation2], 1313
  %v3138 = vld [vmem:[%s3137] ss:$2 sm:$0x3]
  %s3139 = scalar_lea.vmem [#allocation2], 1361
  %v3140 = vld [vmem:[%s3139] ss:$2 sm:$0xff]
  %s3141 = scalar_lea.vmem [#allocation2], 1377
  %v3142 = vld [vmem:[%s3141] ss:$2 sm:$0xff]
  %s3143 = scalar_lea.vmem [#allocation2], 1393
  %v3144 = vld [vmem:[%s3143] ss:$2 sm:$0x3]
  %s3145 = scalar_lea.vmem [#allocation2], 1441
  %v3146 = vld [vmem:[%s3145] ss:$2 sm:$0xff]
  %s3147 = scalar_lea.vmem [#allocation2], 1457
  %v3148 = vld [vmem:[%s3147] ss:$2 sm:$0xff]
  %s3149 = scalar_lea.vmem [#allocation2], 1473
  %v3150 = vld [vmem:[%s3149] ss:$2 sm:$0x3]
  %s3151 = scalar_lea.vmem [#allocation2], 1521
  %v3152 = vld [vmem:[%s3151] ss:$2 sm:$0xff]
  %s3153 = scalar_lea.vmem [#allocation2], 1537
  %v3154 = vld [vmem:[%s3153] ss:$2 sm:$0xff]
  %s3155 = scalar_lea.vmem [#allocation2], 1553
  %v3156 = vld [vmem:[%s3155] ss:$2 sm:$0x3]
  %s3157 = scalar_lea.vmem [#allocation2], 1601
  %v3158 = vld [vmem:[%s3157] ss:$2 sm:$0xff]
  %s3159 = scalar_lea.vmem [#allocation2], 1617
  %v3160 = vld [vmem:[%s3159] ss:$2 sm:$0xff]
  %s3161 = scalar_lea.vmem [#allocation2], 1633
  %v3162 = vld [vmem:[%s3161] ss:$2 sm:$0x3]
  %s3163 = scalar_lea.vmem [#allocation2], 1681
  %v3164 = vld [vmem:[%s3163] ss:$2 sm:$0xff]
  %s3165 = scalar_lea.vmem [#allocation2], 1697
  %v3166 = vld [vmem:[%s3165] ss:$2 sm:$0xff]
  %s3167 = scalar_lea.vmem [#allocation2], 1713
  %v3168 = vld [vmem:[%s3167] ss:$2 sm:$0x3]
  %s3169 = scalar_lea.vmem [#allocation2], 1761
  %v3170 = vld [vmem:[%s3169] ss:$2 sm:$0xff]
  %s3171 = scalar_lea.vmem [#allocation2], 1777
  %v3172 = vld [vmem:[%s3171] ss:$2 sm:$0xff]
  %s3173 = scalar_lea.vmem [#allocation2], 1793
  %v3174 = vld [vmem:[%s3173] ss:$2 sm:$0x3]
  %s3175 = scalar_lea.vmem [#allocation2], 1841
  %v3176 = vld [vmem:[%s3175] ss:$2 sm:$0xff]
  %s3177 = scalar_lea.vmem [#allocation2], 1857
  %v3178 = vld [vmem:[%s3177] ss:$2 sm:$0xff]
  %s3179 = scalar_lea.vmem [#allocation2], 1873
  %v3180 = vld [vmem:[%s3179] ss:$2 sm:$0x3]
  %s3181 = scalar_lea.vmem [#allocation2], 1921
  %v3182 = vld [vmem:[%s3181] ss:$2 sm:$0xff]
  %s3183 = scalar_lea.vmem [#allocation2], 1937
  %v3184 = vld [vmem:[%s3183] ss:$2 sm:$0xff]
  %s3185 = scalar_lea.vmem [#allocation2], 1953
  %v3186 = vld [vmem:[%s3185] ss:$2 sm:$0x3]
  %s3187 = scalar_lea.vmem [#allocation2], 2001
  %v3188 = vld [vmem:[%s3187] ss:$2 sm:$0xff]
  %s3189 = scalar_lea.vmem [#allocation2], 2017
  %v3190 = vld [vmem:[%s3189] ss:$2 sm:$0xff]
  %s3191 = scalar_lea.vmem [#allocation2], 2033
  %v3192 = vld [vmem:[%s3191] ss:$2 sm:$0x3]
  %s3193 = scalar_lea.vmem [#allocation2], 2081
  %v3194 = vld [vmem:[%s3193] ss:$2 sm:$0xff]
  %s3195 = scalar_lea.vmem [#allocation2], 2097
  %v3196 = vld [vmem:[%s3195] ss:$2 sm:$0xff]
  %s3197 = scalar_lea.vmem [#allocation2], 2113
  %v3198 = vld [vmem:[%s3197] ss:$2 sm:$0x3]
  %s3199 = scalar_lea.vmem [#allocation2], 2161
  %v3200 = vld [vmem:[%s3199] ss:$2 sm:$0xff]
  %s3201 = scalar_lea.vmem [#allocation2], 2177
  %v3202 = vld [vmem:[%s3201] ss:$2 sm:$0xff]
  %s3203 = scalar_lea.vmem [#allocation2], 2193
  %v3204 = vld [vmem:[%s3203] ss:$2 sm:$0x3]
  %v3205 = vmax.f32 %v2870, %v3038
  %v3206 = vmax.f32 %v2872, %v3040
  %v3207 = vmax.f32 %v2874, %v3042
  %v3208 = vmax.f32 %v2876, %v3044
  %v3209 = vmax.f32 %v2878, %v3046
  %v3210 = vmax.f32 %v2880, %v3048
  %v3211 = vmax.f32 %v2882, %v3050
  %v3212 = vmax.f32 %v2884, %v3052
  %v3213 = vmax.f32 %v2886, %v3054
  %v3214 = vmax.f32 %v2888, %v3056
  %v3215 = vmax.f32 %v2890, %v3058
  %v3216 = vmax.f32 %v2892, %v3060
  %v3217 = vmax.f32 %v2894, %v3062
  %v3218 = vmax.f32 %v2896, %v3064
  %v3219 = vmax.f32 %v2898, %v3066
  %v3220 = vmax.f32 %v2900, %v3068
  %v3221 = vmax.f32 %v2902, %v3070
  %v3222 = vmax.f32 %v2904, %v3072
  %v3223 = vmax.f32 %v2906, %v3074
  %v3224 = vmax.f32 %v2908, %v3076
  %v3225 = vmax.f32 %v2910, %v3078
  %v3226 = vmax.f32 %v2912, %v3080
  %v3227 = vmax.f32 %v2914, %v3082
  %v3228 = vmax.f32 %v2916, %v3084
  %v3229 = vmax.f32 %v2918, %v3086
  %v3230 = vmax.f32 %v2920, %v3088
  %v3231 = vmax.f32 %v2922, %v3090
  %v3232 = vmax.f32 %v2924, %v3092
  %v3233 = vmax.f32 %v2926, %v3094
  %v3234 = vmax.f32 %v2928, %v3096
  %v3235 = vmax.f32 %v2930, %v3098
  %v3236 = vmax.f32 %v2932, %v3100
  %v3237 = vmax.f32 %v2934, %v3102
  %v3238 = vmax.f32 %v2936, %v3104
  %v3239 = vmax.f32 %v2938, %v3106
  %v3240 = vmax.f32 %v2940, %v3108
  %v3241 = vmax.f32 %v2942, %v3110
  %v3242 = vmax.f32 %v2944, %v3112
  %v3243 = vmax.f32 %v2946, %v3114
  %v3244 = vmax.f32 %v2948, %v3116
  %v3245 = vmax.f32 %v2950, %v3118
  %v3246 = vmax.f32 %v2952, %v3120
  %v3247 = vmax.f32 %v2954, %v3122
  %v3248 = vmax.f32 %v2956, %v3124
  %v3249 = vmax.f32 %v2958, %v3126
  %v3250 = vmax.f32 %v2960, %v3128
  %v3251 = vmax.f32 %v2962, %v3130
  %v3252 = vmax.f32 %v2964, %v3132
  %v3253 = vmax.f32 %v2966, %v3134
  %v3254 = vmax.f32 %v2968, %v3136
  %v3255 = vmax.f32 %v2970, %v3138
  %v3256 = vmax.f32 %v2972, %v3140
  %v3257 = vmax.f32 %v2974, %v3142
  %v3258 = vmax.f32 %v2976, %v3144
  %v3259 = vmax.f32 %v2978, %v3146
  %v3260 = vmax.f32 %v2980, %v3148
  %v3261 = vmax.f32 %v2982, %v3150
  %v3262 = vmax.f32 %v2984, %v3152
  %v3263 = vmax.f32 %v2986, %v3154
  %v3264 = vmax.f32 %v2988, %v3156
  %v3265 = vmax.f32 %v2990, %v3158
  %v3266 = vmax.f32 %v2992, %v3160
  %v3267 = vmax.f32 %v2994, %v3162
  %v3268 = vmax.f32 %v2996, %v3164
  %v3269 = vmax.f32 %v2998, %v3166
  %v3270 = vmax.f32 %v3000, %v3168
  %v3271 = vmax.f32 %v3002, %v3170
  %v3272 = vmax.f32 %v3004, %v3172
  %v3273 = vmax.f32 %v3006, %v3174
  %v3274 = vmax.f32 %v3008, %v3176
  %v3275 = vmax.f32 %v3010, %v3178
  %v3276 = vmax.f32 %v3012, %v3180
  %v3277 = vmax.f32 %v3014, %v3182
  %v3278 = vmax.f32 %v3016, %v3184
  %v3279 = vmax.f32 %v3018, %v3186
  %v3280 = vmax.f32 %v3020, %v3188
  %v3281 = vmax.f32 %v3022, %v3190
  %v3282 = vmax.f32 %v3024, %v3192
  %v3283 = vmax.f32 %v3026, %v3194
  %v3284 = vmax.f32 %v3028, %v3196
  %v3285 = vmax.f32 %v3030, %v3198
  %v3286 = vmax.f32 %v3032, %v3200
  %v3287 = vmax.f32 %v3034, %v3202
  %v3288 = vmax.f32 %v3036, %v3204
  %s3289 = scalar_lea.vmem [#allocation2], 40
  %v3290 = vld [vmem:[%s3289] ss:$2 sm:$0xff]
  %s3291 = scalar_lea.vmem %s3289, 16 [#allocation2]
  %v3292 = vld [vmem:[%s3291] ss:$2 sm:$0xff]
  %s3293 = scalar_lea.vmem %s3289, 32 [#allocation2]
  %v3294 = vld [vmem:[%s3293] ss:$2 sm:$0x3]
  %s3295 = scalar_lea.vmem %s3289, 80 [#allocation2]
  %v3296 = vld [vmem:[%s3295] ss:$2 sm:$0xff]
  %s3297 = scalar_lea.vmem %s3289, 96 [#allocation2]
  %v3298 = vld [vmem:[%s3297] ss:$2 sm:$0xff]
  %s3299 = scalar_lea.vmem %s3289, 112 [#allocation2]
  %v3300 = vld [vmem:[%s3299] ss:$2 sm:$0x3]
  %s3301 = scalar_lea.vmem %s3289, 160 [#allocation2]
  %v3302 = vld [vmem:[%s3301] ss:$2 sm:$0xff]
  %s3303 = scalar_lea.vmem %s3289, 176 [#allocation2]
  %v3304 = vld [vmem:[%s3303] ss:$2 sm:$0xff]
  %s3305 = scalar_lea.vmem %s3289, 192 [#allocation2]
  %v3306 = vld [vmem:[%s3305] ss:$2 sm:$0x3]
  %s3307 = scalar_lea.vmem %s3289, 240 [#allocation2]
  %v3308 = vld [vmem:[%s3307] ss:$2 sm:$0xff]
  %s3309 = scalar_lea.vmem %s3289, 256 [#allocation2]
  %v3310 = vld [vmem:[%s3309] ss:$2 sm:$0xff]
  %s3311 = scalar_lea.vmem %s3289, 272 [#allocation2]
  %v3312 = vld [vmem:[%s3311] ss:$2 sm:$0x3]
  %s3313 = scalar_lea.vmem %s3289, 320 [#allocation2]
  %v3314 = vld [vmem:[%s3313] ss:$2 sm:$0xff]
  %s3315 = scalar_lea.vmem %s3289, 336 [#allocation2]
  %v3316 = vld [vmem:[%s3315] ss:$2 sm:$0xff]
  %s3317 = scalar_lea.vmem %s3289, 352 [#allocation2]
  %v3318 = vld [vmem:[%s3317] ss:$2 sm:$0x3]
  %s3319 = scalar_lea.vmem %s3289, 400 [#allocation2]
  %v3320 = vld [vmem:[%s3319] ss:$2 sm:$0xff]
  %s3321 = scalar_lea.vmem %s3289, 416 [#allocation2]
  %v3322 = vld [vmem:[%s3321] ss:$2 sm:$0xff]
  %s3323 = scalar_lea.vmem %s3289, 432 [#allocation2]
  %v3324 = vld [vmem:[%s3323] ss:$2 sm:$0x3]
  %s3325 = scalar_lea.vmem %s3289, 480 [#allocation2]
  %v3326 = vld [vmem:[%s3325] ss:$2 sm:$0xff]
  %s3327 = scalar_lea.vmem %s3289, 496 [#allocation2]
  %v3328 = vld [vmem:[%s3327] ss:$2 sm:$0xff]
  %s3329 = scalar_lea.vmem %s3289, 512 [#allocation2]
  %v3330 = vld [vmem:[%s3329] ss:$2 sm:$0x3]
  %s3331 = scalar_lea.vmem %s3289, 560 [#allocation2]
  %v3332 = vld [vmem:[%s3331] ss:$2 sm:$0xff]
  %s3333 = scalar_lea.vmem %s3289, 576 [#allocation2]
  %v3334 = vld [vmem:[%s3333] ss:$2 sm:$0xff]
  %s3335 = scalar_lea.vmem %s3289, 592 [#allocation2]
  %v3336 = vld [vmem:[%s3335] ss:$2 sm:$0x3]
  %s3337 = scalar_lea.vmem %s3289, 640 [#allocation2]
  %v3338 = vld [vmem:[%s3337] ss:$2 sm:$0xff]
  %s3339 = scalar_lea.vmem %s3289, 656 [#allocation2]
  %v3340 = vld [vmem:[%s3339] ss:$2 sm:$0xff]
  %s3341 = scalar_lea.vmem %s3289, 672 [#allocation2]
  %v3342 = vld [vmem:[%s3341] ss:$2 sm:$0x3]
  %s3343 = scalar_lea.vmem %s3289, 720 [#allocation2]
  %v3344 = vld [vmem:[%s3343] ss:$2 sm:$0xff]
  %s3345 = scalar_lea.vmem %s3289, 736 [#allocation2]
  %v3346 = vld [vmem:[%s3345] ss:$2 sm:$0xff]
  %s3347 = scalar_lea.vmem %s3289, 752 [#allocation2]
  %v3348 = vld [vmem:[%s3347] ss:$2 sm:$0x3]
  %s3349 = scalar_lea.vmem %s3289, 800 [#allocation2]
  %v3350 = vld [vmem:[%s3349] ss:$2 sm:$0xff]
  %s3351 = scalar_lea.vmem %s3289, 816 [#allocation2]
  %v3352 = vld [vmem:[%s3351] ss:$2 sm:$0xff]
  %s3353 = scalar_lea.vmem %s3289, 832 [#allocation2]
  %v3354 = vld [vmem:[%s3353] ss:$2 sm:$0x3]
  %s3355 = scalar_lea.vmem %s3289, 880 [#allocation2]
  %v3356 = vld [vmem:[%s3355] ss:$2 sm:$0xff]
  %s3357 = scalar_lea.vmem %s3289, 896 [#allocation2]
  %v3358 = vld [vmem:[%s3357] ss:$2 sm:$0xff]
  %s3359 = scalar_lea.vmem %s3289, 912 [#allocation2]
  %v3360 = vld [vmem:[%s3359] ss:$2 sm:$0x3]
  %s3361 = scalar_lea.vmem %s3289, 960 [#allocation2]
  %v3362 = vld [vmem:[%s3361] ss:$2 sm:$0xff]
  %s3363 = scalar_lea.vmem %s3289, 976 [#allocation2]
  %v3364 = vld [vmem:[%s3363] ss:$2 sm:$0xff]
  %s3365 = scalar_lea.vmem %s3289, 992 [#allocation2]
  %v3366 = vld [vmem:[%s3365] ss:$2 sm:$0x3]
  %s3367 = scalar_lea.vmem %s3289, 1040 [#allocation2]
  %v3368 = vld [vmem:[%s3367] ss:$2 sm:$0xff]
  %s3369 = scalar_lea.vmem %s3289, 1056 [#allocation2]
  %v3370 = vld [vmem:[%s3369] ss:$2 sm:$0xff]
  %s3371 = scalar_lea.vmem %s3289, 1072 [#allocation2]
  %v3372 = vld [vmem:[%s3371] ss:$2 sm:$0x3]
  %s3373 = scalar_lea.vmem %s3289, 1120 [#allocation2]
  %v3374 = vld [vmem:[%s3373] ss:$2 sm:$0xff]
  %s3375 = scalar_lea.vmem %s3289, 1136 [#allocation2]
  %v3376 = vld [vmem:[%s3375] ss:$2 sm:$0xff]
  %s3377 = scalar_lea.vmem %s3289, 1152 [#allocation2]
  %v3378 = vld [vmem:[%s3377] ss:$2 sm:$0x3]
  %s3379 = scalar_lea.vmem %s3289, 1200 [#allocation2]
  %v3380 = vld [vmem:[%s3379] ss:$2 sm:$0xff]
  %s3381 = scalar_lea.vmem %s3289, 1216 [#allocation2]
  %v3382 = vld [vmem:[%s3381] ss:$2 sm:$0xff]
  %s3383 = scalar_lea.vmem %s3289, 1232 [#allocation2]
  %v3384 = vld [vmem:[%s3383] ss:$2 sm:$0x3]
  %s3385 = scalar_lea.vmem %s3289, 1280 [#allocation2]
  %v3386 = vld [vmem:[%s3385] ss:$2 sm:$0xff]
  %s3387 = scalar_lea.vmem %s3289, 1296 [#allocation2]
  %v3388 = vld [vmem:[%s3387] ss:$2 sm:$0xff]
  %s3389 = scalar_lea.vmem %s3289, 1312 [#allocation2]
  %v3390 = vld [vmem:[%s3389] ss:$2 sm:$0x3]
  %s3391 = scalar_lea.vmem %s3289, 1360 [#allocation2]
  %v3392 = vld [vmem:[%s3391] ss:$2 sm:$0xff]
  %s3393 = scalar_lea.vmem %s3289, 1376 [#allocation2]
  %v3394 = vld [vmem:[%s3393] ss:$2 sm:$0xff]
  %s3395 = scalar_lea.vmem %s3289, 1392 [#allocation2]
  %v3396 = vld [vmem:[%s3395] ss:$2 sm:$0x3]
  %s3397 = scalar_lea.vmem %s3289, 1440 [#allocation2]
  %v3398 = vld [vmem:[%s3397] ss:$2 sm:$0xff]
  %s3399 = scalar_lea.vmem %s3289, 1456 [#allocation2]
  %v3400 = vld [vmem:[%s3399] ss:$2 sm:$0xff]
  %s3401 = scalar_lea.vmem %s3289, 1472 [#allocation2]
  %v3402 = vld [vmem:[%s3401] ss:$2 sm:$0x3]
  %s3403 = scalar_lea.vmem %s3289, 1520 [#allocation2]
  %v3404 = vld [vmem:[%s3403] ss:$2 sm:$0xff]
  %s3405 = scalar_lea.vmem %s3289, 1536 [#allocation2]
  %v3406 = vld [vmem:[%s3405] ss:$2 sm:$0xff]
  %s3407 = scalar_lea.vmem %s3289, 1552 [#allocation2]
  %v3408 = vld [vmem:[%s3407] ss:$2 sm:$0x3]
  %s3409 = scalar_lea.vmem %s3289, 1600 [#allocation2]
  %v3410 = vld [vmem:[%s3409] ss:$2 sm:$0xff]
  %s3411 = scalar_lea.vmem %s3289, 1616 [#allocation2]
  %v3412 = vld [vmem:[%s3411] ss:$2 sm:$0xff]
  %s3413 = scalar_lea.vmem %s3289, 1632 [#allocation2]
  %v3414 = vld [vmem:[%s3413] ss:$2 sm:$0x3]
  %s3415 = scalar_lea.vmem %s3289, 1680 [#allocation2]
  %v3416 = vld [vmem:[%s3415] ss:$2 sm:$0xff]
  %s3417 = scalar_lea.vmem %s3289, 1696 [#allocation2]
  %v3418 = vld [vmem:[%s3417] ss:$2 sm:$0xff]
  %s3419 = scalar_lea.vmem %s3289, 1712 [#allocation2]
  %v3420 = vld [vmem:[%s3419] ss:$2 sm:$0x3]
  %s3421 = scalar_lea.vmem %s3289, 1760 [#allocation2]
  %v3422 = vld [vmem:[%s3421] ss:$2 sm:$0xff]
  %s3423 = scalar_lea.vmem %s3289, 1776 [#allocation2]
  %v3424 = vld [vmem:[%s3423] ss:$2 sm:$0xff]
  %s3425 = scalar_lea.vmem %s3289, 1792 [#allocation2]
  %v3426 = vld [vmem:[%s3425] ss:$2 sm:$0x3]
  %s3427 = scalar_lea.vmem %s3289, 1840 [#allocation2]
  %v3428 = vld [vmem:[%s3427] ss:$2 sm:$0xff]
  %s3429 = scalar_lea.vmem %s3289, 1856 [#allocation2]
  %v3430 = vld [vmem:[%s3429] ss:$2 sm:$0xff]
  %s3431 = scalar_lea.vmem %s3289, 1872 [#allocation2]
  %v3432 = vld [vmem:[%s3431] ss:$2 sm:$0x3]
  %s3433 = scalar_lea.vmem %s3289, 1920 [#allocation2]
  %v3434 = vld [vmem:[%s3433] ss:$2 sm:$0xff]
  %s3435 = scalar_lea.vmem %s3289, 1936 [#allocation2]
  %v3436 = vld [vmem:[%s3435] ss:$2 sm:$0xff]
  %s3437 = scalar_lea.vmem %s3289, 1952 [#allocation2]
  %v3438 = vld [vmem:[%s3437] ss:$2 sm:$0x3]
  %s3439 = scalar_lea.vmem %s3289, 2000 [#allocation2]
  %v3440 = vld [vmem:[%s3439] ss:$2 sm:$0xff]
  %s3441 = scalar_lea.vmem %s3289, 2016 [#allocation2]
  %v3442 = vld [vmem:[%s3441] ss:$2 sm:$0xff]
  %s3443 = scalar_lea.vmem %s3289, 2032 [#allocation2]
  %v3444 = vld [vmem:[%s3443] ss:$2 sm:$0x3]
  %s3445 = scalar_lea.vmem %s3289, 2080 [#allocation2]
  %v3446 = vld [vmem:[%s3445] ss:$2 sm:$0xff]
  %s3447 = scalar_lea.vmem %s3289, 2096 [#allocation2]
  %v3448 = vld [vmem:[%s3447] ss:$2 sm:$0xff]
  %s3449 = scalar_lea.vmem %s3289, 2112 [#allocation2]
  %v3450 = vld [vmem:[%s3449] ss:$2 sm:$0x3]
  %s3451 = scalar_lea.vmem %s3289, 2160 [#allocation2]
  %v3452 = vld [vmem:[%s3451] ss:$2 sm:$0xff]
  %s3453 = scalar_lea.vmem %s3289, 2176 [#allocation2]
  %v3454 = vld [vmem:[%s3453] ss:$2 sm:$0xff]
  %s3455 = scalar_lea.vmem %s3289, 2192 [#allocation2]
  %v3456 = vld [vmem:[%s3455] ss:$2 sm:$0x3]
  %v3457 = vmax.f32 %v3205, %v3290
  %v3458 = vmax.f32 %v3206, %v3292
  %v3459 = vmax.f32 %v3207, %v3294
  %v3460 = vmax.f32 %v3208, %v3296
  %v3461 = vmax.f32 %v3209, %v3298
  %v3462 = vmax.f32 %v3210, %v3300
  %v3463 = vmax.f32 %v3211, %v3302
  %v3464 = vmax.f32 %v3212, %v3304
  %v3465 = vmax.f32 %v3213, %v3306
  %v3466 = vmax.f32 %v3214, %v3308
  %v3467 = vmax.f32 %v3215, %v3310
  %v3468 = vmax.f32 %v3216, %v3312
  %v3469 = vmax.f32 %v3217, %v3314
  %v3470 = vmax.f32 %v3218, %v3316
  %v3471 = vmax.f32 %v3219, %v3318
  %v3472 = vmax.f32 %v3220, %v3320
  %v3473 = vmax.f32 %v3221, %v3322
  %v3474 = vmax.f32 %v3222, %v3324
  %v3475 = vmax.f32 %v3223, %v3326
  %v3476 = vmax.f32 %v3224, %v3328
  %v3477 = vmax.f32 %v3225, %v3330
  %v3478 = vmax.f32 %v3226, %v3332
  %v3479 = vmax.f32 %v3227, %v3334
  %v3480 = vmax.f32 %v3228, %v3336
  %v3481 = vmax.f32 %v3229, %v3338
  %v3482 = vmax.f32 %v3230, %v3340
  %v3483 = vmax.f32 %v3231, %v3342
  %v3484 = vmax.f32 %v3232, %v3344
  %v3485 = vmax.f32 %v3233, %v3346
  %v3486 = vmax.f32 %v3234, %v3348
  %v3487 = vmax.f32 %v3235, %v3350
  %v3488 = vmax.f32 %v3236, %v3352
  %v3489 = vmax.f32 %v3237, %v3354
  %v3490 = vmax.f32 %v3238, %v3356
  %v3491 = vmax.f32 %v3239, %v3358
  %v3492 = vmax.f32 %v3240, %v3360
  %v3493 = vmax.f32 %v3241, %v3362
  %v3494 = vmax.f32 %v3242, %v3364
  %v3495 = vmax.f32 %v3243, %v3366
  %v3496 = vmax.f32 %v3244, %v3368
  %v3497 = vmax.f32 %v3245, %v3370
  %v3498 = vmax.f32 %v3246, %v3372
  %v3499 = vmax.f32 %v3247, %v3374
  %v3500 = vmax.f32 %v3248, %v3376
  %v3501 = vmax.f32 %v3249, %v3378
  %v3502 = vmax.f32 %v3250, %v3380
  %v3503 = vmax.f32 %v3251, %v3382
  %v3504 = vmax.f32 %v3252, %v3384
  %v3505 = vmax.f32 %v3253, %v3386
  %v3506 = vmax.f32 %v3254, %v3388
  %v3507 = vmax.f32 %v3255, %v3390
  %v3508 = vmax.f32 %v3256, %v3392
  %v3509 = vmax.f32 %v3257, %v3394
  %v3510 = vmax.f32 %v3258, %v3396
  %v3511 = vmax.f32 %v3259, %v3398
  %v3512 = vmax.f32 %v3260, %v3400
  %v3513 = vmax.f32 %v3261, %v3402
  %v3514 = vmax.f32 %v3262, %v3404
  %v3515 = vmax.f32 %v3263, %v3406
  %v3516 = vmax.f32 %v3264, %v3408
  %v3517 = vmax.f32 %v3265, %v3410
  %v3518 = vmax.f32 %v3266, %v3412
  %v3519 = vmax.f32 %v3267, %v3414
  %v3520 = vmax.f32 %v3268, %v3416
  %v3521 = vmax.f32 %v3269, %v3418
  %v3522 = vmax.f32 %v3270, %v3420
  %v3523 = vmax.f32 %v3271, %v3422
  %v3524 = vmax.f32 %v3272, %v3424
  %v3525 = vmax.f32 %v3273, %v3426
  %v3526 = vmax.f32 %v3274, %v3428
  %v3527 = vmax.f32 %v3275, %v3430
  %v3528 = vmax.f32 %v3276, %v3432
  %v3529 = vmax.f32 %v3277, %v3434
  %v3530 = vmax.f32 %v3278, %v3436
  %v3531 = vmax.f32 %v3279, %v3438
  %v3532 = vmax.f32 %v3280, %v3440
  %v3533 = vmax.f32 %v3281, %v3442
  %v3534 = vmax.f32 %v3282, %v3444
  %v3535 = vmax.f32 %v3283, %v3446
  %v3536 = vmax.f32 %v3284, %v3448
  %v3537 = vmax.f32 %v3285, %v3450
  %v3538 = vmax.f32 %v3286, %v3452
  %v3539 = vmax.f32 %v3287, %v3454
  %v3540 = vmax.f32 %v3288, %v3456
  %s3541 = scalar_lea.vmem %s3289, 1 [#allocation2]
  %v3542 = vld [vmem:[%s3541] ss:$2 sm:$0xff]
  %s3543 = scalar_lea.vmem %s3289, 17 [#allocation2]
  %v3544 = vld [vmem:[%s3543] ss:$2 sm:$0xff]
  %s3545 = scalar_lea.vmem %s3289, 33 [#allocation2]
  %v3546 = vld [vmem:[%s3545] ss:$2 sm:$0x3]
  %s3547 = scalar_lea.vmem %s3289, 81 [#allocation2]
  %v3548 = vld [vmem:[%s3547] ss:$2 sm:$0xff]
  %s3549 = scalar_lea.vmem %s3289, 97 [#allocation2]
  %v3550 = vld [vmem:[%s3549] ss:$2 sm:$0xff]
  %s3551 = scalar_lea.vmem %s3289, 113 [#allocation2]
  %v3552 = vld [vmem:[%s3551] ss:$2 sm:$0x3]
  %s3553 = scalar_lea.vmem %s3289, 161 [#allocation2]
  %v3554 = vld [vmem:[%s3553] ss:$2 sm:$0xff]
  %s3555 = scalar_lea.vmem %s3289, 177 [#allocation2]
  %v3556 = vld [vmem:[%s3555] ss:$2 sm:$0xff]
  %s3557 = scalar_lea.vmem %s3289, 193 [#allocation2]
  %v3558 = vld [vmem:[%s3557] ss:$2 sm:$0x3]
  %s3559 = scalar_lea.vmem %s3289, 241 [#allocation2]
  %v3560 = vld [vmem:[%s3559] ss:$2 sm:$0xff]
  %s3561 = scalar_lea.vmem %s3289, 257 [#allocation2]
  %v3562 = vld [vmem:[%s3561] ss:$2 sm:$0xff]
  %s3563 = scalar_lea.vmem %s3289, 273 [#allocation2]
  %v3564 = vld [vmem:[%s3563] ss:$2 sm:$0x3]
  %s3565 = scalar_lea.vmem %s3289, 321 [#allocation2]
  %v3566 = vld [vmem:[%s3565] ss:$2 sm:$0xff]
  %s3567 = scalar_lea.vmem %s3289, 337 [#allocation2]
  %v3568 = vld [vmem:[%s3567] ss:$2 sm:$0xff]
  %s3569 = scalar_lea.vmem %s3289, 353 [#allocation2]
  %v3570 = vld [vmem:[%s3569] ss:$2 sm:$0x3]
  %s3571 = scalar_lea.vmem %s3289, 401 [#allocation2]
  %v3572 = vld [vmem:[%s3571] ss:$2 sm:$0xff]
  %s3573 = scalar_lea.vmem %s3289, 417 [#allocation2]
  %v3574 = vld [vmem:[%s3573] ss:$2 sm:$0xff]
  %s3575 = scalar_lea.vmem %s3289, 433 [#allocation2]
  %v3576 = vld [vmem:[%s3575] ss:$2 sm:$0x3]
  %s3577 = scalar_lea.vmem %s3289, 481 [#allocation2]
  %v3578 = vld [vmem:[%s3577] ss:$2 sm:$0xff]
  %s3579 = scalar_lea.vmem %s3289, 497 [#allocation2]
  %v3580 = vld [vmem:[%s3579] ss:$2 sm:$0xff]
  %s3581 = scalar_lea.vmem %s3289, 513 [#allocation2]
  %v3582 = vld [vmem:[%s3581] ss:$2 sm:$0x3]
  %s3583 = scalar_lea.vmem %s3289, 561 [#allocation2]
  %v3584 = vld [vmem:[%s3583] ss:$2 sm:$0xff]
  %s3585 = scalar_lea.vmem %s3289, 577 [#allocation2]
  %v3586 = vld [vmem:[%s3585] ss:$2 sm:$0xff]
  %s3587 = scalar_lea.vmem %s3289, 593 [#allocation2]
  %v3588 = vld [vmem:[%s3587] ss:$2 sm:$0x3]
  %s3589 = scalar_lea.vmem %s3289, 641 [#allocation2]
  %v3590 = vld [vmem:[%s3589] ss:$2 sm:$0xff]
  %s3591 = scalar_lea.vmem %s3289, 657 [#allocation2]
  %v3592 = vld [vmem:[%s3591] ss:$2 sm:$0xff]
  %s3593 = scalar_lea.vmem %s3289, 673 [#allocation2]
  %v3594 = vld [vmem:[%s3593] ss:$2 sm:$0x3]
  %s3595 = scalar_lea.vmem %s3289, 721 [#allocation2]
  %v3596 = vld [vmem:[%s3595] ss:$2 sm:$0xff]
  %s3597 = scalar_lea.vmem %s3289, 737 [#allocation2]
  %v3598 = vld [vmem:[%s3597] ss:$2 sm:$0xff]
  %s3599 = scalar_lea.vmem %s3289, 753 [#allocation2]
  %v3600 = vld [vmem:[%s3599] ss:$2 sm:$0x3]
  %s3601 = scalar_lea.vmem %s3289, 801 [#allocation2]
  %v3602 = vld [vmem:[%s3601] ss:$2 sm:$0xff]
  %s3603 = scalar_lea.vmem %s3289, 817 [#allocation2]
  %v3604 = vld [vmem:[%s3603] ss:$2 sm:$0xff]
  %s3605 = scalar_lea.vmem %s3289, 833 [#allocation2]
  %v3606 = vld [vmem:[%s3605] ss:$2 sm:$0x3]
  %s3607 = scalar_lea.vmem %s3289, 881 [#allocation2]
  %v3608 = vld [vmem:[%s3607] ss:$2 sm:$0xff]
  %s3609 = scalar_lea.vmem %s3289, 897 [#allocation2]
  %v3610 = vld [vmem:[%s3609] ss:$2 sm:$0xff]
  %s3611 = scalar_lea.vmem %s3289, 913 [#allocation2]
  %v3612 = vld [vmem:[%s3611] ss:$2 sm:$0x3]
  %s3613 = scalar_lea.vmem %s3289, 961 [#allocation2]
  %v3614 = vld [vmem:[%s3613] ss:$2 sm:$0xff]
  %s3615 = scalar_lea.vmem %s3289, 977 [#allocation2]
  %v3616 = vld [vmem:[%s3615] ss:$2 sm:$0xff]
  %s3617 = scalar_lea.vmem %s3289, 993 [#allocation2]
  %v3618 = vld [vmem:[%s3617] ss:$2 sm:$0x3]
  %s3619 = scalar_lea.vmem %s3289, 1041 [#allocation2]
  %v3620 = vld [vmem:[%s3619] ss:$2 sm:$0xff]
  %s3621 = scalar_lea.vmem %s3289, 1057 [#allocation2]
  %v3622 = vld [vmem:[%s3621] ss:$2 sm:$0xff]
  %s3623 = scalar_lea.vmem %s3289, 1073 [#allocation2]
  %v3624 = vld [vmem:[%s3623] ss:$2 sm:$0x3]
  %s3625 = scalar_lea.vmem %s3289, 1121 [#allocation2]
  %v3626 = vld [vmem:[%s3625] ss:$2 sm:$0xff]
  %s3627 = scalar_lea.vmem %s3289, 1137 [#allocation2]
  %v3628 = vld [vmem:[%s3627] ss:$2 sm:$0xff]
  %s3629 = scalar_lea.vmem %s3289, 1153 [#allocation2]
  %v3630 = vld [vmem:[%s3629] ss:$2 sm:$0x3]
  %s3631 = scalar_lea.vmem %s3289, 1201 [#allocation2]
  %v3632 = vld [vmem:[%s3631] ss:$2 sm:$0xff]
  %s3633 = scalar_lea.vmem %s3289, 1217 [#allocation2]
  %v3634 = vld [vmem:[%s3633] ss:$2 sm:$0xff]
  %s3635 = scalar_lea.vmem %s3289, 1233 [#allocation2]
  %v3636 = vld [vmem:[%s3635] ss:$2 sm:$0x3]
  %s3637 = scalar_lea.vmem %s3289, 1281 [#allocation2]
  %v3638 = vld [vmem:[%s3637] ss:$2 sm:$0xff]
  %s3639 = scalar_lea.vmem %s3289, 1297 [#allocation2]
  %v3640 = vld [vmem:[%s3639] ss:$2 sm:$0xff]
  %s3641 = scalar_lea.vmem %s3289, 1313 [#allocation2]
  %v3642 = vld [vmem:[%s3641] ss:$2 sm:$0x3]
  %s3643 = scalar_lea.vmem %s3289, 1361 [#allocation2]
  %v3644 = vld [vmem:[%s3643] ss:$2 sm:$0xff]
  %s3645 = scalar_lea.vmem %s3289, 1377 [#allocation2]
  %v3646 = vld [vmem:[%s3645] ss:$2 sm:$0xff]
  %s3647 = scalar_lea.vmem %s3289, 1393 [#allocation2]
  %v3648 = vld [vmem:[%s3647] ss:$2 sm:$0x3]
  %s3649 = scalar_lea.vmem %s3289, 1441 [#allocation2]
  %v3650 = vld [vmem:[%s3649] ss:$2 sm:$0xff]
  %s3651 = scalar_lea.vmem %s3289, 1457 [#allocation2]
  %v3652 = vld [vmem:[%s3651] ss:$2 sm:$0xff]
  %s3653 = scalar_lea.vmem %s3289, 1473 [#allocation2]
  %v3654 = vld [vmem:[%s3653] ss:$2 sm:$0x3]
  %s3655 = scalar_lea.vmem %s3289, 1521 [#allocation2]
  %v3656 = vld [vmem:[%s3655] ss:$2 sm:$0xff]
  %s3657 = scalar_lea.vmem %s3289, 1537 [#allocation2]
  %v3658 = vld [vmem:[%s3657] ss:$2 sm:$0xff]
  %s3659 = scalar_lea.vmem %s3289, 1553 [#allocation2]
  %v3660 = vld [vmem:[%s3659] ss:$2 sm:$0x3]
  %s3661 = scalar_lea.vmem %s3289, 1601 [#allocation2]
  %v3662 = vld [vmem:[%s3661] ss:$2 sm:$0xff]
  %s3663 = scalar_lea.vmem %s3289, 1617 [#allocation2]
  %v3664 = vld [vmem:[%s3663] ss:$2 sm:$0xff]
  %s3665 = scalar_lea.vmem %s3289, 1633 [#allocation2]
  %v3666 = vld [vmem:[%s3665] ss:$2 sm:$0x3]
  %s3667 = scalar_lea.vmem %s3289, 1681 [#allocation2]
  %v3668 = vld [vmem:[%s3667] ss:$2 sm:$0xff]
  %s3669 = scalar_lea.vmem %s3289, 1697 [#allocation2]
  %v3670 = vld [vmem:[%s3669] ss:$2 sm:$0xff]
  %s3671 = scalar_lea.vmem %s3289, 1713 [#allocation2]
  %v3672 = vld [vmem:[%s3671] ss:$2 sm:$0x3]
  %s3673 = scalar_lea.vmem %s3289, 1761 [#allocation2]
  %v3674 = vld [vmem:[%s3673] ss:$2 sm:$0xff]
  %s3675 = scalar_lea.vmem %s3289, 1777 [#allocation2]
  %v3676 = vld [vmem:[%s3675] ss:$2 sm:$0xff]
  %s3677 = scalar_lea.vmem %s3289, 1793 [#allocation2]
  %v3678 = vld [vmem:[%s3677] ss:$2 sm:$0x3]
  %s3679 = scalar_lea.vmem %s3289, 1841 [#allocation2]
  %v3680 = vld [vmem:[%s3679] ss:$2 sm:$0xff]
  %s3681 = scalar_lea.vmem %s3289, 1857 [#allocation2]
  %v3682 = vld [vmem:[%s3681] ss:$2 sm:$0xff]
  %s3683 = scalar_lea.vmem %s3289, 1873 [#allocation2]
  %v3684 = vld [vmem:[%s3683] ss:$2 sm:$0x3]
  %s3685 = scalar_lea.vmem %s3289, 1921 [#allocation2]
  %v3686 = vld [vmem:[%s3685] ss:$2 sm:$0xff]
  %s3687 = scalar_lea.vmem %s3289, 1937 [#allocation2]
  %v3688 = vld [vmem:[%s3687] ss:$2 sm:$0xff]
  %s3689 = scalar_lea.vmem %s3289, 1953 [#allocation2]
  %v3690 = vld [vmem:[%s3689] ss:$2 sm:$0x3]
  %s3691 = scalar_lea.vmem %s3289, 2001 [#allocation2]
  %v3692 = vld [vmem:[%s3691] ss:$2 sm:$0xff]
  %s3693 = scalar_lea.vmem %s3289, 2017 [#allocation2]
  %v3694 = vld [vmem:[%s3693] ss:$2 sm:$0xff]
  %s3695 = scalar_lea.vmem %s3289, 2033 [#allocation2]
  %v3696 = vld [vmem:[%s3695] ss:$2 sm:$0x3]
  %s3697 = scalar_lea.vmem %s3289, 2081 [#allocation2]
  %v3698 = vld [vmem:[%s3697] ss:$2 sm:$0xff]
  %s3699 = scalar_lea.vmem %s3289, 2097 [#allocation2]
  %v3700 = vld [vmem:[%s3699] ss:$2 sm:$0xff]
  %s3701 = scalar_lea.vmem %s3289, 2113 [#allocation2]
  %v3702 = vld [vmem:[%s3701] ss:$2 sm:$0x3]
  %s3703 = scalar_lea.vmem %s3289, 2161 [#allocation2]
  %v3704 = vld [vmem:[%s3703] ss:$2 sm:$0xff]
  %s3705 = scalar_lea.vmem %s3289, 2177 [#allocation2]
  %v3706 = vld [vmem:[%s3705] ss:$2 sm:$0xff]
  %s3707 = scalar_lea.vmem %s3289, 2193 [#allocation2]
  %v3708 = vld [vmem:[%s3707] ss:$2 sm:$0x3]
  %v3709 = vmax.f32 %v3457, %v3542
  %v3710 = vmax.f32 %v3458, %v3544
  %v3711 = vmax.f32 %v3459, %v3546
  %v3712 = vmax.f32 %v3460, %v3548
  %v3713 = vmax.f32 %v3461, %v3550
  %v3714 = vmax.f32 %v3462, %v3552
  %v3715 = vmax.f32 %v3463, %v3554
  %v3716 = vmax.f32 %v3464, %v3556
  %v3717 = vmax.f32 %v3465, %v3558
  %v3718 = vmax.f32 %v3466, %v3560
  %v3719 = vmax.f32 %v3467, %v3562
  %v3720 = vmax.f32 %v3468, %v3564
  %v3721 = vmax.f32 %v3469, %v3566
  %v3722 = vmax.f32 %v3470, %v3568
  %v3723 = vmax.f32 %v3471, %v3570
  %v3724 = vmax.f32 %v3472, %v3572
  %v3725 = vmax.f32 %v3473, %v3574
  %v3726 = vmax.f32 %v3474, %v3576
  %v3727 = vmax.f32 %v3475, %v3578
  %v3728 = vmax.f32 %v3476, %v3580
  %v3729 = vmax.f32 %v3477, %v3582
  %v3730 = vmax.f32 %v3478, %v3584
  %v3731 = vmax.f32 %v3479, %v3586
  %v3732 = vmax.f32 %v3480, %v3588
  %v3733 = vmax.f32 %v3481, %v3590
  %v3734 = vmax.f32 %v3482, %v3592
  %v3735 = vmax.f32 %v3483, %v3594
  %v3736 = vmax.f32 %v3484, %v3596
  %v3737 = vmax.f32 %v3485, %v3598
  %v3738 = vmax.f32 %v3486, %v3600
  %v3739 = vmax.f32 %v3487, %v3602
  %v3740 = vmax.f32 %v3488, %v3604
  %v3741 = vmax.f32 %v3489, %v3606
  %v3742 = vmax.f32 %v3490, %v3608
  %v3743 = vmax.f32 %v3491, %v3610
  %v3744 = vmax.f32 %v3492, %v3612
  %v3745 = vmax.f32 %v3493, %v3614
  %v3746 = vmax.f32 %v3494, %v3616
  %v3747 = vmax.f32 %v3495, %v3618
  %v3748 = vmax.f32 %v3496, %v3620
  %v3749 = vmax.f32 %v3497, %v3622
  %v3750 = vmax.f32 %v3498, %v3624
  %v3751 = vmax.f32 %v3499, %v3626
  %v3752 = vmax.f32 %v3500, %v3628
  %v3753 = vmax.f32 %v3501, %v3630
  %v3754 = vmax.f32 %v3502, %v3632
  %v3755 = vmax.f32 %v3503, %v3634
  %v3756 = vmax.f32 %v3504, %v3636
  %v3757 = vmax.f32 %v3505, %v3638
  %v3758 = vmax.f32 %v3506, %v3640
  %v3759 = vmax.f32 %v3507, %v3642
  %v3760 = vmax.f32 %v3508, %v3644
  %v3761 = vmax.f32 %v3509, %v3646
  %v3762 = vmax.f32 %v3510, %v3648
  %v3763 = vmax.f32 %v3511, %v3650
  %v3764 = vmax.f32 %v3512, %v3652
  %v3765 = vmax.f32 %v3513, %v3654
  %v3766 = vmax.f32 %v3514, %v3656
  %v3767 = vmax.f32 %v3515, %v3658
  %v3768 = vmax.f32 %v3516, %v3660
  %v3769 = vmax.f32 %v3517, %v3662
  %v3770 = vmax.f32 %v3518, %v3664
  %v3771 = vmax.f32 %v3519, %v3666
  %v3772 = vmax.f32 %v3520, %v3668
  %v3773 = vmax.f32 %v3521, %v3670
  %v3774 = vmax.f32 %v3522, %v3672
  %v3775 = vmax.f32 %v3523, %v3674
  %v3776 = vmax.f32 %v3524, %v3676
  %v3777 = vmax.f32 %v3525, %v3678
  %v3778 = vmax.f32 %v3526, %v3680
  %v3779 = vmax.f32 %v3527, %v3682
  %v3780 = vmax.f32 %v3528, %v3684
  %v3781 = vmax.f32 %v3529, %v3686
  %v3782 = vmax.f32 %v3530, %v3688
  %v3783 = vmax.f32 %v3531, %v3690
  %v3784 = vmax.f32 %v3532, %v3692
  %v3785 = vmax.f32 %v3533, %v3694
  %v3786 = vmax.f32 %v3534, %v3696
  %v3787 = vmax.f32 %v3535, %v3698
  %v3788 = vmax.f32 %v3536, %v3700
  %v3789 = vmax.f32 %v3537, %v3702
  %v3790 = vmax.f32 %v3538, %v3704
  %v3791 = vmax.f32 %v3539, %v3706
  %v3792 = vmax.f32 %v3540, %v3708
  %v3793 = vld [vmem:[%s2] sm:$0x1]
  %v3795 = vlaneseq
  %v3796 = vshrl.u32 %v3795, 7
  %v3797 = vsub.s32 0, %v3796
  %v3798 = vrot.slane %v3793, %v3797
  %v3800 = vadd.f32 %v3709, %v3798
  %v3801 = vadd.f32 %v3710, %v3798
  %v3802 = vadd.f32 %v3711, %v3798
  %v3803 = vadd.f32 %v3712, %v3798
  %v3804 = vadd.f32 %v3713, %v3798
  %v3805 = vadd.f32 %v3714, %v3798
  %v3806 = vadd.f32 %v3715, %v3798
  %v3807 = vadd.f32 %v3716, %v3798
  %v3808 = vadd.f32 %v3717, %v3798
  %v3809 = vadd.f32 %v3718, %v3798
  %v3810 = vadd.f32 %v3719, %v3798
  %v3811 = vadd.f32 %v3720, %v3798
  %v3812 = vadd.f32 %v3721, %v3798
  %v3813 = vadd.f32 %v3722, %v3798
  %v3814 = vadd.f32 %v3723, %v3798
  %v3815 = vadd.f32 %v3724, %v3798
  %v3816 = vadd.f32 %v3725, %v3798
  %v3817 = vadd.f32 %v3726, %v3798
  %v3818 = vadd.f32 %v3727, %v3798
  %v3819 = vadd.f32 %v3728, %v3798
  %v3820 = vadd.f32 %v3729, %v3798
  %v3821 = vadd.f32 %v3730, %v3798
  %v3822 = vadd.f32 %v3731, %v3798
  %v3823 = vadd.f32 %v3732, %v3798
  %v3824 = vadd.f32 %v3733, %v3798
  %v3825 = vadd.f32 %v3734, %v3798
  %v3826 = vadd.f32 %v3735, %v3798
  %v3827 = vadd.f32 %v3736, %v3798
  %v3828 = vadd.f32 %v3737, %v3798
  %v3829 = vadd.f32 %v3738, %v3798
  %v3830 = vadd.f32 %v3739, %v3798
  %v3831 = vadd.f32 %v3740, %v3798
  %v3832 = vadd.f32 %v3741, %v3798
  %v3833 = vadd.f32 %v3742, %v3798
  %v3834 = vadd.f32 %v3743, %v3798
  %v3835 = vadd.f32 %v3744, %v3798
  %v3836 = vadd.f32 %v3745, %v3798
  %v3837 = vadd.f32 %v3746, %v3798
  %v3838 = vadd.f32 %v3747, %v3798
  %v3839 = vadd.f32 %v3748, %v3798
  %v3840 = vadd.f32 %v3749, %v3798
  %v3841 = vadd.f32 %v3750, %v3798
  %v3842 = vadd.f32 %v3751, %v3798
  %v3843 = vadd.f32 %v3752, %v3798
  %v3844 = vadd.f32 %v3753, %v3798
  %v3845 = vadd.f32 %v3754, %v3798
  %v3846 = vadd.f32 %v3755, %v3798
  %v3847 = vadd.f32 %v3756, %v3798
  %v3848 = vadd.f32 %v3757, %v3798
  %v3849 = vadd.f32 %v3758, %v3798
  %v3850 = vadd.f32 %v3759, %v3798
  %v3851 = vadd.f32 %v3760, %v3798
  %v3852 = vadd.f32 %v3761, %v3798
  %v3853 = vadd.f32 %v3762, %v3798
  %v3854 = vadd.f32 %v3763, %v3798
  %v3855 = vadd.f32 %v3764, %v3798
  %v3856 = vadd.f32 %v3765, %v3798
  %v3857 = vadd.f32 %v3766, %v3798
  %v3858 = vadd.f32 %v3767, %v3798
  %v3859 = vadd.f32 %v3768, %v3798
  %v3860 = vadd.f32 %v3769, %v3798
  %v3861 = vadd.f32 %v3770, %v3798
  %v3862 = vadd.f32 %v3771, %v3798
  %v3863 = vadd.f32 %v3772, %v3798
  %v3864 = vadd.f32 %v3773, %v3798
  %v3865 = vadd.f32 %v3774, %v3798
  %v3866 = vadd.f32 %v3775, %v3798
  %v3867 = vadd.f32 %v3776, %v3798
  %v3868 = vadd.f32 %v3777, %v3798
  %v3869 = vadd.f32 %v3778, %v3798
  %v3870 = vadd.f32 %v3779, %v3798
  %v3871 = vadd.f32 %v3780, %v3798
  %v3872 = vadd.f32 %v3781, %v3798
  %v3873 = vadd.f32 %v3782, %v3798
  %v3874 = vadd.f32 %v3783, %v3798
  %v3875 = vadd.f32 %v3784, %v3798
  %v3876 = vadd.f32 %v3785, %v3798
  %v3877 = vadd.f32 %v3786, %v3798
  %v3878 = vadd.f32 %v3787, %v3798
  %v3879 = vadd.f32 %v3788, %v3798
  %v3880 = vadd.f32 %v3789, %v3798
  %v3881 = vadd.f32 %v3790, %v3798
  %v3882 = vadd.f32 %v3791, %v3798
  %v3883 = vadd.f32 %v3792, %v3798
  %v3884 = vmax.f32 %v3800, 0.0
  %v3885 = vmax.f32 %v3801, 0.0
  %v3886 = vmax.f32 %v3802, 0.0
  %v3887 = vmax.f32 %v3803, 0.0
  %v3888 = vmax.f32 %v3804, 0.0
  %v3889 = vmax.f32 %v3805, 0.0
  %v3890 = vmax.f32 %v3806, 0.0
  %v3891 = vmax.f32 %v3807, 0.0
  %v3892 = vmax.f32 %v3808, 0.0
  %v3893 = vmax.f32 %v3809, 0.0
  %v3894 = vmax.f32 %v3810, 0.0
  %v3895 = vmax.f32 %v3811, 0.0
  %v3896 = vmax.f32 %v3812, 0.0
  %v3897 = vmax.f32 %v3813, 0.0
  %v3898 = vmax.f32 %v3814, 0.0
  %v3899 = vmax.f32 %v3815, 0.0
  %v3900 = vmax.f32 %v3816, 0.0
  %v3901 = vmax.f32 %v3817, 0.0
  %v3902 = vmax.f32 %v3818, 0.0
  %v3903 = vmax.f32 %v3819, 0.0
  %v3904 = vmax.f32 %v3820, 0.0
  %v3905 = vmax.f32 %v3821, 0.0
  %v3906 = vmax.f32 %v3822, 0.0
  %v3907 = vmax.f32 %v3823, 0.0
  %v3908 = vmax.f32 %v3824, 0.0
  %v3909 = vmax.f32 %v3825, 0.0
  %v3910 = vmax.f32 %v3826, 0.0
  %v3911 = vmax.f32 %v3827, 0.0
  %v3912 = vmax.f32 %v3828, 0.0
  %v3913 = vmax.f32 %v3829, 0.0
  %v3914 = vmax.f32 %v3830, 0.0
  %v3915 = vmax.f32 %v3831, 0.0
  %v3916 = vmax.f32 %v3832, 0.0
  %v3917 = vmax.f32 %v3833, 0.0
  %v3918 = vmax.f32 %v3834, 0.0
  %v3919 = vmax.f32 %v3835, 0.0
  %v3920 = vmax.f32 %v3836, 0.0
  %v3921 = vmax.f32 %v3837, 0.0
  %v3922 = vmax.f32 %v3838, 0.0
  %v3923 = vmax.f32 %v3839, 0.0
  %v3924 = vmax.f32 %v3840, 0.0
  %v3925 = vmax.f32 %v3841, 0.0
  %v3926 = vmax.f32 %v3842, 0.0
  %v3927 = vmax.f32 %v3843, 0.0
  %v3928 = vmax.f32 %v3844, 0.0
  %v3929 = vmax.f32 %v3845, 0.0
  %v3930 = vmax.f32 %v3846, 0.0
  %v3931 = vmax.f32 %v3847, 0.0
  %v3932 = vmax.f32 %v3848, 0.0
  %v3933 = vmax.f32 %v3849, 0.0
  %v3934 = vmax.f32 %v3850, 0.0
  %v3935 = vmax.f32 %v3851, 0.0
  %v3936 = vmax.f32 %v3852, 0.0
  %v3937 = vmax.f32 %v3853, 0.0
  %v3938 = vmax.f32 %v3854, 0.0
  %v3939 = vmax.f32 %v3855, 0.0
  %v3940 = vmax.f32 %v3856, 0.0
  %v3941 = vmax.f32 %v3857, 0.0
  %v3942 = vmax.f32 %v3858, 0.0
  %v3943 = vmax.f32 %v3859, 0.0
  %v3944 = vmax.f32 %v3860, 0.0
  %v3945 = vmax.f32 %v3861, 0.0
  %v3946 = vmax.f32 %v3862, 0.0
  %v3947 = vmax.f32 %v3863, 0.0
  %v3948 = vmax.f32 %v3864, 0.0
  %v3949 = vmax.f32 %v3865, 0.0
  %v3950 = vmax.f32 %v3866, 0.0
  %v3951 = vmax.f32 %v3867, 0.0
  %v3952 = vmax.f32 %v3868, 0.0
  %v3953 = vmax.f32 %v3869, 0.0
  %v3954 = vmax.f32 %v3870, 0.0
  %v3955 = vmax.f32 %v3871, 0.0
  %v3956 = vmax.f32 %v3872, 0.0
  %v3957 = vmax.f32 %v3873, 0.0
  %v3958 = vmax.f32 %v3874, 0.0
  %v3959 = vmax.f32 %v3875, 0.0
  %v3960 = vmax.f32 %v3876, 0.0
  %v3961 = vmax.f32 %v3877, 0.0
  %v3962 = vmax.f32 %v3878, 0.0
  %v3963 = vmax.f32 %v3879, 0.0
  %v3964 = vmax.f32 %v3880, 0.0
  %v3965 = vmax.f32 %v3881, 0.0
  %v3966 = vmax.f32 %v3882, 0.0
  %v3967 = vmax.f32 %v3883, 0.0
  %v3968 = vlaneseq
  %v3969 = vshrl.u32 %v3968, 7
  %v3970 = vadd.s32 %v3969, 8
  %v3971 = vadd.s32 %v3969, 16
  %vm3972 = vcmp.ge.s32.totalorder %v3969, 1
  %vm3973 = vcmp.ge.s32.totalorder %v3970, 1
  %vm3974 = vcmp.ge.s32.totalorder %v3971, 1
  %vm3975 = vcmp.le.s32.totalorder %v3969, 14
  %vm3976 = vcmp.le.s32.totalorder %v3970, 14
  %vm3977 = vcmp.le.s32.totalorder %v3971, 14
  %vm3978 = vmand %vm3972, %vm3975
  %vm3979 = vmand %vm3973, %vm3976
  %vm3980 = vmand %vm3974, %vm3977
  %v3981 = vsel %vm3978, %v3884, 0.0
  %v3982 = vsel %vm3979, %v3885, 0.0
  %v3983 = vsel %vm3980, %v3886, 0.0
  %v3984 = vsel %vm3978, %v3887, 0.0
  %v3985 = vsel %vm3979, %v3888, 0.0
  %v3986 = vsel %vm3980, %v3889, 0.0
  %v3987 = vsel %vm3978, %v3890, 0.0
  %v3988 = vsel %vm3979, %v3891, 0.0
  %v3989 = vsel %vm3980, %v3892, 0.0
  %v3990 = vsel %vm3978, %v3893, 0.0
  %v3991 = vsel %vm3979, %v3894, 0.0
  %v3992 = vsel %vm3980, %v3895, 0.0
  %v3993 = vsel %vm3978, %v3896, 0.0
  %v3994 = vsel %vm3979, %v3897, 0.0
  %v3995 = vsel %vm3980, %v3898, 0.0
  %v3996 = vsel %vm3978, %v3899, 0.0
  %v3997 = vsel %vm3979, %v3900, 0.0
  %v3998 = vsel %vm3980, %v3901, 0.0
  %v3999 = vsel %vm3978, %v3902, 0.0
  %v4000 = vsel %vm3979, %v3903, 0.0
  %v4001 = vsel %vm3980, %v3904, 0.0
  %v4002 = vsel %vm3978, %v3905, 0.0
  %v4003 = vsel %vm3979, %v3906, 0.0
  %v4004 = vsel %vm3980, %v3907, 0.0
  %v4005 = vsel %vm3978, %v3908, 0.0
  %v4006 = vsel %vm3979, %v3909, 0.0
  %v4007 = vsel %vm3980, %v3910, 0.0
  %v4008 = vsel %vm3978, %v3911, 0.0
  %v4009 = vsel %vm3979, %v3912, 0.0
  %v4010 = vsel %vm3980, %v3913, 0.0
  %v4011 = vsel %vm3978, %v3914, 0.0
  %v4012 = vsel %vm3979, %v3915, 0.0
  %v4013 = vsel %vm3980, %v3916, 0.0
  %v4014 = vsel %vm3978, %v3917, 0.0
  %v4015 = vsel %vm3979, %v3918, 0.0
  %v4016 = vsel %vm3980, %v3919, 0.0
  %v4017 = vsel %vm3978, %v3920, 0.0
  %v4018 = vsel %vm3979, %v3921, 0.0
  %v4019 = vsel %vm3980, %v3922, 0.0
  %v4020 = vsel %vm3978, %v3923, 0.0
  %v4021 = vsel %vm3979, %v3924, 0.0
  %v4022 = vsel %vm3980, %v3925, 0.0
  %v4023 = vsel %vm3978, %v3926, 0.0
  %v4024 = vsel %vm3979, %v3927, 0.0
  %v4025 = vsel %vm3980, %v3928, 0.0
  %v4026 = vsel %vm3978, %v3929, 0.0
  %v4027 = vsel %vm3979, %v3930, 0.0
  %v4028 = vsel %vm3980, %v3931, 0.0
  %v4029 = vsel %vm3978, %v3932, 0.0
  %v4030 = vsel %vm3979, %v3933, 0.0
  %v4031 = vsel %vm3980, %v3934, 0.0
  %v4032 = vsel %vm3978, %v3935, 0.0
  %v4033 = vsel %vm3979, %v3936, 0.0
  %v4034 = vsel %vm3980, %v3937, 0.0
  %v4035 = vsel %vm3978, %v3938, 0.0
  %v4036 = vsel %vm3979, %v3939, 0.0
  %v4037 = vsel %vm3980, %v3940, 0.0
  %v4038 = vsel %vm3978, %v3941, 0.0
  %v4039 = vsel %vm3979, %v3942, 0.0
  %v4040 = vsel %vm3980, %v3943, 0.0
  %v4041 = vsel %vm3978, %v3944, 0.0
  %v4042 = vsel %vm3979, %v3945, 0.0
  %v4043 = vsel %vm3980, %v3946, 0.0
  %v4044 = vsel %vm3978, %v3947, 0.0
  %v4045 = vsel %vm3979, %v3948, 0.0
  %v4046 = vsel %vm3980, %v3949, 0.0
  %v4047 = vsel %vm3978, %v3950, 0.0
  %v4048 = vsel %vm3979, %v3951, 0.0
  %v4049 = vsel %vm3980, %v3952, 0.0
  %v4050 = vsel %vm3978, %v3953, 0.0
  %v4051 = vsel %vm3979, %v3954, 0.0
  %v4052 = vsel %vm3980, %v3955, 0.0
  %v4053 = vsel %vm3978, %v3956, 0.0
  %v4054 = vsel %vm3979, %v3957, 0.0
  %v4055 = vsel %vm3980, %v3958, 0.0
  %v4056 = vsel %vm3978, %v3959, 0.0
  %v4057 = vsel %vm3979, %v3960, 0.0
  %v4058 = vsel %vm3980, %v3961, 0.0
  %v4059 = vsel %vm3978, %v3962, 0.0
  %v4060 = vsel %vm3979, %v3963, 0.0
  %v4061 = vsel %vm3980, %v3964, 0.0
  %v4062 = vsel %vm3978, %v3965, 0.0
  %v4063 = vsel %vm3979, %v3966, 0.0
  %v4064 = vsel %vm3980, %v3967, 0.0
  %4065 = vst.msk [vmem:[#allocation3] sm:$0xff] %vm2589, 0.0
  %4066 = vst.msk [vmem:[#allocation3 + $0x8] sm:$0xff] %vm2589, 0.0
  %vm4067 = vcmask 254976
  %4068 = vst.msk [vmem:[#allocation3 + $0x10] sm:$0x3] %vm4067, 0.0
  %4069 = vst.msk [vmem:[#allocation3 + $0x18] sm:$0xff] %vm2589, %v3981
  %4070 = vst.msk [vmem:[#allocation3 + $0x20] sm:$0xff] %vm2589, %v3982
  %4071 = vst.msk [vmem:[#allocation3 + $0x28] sm:$0x3] %vm4067, %v3983
  %4072 = vst.msk [vmem:[#allocation3 + $0x30] sm:$0xff] %vm2589, %v3984
  %4073 = vst.msk [vmem:[#allocation3 + $0x38] sm:$0xff] %vm2589, %v3985
  %4074 = vst.msk [vmem:[#allocation3 + $0x40] sm:$0x3] %vm4067, %v3986
  %4075 = vst.msk [vmem:[#allocation3 + $0x48] sm:$0xff] %vm2589, %v3987
  %4076 = vst.msk [vmem:[#allocation3 + $0x50] sm:$0xff] %vm2589, %v3988
  %4077 = vst.msk [vmem:[#allocation3 + $0x58] sm:$0x3] %vm4067, %v3989
  %4078 = vst.msk [vmem:[#allocation3 + $0x60] sm:$0xff] %vm2589, %v3990
  %4079 = vst.msk [vmem:[#allocation3 + $0x68] sm:$0xff] %vm2589, %v3991
  %4080 = vst.msk [vmem:[#allocation3 + $0x70] sm:$0x3] %vm4067, %v3992
  %4081 = vst.msk [vmem:[#allocation3 + $0x78] sm:$0xff] %vm2589, %v3993
  %4082 = vst.msk [vmem:[#allocation3 + $0x80] sm:$0xff] %vm2589, %v3994
  %4083 = vst.msk [vmem:[#allocation3 + $0x88] sm:$0x3] %vm4067, %v3995
  %4084 = vst.msk [vmem:[#allocation3 + $0x90] sm:$0xff] %vm2589, %v3996
  %4085 = vst.msk [vmem:[#allocation3 + $0x98] sm:$0xff] %vm2589, %v3997
  %4086 = vst.msk [vmem:[#allocation3 + $0xa0] sm:$0x3] %vm4067, %v3998
  %4087 = vst.msk [vmem:[#allocation3 + $0xa8] sm:$0xff] %vm2589, %v3999
  %4088 = vst.msk [vmem:[#allocation3 + $0xb0] sm:$0xff] %vm2589, %v4000
  %4089 = vst.msk [vmem:[#allocation3 + $0xb8] sm:$0x3] %vm4067, %v4001
  %4090 = vst.msk [vmem:[#allocation3 + $0xc0] sm:$0xff] %vm2589, %v4002
  %4091 = vst.msk [vmem:[#allocation3 + $0xc8] sm:$0xff] %vm2589, %v4003
  %4092 = vst.msk [vmem:[#allocation3 + $0xd0] sm:$0x3] %vm4067, %v4004
  %4093 = vst.msk [vmem:[#allocation3 + $0xd8] sm:$0xff] %vm2589, %v4005
  %4094 = vst.msk [vmem:[#allocation3 + $0xe0] sm:$0xff] %vm2589, %v4006
  %4095 = vst.msk [vmem:[#allocation3 + $0xe8] sm:$0x3] %vm4067, %v4007
  %4096 = vst.msk [vmem:[#allocation3 + $0xf0] sm:$0xff] %vm2589, %v4008
  %4097 = vst.msk [vmem:[#allocation3 + $0xf8] sm:$0xff] %vm2589, %v4009
  %4098 = vst.msk [vmem:[#allocation3 + $0x100] sm:$0x3] %vm4067, %v4010
  %4099 = vst.msk [vmem:[#allocation3 + $0x108] sm:$0xff] %vm2589, %v4011
  %4100 = vst.msk [vmem:[#allocation3 + $0x110] sm:$0xff] %vm2589, %v4012
  %4101 = vst.msk [vmem:[#allocation3 + $0x118] sm:$0x3] %vm4067, %v4013
  %4102 = vst.msk [vmem:[#allocation3 + $0x120] sm:$0xff] %vm2589, %v4014
  %4103 = vst.msk [vmem:[#allocation3 + $0x128] sm:$0xff] %vm2589, %v4015
  %4104 = vst.msk [vmem:[#allocation3 + $0x130] sm:$0x3] %vm4067, %v4016
  %4105 = vst.msk [vmem:[#allocation3 + $0x138] sm:$0xff] %vm2589, %v4017
  %4106 = vst.msk [vmem:[#allocation3 + $0x140] sm:$0xff] %vm2589, %v4018
  %4107 = vst.msk [vmem:[#allocation3 + $0x148] sm:$0x3] %vm4067, %v4019
  %4108 = vst.msk [vmem:[#allocation3 + $0x150] sm:$0xff] %vm2589, %v4020
  %4109 = vst.msk [vmem:[#allocation3 + $0x158] sm:$0xff] %vm2589, %v4021
  %4110 = vst.msk [vmem:[#allocation3 + $0x160] sm:$0x3] %vm4067, %v4022
  %4111 = vst.msk [vmem:[#allocation3 + $0x168] sm:$0xff] %vm2589, 0.0
  %4112 = vst.msk [vmem:[#allocation3 + $0x170] sm:$0xff] %vm2589, 0.0
  %4113 = vst.msk [vmem:[#allocation3 + $0x178] sm:$0x3] %vm4067, 0.0
  %4114 = vst.msk [vmem:[#allocation3 + $0x180] sm:$0xff] %vm2589, 0.0
  %4115 = vst.msk [vmem:[#allocation3 + $0x188] sm:$0xff] %vm2589, 0.0
  %4116 = vst.msk [vmem:[#allocation3 + $0x190] sm:$0x3] %vm4067, 0.0
  %4117 = vst.msk [vmem:[#allocation3 + $0x198] sm:$0xff] %vm2589, %v4023
  %4118 = vst.msk [vmem:[#allocation3 + $0x1a0] sm:$0xff] %vm2589, %v4024
  %4119 = vst.msk [vmem:[#allocation3 + $0x1a8] sm:$0x3] %vm4067, %v4025
  %4120 = vst.msk [vmem:[#allocation3 + $0x1b0] sm:$0xff] %vm2589, %v4026
  %4121 = vst.msk [vmem:[#allocation3 + $0x1b8] sm:$0xff] %vm2589, %v4027
  %4122 = vst.msk [vmem:[#allocation3 + $0x1c0] sm:$0x3] %vm4067, %v4028
  %4123 = vst.msk [vmem:[#allocation3 + $0x1c8] sm:$0xff] %vm2589, %v4029
  %4124 = vst.msk [vmem:[#allocation3 + $0x1d0] sm:$0xff] %vm2589, %v4030
  %4125 = vst.msk [vmem:[#allocation3 + $0x1d8] sm:$0x3] %vm4067, %v4031
  %4126 = vst.msk [vmem:[#allocation3 + $0x1e0] sm:$0xff] %vm2589, %v4032
  %4127 = vst.msk [vmem:[#allocation3 + $0x1e8] sm:$0xff] %vm2589, %v4033
  %4128 = vst.msk [vmem:[#allocation3 + $0x1f0] sm:$0x3] %vm4067, %v4034
  %4129 = vst.msk [vmem:[#allocation3 + $0x1f8] sm:$0xff] %vm2589, %v4035
  %4130 = vst.msk [vmem:[#allocation3 + $0x200] sm:$0xff] %vm2589, %v4036
  %4131 = vst.msk [vmem:[#allocation3 + $0x208] sm:$0x3] %vm4067, %v4037
  %4132 = vst.msk [vmem:[#allocation3 + $0x210] sm:$0xff] %vm2589, %v4038
  %4133 = vst.msk [vmem:[#allocation3 + $0x218] sm:$0xff] %vm2589, %v4039
  %4134 = vst.msk [vmem:[#allocation3 + $0x220] sm:$0x3] %vm4067, %v4040
  %4135 = vst.msk [vmem:[#allocation3 + $0x228] sm:$0xff] %vm2589, %v4041
  %4136 = vst.msk [vmem:[#allocation3 + $0x230] sm:$0xff] %vm2589, %v4042
  %4137 = vst.msk [vmem:[#allocation3 + $0x238] sm:$0x3] %vm4067, %v4043
  %4138 = vst.msk [vmem:[#allocation3 + $0x240] sm:$0xff] %vm2589, %v4044
  %4139 = vst.msk [vmem:[#allocation3 + $0x248] sm:$0xff] %vm2589, %v4045
  %4140 = vst.msk [vmem:[#allocation3 + $0x250] sm:$0x3] %vm4067, %v4046
  %4141 = vst.msk [vmem:[#allocation3 + $0x258] sm:$0xff] %vm2589, %v4047
  %4142 = vst.msk [vmem:[#allocation3 + $0x260] sm:$0xff] %vm2589, %v4048
  %4143 = vst.msk [vmem:[#allocation3 + $0x268] sm:$0x3] %vm4067, %v4049
  %4144 = vst.msk [vmem:[#allocation3 + $0x270] sm:$0xff] %vm2589, %v4050
  %4145 = vst.msk [vmem:[#allocation3 + $0x278] sm:$0xff] %vm2589, %v4051
  %4146 = vst.msk [vmem:[#allocation3 + $0x280] sm:$0x3] %vm4067, %v4052
  %4147 = vst.msk [vmem:[#allocation3 + $0x288] sm:$0xff] %vm2589, %v4053
  %4148 = vst.msk [vmem:[#allocation3 + $0x290] sm:$0xff] %vm2589, %v4054
  %4149 = vst.msk [vmem:[#allocation3 + $0x298] sm:$0x3] %vm4067, %v4055
  %4150 = vst.msk [vmem:[#allocation3 + $0x2a0] sm:$0xff] %vm2589, %v4056
  %4151 = vst.msk [vmem:[#allocation3 + $0x2a8] sm:$0xff] %vm2589, %v4057
  %4152 = vst.msk [vmem:[#allocation3 + $0x2b0] sm:$0x3] %vm4067, %v4058
  %4153 = vst.msk [vmem:[#allocation3 + $0x2b8] sm:$0xff] %vm2589, %v4059
  %4154 = vst.msk [vmem:[#allocation3 + $0x2c0] sm:$0xff] %vm2589, %v4060
  %4155 = vst.msk [vmem:[#allocation3 + $0x2c8] sm:$0x3] %vm4067, %v4061
  %4156 = vst.msk [vmem:[#allocation3 + $0x2d0] sm:$0xff] %vm2589, %v4062
  %4157 = vst.msk [vmem:[#allocation3 + $0x2d8] sm:$0xff] %vm2589, %v4063
  %4158 = vst.msk [vmem:[#allocation3 + $0x2e0] sm:$0x3] %vm4067, %v4064
  %4159 = vst.msk [vmem:[#allocation3 + $0x2e8] sm:$0xff] %vm2589, 0.0
  %4160 = vst.msk [vmem:[#allocation3 + $0x2f0] sm:$0xff] %vm2589, 0.0
  %4161 = vst.msk [vmem:[#allocation3 + $0x2f8] sm:$0x3] %vm4067, 0.0
  %v4162 = vld [vmem:[#allocation3] sm:$0xff]
  %v4163 = vld [vmem:[#allocation3 + $0x8] sm:$0xff]
  %v4164 = vld [vmem:[#allocation3 + $0x18] sm:$0xff]
  %v4165 = vld [vmem:[#allocation3 + $0x20] sm:$0xff]
  %v4166 = vld [vmem:[#allocation3 + $0x30] sm:$0xff]
  %v4167 = vld [vmem:[#allocation3 + $0x38] sm:$0xff]
  %v4168 = vld [vmem:[#allocation3 + $0x48] sm:$0xff]
  %v4169 = vld [vmem:[#allocation3 + $0x50] sm:$0xff]
  %v4170 = vld [vmem:[#allocation3 + $0x60] sm:$0xff]
  %v4171 = vld [vmem:[#allocation3 + $0x68] sm:$0xff]
  %v4172 = vld [vmem:[#allocation3 + $0x78] sm:$0xff]
  %v4173 = vld [vmem:[#allocation3 + $0x80] sm:$0xff]
  %v4174 = vld [vmem:[#allocation3 + $0x90] sm:$0xff]
  %v4175 = vld [vmem:[#allocation3 + $0x98] sm:$0xff]
  %v4176 = vld [vmem:[#allocation3 + $0xa8] sm:$0xff]
  %v4177 = vld [vmem:[#allocation3 + $0xb0] sm:$0xff]
  %v4178 = vld [vmem:[#allocation3 + $0xc0] sm:$0xff]
  %v4179 = vld [vmem:[#allocation3 + $0xc8] sm:$0xff]
  %v4180 = vld [vmem:[#allocation3 + $0xd8] sm:$0xff]
  %v4181 = vld [vmem:[#allocation3 + $0xe0] sm:$0xff]
  %v4182 = vld [vmem:[#allocation3 + $0xf0] sm:$0xff]
  %v4183 = vld [vmem:[#allocation3 + $0xf8] sm:$0xff]
  %v4184 = vld [vmem:[#allocation3 + $0x108] sm:$0xff]
  %v4185 = vld [vmem:[#allocation3 + $0x110] sm:$0xff]
  %v4186 = vld [vmem:[#allocation3 + $0x120] sm:$0xff]
  %v4187 = vld [vmem:[#allocation3 + $0x128] sm:$0xff]
  %v4188 = vld [vmem:[#allocation3 + $0x138] sm:$0xff]
  %v4189 = vld [vmem:[#allocation3 + $0x140] sm:$0xff]
  %v4190 = vld [vmem:[#allocation3 + $0x180] sm:$0xff]
  %v4191 = vld [vmem:[#allocation3 + $0x188] sm:$0xff]
  %v4192 = vld [vmem:[#allocation3 + $0x198] sm:$0xff]
  %v4193 = vld [vmem:[#allocation3 + $0x1a0] sm:$0xff]
  %v4194 = vld [vmem:[#allocation3 + $0x1b0] sm:$0xff]
  %v4195 = vld [vmem:[#allocation3 + $0x1b8] sm:$0xff]
  %v4196 = vld [vmem:[#allocation3 + $0x1c8] sm:$0xff]
  %v4197 = vld [vmem:[#allocation3 + $0x1d0] sm:$0xff]
  %v4198 = vld [vmem:[#allocation3 + $0x1e0] sm:$0xff]
  %v4199 = vld [vmem:[#allocation3 + $0x1e8] sm:$0xff]
  %v4200 = vld [vmem:[#allocation3 + $0x1f8] sm:$0xff]
  %v4201 = vld [vmem:[#allocation3 + $0x200] sm:$0xff]
  %v4202 = vld [vmem:[#allocation3 + $0x210] sm:$0xff]
  %v4203 = vld [vmem:[#allocation3 + $0x218] sm:$0xff]
  %v4204 = vld [vmem:[#allocation3 + $0x228] sm:$0xff]
  %v4205 = vld [vmem:[#allocation3 + $0x230] sm:$0xff]
  %v4206 = vld [vmem:[#allocation3 + $0x240] sm:$0xff]
  %v4207 = vld [vmem:[#allocation3 + $0x248] sm:$0xff]
  %v4208 = vld [vmem:[#allocation3 + $0x258] sm:$0xff]
  %v4209 = vld [vmem:[#allocation3 + $0x260] sm:$0xff]
  %v4210 = vld [vmem:[#allocation3 + $0x270] sm:$0xff]
  %v4211 = vld [vmem:[#allocation3 + $0x278] sm:$0xff]
  %v4212 = vld [vmem:[#allocation3 + $0x288] sm:$0xff]
  %v4213 = vld [vmem:[#allocation3 + $0x290] sm:$0xff]
  %v4214 = vld [vmem:[#allocation3 + $0x2a0] sm:$0xff]
  %v4215 = vld [vmem:[#allocation3 + $0x2a8] sm:$0xff]
  %v4216 = vld [vmem:[#allocation3 + $0x2b8] sm:$0xff]
  %v4217 = vld [vmem:[#allocation3 + $0x2c0] sm:$0xff]
  %v4218 = vld [vmem:[#allocation3 + $0x1] sm:$0xff]
  %v4219 = vld [vmem:[#allocation3 + $0x9] sm:$0xff]
  %v4220 = vld [vmem:[#allocation3 + $0x19] sm:$0xff]
  %v4221 = vld [vmem:[#allocation3 + $0x21] sm:$0xff]
  %v4222 = vld [vmem:[#allocation3 + $0x31] sm:$0xff]
  %v4223 = vld [vmem:[#allocation3 + $0x39] sm:$0xff]
  %v4224 = vld [vmem:[#allocation3 + $0x49] sm:$0xff]
  %v4225 = vld [vmem:[#allocation3 + $0x51] sm:$0xff]
  %v4226 = vld [vmem:[#allocation3 + $0x61] sm:$0xff]
  %v4227 = vld [vmem:[#allocation3 + $0x69] sm:$0xff]
  %v4228 = vld [vmem:[#allocation3 + $0x79] sm:$0xff]
  %v4229 = vld [vmem:[#allocation3 + $0x81] sm:$0xff]
  %v4230 = vld [vmem:[#allocation3 + $0x91] sm:$0xff]
  %v4231 = vld [vmem:[#allocation3 + $0x99] sm:$0xff]
  %v4232 = vld [vmem:[#allocation3 + $0xa9] sm:$0xff]
  %v4233 = vld [vmem:[#allocation3 + $0xb1] sm:$0xff]
  %v4234 = vld [vmem:[#allocation3 + $0xc1] sm:$0xff]
  %v4235 = vld [vmem:[#allocation3 + $0xc9] sm:$0xff]
  %v4236 = vld [vmem:[#allocation3 + $0xd9] sm:$0xff]
  %v4237 = vld [vmem:[#allocation3 + $0xe1] sm:$0xff]
  %v4238 = vld [vmem:[#allocation3 + $0xf1] sm:$0xff]
  %v4239 = vld [vmem:[#allocation3 + $0xf9] sm:$0xff]
  %v4240 = vld [vmem:[#allocation3 + $0x109] sm:$0xff]
  %v4241 = vld [vmem:[#allocation3 + $0x111] sm:$0xff]
  %v4242 = vld [vmem:[#allocation3 + $0x121] sm:$0xff]
  %v4243 = vld [vmem:[#allocation3 + $0x129] sm:$0xff]
  %v4244 = vld [vmem:[#allocation3 + $0x139] sm:$0xff]
  %v4245 = vld [vmem:[#allocation3 + $0x141] sm:$0xff]
  %v4246 = vld [vmem:[#allocation3 + $0x181] sm:$0xff]
  %v4247 = vld [vmem:[#allocation3 + $0x189] sm:$0xff]
  %v4248 = vld [vmem:[#allocation3 + $0x199] sm:$0xff]
  %v4249 = vld [vmem:[#allocation3 + $0x1a1] sm:$0xff]
  %v4250 = vld [vmem:[#allocation3 + $0x1b1] sm:$0xff]
  %v4251 = vld [vmem:[#allocation3 + $0x1b9] sm:$0xff]
  %v4252 = vld [vmem:[#allocation3 + $0x1c9] sm:$0xff]
  %v4253 = vld [vmem:[#allocation3 + $0x1d1] sm:$0xff]
  %v4254 = vld [vmem:[#allocation3 + $0x1e1] sm:$0xff]
  %v4255 = vld [vmem:[#allocation3 + $0x1e9] sm:$0xff]
  %v4256 = vld [vmem:[#allocation3 + $0x1f9] sm:$0xff]
  %v4257 = vld [vmem:[#allocation3 + $0x201] sm:$0xff]
  %v4258 = vld [vmem:[#allocation3 + $0x211] sm:$0xff]
  %v4259 = vld [vmem:[#allocation3 + $0x219] sm:$0xff]
  %v4260 = vld [vmem:[#allocation3 + $0x229] sm:$0xff]
  %v4261 = vld [vmem:[#allocation3 + $0x231] sm:$0xff]
  %v4262 = vld [vmem:[#allocation3 + $0x241] sm:$0xff]
  %v4263 = vld [vmem:[#allocation3 + $0x249] sm:$0xff]
  %v4264 = vld [vmem:[#allocation3 + $0x259] sm:$0xff]
  %v4265 = vld [vmem:[#allocation3 + $0x261] sm:$0xff]
  %v4266 = vld [vmem:[#allocation3 + $0x271] sm:$0xff]
  %v4267 = vld [vmem:[#allocation3 + $0x279] sm:$0xff]
  %v4268 = vld [vmem:[#allocation3 + $0x289] sm:$0xff]
  %v4269 = vld [vmem:[#allocation3 + $0x291] sm:$0xff]
  %v4270 = vld [vmem:[#allocation3 + $0x2a1] sm:$0xff]
  %v4271 = vld [vmem:[#allocation3 + $0x2a9] sm:$0xff]
  %v4272 = vld [vmem:[#allocation3 + $0x2b9] sm:$0xff]
  %v4273 = vld [vmem:[#allocation3 + $0x2c1] sm:$0xff]
  %v4274 = vld [vmem:[#allocation3 + $0x2] sm:$0xff]
  %v4275 = vld [vmem:[#allocation3 + $0xa] sm:$0xff]
  %v4276 = vld [vmem:[#allocation3 + $0x1a] sm:$0xff]
  %v4277 = vld [vmem:[#allocation3 + $0x22] sm:$0xff]
  %v4278 = vld [vmem:[#allocation3 + $0x32] sm:$0xff]
  %v4279 = vld [vmem:[#allocation3 + $0x3a] sm:$0xff]
  %v4280 = vld [vmem:[#allocation3 + $0x4a] sm:$0xff]
  %v4281 = vld [vmem:[#allocation3 + $0x52] sm:$0xff]
  %v4282 = vld [vmem:[#allocation3 + $0x62] sm:$0xff]
  %v4283 = vld [vmem:[#allocation3 + $0x6a] sm:$0xff]
  %v4284 = vld [vmem:[#allocation3 + $0x7a] sm:$0xff]
  %v4285 = vld [vmem:[#allocation3 + $0x82] sm:$0xff]
  %v4286 = vld [vmem:[#allocation3 + $0x92] sm:$0xff]
  %v4287 = vld [vmem:[#allocation3 + $0x9a] sm:$0xff]
  %v4288 = vld [vmem:[#allocation3 + $0xaa] sm:$0xff]
  %v4289 = vld [vmem:[#allocation3 + $0xb2] sm:$0xff]
  %v4290 = vld [vmem:[#allocation3 + $0xc2] sm:$0xff]
  %v4291 = vld [vmem:[#allocation3 + $0xca] sm:$0xff]
  %v4292 = vld [vmem:[#allocation3 + $0xda] sm:$0xff]
  %v4293 = vld [vmem:[#allocation3 + $0xe2] sm:$0xff]
  %v4294 = vld [vmem:[#allocation3 + $0xf2] sm:$0xff]
  %v4295 = vld [vmem:[#allocation3 + $0xfa] sm:$0xff]
  %v4296 = vld [vmem:[#allocation3 + $0x10a] sm:$0xff]
  %v4297 = vld [vmem:[#allocation3 + $0x112] sm:$0xff]
  %v4298 = vld [vmem:[#allocation3 + $0x122] sm:$0xff]
  %v4299 = vld [vmem:[#allocation3 + $0x12a] sm:$0xff]
  %v4300 = vld [vmem:[#allocation3 + $0x13a] sm:$0xff]
  %v4301 = vld [vmem:[#allocation3 + $0x142] sm:$0xff]
  %v4302 = vld [vmem:[#allocation3 + $0x182] sm:$0xff]
  %v4303 = vld [vmem:[#allocation3 + $0x18a] sm:$0xff]
  %v4304 = vld [vmem:[#allocation3 + $0x19a] sm:$0xff]
  %v4305 = vld [vmem:[#allocation3 + $0x1a2] sm:$0xff]
  %v4306 = vld [vmem:[#allocation3 + $0x1b2] sm:$0xff]
  %v4307 = vld [vmem:[#allocation3 + $0x1ba] sm:$0xff]
  %v4308 = vld [vmem:[#allocation3 + $0x1ca] sm:$0xff]
  %v4309 = vld [vmem:[#allocation3 + $0x1d2] sm:$0xff]
  %v4310 = vld [vmem:[#allocation3 + $0x1e2] sm:$0xff]
  %v4311 = vld [vmem:[#allocation3 + $0x1ea] sm:$0xff]
  %v4312 = vld [vmem:[#allocation3 + $0x1fa] sm:$0xff]
  %v4313 = vld [vmem:[#allocation3 + $0x202] sm:$0xff]
  %v4314 = vld [vmem:[#allocation3 + $0x212] sm:$0xff]
  %v4315 = vld [vmem:[#allocation3 + $0x21a] sm:$0xff]
  %v4316 = vld [vmem:[#allocation3 + $0x22a] sm:$0xff]
  %v4317 = vld [vmem:[#allocation3 + $0x232] sm:$0xff]
  %v4318 = vld [vmem:[#allocation3 + $0x242] sm:$0xff]
  %v4319 = vld [vmem:[#allocation3 + $0x24a] sm:$0xff]
  %v4320 = vld [vmem:[#allocation3 + $0x25a] sm:$0xff]
  %v4321 = vld [vmem:[#allocation3 + $0x262] sm:$0xff]
  %v4322 = vld [vmem:[#allocation3 + $0x272] sm:$0xff]
  %v4323 = vld [vmem:[#allocation3 + $0x27a] sm:$0xff]
  %v4324 = vld [vmem:[#allocation3 + $0x28a] sm:$0xff]
  %v4325 = vld [vmem:[#allocation3 + $0x292] sm:$0xff]
  %v4326 = vld [vmem:[#allocation3 + $0x2a2] sm:$0xff]
  %v4327 = vld [vmem:[#allocation3 + $0x2aa] sm:$0xff]
  %v4328 = vld [vmem:[#allocation3 + $0x2ba] sm:$0xff]
  %v4329 = vld [vmem:[#allocation3 + $0x2c2] sm:$0xff]
  %s4330 = scalar_lea.vmem [#allocation3], 24
  %v4331 = vld [vmem:[%s4330] sm:$0xff]
  %v4332 = vld [vmem:[%s4330 + $0x8] sm:$0xff]
  %v4333 = vld [vmem:[%s4330 + $0x18] sm:$0xff]
  %v4334 = vld [vmem:[%s4330 + $0x20] sm:$0xff]
  %v4335 = vld [vmem:[%s4330 + $0x30] sm:$0xff]
  %v4336 = vld [vmem:[%s4330 + $0x38] sm:$0xff]
  %v4337 = vld [vmem:[%s4330 + $0x48] sm:$0xff]
  %v4338 = vld [vmem:[%s4330 + $0x50] sm:$0xff]
  %v4339 = vld [vmem:[%s4330 + $0x60] sm:$0xff]
  %v4340 = vld [vmem:[%s4330 + $0x68] sm:$0xff]
  %v4341 = vld [vmem:[%s4330 + $0x78] sm:$0xff]
  %v4342 = vld [vmem:[%s4330 + $0x80] sm:$0xff]
  %v4343 = vld [vmem:[%s4330 + $0x90] sm:$0xff]
  %v4344 = vld [vmem:[%s4330 + $0x98] sm:$0xff]
  %v4345 = vld [vmem:[%s4330 + $0xa8] sm:$0xff]
  %v4346 = vld [vmem:[%s4330 + $0xb0] sm:$0xff]
  %v4347 = vld [vmem:[%s4330 + $0xc0] sm:$0xff]
  %v4348 = vld [vmem:[%s4330 + $0xc8] sm:$0xff]
  %v4349 = vld [vmem:[%s4330 + $0xd8] sm:$0xff]
  %v4350 = vld [vmem:[%s4330 + $0xe0] sm:$0xff]
  %v4351 = vld [vmem:[%s4330 + $0xf0] sm:$0xff]
  %v4352 = vld [vmem:[%s4330 + $0xf8] sm:$0xff]
  %v4353 = vld [vmem:[%s4330 + $0x108] sm:$0xff]
  %v4354 = vld [vmem:[%s4330 + $0x110] sm:$0xff]
  %v4355 = vld [vmem:[%s4330 + $0x120] sm:$0xff]
  %v4356 = vld [vmem:[%s4330 + $0x128] sm:$0xff]
  %v4357 = vld [vmem:[%s4330 + $0x138] sm:$0xff]
  %v4358 = vld [vmem:[%s4330 + $0x140] sm:$0xff]
  %v4359 = vld [vmem:[%s4330 + $0x180] sm:$0xff]
  %v4360 = vld [vmem:[%s4330 + $0x188] sm:$0xff]
  %v4361 = vld [vmem:[%s4330 + $0x198] sm:$0xff]
  %v4362 = vld [vmem:[%s4330 + $0x1a0] sm:$0xff]
  %v4363 = vld [vmem:[%s4330 + $0x1b0] sm:$0xff]
  %v4364 = vld [vmem:[%s4330 + $0x1b8] sm:$0xff]
  %v4365 = vld [vmem:[%s4330 + $0x1c8] sm:$0xff]
  %v4366 = vld [vmem:[%s4330 + $0x1d0] sm:$0xff]
  %v4367 = vld [vmem:[%s4330 + $0x1e0] sm:$0xff]
  %v4368 = vld [vmem:[%s4330 + $0x1e8] sm:$0xff]
  %v4369 = vld [vmem:[%s4330 + $0x1f8] sm:$0xff]
  %v4370 = vld [vmem:[%s4330 + $0x200] sm:$0xff]
  %v4371 = vld [vmem:[%s4330 + $0x210] sm:$0xff]
  %v4372 = vld [vmem:[%s4330 + $0x218] sm:$0xff]
  %v4373 = vld [vmem:[%s4330 + $0x228] sm:$0xff]
  %v4374 = vld [vmem:[%s4330 + $0x230] sm:$0xff]
  %v4375 = vld [vmem:[%s4330 + $0x240] sm:$0xff]
  %v4376 = vld [vmem:[%s4330 + $0x248] sm:$0xff]
  %v4377 = vld [vmem:[%s4330 + $0x258] sm:$0xff]
  %v4378 = vld [vmem:[%s4330 + $0x260] sm:$0xff]
  %v4379 = vld [vmem:[%s4330 + $0x270] sm:$0xff]
  %v4380 = vld [vmem:[%s4330 + $0x278] sm:$0xff]
  %v4381 = vld [vmem:[%s4330 + $0x288] sm:$0xff]
  %v4382 = vld [vmem:[%s4330 + $0x290] sm:$0xff]
  %v4383 = vld [vmem:[%s4330 + $0x2a0] sm:$0xff]
  %v4384 = vld [vmem:[%s4330 + $0x2a8] sm:$0xff]
  %v4385 = vld [vmem:[%s4330 + $0x2b8] sm:$0xff]
  %v4386 = vld [vmem:[%s4330 + $0x2c0] sm:$0xff]
  %v4387 = vld [vmem:[%s4330 + $0x1] sm:$0xff]
  %v4388 = vld [vmem:[%s4330 + $0x9] sm:$0xff]
  %v4389 = vld [vmem:[%s4330 + $0x19] sm:$0xff]
  %v4390 = vld [vmem:[%s4330 + $0x21] sm:$0xff]
  %v4391 = vld [vmem:[%s4330 + $0x31] sm:$0xff]
  %v4392 = vld [vmem:[%s4330 + $0x39] sm:$0xff]
  %v4393 = vld [vmem:[%s4330 + $0x49] sm:$0xff]
  %v4394 = vld [vmem:[%s4330 + $0x51] sm:$0xff]
  %v4395 = vld [vmem:[%s4330 + $0x61] sm:$0xff]
  %v4396 = vld [vmem:[%s4330 + $0x69] sm:$0xff]
  %v4397 = vld [vmem:[%s4330 + $0x79] sm:$0xff]
  %v4398 = vld [vmem:[%s4330 + $0x81] sm:$0xff]
  %v4399 = vld [vmem:[%s4330 + $0x91] sm:$0xff]
  %v4400 = vld [vmem:[%s4330 + $0x99] sm:$0xff]
  %v4401 = vld [vmem:[%s4330 + $0xa9] sm:$0xff]
  %v4402 = vld [vmem:[%s4330 + $0xb1] sm:$0xff]
  %v4403 = vld [vmem:[%s4330 + $0xc1] sm:$0xff]
  %v4404 = vld [vmem:[%s4330 + $0xc9] sm:$0xff]
  %v4405 = vld [vmem:[%s4330 + $0xd9] sm:$0xff]
  %v4406 = vld [vmem:[%s4330 + $0xe1] sm:$0xff]
  %v4407 = vld [vmem:[%s4330 + $0xf1] sm:$0xff]
  %v4408 = vld [vmem:[%s4330 + $0xf9] sm:$0xff]
  %v4409 = vld [vmem:[%s4330 + $0x109] sm:$0xff]
  %v4410 = vld [vmem:[%s4330 + $0x111] sm:$0xff]
  %v4411 = vld [vmem:[%s4330 + $0x121] sm:$0xff]
  %v4412 = vld [vmem:[%s4330 + $0x129] sm:$0xff]
  %v4413 = vld [vmem:[%s4330 + $0x139] sm:$0xff]
  %v4414 = vld [vmem:[%s4330 + $0x141] sm:$0xff]
  %v4415 = vld [vmem:[%s4330 + $0x181] sm:$0xff]
  %v4416 = vld [vmem:[%s4330 + $0x189] sm:$0xff]
  %v4417 = vld [vmem:[%s4330 + $0x199] sm:$0xff]
  %v4418 = vld [vmem:[%s4330 + $0x1a1] sm:$0xff]
  %v4419 = vld [vmem:[%s4330 + $0x1b1] sm:$0xff]
  %v4420 = vld [vmem:[%s4330 + $0x1b9] sm:$0xff]
  %v4421 = vld [vmem:[%s4330 + $0x1c9] sm:$0xff]
  %v4422 = vld [vmem:[%s4330 + $0x1d1] sm:$0xff]
  %v4423 = vld [vmem:[%s4330 + $0x1e1] sm:$0xff]
  %v4424 = vld [vmem:[%s4330 + $0x1e9] sm:$0xff]
  %v4425 = vld [vmem:[%s4330 + $0x1f9] sm:$0xff]
  %v4426 = vld [vmem:[%s4330 + $0x201] sm:$0xff]
  %v4427 = vld [vmem:[%s4330 + $0x211] sm:$0xff]
  %v4428 = vld [vmem:[%s4330 + $0x219] sm:$0xff]
  %v4429 = vld [vmem:[%s4330 + $0x229] sm:$0xff]
  %v4430 = vld [vmem:[%s4330 + $0x231] sm:$0xff]
  %v4431 = vld [vmem:[%s4330 + $0x241] sm:$0xff]
  %v4432 = vld [vmem:[%s4330 + $0x249] sm:$0xff]
  %v4433 = vld [vmem:[%s4330 + $0x259] sm:$0xff]
  %v4434 = vld [vmem:[%s4330 + $0x261] sm:$0xff]
  %v4435 = vld [vmem:[%s4330 + $0x271] sm:$0xff]
  %v4436 = vld [vmem:[%s4330 + $0x279] sm:$0xff]
  %v4437 = vld [vmem:[%s4330 + $0x289] sm:$0xff]
  %v4438 = vld [vmem:[%s4330 + $0x291] sm:$0xff]
  %v4439 = vld [vmem:[%s4330 + $0x2a1] sm:$0xff]
  %v4440 = vld [vmem:[%s4330 + $0x2a9] sm:$0xff]
  %v4441 = vld [vmem:[%s4330 + $0x2b9] sm:$0xff]
  %v4442 = vld [vmem:[%s4330 + $0x2c1] sm:$0xff]
  %v4443 = vld [vmem:[%s4330 + $0x2] sm:$0xff]
  %v4444 = vld [vmem:[%s4330 + $0xa] sm:$0xff]
  %v4445 = vld [vmem:[%s4330 + $0x1a] sm:$0xff]
  %v4446 = vld [vmem:[%s4330 + $0x22] sm:$0xff]
  %v4447 = vld [vmem:[%s4330 + $0x32] sm:$0xff]
  %v4448 = vld [vmem:[%s4330 + $0x3a] sm:$0xff]
  %v4449 = vld [vmem:[%s4330 + $0x4a] sm:$0xff]
  %v4450 = vld [vmem:[%s4330 + $0x52] sm:$0xff]
  %v4451 = vld [vmem:[%s4330 + $0x62] sm:$0xff]
  %v4452 = vld [vmem:[%s4330 + $0x6a] sm:$0xff]
  %v4453 = vld [vmem:[%s4330 + $0x7a] sm:$0xff]
  %v4454 = vld [vmem:[%s4330 + $0x82] sm:$0xff]
  %v4455 = vld [vmem:[%s4330 + $0x92] sm:$0xff]
  %v4456 = vld [vmem:[%s4330 + $0x9a] sm:$0xff]
  %v4457 = vld [vmem:[%s4330 + $0xaa] sm:$0xff]
  %v4458 = vld [vmem:[%s4330 + $0xb2] sm:$0xff]
  %v4459 = vld [vmem:[%s4330 + $0xc2] sm:$0xff]
  %v4460 = vld [vmem:[%s4330 + $0xca] sm:$0xff]
  %v4461 = vld [vmem:[%s4330 + $0xda] sm:$0xff]
  %v4462 = vld [vmem:[%s4330 + $0xe2] sm:$0xff]
  %v4463 = vld [vmem:[%s4330 + $0xf2] sm:$0xff]
  %v4464 = vld [vmem:[%s4330 + $0xfa] sm:$0xff]
  %v4465 = vld [vmem:[%s4330 + $0x10a] sm:$0xff]
  %v4466 = vld [vmem:[%s4330 + $0x112] sm:$0xff]
  %v4467 = vld [vmem:[%s4330 + $0x122] sm:$0xff]
  %v4468 = vld [vmem:[%s4330 + $0x12a] sm:$0xff]
  %v4469 = vld [vmem:[%s4330 + $0x13a] sm:$0xff]
  %v4470 = vld [vmem:[%s4330 + $0x142] sm:$0xff]
  %v4471 = vld [vmem:[%s4330 + $0x182] sm:$0xff]
  %v4472 = vld [vmem:[%s4330 + $0x18a] sm:$0xff]
  %v4473 = vld [vmem:[%s4330 + $0x19a] sm:$0xff]
  %v4474 = vld [vmem:[%s4330 + $0x1a2] sm:$0xff]
  %v4475 = vld [vmem:[%s4330 + $0x1b2] sm:$0xff]
  %v4476 = vld [vmem:[%s4330 + $0x1ba] sm:$0xff]
  %v4477 = vld [vmem:[%s4330 + $0x1ca] sm:$0xff]
  %v4478 = vld [vmem:[%s4330 + $0x1d2] sm:$0xff]
  %v4479 = vld [vmem:[%s4330 + $0x1e2] sm:$0xff]
  %v4480 = vld [vmem:[%s4330 + $0x1ea] sm:$0xff]
  %v4481 = vld [vmem:[%s4330 + $0x1fa] sm:$0xff]
  %v4482 = vld [vmem:[%s4330 + $0x202] sm:$0xff]
  %v4483 = vld [vmem:[%s4330 + $0x212] sm:$0xff]
  %v4484 = vld [vmem:[%s4330 + $0x21a] sm:$0xff]
  %v4485 = vld [vmem:[%s4330 + $0x22a] sm:$0xff]
  %v4486 = vld [vmem:[%s4330 + $0x232] sm:$0xff]
  %v4487 = vld [vmem:[%s4330 + $0x242] sm:$0xff]
  %v4488 = vld [vmem:[%s4330 + $0x24a] sm:$0xff]
  %v4489 = vld [vmem:[%s4330 + $0x25a] sm:$0xff]
  %v4490 = vld [vmem:[%s4330 + $0x262] sm:$0xff]
  %v4491 = vld [vmem:[%s4330 + $0x272] sm:$0xff]
  %v4492 = vld [vmem:[%s4330 + $0x27a] sm:$0xff]
  %v4493 = vld [vmem:[%s4330 + $0x28a] sm:$0xff]
  %v4494 = vld [vmem:[%s4330 + $0x292] sm:$0xff]
  %v4495 = vld [vmem:[%s4330 + $0x2a2] sm:$0xff]
  %v4496 = vld [vmem:[%s4330 + $0x2aa] sm:$0xff]
  %v4497 = vld [vmem:[%s4330 + $0x2ba] sm:$0xff]
  %v4498 = vld [vmem:[%s4330 + $0x2c2] sm:$0xff]
  %s4499 = scalar_lea.vmem [#allocation3], 48
  %v4500 = vld [vmem:[%s4499] sm:$0xff]
  %v4501 = vld [vmem:[%s4499 + $0x8] sm:$0xff]
  %v4502 = vld [vmem:[%s4499 + $0x18] sm:$0xff]
  %v4503 = vld [vmem:[%s4499 + $0x20] sm:$0xff]
  %v4504 = vld [vmem:[%s4499 + $0x30] sm:$0xff]
  %v4505 = vld [vmem:[%s4499 + $0x38] sm:$0xff]
  %v4506 = vld [vmem:[%s4499 + $0x48] sm:$0xff]
  %v4507 = vld [vmem:[%s4499 + $0x50] sm:$0xff]
  %v4508 = vld [vmem:[%s4499 + $0x60] sm:$0xff]
  %v4509 = vld [vmem:[%s4499 + $0x68] sm:$0xff]
  %v4510 = vld [vmem:[%s4499 + $0x78] sm:$0xff]
  %v4511 = vld [vmem:[%s4499 + $0x80] sm:$0xff]
  %v4512 = vld [vmem:[%s4499 + $0x90] sm:$0xff]
  %v4513 = vld [vmem:[%s4499 + $0x98] sm:$0xff]
  %v4514 = vld [vmem:[%s4499 + $0xa8] sm:$0xff]
  %v4515 = vld [vmem:[%s4499 + $0xb0] sm:$0xff]
  %v4516 = vld [vmem:[%s4499 + $0xc0] sm:$0xff]
  %v4517 = vld [vmem:[%s4499 + $0xc8] sm:$0xff]
  %v4518 = vld [vmem:[%s4499 + $0xd8] sm:$0xff]
  %v4519 = vld [vmem:[%s4499 + $0xe0] sm:$0xff]
  %v4520 = vld [vmem:[%s4499 + $0xf0] sm:$0xff]
  %v4521 = vld [vmem:[%s4499 + $0xf8] sm:$0xff]
  %v4522 = vld [vmem:[%s4499 + $0x108] sm:$0xff]
  %v4523 = vld [vmem:[%s4499 + $0x110] sm:$0xff]
  %v4524 = vld [vmem:[%s4499 + $0x120] sm:$0xff]
  %v4525 = vld [vmem:[%s4499 + $0x128] sm:$0xff]
  %v4526 = vld [vmem:[%s4499 + $0x138] sm:$0xff]
  %v4527 = vld [vmem:[%s4499 + $0x140] sm:$0xff]
  %v4528 = vld [vmem:[%s4499 + $0x180] sm:$0xff]
  %v4529 = vld [vmem:[%s4499 + $0x188] sm:$0xff]
  %v4530 = vld [vmem:[%s4499 + $0x198] sm:$0xff]
  %v4531 = vld [vmem:[%s4499 + $0x1a0] sm:$0xff]
  %v4532 = vld [vmem:[%s4499 + $0x1b0] sm:$0xff]
  %v4533 = vld [vmem:[%s4499 + $0x1b8] sm:$0xff]
  %v4534 = vld [vmem:[%s4499 + $0x1c8] sm:$0xff]
  %v4535 = vld [vmem:[%s4499 + $0x1d0] sm:$0xff]
  %v4536 = vld [vmem:[%s4499 + $0x1e0] sm:$0xff]
  %v4537 = vld [vmem:[%s4499 + $0x1e8] sm:$0xff]
  %v4538 = vld [vmem:[%s4499 + $0x1f8] sm:$0xff]
  %v4539 = vld [vmem:[%s4499 + $0x200] sm:$0xff]
  %v4540 = vld [vmem:[%s4499 + $0x210] sm:$0xff]
  %v4541 = vld [vmem:[%s4499 + $0x218] sm:$0xff]
  %v4542 = vld [vmem:[%s4499 + $0x228] sm:$0xff]
  %v4543 = vld [vmem:[%s4499 + $0x230] sm:$0xff]
  %v4544 = vld [vmem:[%s4499 + $0x240] sm:$0xff]
  %v4545 = vld [vmem:[%s4499 + $0x248] sm:$0xff]
  %v4546 = vld [vmem:[%s4499 + $0x258] sm:$0xff]
  %v4547 = vld [vmem:[%s4499 + $0x260] sm:$0xff]
  %v4548 = vld [vmem:[%s4499 + $0x270] sm:$0xff]
  %v4549 = vld [vmem:[%s4499 + $0x278] sm:$0xff]
  %v4550 = vld [vmem:[%s4499 + $0x288] sm:$0xff]
  %v4551 = vld [vmem:[%s4499 + $0x290] sm:$0xff]
  %v4552 = vld [vmem:[%s4499 + $0x2a0] sm:$0xff]
  %v4553 = vld [vmem:[%s4499 + $0x2a8] sm:$0xff]
  %v4554 = vld [vmem:[%s4499 + $0x2b8] sm:$0xff]
  %v4555 = vld [vmem:[%s4499 + $0x2c0] sm:$0xff]
  %v4556 = vld [vmem:[%s4499 + $0x1] sm:$0xff]
  %v4557 = vld [vmem:[%s4499 + $0x9] sm:$0xff]
  %v4558 = vld [vmem:[%s4499 + $0x19] sm:$0xff]
  %v4559 = vld [vmem:[%s4499 + $0x21] sm:$0xff]
  %v4560 = vld [vmem:[%s4499 + $0x31] sm:$0xff]
  %v4561 = vld [vmem:[%s4499 + $0x39] sm:$0xff]
  %v4562 = vld [vmem:[%s4499 + $0x49] sm:$0xff]
  %v4563 = vld [vmem:[%s4499 + $0x51] sm:$0xff]
  %v4564 = vld [vmem:[%s4499 + $0x61] sm:$0xff]
  %v4565 = vld [vmem:[%s4499 + $0x69] sm:$0xff]
  %v4566 = vld [vmem:[%s4499 + $0x79] sm:$0xff]
  %v4567 = vld [vmem:[%s4499 + $0x81] sm:$0xff]
  %v4568 = vld [vmem:[%s4499 + $0x91] sm:$0xff]
  %v4569 = vld [vmem:[%s4499 + $0x99] sm:$0xff]
  %v4570 = vld [vmem:[%s4499 + $0xa9] sm:$0xff]
  %v4571 = vld [vmem:[%s4499 + $0xb1] sm:$0xff]
  %v4572 = vld [vmem:[%s4499 + $0xc1] sm:$0xff]
  %v4573 = vld [vmem:[%s4499 + $0xc9] sm:$0xff]
  %v4574 = vld [vmem:[%s4499 + $0xd9] sm:$0xff]
  %v4575 = vld [vmem:[%s4499 + $0xe1] sm:$0xff]
  %v4576 = vld [vmem:[%s4499 + $0xf1] sm:$0xff]
  %v4577 = vld [vmem:[%s4499 + $0xf9] sm:$0xff]
  %v4578 = vld [vmem:[%s4499 + $0x109] sm:$0xff]
  %v4579 = vld [vmem:[%s4499 + $0x111] sm:$0xff]
  %v4580 = vld [vmem:[%s4499 + $0x121] sm:$0xff]
  %v4581 = vld [vmem:[%s4499 + $0x129] sm:$0xff]
  %v4582 = vld [vmem:[%s4499 + $0x139] sm:$0xff]
  %v4583 = vld [vmem:[%s4499 + $0x141] sm:$0xff]
  %v4584 = vld [vmem:[%s4499 + $0x181] sm:$0xff]
  %v4585 = vld [vmem:[%s4499 + $0x189] sm:$0xff]
  %v4586 = vld [vmem:[%s4499 + $0x199] sm:$0xff]
  %v4587 = vld [vmem:[%s4499 + $0x1a1] sm:$0xff]
  %v4588 = vld [vmem:[%s4499 + $0x1b1] sm:$0xff]
  %v4589 = vld [vmem:[%s4499 + $0x1b9] sm:$0xff]
  %v4590 = vld [vmem:[%s4499 + $0x1c9] sm:$0xff]
  %v4591 = vld [vmem:[%s4499 + $0x1d1] sm:$0xff]
  %v4592 = vld [vmem:[%s4499 + $0x1e1] sm:$0xff]
  %v4593 = vld [vmem:[%s4499 + $0x1e9] sm:$0xff]
  %v4594 = vld [vmem:[%s4499 + $0x1f9] sm:$0xff]
  %v4595 = vld [vmem:[%s4499 + $0x201] sm:$0xff]
  %v4596 = vld [vmem:[%s4499 + $0x211] sm:$0xff]
  %v4597 = vld [vmem:[%s4499 + $0x219] sm:$0xff]
  %v4598 = vld [vmem:[%s4499 + $0x229] sm:$0xff]
  %v4599 = vld [vmem:[%s4499 + $0x231] sm:$0xff]
  %v4600 = vld [vmem:[%s4499 + $0x241] sm:$0xff]
  %v4601 = vld [vmem:[%s4499 + $0x249] sm:$0xff]
  %v4602 = vld [vmem:[%s4499 + $0x259] sm:$0xff]
  %v4603 = vld [vmem:[%s4499 + $0x261] sm:$0xff]
  %v4604 = vld [vmem:[%s4499 + $0x271] sm:$0xff]
  %v4605 = vld [vmem:[%s4499 + $0x279] sm:$0xff]
  %v4606 = vld [vmem:[%s4499 + $0x289] sm:$0xff]
  %v4607 = vld [vmem:[%s4499 + $0x291] sm:$0xff]
  %v4608 = vld [vmem:[%s4499 + $0x2a1] sm:$0xff]
  %v4609 = vld [vmem:[%s4499 + $0x2a9] sm:$0xff]
  %v4610 = vld [vmem:[%s4499 + $0x2b9] sm:$0xff]
  %v4611 = vld [vmem:[%s4499 + $0x2c1] sm:$0xff]
  %v4612 = vld [vmem:[%s4499 + $0x2] sm:$0xff]
  %v4613 = vld [vmem:[%s4499 + $0xa] sm:$0xff]
  %v4614 = vld [vmem:[%s4499 + $0x1a] sm:$0xff]
  %v4615 = vld [vmem:[%s4499 + $0x22] sm:$0xff]
  %v4616 = vld [vmem:[%s4499 + $0x32] sm:$0xff]
  %v4617 = vld [vmem:[%s4499 + $0x3a] sm:$0xff]
  %v4618 = vld [vmem:[%s4499 + $0x4a] sm:$0xff]
  %v4619 = vld [vmem:[%s4499 + $0x52] sm:$0xff]
  %v4620 = vld [vmem:[%s4499 + $0x62] sm:$0xff]
  %v4621 = vld [vmem:[%s4499 + $0x6a] sm:$0xff]
  %v4622 = vld [vmem:[%s4499 + $0x7a] sm:$0xff]
  %v4623 = vld [vmem:[%s4499 + $0x82] sm:$0xff]
  %v4624 = vld [vmem:[%s4499 + $0x92] sm:$0xff]
  %v4625 = vld [vmem:[%s4499 + $0x9a] sm:$0xff]
  %v4626 = vld [vmem:[%s4499 + $0xaa] sm:$0xff]
  %v4627 = vld [vmem:[%s4499 + $0xb2] sm:$0xff]
  %v4628 = vld [vmem:[%s4499 + $0xc2] sm:$0xff]
  %v4629 = vld [vmem:[%s4499 + $0xca] sm:$0xff]
  %v4630 = vld [vmem:[%s4499 + $0xda] sm:$0xff]
  %v4631 = vld [vmem:[%s4499 + $0xe2] sm:$0xff]
  %v4632 = vld [vmem:[%s4499 + $0xf2] sm:$0xff]
  %v4633 = vld [vmem:[%s4499 + $0xfa] sm:$0xff]
  %v4634 = vld [vmem:[%s4499 + $0x10a] sm:$0xff]
  %v4635 = vld [vmem:[%s4499 + $0x112] sm:$0xff]
  %v4636 = vld [vmem:[%s4499 + $0x122] sm:$0xff]
  %v4637 = vld [vmem:[%s4499 + $0x12a] sm:$0xff]
  %v4638 = vld [vmem:[%s4499 + $0x13a] sm:$0xff]
  %v4639 = vld [vmem:[%s4499 + $0x142] sm:$0xff]
  %v4640 = vld [vmem:[%s4499 + $0x182] sm:$0xff]
  %v4641 = vld [vmem:[%s4499 + $0x18a] sm:$0xff]
  %v4642 = vld [vmem:[%s4499 + $0x19a] sm:$0xff]
  %v4643 = vld [vmem:[%s4499 + $0x1a2] sm:$0xff]
  %v4644 = vld [vmem:[%s4499 + $0x1b2] sm:$0xff]
  %v4645 = vld [vmem:[%s4499 + $0x1ba] sm:$0xff]
  %v4646 = vld [vmem:[%s4499 + $0x1ca] sm:$0xff]
  %v4647 = vld [vmem:[%s4499 + $0x1d2] sm:$0xff]
  %v4648 = vld [vmem:[%s4499 + $0x1e2] sm:$0xff]
  %v4649 = vld [vmem:[%s4499 + $0x1ea] sm:$0xff]
  %v4650 = vld [vmem:[%s4499 + $0x1fa] sm:$0xff]
  %v4651 = vld [vmem:[%s4499 + $0x202] sm:$0xff]
  %v4652 = vld [vmem:[%s4499 + $0x212] sm:$0xff]
  %v4653 = vld [vmem:[%s4499 + $0x21a] sm:$0xff]
  %v4654 = vld [vmem:[%s4499 + $0x22a] sm:$0xff]
  %v4655 = vld [vmem:[%s4499 + $0x232] sm:$0xff]
  %v4656 = vld [vmem:[%s4499 + $0x242] sm:$0xff]
  %v4657 = vld [vmem:[%s4499 + $0x24a] sm:$0xff]
  %v4658 = vld [vmem:[%s4499 + $0x25a] sm:$0xff]
  %v4659 = vld [vmem:[%s4499 + $0x262] sm:$0xff]
  %v4660 = vld [vmem:[%s4499 + $0x272] sm:$0xff]
  %v4661 = vld [vmem:[%s4499 + $0x27a] sm:$0xff]
  %v4662 = vld [vmem:[%s4499 + $0x28a] sm:$0xff]
  %v4663 = vld [vmem:[%s4499 + $0x292] sm:$0xff]
  %v4664 = vld [vmem:[%s4499 + $0x2a2] sm:$0xff]
  %v4665 = vld [vmem:[%s4499 + $0x2aa] sm:$0xff]
  %v4666 = vld [vmem:[%s4499 + $0x2ba] sm:$0xff]
  %v4667 = vld [vmem:[%s4499 + $0x2c2] sm:$0xff]
  %4724 = vrot.lane.b32.xlu0 %v4218, 32
  %v4725 = vpop.permute.xlu0 %4724
  %4726 = vrot.lane.b32.xlu0 %v4219, 32
  %v4727 = vpop.permute.xlu0 %4726
  %4728 = vrot.lane.b32.xlu0 %v4220, 32
  %v4729 = vpop.permute.xlu0 %4728
  %4730 = vrot.lane.b32.xlu0 %v4221, 32
  %v4731 = vpop.permute.xlu0 %4730
  %4732 = vrot.lane.b32.xlu0 %v4222, 32
  %v4733 = vpop.permute.xlu0 %4732
  %4734 = vrot.lane.b32.xlu0 %v4223, 32
  %v4735 = vpop.permute.xlu0 %4734
  %4736 = vrot.lane.b32.xlu0 %v4224, 32
  %v4737 = vpop.permute.xlu0 %4736
  %4738 = vrot.lane.b32.xlu0 %v4225, 32
  %v4739 = vpop.permute.xlu0 %4738
  %4740 = vrot.lane.b32.xlu0 %v4226, 32
  %v4741 = vpop.permute.xlu0 %4740
  %4742 = vrot.lane.b32.xlu0 %v4227, 32
  %v4743 = vpop.permute.xlu0 %4742
  %4744 = vrot.lane.b32.xlu0 %v4228, 32
  %v4745 = vpop.permute.xlu0 %4744
  %4746 = vrot.lane.b32.xlu0 %v4229, 32
  %v4747 = vpop.permute.xlu0 %4746
  %4748 = vrot.lane.b32.xlu0 %v4230, 32
  %v4749 = vpop.permute.xlu0 %4748
  %4750 = vrot.lane.b32.xlu0 %v4231, 32
  %v4751 = vpop.permute.xlu0 %4750
  %4752 = vrot.lane.b32.xlu0 %v4232, 32
  %v4753 = vpop.permute.xlu0 %4752
  %4754 = vrot.lane.b32.xlu0 %v4233, 32
  %v4755 = vpop.permute.xlu0 %4754
  %4756 = vrot.lane.b32.xlu0 %v4234, 32
  %v4757 = vpop.permute.xlu0 %4756
  %4758 = vrot.lane.b32.xlu0 %v4235, 32
  %v4759 = vpop.permute.xlu0 %4758
  %4760 = vrot.lane.b32.xlu0 %v4236, 32
  %v4761 = vpop.permute.xlu0 %4760
  %4762 = vrot.lane.b32.xlu0 %v4237, 32
  %v4763 = vpop.permute.xlu0 %4762
  %4764 = vrot.lane.b32.xlu0 %v4238, 32
  %v4765 = vpop.permute.xlu0 %4764
  %4766 = vrot.lane.b32.xlu0 %v4239, 32
  %v4767 = vpop.permute.xlu0 %4766
  %4768 = vrot.lane.b32.xlu0 %v4240, 32
  %v4769 = vpop.permute.xlu0 %4768
  %4770 = vrot.lane.b32.xlu0 %v4241, 32
  %v4771 = vpop.permute.xlu0 %4770
  %4772 = vrot.lane.b32.xlu0 %v4242, 32
  %v4773 = vpop.permute.xlu0 %4772
  %4774 = vrot.lane.b32.xlu0 %v4243, 32
  %v4775 = vpop.permute.xlu0 %4774
  %4776 = vrot.lane.b32.xlu0 %v4244, 32
  %v4777 = vpop.permute.xlu0 %4776
  %4778 = vrot.lane.b32.xlu0 %v4245, 32
  %v4779 = vpop.permute.xlu0 %4778
  %4780 = vrot.lane.b32.xlu0 %v4246, 32
  %v4781 = vpop.permute.xlu0 %4780
  %4782 = vrot.lane.b32.xlu0 %v4247, 32
  %v4783 = vpop.permute.xlu0 %4782
  %4784 = vrot.lane.b32.xlu0 %v4248, 32
  %v4785 = vpop.permute.xlu0 %4784
  %4786 = vrot.lane.b32.xlu0 %v4249, 32
  %v4787 = vpop.permute.xlu0 %4786
  %4788 = vrot.lane.b32.xlu0 %v4250, 32
  %v4789 = vpop.permute.xlu0 %4788
  %4790 = vrot.lane.b32.xlu0 %v4251, 32
  %v4791 = vpop.permute.xlu0 %4790
  %4792 = vrot.lane.b32.xlu0 %v4252, 32
  %v4793 = vpop.permute.xlu0 %4792
  %4794 = vrot.lane.b32.xlu0 %v4253, 32
  %v4795 = vpop.permute.xlu0 %4794
  %4796 = vrot.lane.b32.xlu0 %v4254, 32
  %v4797 = vpop.permute.xlu0 %4796
  %4798 = vrot.lane.b32.xlu0 %v4255, 32
  %v4799 = vpop.permute.xlu0 %4798
  %4800 = vrot.lane.b32.xlu0 %v4256, 32
  %v4801 = vpop.permute.xlu0 %4800
  %4802 = vrot.lane.b32.xlu0 %v4257, 32
  %v4803 = vpop.permute.xlu0 %4802
  %4804 = vrot.lane.b32.xlu0 %v4258, 32
  %v4805 = vpop.permute.xlu0 %4804
  %4806 = vrot.lane.b32.xlu0 %v4259, 32
  %v4807 = vpop.permute.xlu0 %4806
  %4808 = vrot.lane.b32.xlu0 %v4260, 32
  %v4809 = vpop.permute.xlu0 %4808
  %4810 = vrot.lane.b32.xlu0 %v4261, 32
  %v4811 = vpop.permute.xlu0 %4810
  %4812 = vrot.lane.b32.xlu0 %v4262, 32
  %v4813 = vpop.permute.xlu0 %4812
  %4814 = vrot.lane.b32.xlu0 %v4263, 32
  %v4815 = vpop.permute.xlu0 %4814
  %4816 = vrot.lane.b32.xlu0 %v4264, 32
  %v4817 = vpop.permute.xlu0 %4816
  %4818 = vrot.lane.b32.xlu0 %v4265, 32
  %v4819 = vpop.permute.xlu0 %4818
  %4820 = vrot.lane.b32.xlu0 %v4266, 32
  %v4821 = vpop.permute.xlu0 %4820
  %4822 = vrot.lane.b32.xlu0 %v4267, 32
  %v4823 = vpop.permute.xlu0 %4822
  %4824 = vrot.lane.b32.xlu0 %v4268, 32
  %v4825 = vpop.permute.xlu0 %4824
  %4826 = vrot.lane.b32.xlu0 %v4269, 32
  %v4827 = vpop.permute.xlu0 %4826
  %4828 = vrot.lane.b32.xlu0 %v4270, 32
  %v4829 = vpop.permute.xlu0 %4828
  %4830 = vrot.lane.b32.xlu0 %v4271, 32
  %v4831 = vpop.permute.xlu0 %4830
  %4832 = vrot.lane.b32.xlu0 %v4272, 32
  %v4833 = vpop.permute.xlu0 %4832
  %4834 = vrot.lane.b32.xlu0 %v4273, 32
  %v4835 = vpop.permute.xlu0 %4834
  %4948 = vrot.lane.b32.xlu0 %v4274, 64
  %v4949 = vpop.permute.xlu0 %4948
  %4950 = vrot.lane.b32.xlu0 %v4275, 64
  %v4951 = vpop.permute.xlu0 %4950
  %4952 = vrot.lane.b32.xlu0 %v4276, 64
  %v4953 = vpop.permute.xlu0 %4952
  %4954 = vrot.lane.b32.xlu0 %v4277, 64
  %v4955 = vpop.permute.xlu0 %4954
  %4956 = vrot.lane.b32.xlu0 %v4278, 64
  %v4957 = vpop.permute.xlu0 %4956
  %4958 = vrot.lane.b32.xlu0 %v4279, 64
  %v4959 = vpop.permute.xlu0 %4958
  %4960 = vrot.lane.b32.xlu0 %v4280, 64
  %v4961 = vpop.permute.xlu0 %4960
  %4962 = vrot.lane.b32.xlu0 %v4281, 64
  %v4963 = vpop.permute.xlu0 %4962
  %4964 = vrot.lane.b32.xlu0 %v4282, 64
  %v4965 = vpop.permute.xlu0 %4964
  %4966 = vrot.lane.b32.xlu0 %v4283, 64
  %v4967 = vpop.permute.xlu0 %4966
  %4968 = vrot.lane.b32.xlu0 %v4284, 64
  %v4969 = vpop.permute.xlu0 %4968
  %4970 = vrot.lane.b32.xlu0 %v4285, 64
  %v4971 = vpop.permute.xlu0 %4970
  %4972 = vrot.lane.b32.xlu0 %v4286, 64
  %v4973 = vpop.permute.xlu0 %4972
  %4974 = vrot.lane.b32.xlu0 %v4287, 64
  %v4975 = vpop.permute.xlu0 %4974
  %4976 = vrot.lane.b32.xlu0 %v4288, 64
  %v4977 = vpop.permute.xlu0 %4976
  %4978 = vrot.lane.b32.xlu0 %v4289, 64
  %v4979 = vpop.permute.xlu0 %4978
  %4980 = vrot.lane.b32.xlu0 %v4290, 64
  %v4981 = vpop.permute.xlu0 %4980
  %4982 = vrot.lane.b32.xlu0 %v4291, 64
  %v4983 = vpop.permute.xlu0 %4982
  %4984 = vrot.lane.b32.xlu0 %v4292, 64
  %v4985 = vpop.permute.xlu0 %4984
  %4986 = vrot.lane.b32.xlu0 %v4293, 64
  %v4987 = vpop.permute.xlu0 %4986
  %4988 = vrot.lane.b32.xlu0 %v4294, 64
  %v4989 = vpop.permute.xlu0 %4988
  %4990 = vrot.lane.b32.xlu0 %v4295, 64
  %v4991 = vpop.permute.xlu0 %4990
  %4992 = vrot.lane.b32.xlu0 %v4296, 64
  %v4993 = vpop.permute.xlu0 %4992
  %4994 = vrot.lane.b32.xlu0 %v4297, 64
  %v4995 = vpop.permute.xlu0 %4994
  %4996 = vrot.lane.b32.xlu0 %v4298, 64
  %v4997 = vpop.permute.xlu0 %4996
  %4998 = vrot.lane.b32.xlu0 %v4299, 64
  %v4999 = vpop.permute.xlu0 %4998
  %5000 = vrot.lane.b32.xlu0 %v4300, 64
  %v5001 = vpop.permute.xlu0 %5000
  %5002 = vrot.lane.b32.xlu0 %v4301, 64
  %v5003 = vpop.permute.xlu0 %5002
  %5004 = vrot.lane.b32.xlu0 %v4302, 64
  %v5005 = vpop.permute.xlu0 %5004
  %5006 = vrot.lane.b32.xlu0 %v4303, 64
  %v5007 = vpop.permute.xlu0 %5006
  %5008 = vrot.lane.b32.xlu0 %v4304, 64
  %v5009 = vpop.permute.xlu0 %5008
  %5010 = vrot.lane.b32.xlu0 %v4305, 64
  %v5011 = vpop.permute.xlu0 %5010
  %5012 = vrot.lane.b32.xlu0 %v4306, 64
  %v5013 = vpop.permute.xlu0 %5012
  %5014 = vrot.lane.b32.xlu0 %v4307, 64
  %v5015 = vpop.permute.xlu0 %5014
  %5016 = vrot.lane.b32.xlu0 %v4308, 64
  %v5017 = vpop.permute.xlu0 %5016
  %5018 = vrot.lane.b32.xlu0 %v4309, 64
  %v5019 = vpop.permute.xlu0 %5018
  %5020 = vrot.lane.b32.xlu0 %v4310, 64
  %v5021 = vpop.permute.xlu0 %5020
  %5022 = vrot.lane.b32.xlu0 %v4311, 64
  %v5023 = vpop.permute.xlu0 %5022
  %5024 = vrot.lane.b32.xlu0 %v4312, 64
  %v5025 = vpop.permute.xlu0 %5024
  %5026 = vrot.lane.b32.xlu0 %v4313, 64
  %v5027 = vpop.permute.xlu0 %5026
  %5028 = vrot.lane.b32.xlu0 %v4314, 64
  %v5029 = vpop.permute.xlu0 %5028
  %5030 = vrot.lane.b32.xlu0 %v4315, 64
  %v5031 = vpop.permute.xlu0 %5030
  %5032 = vrot.lane.b32.xlu0 %v4316, 64
  %v5033 = vpop.permute.xlu0 %5032
  %5034 = vrot.lane.b32.xlu0 %v4317, 64
  %v5035 = vpop.permute.xlu0 %5034
  %5036 = vrot.lane.b32.xlu0 %v4318, 64
  %v5037 = vpop.permute.xlu0 %5036
  %5038 = vrot.lane.b32.xlu0 %v4319, 64
  %v5039 = vpop.permute.xlu0 %5038
  %5040 = vrot.lane.b32.xlu0 %v4320, 64
  %v5041 = vpop.permute.xlu0 %5040
  %5042 = vrot.lane.b32.xlu0 %v4321, 64
  %v5043 = vpop.permute.xlu0 %5042
  %5044 = vrot.lane.b32.xlu0 %v4322, 64
  %v5045 = vpop.permute.xlu0 %5044
  %5046 = vrot.lane.b32.xlu0 %v4323, 64
  %v5047 = vpop.permute.xlu0 %5046
  %5048 = vrot.lane.b32.xlu0 %v4324, 64
  %v5049 = vpop.permute.xlu0 %5048
  %5050 = vrot.lane.b32.xlu0 %v4325, 64
  %v5051 = vpop.permute.xlu0 %5050
  %5052 = vrot.lane.b32.xlu0 %v4326, 64
  %v5053 = vpop.permute.xlu0 %5052
  %5054 = vrot.lane.b32.xlu0 %v4327, 64
  %v5055 = vpop.permute.xlu0 %5054
  %5056 = vrot.lane.b32.xlu0 %v4328, 64
  %v5057 = vpop.permute.xlu0 %5056
  %5058 = vrot.lane.b32.xlu0 %v4329, 64
  %v5059 = vpop.permute.xlu0 %5058
  %5172 = vrot.lane.b32.xlu0 %v4331, 96
  %v5173 = vpop.permute.xlu0 %5172
  %5174 = vrot.lane.b32.xlu0 %v4332, 96
  %v5175 = vpop.permute.xlu0 %5174
  %5176 = vrot.lane.b32.xlu0 %v4333, 96
  %v5177 = vpop.permute.xlu0 %5176
  %5178 = vrot.lane.b32.xlu0 %v4334, 96
  %v5179 = vpop.permute.xlu0 %5178
  %5180 = vrot.lane.b32.xlu0 %v4335, 96
  %v5181 = vpop.permute.xlu0 %5180
  %5182 = vrot.lane.b32.xlu0 %v4336, 96
  %v5183 = vpop.permute.xlu0 %5182
  %5184 = vrot.lane.b32.xlu0 %v4337, 96
  %v5185 = vpop.permute.xlu0 %5184
  %5186 = vrot.lane.b32.xlu0 %v4338, 96
  %v5187 = vpop.permute.xlu0 %5186
  %5188 = vrot.lane.b32.xlu0 %v4339, 96
  %v5189 = vpop.permute.xlu0 %5188
  %5190 = vrot.lane.b32.xlu0 %v4340, 96
  %v5191 = vpop.permute.xlu0 %5190
  %5192 = vrot.lane.b32.xlu0 %v4341, 96
  %v5193 = vpop.permute.xlu0 %5192
  %5194 = vrot.lane.b32.xlu0 %v4342, 96
  %v5195 = vpop.permute.xlu0 %5194
  %5196 = vrot.lane.b32.xlu0 %v4343, 96
  %v5197 = vpop.permute.xlu0 %5196
  %5198 = vrot.lane.b32.xlu0 %v4344, 96
  %v5199 = vpop.permute.xlu0 %5198
  %5200 = vrot.lane.b32.xlu0 %v4345, 96
  %v5201 = vpop.permute.xlu0 %5200
  %5202 = vrot.lane.b32.xlu0 %v4346, 96
  %v5203 = vpop.permute.xlu0 %5202
  %5204 = vrot.lane.b32.xlu0 %v4347, 96
  %v5205 = vpop.permute.xlu0 %5204
  %5206 = vrot.lane.b32.xlu0 %v4348, 96
  %v5207 = vpop.permute.xlu0 %5206
  %5208 = vrot.lane.b32.xlu0 %v4349, 96
  %v5209 = vpop.permute.xlu0 %5208
  %5210 = vrot.lane.b32.xlu0 %v4350, 96
  %v5211 = vpop.permute.xlu0 %5210
  %5212 = vrot.lane.b32.xlu0 %v4351, 96
  %v5213 = vpop.permute.xlu0 %5212
  %5214 = vrot.lane.b32.xlu0 %v4352, 96
  %v5215 = vpop.permute.xlu0 %5214
  %5216 = vrot.lane.b32.xlu0 %v4353, 96
  %v5217 = vpop.permute.xlu0 %5216
  %5218 = vrot.lane.b32.xlu0 %v4354, 96
  %v5219 = vpop.permute.xlu0 %5218
  %5220 = vrot.lane.b32.xlu0 %v4355, 96
  %v5221 = vpop.permute.xlu0 %5220
  %5222 = vrot.lane.b32.xlu0 %v4356, 96
  %v5223 = vpop.permute.xlu0 %5222
  %5224 = vrot.lane.b32.xlu0 %v4357, 96
  %v5225 = vpop.permute.xlu0 %5224
  %5226 = vrot.lane.b32.xlu0 %v4358, 96
  %v5227 = vpop.permute.xlu0 %5226
  %5228 = vrot.lane.b32.xlu0 %v4359, 96
  %v5229 = vpop.permute.xlu0 %5228
  %5230 = vrot.lane.b32.xlu0 %v4360, 96
  %v5231 = vpop.permute.xlu0 %5230
  %5232 = vrot.lane.b32.xlu0 %v4361, 96
  %v5233 = vpop.permute.xlu0 %5232
  %5234 = vrot.lane.b32.xlu0 %v4362, 96
  %v5235 = vpop.permute.xlu0 %5234
  %5236 = vrot.lane.b32.xlu0 %v4363, 96
  %v5237 = vpop.permute.xlu0 %5236
  %5238 = vrot.lane.b32.xlu0 %v4364, 96
  %v5239 = vpop.permute.xlu0 %5238
  %5240 = vrot.lane.b32.xlu0 %v4365, 96
  %v5241 = vpop.permute.xlu0 %5240
  %5242 = vrot.lane.b32.xlu0 %v4366, 96
  %v5243 = vpop.permute.xlu0 %5242
  %5244 = vrot.lane.b32.xlu0 %v4367, 96
  %v5245 = vpop.permute.xlu0 %5244
  %5246 = vrot.lane.b32.xlu0 %v4368, 96
  %v5247 = vpop.permute.xlu0 %5246
  %5248 = vrot.lane.b32.xlu0 %v4369, 96
  %v5249 = vpop.permute.xlu0 %5248
  %5250 = vrot.lane.b32.xlu0 %v4370, 96
  %v5251 = vpop.permute.xlu0 %5250
  %5252 = vrot.lane.b32.xlu0 %v4371, 96
  %v5253 = vpop.permute.xlu0 %5252
  %5254 = vrot.lane.b32.xlu0 %v4372, 96
  %v5255 = vpop.permute.xlu0 %5254
  %5256 = vrot.lane.b32.xlu0 %v4373, 96
  %v5257 = vpop.permute.xlu0 %5256
  %5258 = vrot.lane.b32.xlu0 %v4374, 96
  %v5259 = vpop.permute.xlu0 %5258
  %5260 = vrot.lane.b32.xlu0 %v4375, 96
  %v5261 = vpop.permute.xlu0 %5260
  %5262 = vrot.lane.b32.xlu0 %v4376, 96
  %v5263 = vpop.permute.xlu0 %5262
  %5264 = vrot.lane.b32.xlu0 %v4377, 96
  %v5265 = vpop.permute.xlu0 %5264
  %5266 = vrot.lane.b32.xlu0 %v4378, 96
  %v5267 = vpop.permute.xlu0 %5266
  %5268 = vrot.lane.b32.xlu0 %v4379, 96
  %v5269 = vpop.permute.xlu0 %5268
  %5270 = vrot.lane.b32.xlu0 %v4380, 96
  %v5271 = vpop.permute.xlu0 %5270
  %5272 = vrot.lane.b32.xlu0 %v4381, 96
  %v5273 = vpop.permute.xlu0 %5272
  %5274 = vrot.lane.b32.xlu0 %v4382, 96
  %v5275 = vpop.permute.xlu0 %5274
  %5276 = vrot.lane.b32.xlu0 %v4383, 96
  %v5277 = vpop.permute.xlu0 %5276
  %5278 = vrot.lane.b32.xlu0 %v4384, 96
  %v5279 = vpop.permute.xlu0 %5278
  %5280 = vrot.lane.b32.xlu0 %v4385, 96
  %v5281 = vpop.permute.xlu0 %5280
  %5282 = vrot.lane.b32.xlu0 %v4386, 96
  %v5283 = vpop.permute.xlu0 %5282
  %5396 = vrot.lane.b32.xlu0 %v4443, 32
  %v5397 = vpop.permute.xlu0 %5396
  %5398 = vrot.lane.b32.xlu0 %v4444, 32
  %v5399 = vpop.permute.xlu0 %5398
  %5400 = vrot.lane.b32.xlu0 %v4445, 32
  %v5401 = vpop.permute.xlu0 %5400
  %5402 = vrot.lane.b32.xlu0 %v4446, 32
  %v5403 = vpop.permute.xlu0 %5402
  %5404 = vrot.lane.b32.xlu0 %v4447, 32
  %v5405 = vpop.permute.xlu0 %5404
  %5406 = vrot.lane.b32.xlu0 %v4448, 32
  %v5407 = vpop.permute.xlu0 %5406
  %5408 = vrot.lane.b32.xlu0 %v4449, 32
  %v5409 = vpop.permute.xlu0 %5408
  %5410 = vrot.lane.b32.xlu0 %v4450, 32
  %v5411 = vpop.permute.xlu0 %5410
  %5412 = vrot.lane.b32.xlu0 %v4451, 32
  %v5413 = vpop.permute.xlu0 %5412
  %5414 = vrot.lane.b32.xlu0 %v4452, 32
  %v5415 = vpop.permute.xlu0 %5414
  %5416 = vrot.lane.b32.xlu0 %v4453, 32
  %v5417 = vpop.permute.xlu0 %5416
  %5418 = vrot.lane.b32.xlu0 %v4454, 32
  %v5419 = vpop.permute.xlu0 %5418
  %5420 = vrot.lane.b32.xlu0 %v4455, 32
  %v5421 = vpop.permute.xlu0 %5420
  %5422 = vrot.lane.b32.xlu0 %v4456, 32
  %v5423 = vpop.permute.xlu0 %5422
  %5424 = vrot.lane.b32.xlu0 %v4457, 32
  %v5425 = vpop.permute.xlu0 %5424
  %5426 = vrot.lane.b32.xlu0 %v4458, 32
  %v5427 = vpop.permute.xlu0 %5426
  %5428 = vrot.lane.b32.xlu0 %v4459, 32
  %v5429 = vpop.permute.xlu0 %5428
  %5430 = vrot.lane.b32.xlu0 %v4460, 32
  %v5431 = vpop.permute.xlu0 %5430
  %5432 = vrot.lane.b32.xlu0 %v4461, 32
  %v5433 = vpop.permute.xlu0 %5432
  %5434 = vrot.lane.b32.xlu0 %v4462, 32
  %v5435 = vpop.permute.xlu0 %5434
  %5436 = vrot.lane.b32.xlu0 %v4463, 32
  %v5437 = vpop.permute.xlu0 %5436
  %5438 = vrot.lane.b32.xlu0 %v4464, 32
  %v5439 = vpop.permute.xlu0 %5438
  %5440 = vrot.lane.b32.xlu0 %v4465, 32
  %v5441 = vpop.permute.xlu0 %5440
  %5442 = vrot.lane.b32.xlu0 %v4466, 32
  %v5443 = vpop.permute.xlu0 %5442
  %5444 = vrot.lane.b32.xlu0 %v4467, 32
  %v5445 = vpop.permute.xlu0 %5444
  %5446 = vrot.lane.b32.xlu0 %v4468, 32
  %v5447 = vpop.permute.xlu0 %5446
  %5448 = vrot.lane.b32.xlu0 %v4469, 32
  %v5449 = vpop.permute.xlu0 %5448
  %5450 = vrot.lane.b32.xlu0 %v4470, 32
  %v5451 = vpop.permute.xlu0 %5450
  %5452 = vrot.lane.b32.xlu0 %v4471, 32
  %v5453 = vpop.permute.xlu0 %5452
  %5454 = vrot.lane.b32.xlu0 %v4472, 32
  %v5455 = vpop.permute.xlu0 %5454
  %5456 = vrot.lane.b32.xlu0 %v4473, 32
  %v5457 = vpop.permute.xlu0 %5456
  %5458 = vrot.lane.b32.xlu0 %v4474, 32
  %v5459 = vpop.permute.xlu0 %5458
  %5460 = vrot.lane.b32.xlu0 %v4475, 32
  %v5461 = vpop.permute.xlu0 %5460
  %5462 = vrot.lane.b32.xlu0 %v4476, 32
  %v5463 = vpop.permute.xlu0 %5462
  %5464 = vrot.lane.b32.xlu0 %v4477, 32
  %v5465 = vpop.permute.xlu0 %5464
  %5466 = vrot.lane.b32.xlu0 %v4478, 32
  %v5467 = vpop.permute.xlu0 %5466
  %5468 = vrot.lane.b32.xlu0 %v4479, 32
  %v5469 = vpop.permute.xlu0 %5468
  %5470 = vrot.lane.b32.xlu0 %v4480, 32
  %v5471 = vpop.permute.xlu0 %5470
  %5472 = vrot.lane.b32.xlu0 %v4481, 32
  %v5473 = vpop.permute.xlu0 %5472
  %5474 = vrot.lane.b32.xlu0 %v4482, 32
  %v5475 = vpop.permute.xlu0 %5474
  %5476 = vrot.lane.b32.xlu0 %v4483, 32
  %v5477 = vpop.permute.xlu0 %5476
  %5478 = vrot.lane.b32.xlu0 %v4484, 32
  %v5479 = vpop.permute.xlu0 %5478
  %5480 = vrot.lane.b32.xlu0 %v4485, 32
  %v5481 = vpop.permute.xlu0 %5480
  %5482 = vrot.lane.b32.xlu0 %v4486, 32
  %v5483 = vpop.permute.xlu0 %5482
  %5484 = vrot.lane.b32.xlu0 %v4487, 32
  %v5485 = vpop.permute.xlu0 %5484
  %5486 = vrot.lane.b32.xlu0 %v4488, 32
  %v5487 = vpop.permute.xlu0 %5486
  %5488 = vrot.lane.b32.xlu0 %v4489, 32
  %v5489 = vpop.permute.xlu0 %5488
  %5490 = vrot.lane.b32.xlu0 %v4490, 32
  %v5491 = vpop.permute.xlu0 %5490
  %5492 = vrot.lane.b32.xlu0 %v4491, 32
  %v5493 = vpop.permute.xlu0 %5492
  %5494 = vrot.lane.b32.xlu0 %v4492, 32
  %v5495 = vpop.permute.xlu0 %5494
  %5496 = vrot.lane.b32.xlu0 %v4493, 32
  %v5497 = vpop.permute.xlu0 %5496
  %5498 = vrot.lane.b32.xlu0 %v4494, 32
  %v5499 = vpop.permute.xlu0 %5498
  %5500 = vrot.lane.b32.xlu0 %v4495, 32
  %v5501 = vpop.permute.xlu0 %5500
  %5502 = vrot.lane.b32.xlu0 %v4496, 32
  %v5503 = vpop.permute.xlu0 %5502
  %5504 = vrot.lane.b32.xlu0 %v4497, 32
  %v5505 = vpop.permute.xlu0 %5504
  %5506 = vrot.lane.b32.xlu0 %v4498, 32
  %v5507 = vpop.permute.xlu0 %5506
  %5620 = vrot.lane.b32.xlu0 %v4500, 64
  %v5621 = vpop.permute.xlu0 %5620
  %5622 = vrot.lane.b32.xlu0 %v4501, 64
  %v5623 = vpop.permute.xlu0 %5622
  %5624 = vrot.lane.b32.xlu0 %v4502, 64
  %v5625 = vpop.permute.xlu0 %5624
  %5626 = vrot.lane.b32.xlu0 %v4503, 64
  %v5627 = vpop.permute.xlu0 %5626
  %5628 = vrot.lane.b32.xlu0 %v4504, 64
  %v5629 = vpop.permute.xlu0 %5628
  %5630 = vrot.lane.b32.xlu0 %v4505, 64
  %v5631 = vpop.permute.xlu0 %5630
  %5632 = vrot.lane.b32.xlu0 %v4506, 64
  %v5633 = vpop.permute.xlu0 %5632
  %5634 = vrot.lane.b32.xlu0 %v4507, 64
  %v5635 = vpop.permute.xlu0 %5634
  %5636 = vrot.lane.b32.xlu0 %v4508, 64
  %v5637 = vpop.permute.xlu0 %5636
  %5638 = vrot.lane.b32.xlu0 %v4509, 64
  %v5639 = vpop.permute.xlu0 %5638
  %5640 = vrot.lane.b32.xlu0 %v4510, 64
  %v5641 = vpop.permute.xlu0 %5640
  %5642 = vrot.lane.b32.xlu0 %v4511, 64
  %v5643 = vpop.permute.xlu0 %5642
  %5644 = vrot.lane.b32.xlu0 %v4512, 64
  %v5645 = vpop.permute.xlu0 %5644
  %5646 = vrot.lane.b32.xlu0 %v4513, 64
  %v5647 = vpop.permute.xlu0 %5646
  %5648 = vrot.lane.b32.xlu0 %v4514, 64
  %v5649 = vpop.permute.xlu0 %5648
  %5650 = vrot.lane.b32.xlu0 %v4515, 64
  %v5651 = vpop.permute.xlu0 %5650
  %5652 = vrot.lane.b32.xlu0 %v4516, 64
  %v5653 = vpop.permute.xlu0 %5652
  %5654 = vrot.lane.b32.xlu0 %v4517, 64
  %v5655 = vpop.permute.xlu0 %5654
  %5656 = vrot.lane.b32.xlu0 %v4518, 64
  %v5657 = vpop.permute.xlu0 %5656
  %5658 = vrot.lane.b32.xlu0 %v4519, 64
  %v5659 = vpop.permute.xlu0 %5658
  %5660 = vrot.lane.b32.xlu0 %v4520, 64
  %v5661 = vpop.permute.xlu0 %5660
  %5662 = vrot.lane.b32.xlu0 %v4521, 64
  %v5663 = vpop.permute.xlu0 %5662
  %5664 = vrot.lane.b32.xlu0 %v4522, 64
  %v5665 = vpop.permute.xlu0 %5664
  %5666 = vrot.lane.b32.xlu0 %v4523, 64
  %v5667 = vpop.permute.xlu0 %5666
  %5668 = vrot.lane.b32.xlu0 %v4524, 64
  %v5669 = vpop.permute.xlu0 %5668
  %5670 = vrot.lane.b32.xlu0 %v4525, 64
  %v5671 = vpop.permute.xlu0 %5670
  %5672 = vrot.lane.b32.xlu0 %v4526, 64
  %v5673 = vpop.permute.xlu0 %5672
  %5674 = vrot.lane.b32.xlu0 %v4527, 64
  %v5675 = vpop.permute.xlu0 %5674
  %5676 = vrot.lane.b32.xlu0 %v4528, 64
  %v5677 = vpop.permute.xlu0 %5676
  %5678 = vrot.lane.b32.xlu0 %v4529, 64
  %v5679 = vpop.permute.xlu0 %5678
  %5680 = vrot.lane.b32.xlu0 %v4530, 64
  %v5681 = vpop.permute.xlu0 %5680
  %5682 = vrot.lane.b32.xlu0 %v4531, 64
  %v5683 = vpop.permute.xlu0 %5682
  %5684 = vrot.lane.b32.xlu0 %v4532, 64
  %v5685 = vpop.permute.xlu0 %5684
  %5686 = vrot.lane.b32.xlu0 %v4533, 64
  %v5687 = vpop.permute.xlu0 %5686
  %5688 = vrot.lane.b32.xlu0 %v4534, 64
  %v5689 = vpop.permute.xlu0 %5688
  %5690 = vrot.lane.b32.xlu0 %v4535, 64
  %v5691 = vpop.permute.xlu0 %5690
  %5692 = vrot.lane.b32.xlu0 %v4536, 64
  %v5693 = vpop.permute.xlu0 %5692
  %5694 = vrot.lane.b32.xlu0 %v4537, 64
  %v5695 = vpop.permute.xlu0 %5694
  %5696 = vrot.lane.b32.xlu0 %v4538, 64
  %v5697 = vpop.permute.xlu0 %5696
  %5698 = vrot.lane.b32.xlu0 %v4539, 64
  %v5699 = vpop.permute.xlu0 %5698
  %5700 = vrot.lane.b32.xlu0 %v4540, 64
  %v5701 = vpop.permute.xlu0 %5700
  %5702 = vrot.lane.b32.xlu0 %v4541, 64
  %v5703 = vpop.permute.xlu0 %5702
  %5704 = vrot.lane.b32.xlu0 %v4542, 64
  %v5705 = vpop.permute.xlu0 %5704
  %5706 = vrot.lane.b32.xlu0 %v4543, 64
  %v5707 = vpop.permute.xlu0 %5706
  %5708 = vrot.lane.b32.xlu0 %v4544, 64
  %v5709 = vpop.permute.xlu0 %5708
  %5710 = vrot.lane.b32.xlu0 %v4545, 64
  %v5711 = vpop.permute.xlu0 %5710
  %5712 = vrot.lane.b32.xlu0 %v4546, 64
  %v5713 = vpop.permute.xlu0 %5712
  %5714 = vrot.lane.b32.xlu0 %v4547, 64
  %v5715 = vpop.permute.xlu0 %5714
  %5716 = vrot.lane.b32.xlu0 %v4548, 64
  %v5717 = vpop.permute.xlu0 %5716
  %5718 = vrot.lane.b32.xlu0 %v4549, 64
  %v5719 = vpop.permute.xlu0 %5718
  %5720 = vrot.lane.b32.xlu0 %v4550, 64
  %v5721 = vpop.permute.xlu0 %5720
  %5722 = vrot.lane.b32.xlu0 %v4551, 64
  %v5723 = vpop.permute.xlu0 %5722
  %5724 = vrot.lane.b32.xlu0 %v4552, 64
  %v5725 = vpop.permute.xlu0 %5724
  %5726 = vrot.lane.b32.xlu0 %v4553, 64
  %v5727 = vpop.permute.xlu0 %5726
  %5728 = vrot.lane.b32.xlu0 %v4554, 64
  %v5729 = vpop.permute.xlu0 %5728
  %5730 = vrot.lane.b32.xlu0 %v4555, 64
  %v5731 = vpop.permute.xlu0 %5730
  %5844 = vrot.lane.b32.xlu0 %v4556, 96
  %v5845 = vpop.permute.xlu0 %5844
  %5846 = vrot.lane.b32.xlu0 %v4557, 96
  %v5847 = vpop.permute.xlu0 %5846
  %5848 = vrot.lane.b32.xlu0 %v4558, 96
  %v5849 = vpop.permute.xlu0 %5848
  %5850 = vrot.lane.b32.xlu0 %v4559, 96
  %v5851 = vpop.permute.xlu0 %5850
  %5852 = vrot.lane.b32.xlu0 %v4560, 96
  %v5853 = vpop.permute.xlu0 %5852
  %5854 = vrot.lane.b32.xlu0 %v4561, 96
  %v5855 = vpop.permute.xlu0 %5854
  %5856 = vrot.lane.b32.xlu0 %v4562, 96
  %v5857 = vpop.permute.xlu0 %5856
  %5858 = vrot.lane.b32.xlu0 %v4563, 96
  %v5859 = vpop.permute.xlu0 %5858
  %5860 = vrot.lane.b32.xlu0 %v4564, 96
  %v5861 = vpop.permute.xlu0 %5860
  %5862 = vrot.lane.b32.xlu0 %v4565, 96
  %v5863 = vpop.permute.xlu0 %5862
  %5864 = vrot.lane.b32.xlu0 %v4566, 96
  %v5865 = vpop.permute.xlu0 %5864
  %5866 = vrot.lane.b32.xlu0 %v4567, 96
  %v5867 = vpop.permute.xlu0 %5866
  %5868 = vrot.lane.b32.xlu0 %v4568, 96
  %v5869 = vpop.permute.xlu0 %5868
  %5870 = vrot.lane.b32.xlu0 %v4569, 96
  %v5871 = vpop.permute.xlu0 %5870
  %5872 = vrot.lane.b32.xlu0 %v4570, 96
  %v5873 = vpop.permute.xlu0 %5872
  %5874 = vrot.lane.b32.xlu0 %v4571, 96
  %v5875 = vpop.permute.xlu0 %5874
  %5876 = vrot.lane.b32.xlu0 %v4572, 96
  %v5877 = vpop.permute.xlu0 %5876
  %5878 = vrot.lane.b32.xlu0 %v4573, 96
  %v5879 = vpop.permute.xlu0 %5878
  %5880 = vrot.lane.b32.xlu0 %v4574, 96
  %v5881 = vpop.permute.xlu0 %5880
  %5882 = vrot.lane.b32.xlu0 %v4575, 96
  %v5883 = vpop.permute.xlu0 %5882
  %5884 = vrot.lane.b32.xlu0 %v4576, 96
  %v5885 = vpop.permute.xlu0 %5884
  %5886 = vrot.lane.b32.xlu0 %v4577, 96
  %v5887 = vpop.permute.xlu0 %5886
  %5888 = vrot.lane.b32.xlu0 %v4578, 96
  %v5889 = vpop.permute.xlu0 %5888
  %5890 = vrot.lane.b32.xlu0 %v4579, 96
  %v5891 = vpop.permute.xlu0 %5890
  %5892 = vrot.lane.b32.xlu0 %v4580, 96
  %v5893 = vpop.permute.xlu0 %5892
  %5894 = vrot.lane.b32.xlu0 %v4581, 96
  %v5895 = vpop.permute.xlu0 %5894
  %5896 = vrot.lane.b32.xlu0 %v4582, 96
  %v5897 = vpop.permute.xlu0 %5896
  %5898 = vrot.lane.b32.xlu0 %v4583, 96
  %v5899 = vpop.permute.xlu0 %5898
  %5900 = vrot.lane.b32.xlu0 %v4584, 96
  %v5901 = vpop.permute.xlu0 %5900
  %5902 = vrot.lane.b32.xlu0 %v4585, 96
  %v5903 = vpop.permute.xlu0 %5902
  %5904 = vrot.lane.b32.xlu0 %v4586, 96
  %v5905 = vpop.permute.xlu0 %5904
  %5906 = vrot.lane.b32.xlu0 %v4587, 96
  %v5907 = vpop.permute.xlu0 %5906
  %5908 = vrot.lane.b32.xlu0 %v4588, 96
  %v5909 = vpop.permute.xlu0 %5908
  %5910 = vrot.lane.b32.xlu0 %v4589, 96
  %v5911 = vpop.permute.xlu0 %5910
  %5912 = vrot.lane.b32.xlu0 %v4590, 96
  %v5913 = vpop.permute.xlu0 %5912
  %5914 = vrot.lane.b32.xlu0 %v4591, 96
  %v5915 = vpop.permute.xlu0 %5914
  %5916 = vrot.lane.b32.xlu0 %v4592, 96
  %v5917 = vpop.permute.xlu0 %5916
  %5918 = vrot.lane.b32.xlu0 %v4593, 96
  %v5919 = vpop.permute.xlu0 %5918
  %5920 = vrot.lane.b32.xlu0 %v4594, 96
  %v5921 = vpop.permute.xlu0 %5920
  %5922 = vrot.lane.b32.xlu0 %v4595, 96
  %v5923 = vpop.permute.xlu0 %5922
  %5924 = vrot.lane.b32.xlu0 %v4596, 96
  %v5925 = vpop.permute.xlu0 %5924
  %5926 = vrot.lane.b32.xlu0 %v4597, 96
  %v5927 = vpop.permute.xlu0 %5926
  %5928 = vrot.lane.b32.xlu0 %v4598, 96
  %v5929 = vpop.permute.xlu0 %5928
  %5930 = vrot.lane.b32.xlu0 %v4599, 96
  %v5931 = vpop.permute.xlu0 %5930
  %5932 = vrot.lane.b32.xlu0 %v4600, 96
  %v5933 = vpop.permute.xlu0 %5932
  %5934 = vrot.lane.b32.xlu0 %v4601, 96
  %v5935 = vpop.permute.xlu0 %5934
  %5936 = vrot.lane.b32.xlu0 %v4602, 96
  %v5937 = vpop.permute.xlu0 %5936
  %5938 = vrot.lane.b32.xlu0 %v4603, 96
  %v5939 = vpop.permute.xlu0 %5938
  %5940 = vrot.lane.b32.xlu0 %v4604, 96
  %v5941 = vpop.permute.xlu0 %5940
  %5942 = vrot.lane.b32.xlu0 %v4605, 96
  %v5943 = vpop.permute.xlu0 %5942
  %5944 = vrot.lane.b32.xlu0 %v4606, 96
  %v5945 = vpop.permute.xlu0 %5944
  %5946 = vrot.lane.b32.xlu0 %v4607, 96
  %v5947 = vpop.permute.xlu0 %5946
  %5948 = vrot.lane.b32.xlu0 %v4608, 96
  %v5949 = vpop.permute.xlu0 %5948
  %5950 = vrot.lane.b32.xlu0 %v4609, 96
  %v5951 = vpop.permute.xlu0 %5950
  %5952 = vrot.lane.b32.xlu0 %v4610, 96
  %v5953 = vpop.permute.xlu0 %5952
  %5954 = vrot.lane.b32.xlu0 %v4611, 96
  %v5955 = vpop.permute.xlu0 %5954
  %v6012 = vsel %vm2589, %v4162, %v4725
  %v6013 = vsel %vm2589, %v4163, %v4727
  %v6014 = vsel %vm2589, %v4164, %v4729
  %v6015 = vsel %vm2589, %v4165, %v4731
  %v6016 = vsel %vm2589, %v4166, %v4733
  %v6017 = vsel %vm2589, %v4167, %v4735
  %v6018 = vsel %vm2589, %v4168, %v4737
  %v6019 = vsel %vm2589, %v4169, %v4739
  %v6020 = vsel %vm2589, %v4170, %v4741
  %v6021 = vsel %vm2589, %v4171, %v4743
  %v6022 = vsel %vm2589, %v4172, %v4745
  %v6023 = vsel %vm2589, %v4173, %v4747
  %v6024 = vsel %vm2589, %v4174, %v4749
  %v6025 = vsel %vm2589, %v4175, %v4751
  %v6026 = vsel %vm2589, %v4176, %v4753
  %v6027 = vsel %vm2589, %v4177, %v4755
  %v6028 = vsel %vm2589, %v4178, %v4757
  %v6029 = vsel %vm2589, %v4179, %v4759
  %v6030 = vsel %vm2589, %v4180, %v4761
  %v6031 = vsel %vm2589, %v4181, %v4763
  %v6032 = vsel %vm2589, %v4182, %v4765
  %v6033 = vsel %vm2589, %v4183, %v4767
  %v6034 = vsel %vm2589, %v4184, %v4769
  %v6035 = vsel %vm2589, %v4185, %v4771
  %v6036 = vsel %vm2589, %v4186, %v4773
  %v6037 = vsel %vm2589, %v4187, %v4775
  %v6038 = vsel %vm2589, %v4188, %v4777
  %v6039 = vsel %vm2589, %v4189, %v4779
  %v6040 = vsel %vm2589, %v4190, %v4781
  %v6041 = vsel %vm2589, %v4191, %v4783
  %v6042 = vsel %vm2589, %v4192, %v4785
  %v6043 = vsel %vm2589, %v4193, %v4787
  %v6044 = vsel %vm2589, %v4194, %v4789
  %v6045 = vsel %vm2589, %v4195, %v4791
  %v6046 = vsel %vm2589, %v4196, %v4793
  %v6047 = vsel %vm2589, %v4197, %v4795
  %v6048 = vsel %vm2589, %v4198, %v4797
  %v6049 = vsel %vm2589, %v4199, %v4799
  %v6050 = vsel %vm2589, %v4200, %v4801
  %v6051 = vsel %vm2589, %v4201, %v4803
  %v6052 = vsel %vm2589, %v4202, %v4805
  %v6053 = vsel %vm2589, %v4203, %v4807
  %v6054 = vsel %vm2589, %v4204, %v4809
  %v6055 = vsel %vm2589, %v4205, %v4811
  %v6056 = vsel %vm2589, %v4206, %v4813
  %v6057 = vsel %vm2589, %v4207, %v4815
  %v6058 = vsel %vm2589, %v4208, %v4817
  %v6059 = vsel %vm2589, %v4209, %v4819
  %v6060 = vsel %vm2589, %v4210, %v4821
  %v6061 = vsel %vm2589, %v4211, %v4823
  %v6062 = vsel %vm2589, %v4212, %v4825
  %v6063 = vsel %vm2589, %v4213, %v4827
  %v6064 = vsel %vm2589, %v4214, %v4829
  %v6065 = vsel %vm2589, %v4215, %v4831
  %v6066 = vsel %vm2589, %v4216, %v4833
  %v6067 = vsel %vm2589, %v4217, %v4835
  %vm6068 = vcmask 523264
  %v6069 = vsel %vm6068, %v6012, %v4949
  %v6070 = vsel %vm6068, %v6013, %v4951
  %v6071 = vsel %vm6068, %v6014, %v4953
  %v6072 = vsel %vm6068, %v6015, %v4955
  %v6073 = vsel %vm6068, %v6016, %v4957
  %v6074 = vsel %vm6068, %v6017, %v4959
  %v6075 = vsel %vm6068, %v6018, %v4961
  %v6076 = vsel %vm6068, %v6019, %v4963
  %v6077 = vsel %vm6068, %v6020, %v4965
  %v6078 = vsel %vm6068, %v6021, %v4967
  %v6079 = vsel %vm6068, %v6022, %v4969
  %v6080 = vsel %vm6068, %v6023, %v4971
  %v6081 = vsel %vm6068, %v6024, %v4973
  %v6082 = vsel %vm6068, %v6025, %v4975
  %v6083 = vsel %vm6068, %v6026, %v4977
  %v6084 = vsel %vm6068, %v6027, %v4979
  %v6085 = vsel %vm6068, %v6028, %v4981
  %v6086 = vsel %vm6068, %v6029, %v4983
  %v6087 = vsel %vm6068, %v6030, %v4985
  %v6088 = vsel %vm6068, %v6031, %v4987
  %v6089 = vsel %vm6068, %v6032, %v4989
  %v6090 = vsel %vm6068, %v6033, %v4991
  %v6091 = vsel %vm6068, %v6034, %v4993
  %v6092 = vsel %vm6068, %v6035, %v4995
  %v6093 = vsel %vm6068, %v6036, %v4997
  %v6094 = vsel %vm6068, %v6037, %v4999
  %v6095 = vsel %vm6068, %v6038, %v5001
  %v6096 = vsel %vm6068, %v6039, %v5003
  %v6097 = vsel %vm6068, %v6040, %v5005
  %v6098 = vsel %vm6068, %v6041, %v5007
  %v6099 = vsel %vm6068, %v6042, %v5009
  %v6100 = vsel %vm6068, %v6043, %v5011
  %v6101 = vsel %vm6068, %v6044, %v5013
  %v6102 = vsel %vm6068, %v6045, %v5015
  %v6103 = vsel %vm6068, %v6046, %v5017
  %v6104 = vsel %vm6068, %v6047, %v5019
  %v6105 = vsel %vm6068, %v6048, %v5021
  %v6106 = vsel %vm6068, %v6049, %v5023
  %v6107 = vsel %vm6068, %v6050, %v5025
  %v6108 = vsel %vm6068, %v6051, %v5027
  %v6109 = vsel %vm6068, %v6052, %v5029
  %v6110 = vsel %vm6068, %v6053, %v5031
  %v6111 = vsel %vm6068, %v6054, %v5033
  %v6112 = vsel %vm6068, %v6055, %v5035
  %v6113 = vsel %vm6068, %v6056, %v5037
  %v6114 = vsel %vm6068, %v6057, %v5039
  %v6115 = vsel %vm6068, %v6058, %v5041
  %v6116 = vsel %vm6068, %v6059, %v5043
  %v6117 = vsel %vm6068, %v6060, %v5045
  %v6118 = vsel %vm6068, %v6061, %v5047
  %v6119 = vsel %vm6068, %v6062, %v5049
  %v6120 = vsel %vm6068, %v6063, %v5051
  %v6121 = vsel %vm6068, %v6064, %v5053
  %v6122 = vsel %vm6068, %v6065, %v5055
  %v6123 = vsel %vm6068, %v6066, %v5057
  %v6124 = vsel %vm6068, %v6067, %v5059
  %vm6125 = vcmask 785408
  %v6126 = vsel %vm6125, %v6069, %v5173
  %v6127 = vsel %vm6125, %v6070, %v5175
  %v6128 = vsel %vm6125, %v6071, %v5177
  %v6129 = vsel %vm6125, %v6072, %v5179
  %v6130 = vsel %vm6125, %v6073, %v5181
  %v6131 = vsel %vm6125, %v6074, %v5183
  %v6132 = vsel %vm6125, %v6075, %v5185
  %v6133 = vsel %vm6125, %v6076, %v5187
  %v6134 = vsel %vm6125, %v6077, %v5189
  %v6135 = vsel %vm6125, %v6078, %v5191
  %v6136 = vsel %vm6125, %v6079, %v5193
  %v6137 = vsel %vm6125, %v6080, %v5195
  %v6138 = vsel %vm6125, %v6081, %v5197
  %v6139 = vsel %vm6125, %v6082, %v5199
  %v6140 = vsel %vm6125, %v6083, %v5201
  %v6141 = vsel %vm6125, %v6084, %v5203
  %v6142 = vsel %vm6125, %v6085, %v5205
  %v6143 = vsel %vm6125, %v6086, %v5207
  %v6144 = vsel %vm6125, %v6087, %v5209
  %v6145 = vsel %vm6125, %v6088, %v5211
  %v6146 = vsel %vm6125, %v6089, %v5213
  %v6147 = vsel %vm6125, %v6090, %v5215
  %v6148 = vsel %vm6125, %v6091, %v5217
  %v6149 = vsel %vm6125, %v6092, %v5219
  %v6150 = vsel %vm6125, %v6093, %v5221
  %v6151 = vsel %vm6125, %v6094, %v5223
  %v6152 = vsel %vm6125, %v6095, %v5225
  %v6153 = vsel %vm6125, %v6096, %v5227
  %v6154 = vsel %vm6125, %v6097, %v5229
  %v6155 = vsel %vm6125, %v6098, %v5231
  %v6156 = vsel %vm6125, %v6099, %v5233
  %v6157 = vsel %vm6125, %v6100, %v5235
  %v6158 = vsel %vm6125, %v6101, %v5237
  %v6159 = vsel %vm6125, %v6102, %v5239
  %v6160 = vsel %vm6125, %v6103, %v5241
  %v6161 = vsel %vm6125, %v6104, %v5243
  %v6162 = vsel %vm6125, %v6105, %v5245
  %v6163 = vsel %vm6125, %v6106, %v5247
  %v6164 = vsel %vm6125, %v6107, %v5249
  %v6165 = vsel %vm6125, %v6108, %v5251
  %v6166 = vsel %vm6125, %v6109, %v5253
  %v6167 = vsel %vm6125, %v6110, %v5255
  %v6168 = vsel %vm6125, %v6111, %v5257
  %v6169 = vsel %vm6125, %v6112, %v5259
  %v6170 = vsel %vm6125, %v6113, %v5261
  %v6171 = vsel %vm6125, %v6114, %v5263
  %v6172 = vsel %vm6125, %v6115, %v5265
  %v6173 = vsel %vm6125, %v6116, %v5267
  %v6174 = vsel %vm6125, %v6117, %v5269
  %v6175 = vsel %vm6125, %v6118, %v5271
  %v6176 = vsel %vm6125, %v6119, %v5273
  %v6177 = vsel %vm6125, %v6120, %v5275
  %v6178 = vsel %vm6125, %v6121, %v5277
  %v6179 = vsel %vm6125, %v6122, %v5279
  %v6180 = vsel %vm6125, %v6123, %v5281
  %v6181 = vsel %vm6125, %v6124, %v5283
  %v6182 = vsel %vm2589, %v4387, %v5397
  %v6183 = vsel %vm2589, %v4388, %v5399
  %v6184 = vsel %vm2589, %v4389, %v5401
  %v6185 = vsel %vm2589, %v4390, %v5403
  %v6186 = vsel %vm2589, %v4391, %v5405
  %v6187 = vsel %vm2589, %v4392, %v5407
  %v6188 = vsel %vm2589, %v4393, %v5409
  %v6189 = vsel %vm2589, %v4394, %v5411
  %v6190 = vsel %vm2589, %v4395, %v5413
  %v6191 = vsel %vm2589, %v4396, %v5415
  %v6192 = vsel %vm2589, %v4397, %v5417
  %v6193 = vsel %vm2589, %v4398, %v5419
  %v6194 = vsel %vm2589, %v4399, %v5421
  %v6195 = vsel %vm2589, %v4400, %v5423
  %v6196 = vsel %vm2589, %v4401, %v5425
  %v6197 = vsel %vm2589, %v4402, %v5427
  %v6198 = vsel %vm2589, %v4403, %v5429
  %v6199 = vsel %vm2589, %v4404, %v5431
  %v6200 = vsel %vm2589, %v4405, %v5433
  %v6201 = vsel %vm2589, %v4406, %v5435
  %v6202 = vsel %vm2589, %v4407, %v5437
  %v6203 = vsel %vm2589, %v4408, %v5439
  %v6204 = vsel %vm2589, %v4409, %v5441
  %v6205 = vsel %vm2589, %v4410, %v5443
  %v6206 = vsel %vm2589, %v4411, %v5445
  %v6207 = vsel %vm2589, %v4412, %v5447
  %v6208 = vsel %vm2589, %v4413, %v5449
  %v6209 = vsel %vm2589, %v4414, %v5451
  %v6210 = vsel %vm2589, %v4415, %v5453
  %v6211 = vsel %vm2589, %v4416, %v5455
  %v6212 = vsel %vm2589, %v4417, %v5457
  %v6213 = vsel %vm2589, %v4418, %v5459
  %v6214 = vsel %vm2589, %v4419, %v5461
  %v6215 = vsel %vm2589, %v4420, %v5463
  %v6216 = vsel %vm2589, %v4421, %v5465
  %v6217 = vsel %vm2589, %v4422, %v5467
  %v6218 = vsel %vm2589, %v4423, %v5469
  %v6219 = vsel %vm2589, %v4424, %v5471
  %v6220 = vsel %vm2589, %v4425, %v5473
  %v6221 = vsel %vm2589, %v4426, %v5475
  %v6222 = vsel %vm2589, %v4427, %v5477
  %v6223 = vsel %vm2589, %v4428, %v5479
  %v6224 = vsel %vm2589, %v4429, %v5481
  %v6225 = vsel %vm2589, %v4430, %v5483
  %v6226 = vsel %vm2589, %v4431, %v5485
  %v6227 = vsel %vm2589, %v4432, %v5487
  %v6228 = vsel %vm2589, %v4433, %v5489
  %v6229 = vsel %vm2589, %v4434, %v5491
  %v6230 = vsel %vm2589, %v4435, %v5493
  %v6231 = vsel %vm2589, %v4436, %v5495
  %v6232 = vsel %vm2589, %v4437, %v5497
  %v6233 = vsel %vm2589, %v4438, %v5499
  %v6234 = vsel %vm2589, %v4439, %v5501
  %v6235 = vsel %vm2589, %v4440, %v5503
  %v6236 = vsel %vm2589, %v4441, %v5505
  %v6237 = vsel %vm2589, %v4442, %v5507
  %v6238 = vsel %vm6068, %v6182, %v5621
  %v6239 = vsel %vm6068, %v6183, %v5623
  %v6240 = vsel %vm6068, %v6184, %v5625
  %v6241 = vsel %vm6068, %v6185, %v5627
  %v6242 = vsel %vm6068, %v6186, %v5629
  %v6243 = vsel %vm6068, %v6187, %v5631
  %v6244 = vsel %vm6068, %v6188, %v5633
  %v6245 = vsel %vm6068, %v6189, %v5635
  %v6246 = vsel %vm6068, %v6190, %v5637
  %v6247 = vsel %vm6068, %v6191, %v5639
  %v6248 = vsel %vm6068, %v6192, %v5641
  %v6249 = vsel %vm6068, %v6193, %v5643
  %v6250 = vsel %vm6068, %v6194, %v5645
  %v6251 = vsel %vm6068, %v6195, %v5647
  %v6252 = vsel %vm6068, %v6196, %v5649
  %v6253 = vsel %vm6068, %v6197, %v5651
  %v6254 = vsel %vm6068, %v6198, %v5653
  %v6255 = vsel %vm6068, %v6199, %v5655
  %v6256 = vsel %vm6068, %v6200, %v5657
  %v6257 = vsel %vm6068, %v6201, %v5659
  %v6258 = vsel %vm6068, %v6202, %v5661
  %v6259 = vsel %vm6068, %v6203, %v5663
  %v6260 = vsel %vm6068, %v6204, %v5665
  %v6261 = vsel %vm6068, %v6205, %v5667
  %v6262 = vsel %vm6068, %v6206, %v5669
  %v6263 = vsel %vm6068, %v6207, %v5671
  %v6264 = vsel %vm6068, %v6208, %v5673
  %v6265 = vsel %vm6068, %v6209, %v5675
  %v6266 = vsel %vm6068, %v6210, %v5677
  %v6267 = vsel %vm6068, %v6211, %v5679
  %v6268 = vsel %vm6068, %v6212, %v5681
  %v6269 = vsel %vm6068, %v6213, %v5683
  %v6270 = vsel %vm6068, %v6214, %v5685
  %v6271 = vsel %vm6068, %v6215, %v5687
  %v6272 = vsel %vm6068, %v6216, %v5689
  %v6273 = vsel %vm6068, %v6217, %v5691
  %v6274 = vsel %vm6068, %v6218, %v5693
  %v6275 = vsel %vm6068, %v6219, %v5695
  %v6276 = vsel %vm6068, %v6220, %v5697
  %v6277 = vsel %vm6068, %v6221, %v5699
  %v6278 = vsel %vm6068, %v6222, %v5701
  %v6279 = vsel %vm6068, %v6223, %v5703
  %v6280 = vsel %vm6068, %v6224, %v5705
  %v6281 = vsel %vm6068, %v6225, %v5707
  %v6282 = vsel %vm6068, %v6226, %v5709
  %v6283 = vsel %vm6068, %v6227, %v5711
  %v6284 = vsel %vm6068, %v6228, %v5713
  %v6285 = vsel %vm6068, %v6229, %v5715
  %v6286 = vsel %vm6068, %v6230, %v5717
  %v6287 = vsel %vm6068, %v6231, %v5719
  %v6288 = vsel %vm6068, %v6232, %v5721
  %v6289 = vsel %vm6068, %v6233, %v5723
  %v6290 = vsel %vm6068, %v6234, %v5725
  %v6291 = vsel %vm6068, %v6235, %v5727
  %v6292 = vsel %vm6068, %v6236, %v5729
  %v6293 = vsel %vm6068, %v6237, %v5731
  %v6294 = vsel %vm6125, %v6238, %v5845
  %v6295 = vsel %vm6125, %v6239, %v5847
  %v6296 = vsel %vm6125, %v6240, %v5849
  %v6297 = vsel %vm6125, %v6241, %v5851
  %v6298 = vsel %vm6125, %v6242, %v5853
  %v6299 = vsel %vm6125, %v6243, %v5855
  %v6300 = vsel %vm6125, %v6244, %v5857
  %v6301 = vsel %vm6125, %v6245, %v5859
  %v6302 = vsel %vm6125, %v6246, %v5861
  %v6303 = vsel %vm6125, %v6247, %v5863
  %v6304 = vsel %vm6125, %v6248, %v5865
  %v6305 = vsel %vm6125, %v6249, %v5867
  %v6306 = vsel %vm6125, %v6250, %v5869
  %v6307 = vsel %vm6125, %v6251, %v5871
  %v6308 = vsel %vm6125, %v6252, %v5873
  %v6309 = vsel %vm6125, %v6253, %v5875
  %v6310 = vsel %vm6125, %v6254, %v5877
  %v6311 = vsel %vm6125, %v6255, %v5879
  %v6312 = vsel %vm6125, %v6256, %v5881
  %v6313 = vsel %vm6125, %v6257, %v5883
  %v6314 = vsel %vm6125, %v6258, %v5885
  %v6315 = vsel %vm6125, %v6259, %v5887
  %v6316 = vsel %vm6125, %v6260, %v5889
  %v6317 = vsel %vm6125, %v6261, %v5891
  %v6318 = vsel %vm6125, %v6262, %v5893
  %v6319 = vsel %vm6125, %v6263, %v5895
  %v6320 = vsel %vm6125, %v6264, %v5897
  %v6321 = vsel %vm6125, %v6265, %v5899
  %v6322 = vsel %vm6125, %v6266, %v5901
  %v6323 = vsel %vm6125, %v6267, %v5903
  %v6324 = vsel %vm6125, %v6268, %v5905
  %v6325 = vsel %vm6125, %v6269, %v5907
  %v6326 = vsel %vm6125, %v6270, %v5909
  %v6327 = vsel %vm6125, %v6271, %v5911
  %v6328 = vsel %vm6125, %v6272, %v5913
  %v6329 = vsel %vm6125, %v6273, %v5915
  %v6330 = vsel %vm6125, %v6274, %v5917
  %v6331 = vsel %vm6125, %v6275, %v5919
  %v6332 = vsel %vm6125, %v6276, %v5921
  %v6333 = vsel %vm6125, %v6277, %v5923
  %v6334 = vsel %vm6125, %v6278, %v5925
  %v6335 = vsel %vm6125, %v6279, %v5927
  %v6336 = vsel %vm6125, %v6280, %v5929
  %v6337 = vsel %vm6125, %v6281, %v5931
  %v6338 = vsel %vm6125, %v6282, %v5933
  %v6339 = vsel %vm6125, %v6283, %v5935
  %v6340 = vsel %vm6125, %v6284, %v5937
  %v6341 = vsel %vm6125, %v6285, %v5939
  %v6342 = vsel %vm6125, %v6286, %v5941
  %v6343 = vsel %vm6125, %v6287, %v5943
  %v6344 = vsel %vm6125, %v6288, %v5945
  %v6345 = vsel %vm6125, %v6289, %v5947
  %v6346 = vsel %vm6125, %v6290, %v5949
  %v6347 = vsel %vm6125, %v6291, %v5951
  %v6348 = vsel %vm6125, %v6292, %v5953
  %v6349 = vsel %vm6125, %v6293, %v5955
  %v6350 = vpack.c.bf16 %v6127, %v6126
  %v6351 = vpack.c.bf16 %v6295, %v6294
  %v6352 = vpack.c.bf16 %v4613, %v4612
  %v6353 = vpack.c.bf16 %v6129, %v6128
  %v6354 = vpack.c.bf16 %v6297, %v6296
  %v6355 = vpack.c.bf16 %v4615, %v4614
  %v6356 = vpack.c.bf16 %v6131, %v6130
  %v6357 = vpack.c.bf16 %v6299, %v6298
  %v6358 = vpack.c.bf16 %v4617, %v4616
  %v6359 = vpack.c.bf16 %v6133, %v6132
  %v6360 = vpack.c.bf16 %v6301, %v6300
  %v6361 = vpack.c.bf16 %v4619, %v4618
  %v6362 = vpack.c.bf16 %v6135, %v6134
  %v6363 = vpack.c.bf16 %v6303, %v6302
  %v6364 = vpack.c.bf16 %v4621, %v4620
  %v6365 = vpack.c.bf16 %v6137, %v6136
  %v6366 = vpack.c.bf16 %v6305, %v6304
  %v6367 = vpack.c.bf16 %v4623, %v4622
  %v6368 = vpack.c.bf16 %v6139, %v6138
  %v6369 = vpack.c.bf16 %v6307, %v6306
  %v6370 = vpack.c.bf16 %v4625, %v4624
  %v6371 = vpack.c.bf16 %v6141, %v6140
  %v6372 = vpack.c.bf16 %v6309, %v6308
  %v6373 = vpack.c.bf16 %v4627, %v4626
  %v6374 = vpack.c.bf16 %v6143, %v6142
  %v6375 = vpack.c.bf16 %v6311, %v6310
  %v6376 = vpack.c.bf16 %v4629, %v4628
  %v6377 = vpack.c.bf16 %v6145, %v6144
  %v6378 = vpack.c.bf16 %v6313, %v6312
  %v6379 = vpack.c.bf16 %v4631, %v4630
  %v6380 = vpack.c.bf16 %v6147, %v6146
  %v6381 = vpack.c.bf16 %v6315, %v6314
  %v6382 = vpack.c.bf16 %v4633, %v4632
  %v6383 = vpack.c.bf16 %v6149, %v6148
  %v6384 = vpack.c.bf16 %v6317, %v6316
  %v6385 = vpack.c.bf16 %v4635, %v4634
  %v6386 = vpack.c.bf16 %v6151, %v6150
  %v6387 = vpack.c.bf16 %v6319, %v6318
  %v6388 = vpack.c.bf16 %v4637, %v4636
  %v6389 = vpack.c.bf16 %v6153, %v6152
  %v6390 = vpack.c.bf16 %v6321, %v6320
  %v6391 = vpack.c.bf16 %v4639, %v4638
  %v6392 = vpack.c.bf16 %v6155, %v6154
  %v6393 = vpack.c.bf16 %v6323, %v6322
  %v6394 = vpack.c.bf16 %v4641, %v4640
  %v6395 = vpack.c.bf16 %v6157, %v6156
  %v6396 = vpack.c.bf16 %v6325, %v6324
  %v6397 = vpack.c.bf16 %v4643, %v4642
  %v6398 = vpack.c.bf16 %v6159, %v6158
  %v6399 = vpack.c.bf16 %v6327, %v6326
  %v6400 = vpack.c.bf16 %v4645, %v4644
  %v6401 = vpack.c.bf16 %v6161, %v6160
  %v6402 = vpack.c.bf16 %v6329, %v6328
  %v6403 = vpack.c.bf16 %v4647, %v4646
  %v6404 = vpack.c.bf16 %v6163, %v6162
  %v6405 = vpack.c.bf16 %v6331, %v6330
  %v6406 = vpack.c.bf16 %v4649, %v4648
  %v6407 = vpack.c.bf16 %v6165, %v6164
  %v6408 = vpack.c.bf16 %v6333, %v6332
  %v6409 = vpack.c.bf16 %v4651, %v4650
  %v6410 = vpack.c.bf16 %v6167, %v6166
  %v6411 = vpack.c.bf16 %v6335, %v6334
  %v6412 = vpack.c.bf16 %v4653, %v4652
  %v6413 = vpack.c.bf16 %v6169, %v6168
  %v6414 = vpack.c.bf16 %v6337, %v6336
  %v6415 = vpack.c.bf16 %v4655, %v4654
  %v6416 = vpack.c.bf16 %v6171, %v6170
  %v6417 = vpack.c.bf16 %v6339, %v6338
  %v6418 = vpack.c.bf16 %v4657, %v4656
  %v6419 = vpack.c.bf16 %v6173, %v6172
  %v6420 = vpack.c.bf16 %v6341, %v6340
  %v6421 = vpack.c.bf16 %v4659, %v4658
  %v6422 = vpack.c.bf16 %v6175, %v6174
  %v6423 = vpack.c.bf16 %v6343, %v6342
  %v6424 = vpack.c.bf16 %v4661, %v4660
  %v6425 = vpack.c.bf16 %v6177, %v6176
  %v6426 = vpack.c.bf16 %v6345, %v6344
  %v6427 = vpack.c.bf16 %v4663, %v4662
  %v6428 = vpack.c.bf16 %v6179, %v6178
  %v6429 = vpack.c.bf16 %v6347, %v6346
  %v6430 = vpack.c.bf16 %v4665, %v4664
  %v6431 = vpack.c.bf16 %v6181, %v6180
  %v6432 = vpack.c.bf16 %v6349, %v6348
  %v6433 = vpack.c.bf16 %v4667, %v4666
  %v6434 = vld [vmem:[%s3] sm:$0xf]
  %v6435 = vld [vmem:[%s3 + $0x4] sm:$0xf]
  %v6436 = vld [vmem:[%s3 + $0x8] sm:$0xf]
  %v6437 = vld [vmem:[%s3 + $0xc] sm:$0xf]
  %v6438 = vld [vmem:[%s3 + $0x10] sm:$0xf]
  %v6439 = vld [vmem:[%s3 + $0x14] sm:$0xf]
  %v6440 = vld [vmem:[%s3 + $0x18] sm:$0xf]
  %v6441 = vld [vmem:[%s3 + $0x1c] sm:$0xf]
  %v6442 = vld [vmem:[%s3 + $0x20] sm:$0xf]
  %v6443 = vld [vmem:[%s3 + $0x24] sm:$0xf]
  %v6444 = vld [vmem:[%s3 + $0x28] sm:$0xf]
  %v6445 = vld [vmem:[%s3 + $0x2c] sm:$0xf]
  %v6446 = vld [vmem:[%s3 + $0x30] sm:$0xf]
  %v6447 = vld [vmem:[%s3 + $0x34] sm:$0xf]
  %v6448 = vld [vmem:[%s3 + $0x38] sm:$0xf]
  %v6449 = vld [vmem:[%s3 + $0x3c] sm:$0xf]
  %v6450 = vld [vmem:[%s3 + $0x40] sm:$0xf]
  %v6451 = vld [vmem:[%s3 + $0x44] sm:$0xf]
  %v6452 = vld [vmem:[%s3 + $0x48] sm:$0xf]
  %v6453 = vld [vmem:[%s3 + $0x4c] sm:$0xf]
  %v6454 = vld [vmem:[%s3 + $0x50] sm:$0xf]
  %v6455 = vld [vmem:[%s3 + $0x54] sm:$0xf]
  %v6456 = vld [vmem:[%s3 + $0x58] sm:$0xf]
  %v6457 = vld [vmem:[%s3 + $0x5c] sm:$0xf]
  %v6458 = vld [vmem:[%s3 + $0x60] sm:$0xf]
  %v6459 = vld [vmem:[%s3 + $0x64] sm:$0xf]
  %v6460 = vld [vmem:[%s3 + $0x68] sm:$0xf]
  %v6461 = vld [vmem:[%s3 + $0x6c] sm:$0xf]
  %v6462 = vld [vmem:[%s3 + $0x70] sm:$0xf]
  %v6463 = vld [vmem:[%s3 + $0x74] sm:$0xf]
  %v6464 = vld [vmem:[%s3 + $0x78] sm:$0xf]
  %v6465 = vld [vmem:[%s3 + $0x7c] sm:$0xf]
  %v6466 = vld [vmem:[%s3 + $0x80] sm:$0xf]
  %v6467 = vld [vmem:[%s3 + $0x84] sm:$0xf]
  %v6468 = vld [vmem:[%s3 + $0x88] sm:$0xf]
  %v6469 = vld [vmem:[%s3 + $0x8c] sm:$0xf]
  %v6506 = vunpack.c.l.b16 %v6434
  %v6507 = vunpack.c.l.b16 %v6435
  %v6508 = vunpack.c.l.b16 %v6436
  %v6509 = vunpack.c.l.b16 %v6437
  %v6510 = vunpack.c.l.b16 %v6438
  %v6511 = vunpack.c.l.b16 %v6439
  %v6512 = vunpack.c.l.b16 %v6440
  %v6513 = vunpack.c.l.b16 %v6441
  %v6514 = vunpack.c.l.b16 %v6442
  %v6515 = vunpack.c.l.b16 %v6443
  %v6516 = vunpack.c.l.b16 %v6444
  %v6517 = vunpack.c.l.b16 %v6445
  %v6518 = vunpack.c.l.b16 %v6446
  %v6519 = vunpack.c.l.b16 %v6447
  %v6520 = vunpack.c.l.b16 %v6448
  %v6521 = vunpack.c.l.b16 %v6449
  %v6522 = vunpack.c.l.b16 %v6450
  %v6523 = vunpack.c.l.b16 %v6451
  %v6524 = vunpack.c.l.b16 %v6452
  %v6525 = vunpack.c.l.b16 %v6453
  %v6526 = vunpack.c.l.b16 %v6454
  %v6527 = vunpack.c.l.b16 %v6455
  %v6528 = vunpack.c.l.b16 %v6456
  %v6529 = vunpack.c.l.b16 %v6457
  %v6530 = vunpack.c.l.b16 %v6458
  %v6531 = vunpack.c.l.b16 %v6459
  %v6532 = vunpack.c.l.b16 %v6460
  %v6533 = vunpack.c.l.b16 %v6461
  %v6534 = vunpack.c.l.b16 %v6462
  %v6535 = vunpack.c.l.b16 %v6463
  %v6536 = vunpack.c.l.b16 %v6464
  %v6537 = vunpack.c.l.b16 %v6465
  %v6538 = vunpack.c.l.b16 %v6466
  %v6539 = vunpack.c.l.b16 %v6467
  %v6540 = vunpack.c.l.b16 %v6468
  %v6541 = vunpack.c.l.b16 %v6469
  %v6542 = vpack.c.b16 %v6507, %v6506
  %v6543 = vpack.c.b16 %v6509, %v6508
  %v6544 = vpack.c.b16 %v6511, %v6510
  %v6545 = vpack.c.b16 %v6513, %v6512
  %v6546 = vpack.c.b16 %v6515, %v6514
  %v6547 = vpack.c.b16 %v6517, %v6516
  %v6548 = vpack.c.b16 %v6519, %v6518
  %v6549 = vpack.c.b16 %v6521, %v6520
  %v6550 = vpack.c.b16 %v6523, %v6522
  %v6551 = vpack.c.b16 %v6525, %v6524
  %v6552 = vpack.c.b16 %v6527, %v6526
  %v6553 = vpack.c.b16 %v6529, %v6528
  %v6554 = vpack.c.b16 %v6531, %v6530
  %v6555 = vpack.c.b16 %v6533, %v6532
  %v6556 = vpack.c.b16 %v6535, %v6534
  %v6557 = vpack.c.b16 %v6537, %v6536
  %v6558 = vpack.c.b16 %v6539, %v6538
  %v6559 = vpack.c.b16 %v6541, %v6540
  %v6579 = vsel %vm2589, %v6352, 0
  %v6582 = vsel %vm2589, %v6355, 0
  %v6585 = vsel %vm2589, %v6358, 0
  %v6588 = vsel %vm2589, %v6361, 0
  %v6591 = vsel %vm2589, %v6364, 0
  %v6594 = vsel %vm2589, %v6367, 0
  %v6597 = vsel %vm2589, %v6370, 0
  %v6600 = vsel %vm2589, %v6373, 0
  %v6603 = vsel %vm2589, %v6376, 0
  %v6606 = vsel %vm2589, %v6379, 0
  %v6609 = vsel %vm2589, %v6382, 0
  %v6612 = vsel %vm2589, %v6385, 0
  %v6615 = vsel %vm2589, %v6388, 0
  %v6618 = vsel %vm2589, %v6391, 0
  %v6621 = vsel %vm2589, %v6394, 0
  %v6624 = vsel %vm2589, %v6397, 0
  %v6627 = vsel %vm2589, %v6400, 0
  %v6630 = vsel %vm2589, %v6403, 0
  %v6633 = vsel %vm2589, %v6406, 0
  %v6636 = vsel %vm2589, %v6409, 0
  %v6639 = vsel %vm2589, %v6412, 0
  %v6642 = vsel %vm2589, %v6415, 0
  %v6645 = vsel %vm2589, %v6418, 0
  %v6648 = vsel %vm2589, %v6421, 0
  %v6651 = vsel %vm2589, %v6424, 0
  %v6654 = vsel %vm2589, %v6427, 0
  %v6657 = vsel %vm2589, %v6430, 0
  %v6660 = vsel %vm2589, %v6433, 0
  %6662 = vmatprep.subr.bf16.mxu0 0
  %6663 = vmatpush1.bf16.msra.mxu0 %v6542
  %6664 = vmatprep.subr.bf16.mxu0 0
  %6665 = vmatpush1.bf16.msra.mxu0 %v6543
  %6666 = vmatprep.subr.bf16.mxu0 0
  %6667 = vmatpush1.bf16.msra.mxu0 %v6544
  %6668 = vmatprep.subr.bf16.mxu0 0
  %6669 = vmatpush1.bf16.msra.mxu0 %v6545
  %6670 = vmatprep.subr.bf16.mxu0 0
  %6671 = vmatpush1.bf16.msra.mxu0 %v6546
  %6672 = vmatprep.subr.bf16.mxu0 0
  %6673 = vmatpush1.bf16.msra.mxu0 %v6547
  %6674 = vmatprep.subr.bf16.mxu0 0
  %6675 = vmatpush1.bf16.msra.mxu0 %v6548
  %6676 = vmatprep.subr.bf16.mxu0 0
  %6677 = vmatpush1.bf16.msra.mxu0 %v6549
  %6678 = vmatprep.subr.bf16.mxu0 0
  %6679 = vmatpush1.bf16.msra.mxu0 %v6550
  %6680 = vmatprep.subr.bf16.mxu0 0
  %6681 = vmatpush1.bf16.msra.mxu0 %v6551
  %6682 = vmatprep.subr.bf16.mxu0 0
  %6683 = vmatpush1.bf16.msra.mxu0 %v6552
  %6684 = vmatprep.subr.bf16.mxu0 0
  %6685 = vmatpush1.bf16.msra.mxu0 %v6553
  %6686 = vmatprep.subr.bf16.mxu0 0
  %6687 = vmatpush1.bf16.msra.mxu0 %v6554
  %6688 = vmatprep.subr.bf16.mxu0 0
  %6689 = vmatpush1.bf16.msra.mxu0 %v6555
  %6690 = vmatprep.subr.bf16.mxu0 0
  %6691 = vmatpush1.bf16.msra.mxu0 %v6556
  %6692 = vmatprep.subr.bf16.mxu0 0
  %6693 = vmatpush1.bf16.msra.mxu0 %v6557
  %6694 = vmatprep.mubr.bf16.mxu0 %v6351
  %6695 = vmatmul.mubr.bf16.gmra.mrb[0].mxu0 %v6350
  %v6696 = vpop.f32.mrb[0].mxu0
  %v6697 = vadd.f32 0.0, %v6696
  %v6698 = vpop.f32.mrb[0].mxu0
  %v6699 = vpop.f32.mrb[0].mxu0
  %v6700 = vadd.f32 0.0, %v6699
  %v6701 = vpop.f32.mrb[0].mxu0
  %6702 = vmatprep.mubr.bf16.mxu0 %v6354
  %6703 = vmatmul.mubr.bf16.gmra.mrb[0].mxu0 %v6353
  %v6704 = vpop.f32.mrb[0].mxu0
  %v6705 = vadd.f32 0.0, %v6704
  %v6706 = vpop.f32.mrb[0].mxu0
  %v6707 = vpop.f32.mrb[0].mxu0
  %v6708 = vadd.f32 0.0, %v6707
  %v6709 = vpop.f32.mrb[0].mxu0
  %6710 = vmatprep.mubr.bf16.mxu0 %v6357
  %6711 = vmatmul.mubr.bf16.gmra.mrb[0].mxu0 %v6356
  %v6712 = vpop.f32.mrb[0].mxu0
  %v6713 = vadd.f32 0.0, %v6712
  %v6714 = vpop.f32.mrb[0].mxu0
  %v6715 = vpop.f32.mrb[0].mxu0
  %v6716 = vadd.f32 0.0, %v6715
  %v6717 = vpop.f32.mrb[0].mxu0
  %6718 = vmatprep.mubr.bf16.mxu0 %v6360
  %6719 = vmatmul.mubr.bf16.gmra.mrb[0].mxu0 %v6359
  %v6720 = vpop.f32.mrb[0].mxu0
  %v6721 = vadd.f32 0.0, %v6720
  %v6722 = vpop.f32.mrb[0].mxu0
  %v6723 = vpop.f32.mrb[0].mxu0
  %v6724 = vadd.f32 0.0, %v6723
  %v6725 = vpop.f32.mrb[0].mxu0
  %6726 = vmatprep.mubr.bf16.mxu0 %v6363
  %6727 = vmatmul.mubr.bf16.gmra.mrb[0].mxu0 %v6362
  %v6728 = vpop.f32.mrb[0].mxu0
  %v6729 = vadd.f32 0.0, %v6728
  %v6730 = vpop.f32.mrb[0].mxu0
  %v6731 = vpop.f32.mrb[0].mxu0
  %v6732 = vadd.f32 0.0, %v6731
  %v6733 = vpop.f32.mrb[0].mxu0
  %6734 = vmatprep.mubr.bf16.mxu0 %v6366
  %6735 = vmatmul.mubr.bf16.gmra.mrb[0].mxu0 %v6365
  %v6736 = vpop.f32.mrb[0].mxu0
  %v6737 = vadd.f32 0.0, %v6736
  %v6738 = vpop.f32.mrb[0].mxu0
  %v6739 = vpop.f32.mrb[0].mxu0
  %v6740 = vadd.f32 0.0, %v6739
  %v6741 = vpop.f32.mrb[0].mxu0
  %6742 = vmatprep.mubr.bf16.mxu0 %v6369
  %6743 = vmatmul.mubr.bf16.gmra.mrb[0].mxu0 %v6368
  %v6744 = vpop.f32.mrb[0].mxu0
  %v6745 = vadd.f32 0.0, %v6744
  %v6746 = vpop.f32.mrb[0].mxu0
  %v6747 = vpop.f32.mrb[0].mxu0
  %v6748 = vadd.f32 0.0, %v6747
  %v6749 = vpop.f32.mrb[0].mxu0
  %6750 = vmatprep.mubr.bf16.mxu0 %v6372
  %6751 = vmatmul.mubr.bf16.gmra.mrb[0].mxu0 %v6371
  %v6752 = vpop.f32.mrb[0].mxu0
  %v6753 = vadd.f32 0.0, %v6752
  %v6754 = vpop.f32.mrb[0].mxu0
  %v6755 = vpop.f32.mrb[0].mxu0
  %v6756 = vadd.f32 0.0, %v6755
  %v6757 = vpop.f32.mrb[0].mxu0
  %6758 = vmatprep.mubr.bf16.mxu0 %v6375
  %6759 = vmatmul.mubr.bf16.gmra.mrb[0].mxu0 %v6374
  %v6760 = vpop.f32.mrb[0].mxu0
  %v6761 = vadd.f32 0.0, %v6760
  %v6762 = vpop.f32.mrb[0].mxu0
  %v6763 = vpop.f32.mrb[0].mxu0
  %v6764 = vadd.f32 0.0, %v6763
  %v6765 = vpop.f32.mrb[0].mxu0
  %6766 = vmatprep.mubr.bf16.mxu0 %v6378
  %6767 = vmatmul.mubr.bf16.gmra.mrb[0].mxu0 %v6377
  %v6768 = vpop.f32.mrb[0].mxu0
  %v6769 = vadd.f32 0.0, %v6768
  %v6770 = vpop.f32.mrb[0].mxu0
  %v6771 = vpop.f32.mrb[0].mxu0
  %v6772 = vadd.f32 0.0, %v6771
  %v6773 = vpop.f32.mrb[0].mxu0
  %6774 = vmatprep.mubr.bf16.mxu0 %v6381
  %6775 = vmatmul.mubr.bf16.gmra.mrb[0].mxu0 %v6380
  %v6776 = vpop.f32.mrb[0].mxu0
  %v6777 = vadd.f32 0.0, %v6776
  %v6778 = vpop.f32.mrb[0].mxu0
  %v6779 = vpop.f32.mrb[0].mxu0
  %v6780 = vadd.f32 0.0, %v6779
  %v6781 = vpop.f32.mrb[0].mxu0
  %6782 = vmatprep.mubr.bf16.mxu0 %v6384
  %6783 = vmatmul.mubr.bf16.gmra.mrb[0].mxu0 %v6383
  %v6784 = vpop.f32.mrb[0].mxu0
  %v6785 = vadd.f32 0.0, %v6784
  %v6786 = vpop.f32.mrb[0].mxu0
  %v6787 = vpop.f32.mrb[0].mxu0
  %v6788 = vadd.f32 0.0, %v6787
  %v6789 = vpop.f32.mrb[0].mxu0
  %6790 = vmatprep.mubr.bf16.mxu0 %v6387
  %6791 = vmatmul.mubr.bf16.gmra.mrb[0].mxu0 %v6386
  %v6792 = vpop.f32.mrb[0].mxu0
  %v6793 = vadd.f32 0.0, %v6792
  %v6794 = vpop.f32.mrb[0].mxu0
  %v6795 = vpop.f32.mrb[0].mxu0
  %v6796 = vadd.f32 0.0, %v6795
  %v6797 = vpop.f32.mrb[0].mxu0
  %6798 = vmatprep.mubr.bf16.mxu0 %v6390
  %6799 = vmatmul.mubr.bf16.gmra.mrb[0].mxu0 %v6389
  %v6800 = vpop.f32.mrb[0].mxu0
  %v6801 = vadd.f32 0.0, %v6800
  %v6802 = vpop.f32.mrb[0].mxu0
  %v6803 = vpop.f32.mrb[0].mxu0
  %v6804 = vadd.f32 0.0, %v6803
  %v6805 = vpop.f32.mrb[0].mxu0
  %6806 = vmatprep.mubr.bf16.mxu0 %v6393
  %6807 = vmatmul.mubr.bf16.gmra.mrb[0].mxu0 %v6392
  %v6808 = vpop.f32.mrb[0].mxu0
  %v6809 = vadd.f32 0.0, %v6808
  %v6810 = vpop.f32.mrb[0].mxu0
  %v6811 = vpop.f32.mrb[0].mxu0
  %v6812 = vadd.f32 0.0, %v6811
  %v6813 = vpop.f32.mrb[0].mxu0
  %6814 = vmatprep.mubr.bf16.mxu0 %v6396
  %6815 = vmatmul.mubr.bf16.gmra.mrb[0].mxu0 %v6395
  %v6816 = vpop.f32.mrb[0].mxu0
  %v6817 = vadd.f32 0.0, %v6816
  %v6818 = vpop.f32.mrb[0].mxu0
  %v6819 = vpop.f32.mrb[0].mxu0
  %v6820 = vadd.f32 0.0, %v6819
  %v6821 = vpop.f32.mrb[0].mxu0
  %6822 = vmatprep.mubr.bf16.mxu0 %v6399
  %6823 = vmatmul.mubr.bf16.gmra.mrb[0].mxu0 %v6398
  %v6824 = vpop.f32.mrb[0].mxu0
  %v6825 = vadd.f32 0.0, %v6824
  %v6826 = vpop.f32.mrb[0].mxu0
  %v6827 = vpop.f32.mrb[0].mxu0
  %v6828 = vadd.f32 0.0, %v6827
  %v6829 = vpop.f32.mrb[0].mxu0
  %6830 = vmatprep.mubr.bf16.mxu0 %v6402
  %6831 = vmatmul.mubr.bf16.gmra.mrb[0].mxu0 %v6401
  %v6832 = vpop.f32.mrb[0].mxu0
  %v6833 = vadd.f32 0.0, %v6832
  %v6834 = vpop.f32.mrb[0].mxu0
  %v6835 = vpop.f32.mrb[0].mxu0
  %v6836 = vadd.f32 0.0, %v6835
  %v6837 = vpop.f32.mrb[0].mxu0
  %6838 = vmatprep.mubr.bf16.mxu0 %v6405
  %6839 = vmatmul.mubr.bf16.gmra.mrb[0].mxu0 %v6404
  %v6840 = vpop.f32.mrb[0].mxu0
  %v6841 = vadd.f32 0.0, %v6840
  %v6842 = vpop.f32.mrb[0].mxu0
  %v6843 = vpop.f32.mrb[0].mxu0
  %v6844 = vadd.f32 0.0, %v6843
  %v6845 = vpop.f32.mrb[0].mxu0
  %6846 = vmatprep.mubr.bf16.mxu0 %v6408
  %6847 = vmatmul.mubr.bf16.gmra.mrb[0].mxu0 %v6407
  %v6848 = vpop.f32.mrb[0].mxu0
  %v6849 = vadd.f32 0.0, %v6848
  %v6850 = vpop.f32.mrb[0].mxu0
  %v6851 = vpop.f32.mrb[0].mxu0
  %v6852 = vadd.f32 0.0, %v6851
  %v6853 = vpop.f32.mrb[0].mxu0
  %6854 = vmatprep.mubr.bf16.mxu0 %v6411
  %6855 = vmatmul.mubr.bf16.gmra.mrb[0].mxu0 %v6410
  %v6856 = vpop.f32.mrb[0].mxu0
  %v6857 = vadd.f32 0.0, %v6856
  %v6858 = vpop.f32.mrb[0].mxu0
  %v6859 = vpop.f32.mrb[0].mxu0
  %v6860 = vadd.f32 0.0, %v6859
  %v6861 = vpop.f32.mrb[0].mxu0
  %6862 = vmatprep.mubr.bf16.mxu0 %v6414
  %6863 = vmatmul.mubr.bf16.gmra.mrb[0].mxu0 %v6413
  %v6864 = vpop.f32.mrb[0].mxu0
  %v6865 = vadd.f32 0.0, %v6864
  %v6866 = vpop.f32.mrb[0].mxu0
  %v6867 = vpop.f32.mrb[0].mxu0
  %v6868 = vadd.f32 0.0, %v6867
  %v6869 = vpop.f32.mrb[0].mxu0
  %6870 = vmatprep.mubr.bf16.mxu0 %v6417
  %6871 = vmatmul.mubr.bf16.gmra.mrb[0].mxu0 %v6416
  %v6872 = vpop.f32.mrb[0].mxu0
  %v6873 = vadd.f32 0.0, %v6872
  %v6874 = vpop.f32.mrb[0].mxu0
  %v6875 = vpop.f32.mrb[0].mxu0
  %v6876 = vadd.f32 0.0, %v6875
  %v6877 = vpop.f32.mrb[0].mxu0
  %6878 = vmatprep.mubr.bf16.mxu0 %v6420
  %6879 = vmatmul.mubr.bf16.gmra.mrb[0].mxu0 %v6419
  %v6880 = vpop.f32.mrb[0].mxu0
  %v6881 = vadd.f32 0.0, %v6880
  %v6882 = vpop.f32.mrb[0].mxu0
  %v6883 = vpop.f32.mrb[0].mxu0
  %v6884 = vadd.f32 0.0, %v6883
  %v6885 = vpop.f32.mrb[0].mxu0
  %6886 = vmatprep.mubr.bf16.mxu0 %v6423
  %6887 = vmatmul.mubr.bf16.gmra.mrb[0].mxu0 %v6422
  %v6888 = vpop.f32.mrb[0].mxu0
  %v6889 = vadd.f32 0.0, %v6888
  %v6890 = vpop.f32.mrb[0].mxu0
  %v6891 = vpop.f32.mrb[0].mxu0
  %v6892 = vadd.f32 0.0, %v6891
  %v6893 = vpop.f32.mrb[0].mxu0
  %6894 = vmatprep.mubr.bf16.mxu0 %v6426
  %6895 = vmatmul.mubr.bf16.gmra.mrb[0].mxu0 %v6425
  %v6896 = vpop.f32.mrb[0].mxu0
  %v6897 = vadd.f32 0.0, %v6896
  %v6898 = vpop.f32.mrb[0].mxu0
  %v6899 = vpop.f32.mrb[0].mxu0
  %v6900 = vadd.f32 0.0, %v6899
  %v6901 = vpop.f32.mrb[0].mxu0
  %6902 = vmatprep.mubr.bf16.mxu0 %v6429
  %6903 = vmatmul.mubr.bf16.gmra.mrb[0].mxu0 %v6428
  %v6904 = vpop.f32.mrb[0].mxu0
  %v6905 = vadd.f32 0.0, %v6904
  %v6906 = vpop.f32.mrb[0].mxu0
  %v6907 = vpop.f32.mrb[0].mxu0
  %v6908 = vadd.f32 0.0, %v6907
  %v6909 = vpop.f32.mrb[0].mxu0
  %6910 = vmatprep.mubr.bf16.mxu0 %v6432
  %6911 = vmatmul.mubr.bf16.gmra.mrb[0].mxu0 %v6431
  %v6912 = vpop.f32.mrb[0].mxu0
  %v6913 = vadd.f32 0.0, %v6912
  %v6914 = vpop.f32.mrb[0].mxu0
  %v6915 = vpop.f32.mrb[0].mxu0
  %v6916 = vadd.f32 0.0, %v6915
  %v6917 = vpop.f32.mrb[0].mxu0
  %6918 = vdwg.mxu0
  %6919 = vmatprep.subr.bf16.mxu0 0
  %6920 = vmatpush1.bf16.msra.mxu0 %v6558
  %6921 = vmatprep.subr.bf16.mxu0 0
  %6922 = vmatpush1.bf16.msra.mxu0 %v6559
  %6923 = vmatprep.subr.bf16.mxu0 0
  %6924 = vmatpush1.bf16.msra.mxu0 0
  %6925 = vmatprep.subr.bf16.mxu0 0
  %6926 = vmatpush1.bf16.msra.mxu0 0
  %6927 = vmatprep.subr.bf16.mxu0 0
  %6928 = vmatpush1.bf16.msra.mxu0 0
  %6929 = vmatprep.subr.bf16.mxu0 0
  %6930 = vmatpush1.bf16.msra.mxu0 0
  %6931 = vmatprep.subr.bf16.mxu0 0
  %6932 = vmatpush1.bf16.msra.mxu0 0
  %6933 = vmatprep.subr.bf16.mxu0 0
  %6934 = vmatpush1.bf16.msra.mxu0 0
  %6935 = vmatprep.subr.bf16.mxu0 0
  %6936 = vmatpush1.bf16.msra.mxu0 0
  %6937 = vmatprep.subr.bf16.mxu0 0
  %6938 = vmatpush1.bf16.msra.mxu0 0
  %6939 = vmatprep.subr.bf16.mxu0 0
  %6940 = vmatpush1.bf16.msra.mxu0 0
  %6941 = vmatprep.subr.bf16.mxu0 0
  %6942 = vmatpush1.bf16.msra.mxu0 0
  %6943 = vmatprep.subr.bf16.mxu0 0
  %6944 = vmatpush1.bf16.msra.mxu0 0
  %6945 = vmatprep.subr.bf16.mxu0 0
  %6946 = vmatpush1.bf16.msra.mxu0 0
  %6947 = vmatprep.subr.bf16.mxu0 0
  %6948 = vmatpush1.bf16.msra.mxu0 0
  %6949 = vmatprep.subr.bf16.mxu0 0
  %6950 = vmatpush1.bf16.msra.mxu0 0
  %6951 = vmatprep.mubr.bf16.mxu0 0
  %6952 = vmatmul.mubr.bf16.gmra.mrb[0].mxu0 %v6579
  %v6953 = vpop.f32.mrb[0].mxu0
  %v6954 = vadd.f32 %v6697, %v6953
  %v6955 = vpop.f32.mrb[0].mxu0
  %v6956 = vpop.f32.mrb[0].mxu0
  %v6957 = vadd.f32 %v6700, %v6956
  %v6958 = vpop.f32.mrb[0].mxu0
  %6959 = vmatprep.mubr.bf16.mxu0 0
  %6960 = vmatmul.mubr.bf16.gmra.mrb[0].mxu0 %v6582
  %v6961 = vpop.f32.mrb[0].mxu0
  %v6962 = vadd.f32 %v6705, %v6961
  %v6963 = vpop.f32.mrb[0].mxu0
  %v6964 = vpop.f32.mrb[0].mxu0
  %v6965 = vadd.f32 %v6708, %v6964
  %v6966 = vpop.f32.mrb[0].mxu0
  %6967 = vmatprep.mubr.bf16.mxu0 0
  %6968 = vmatmul.mubr.bf16.gmra.mrb[0].mxu0 %v6585
  %v6969 = vpop.f32.mrb[0].mxu0
  %v6970 = vadd.f32 %v6713, %v6969
  %v6971 = vpop.f32.mrb[0].mxu0
  %v6972 = vpop.f32.mrb[0].mxu0
  %v6973 = vadd.f32 %v6716, %v6972
  %v6974 = vpop.f32.mrb[0].mxu0
  %6975 = vmatprep.mubr.bf16.mxu0 0
  %6976 = vmatmul.mubr.bf16.gmra.mrb[0].mxu0 %v6588
  %v6977 = vpop.f32.mrb[0].mxu0
  %v6978 = vadd.f32 %v6721, %v6977
  %v6979 = vpop.f32.mrb[0].mxu0
  %v6980 = vpop.f32.mrb[0].mxu0
  %v6981 = vadd.f32 %v6724, %v6980
  %v6982 = vpop.f32.mrb[0].mxu0
  %6983 = vmatprep.mubr.bf16.mxu0 0
  %6984 = vmatmul.mubr.bf16.gmra.mrb[0].mxu0 %v6591
  %v6985 = vpop.f32.mrb[0].mxu0
  %v6986 = vadd.f32 %v6729, %v6985
  %v6987 = vpop.f32.mrb[0].mxu0
  %v6988 = vpop.f32.mrb[0].mxu0
  %v6989 = vadd.f32 %v6732, %v6988
  %v6990 = vpop.f32.mrb[0].mxu0
  %6991 = vmatprep.mubr.bf16.mxu0 0
  %6992 = vmatmul.mubr.bf16.gmra.mrb[0].mxu0 %v6594
  %v6993 = vpop.f32.mrb[0].mxu0
  %v6994 = vadd.f32 %v6737, %v6993
  %v6995 = vpop.f32.mrb[0].mxu0
  %v6996 = vpop.f32.mrb[0].mxu0
  %v6997 = vadd.f32 %v6740, %v6996
  %v6998 = vpop.f32.mrb[0].mxu0
  %6999 = vmatprep.mubr.bf16.mxu0 0
  %7000 = vmatmul.mubr.bf16.gmra.mrb[0].mxu0 %v6597
  %v7001 = vpop.f32.mrb[0].mxu0
  %v7002 = vadd.f32 %v6745, %v7001
  %v7003 = vpop.f32.mrb[0].mxu0
  %v7004 = vpop.f32.mrb[0].mxu0
  %v7005 = vadd.f32 %v6748, %v7004
  %v7006 = vpop.f32.mrb[0].mxu0
  %7007 = vmatprep.mubr.bf16.mxu0 0
  %7008 = vmatmul.mubr.bf16.gmra.mrb[0].mxu0 %v6600
  %v7009 = vpop.f32.mrb[0].mxu0
  %v7010 = vadd.f32 %v6753, %v7009
  %v7011 = vpop.f32.mrb[0].mxu0
  %v7012 = vpop.f32.mrb[0].mxu0
  %v7013 = vadd.f32 %v6756, %v7012
  %v7014 = vpop.f32.mrb[0].mxu0
  %7015 = vmatprep.mubr.bf16.mxu0 0
  %7016 = vmatmul.mubr.bf16.gmra.mrb[0].mxu0 %v6603
  %v7017 = vpop.f32.mrb[0].mxu0
  %v7018 = vadd.f32 %v6761, %v7017
  %v7019 = vpop.f32.mrb[0].mxu0
  %v7020 = vpop.f32.mrb[0].mxu0
  %v7021 = vadd.f32 %v6764, %v7020
  %v7022 = vpop.f32.mrb[0].mxu0
  %7023 = vmatprep.mubr.bf16.mxu0 0
  %7024 = vmatmul.mubr.bf16.gmra.mrb[0].mxu0 %v6606
  %v7025 = vpop.f32.mrb[0].mxu0
  %v7026 = vadd.f32 %v6769, %v7025
  %v7027 = vpop.f32.mrb[0].mxu0
  %v7028 = vpop.f32.mrb[0].mxu0
  %v7029 = vadd.f32 %v6772, %v7028
  %v7030 = vpop.f32.mrb[0].mxu0
  %7031 = vmatprep.mubr.bf16.mxu0 0
  %7032 = vmatmul.mubr.bf16.gmra.mrb[0].mxu0 %v6609
  %v7033 = vpop.f32.mrb[0].mxu0
  %v7034 = vadd.f32 %v6777, %v7033
  %v7035 = vpop.f32.mrb[0].mxu0
  %v7036 = vpop.f32.mrb[0].mxu0
  %v7037 = vadd.f32 %v6780, %v7036
  %v7038 = vpop.f32.mrb[0].mxu0
  %7039 = vmatprep.mubr.bf16.mxu0 0
  %7040 = vmatmul.mubr.bf16.gmra.mrb[0].mxu0 %v6612
  %v7041 = vpop.f32.mrb[0].mxu0
  %v7042 = vadd.f32 %v6785, %v7041
  %v7043 = vpop.f32.mrb[0].mxu0
  %v7044 = vpop.f32.mrb[0].mxu0
  %v7045 = vadd.f32 %v6788, %v7044
  %v7046 = vpop.f32.mrb[0].mxu0
  %7047 = vmatprep.mubr.bf16.mxu0 0
  %7048 = vmatmul.mubr.bf16.gmra.mrb[0].mxu0 %v6615
  %v7049 = vpop.f32.mrb[0].mxu0
  %v7050 = vadd.f32 %v6793, %v7049
  %v7051 = vpop.f32.mrb[0].mxu0
  %v7052 = vpop.f32.mrb[0].mxu0
  %v7053 = vadd.f32 %v6796, %v7052
  %v7054 = vpop.f32.mrb[0].mxu0
  %7055 = vmatprep.mubr.bf16.mxu0 0
  %7056 = vmatmul.mubr.bf16.gmra.mrb[0].mxu0 %v6618
  %v7057 = vpop.f32.mrb[0].mxu0
  %v7058 = vadd.f32 %v6801, %v7057
  %v7059 = vpop.f32.mrb[0].mxu0
  %v7060 = vpop.f32.mrb[0].mxu0
  %v7061 = vadd.f32 %v6804, %v7060
  %v7062 = vpop.f32.mrb[0].mxu0
  %7063 = vmatprep.mubr.bf16.mxu0 0
  %7064 = vmatmul.mubr.bf16.gmra.mrb[0].mxu0 %v6621
  %v7065 = vpop.f32.mrb[0].mxu0
  %v7066 = vadd.f32 %v6809, %v7065
  %v7067 = vpop.f32.mrb[0].mxu0
  %v7068 = vpop.f32.mrb[0].mxu0
  %v7069 = vadd.f32 %v6812, %v7068
  %v7070 = vpop.f32.mrb[0].mxu0
  %7071 = vmatprep.mubr.bf16.mxu0 0
  %7072 = vmatmul.mubr.bf16.gmra.mrb[0].mxu0 %v6624
  %v7073 = vpop.f32.mrb[0].mxu0
  %v7074 = vadd.f32 %v6817, %v7073
  %v7075 = vpop.f32.mrb[0].mxu0
  %v7076 = vpop.f32.mrb[0].mxu0
  %v7077 = vadd.f32 %v6820, %v7076
  %v7078 = vpop.f32.mrb[0].mxu0
  %7079 = vmatprep.mubr.bf16.mxu0 0
  %7080 = vmatmul.mubr.bf16.gmra.mrb[0].mxu0 %v6627
  %v7081 = vpop.f32.mrb[0].mxu0
  %v7082 = vadd.f32 %v6825, %v7081
  %v7083 = vpop.f32.mrb[0].mxu0
  %v7084 = vpop.f32.mrb[0].mxu0
  %v7085 = vadd.f32 %v6828, %v7084
  %v7086 = vpop.f32.mrb[0].mxu0
  %7087 = vmatprep.mubr.bf16.mxu0 0
  %7088 = vmatmul.mubr.bf16.gmra.mrb[0].mxu0 %v6630
  %v7089 = vpop.f32.mrb[0].mxu0
  %v7090 = vadd.f32 %v6833, %v7089
  %v7091 = vpop.f32.mrb[0].mxu0
  %v7092 = vpop.f32.mrb[0].mxu0
  %v7093 = vadd.f32 %v6836, %v7092
  %v7094 = vpop.f32.mrb[0].mxu0
  %7095 = vmatprep.mubr.bf16.mxu0 0
  %7096 = vmatmul.mubr.bf16.gmra.mrb[0].mxu0 %v6633
  %v7097 = vpop.f32.mrb[0].mxu0
  %v7098 = vadd.f32 %v6841, %v7097
  %v7099 = vpop.f32.mrb[0].mxu0
  %v7100 = vpop.f32.mrb[0].mxu0
  %v7101 = vadd.f32 %v6844, %v7100
  %v7102 = vpop.f32.mrb[0].mxu0
  %7103 = vmatprep.mubr.bf16.mxu0 0
  %7104 = vmatmul.mubr.bf16.gmra.mrb[0].mxu0 %v6636
  %v7105 = vpop.f32.mrb[0].mxu0
  %v7106 = vadd.f32 %v6849, %v7105
  %v7107 = vpop.f32.mrb[0].mxu0
  %v7108 = vpop.f32.mrb[0].mxu0
  %v7109 = vadd.f32 %v6852, %v7108
  %v7110 = vpop.f32.mrb[0].mxu0
  %7111 = vmatprep.mubr.bf16.mxu0 0
  %7112 = vmatmul.mubr.bf16.gmra.mrb[0].mxu0 %v6639
  %v7113 = vpop.f32.mrb[0].mxu0
  %v7114 = vadd.f32 %v6857, %v7113
  %v7115 = vpop.f32.mrb[0].mxu0
  %v7116 = vpop.f32.mrb[0].mxu0
  %v7117 = vadd.f32 %v6860, %v7116
  %v7118 = vpop.f32.mrb[0].mxu0
  %7119 = vmatprep.mubr.bf16.mxu0 0
  %7120 = vmatmul.mubr.bf16.gmra.mrb[0].mxu0 %v6642
  %v7121 = vpop.f32.mrb[0].mxu0
  %v7122 = vadd.f32 %v6865, %v7121
  %v7123 = vpop.f32.mrb[0].mxu0
  %v7124 = vpop.f32.mrb[0].mxu0
  %v7125 = vadd.f32 %v6868, %v7124
  %v7126 = vpop.f32.mrb[0].mxu0
  %7127 = vmatprep.mubr.bf16.mxu0 0
  %7128 = vmatmul.mubr.bf16.gmra.mrb[0].mxu0 %v6645
  %v7129 = vpop.f32.mrb[0].mxu0
  %v7130 = vadd.f32 %v6873, %v7129
  %v7131 = vpop.f32.mrb[0].mxu0
  %v7132 = vpop.f32.mrb[0].mxu0
  %v7133 = vadd.f32 %v6876, %v7132
  %v7134 = vpop.f32.mrb[0].mxu0
  %7135 = vmatprep.mubr.bf16.mxu0 0
  %7136 = vmatmul.mubr.bf16.gmra.mrb[0].mxu0 %v6648
  %v7137 = vpop.f32.mrb[0].mxu0
  %v7138 = vadd.f32 %v6881, %v7137
  %v7139 = vpop.f32.mrb[0].mxu0
  %v7140 = vpop.f32.mrb[0].mxu0
  %v7141 = vadd.f32 %v6884, %v7140
  %v7142 = vpop.f32.mrb[0].mxu0
  %7143 = vmatprep.mubr.bf16.mxu0 0
  %7144 = vmatmul.mubr.bf16.gmra.mrb[0].mxu0 %v6651
  %v7145 = vpop.f32.mrb[0].mxu0
  %v7146 = vadd.f32 %v6889, %v7145
  %v7147 = vpop.f32.mrb[0].mxu0
  %v7148 = vpop.f32.mrb[0].mxu0
  %v7149 = vadd.f32 %v6892, %v7148
  %v7150 = vpop.f32.mrb[0].mxu0
  %7151 = vmatprep.mubr.bf16.mxu0 0
  %7152 = vmatmul.mubr.bf16.gmra.mrb[0].mxu0 %v6654
  %v7153 = vpop.f32.mrb[0].mxu0
  %v7154 = vadd.f32 %v6897, %v7153
  %v7155 = vpop.f32.mrb[0].mxu0
  %v7156 = vpop.f32.mrb[0].mxu0
  %v7157 = vadd.f32 %v6900, %v7156
  %v7158 = vpop.f32.mrb[0].mxu0
  %7159 = vmatprep.mubr.bf16.mxu0 0
  %7160 = vmatmul.mubr.bf16.gmra.mrb[0].mxu0 %v6657
  %v7161 = vpop.f32.mrb[0].mxu0
  %v7162 = vadd.f32 %v6905, %v7161
  %v7163 = vpop.f32.mrb[0].mxu0
  %v7164 = vpop.f32.mrb[0].mxu0
  %v7165 = vadd.f32 %v6908, %v7164
  %v7166 = vpop.f32.mrb[0].mxu0
  %7167 = vmatprep.mubr.bf16.mxu0 0
  %7168 = vmatmul.mubr.bf16.gmra.mrb[0].mxu0 %v6660
  %v7169 = vpop.f32.mrb[0].mxu0
  %v7170 = vadd.f32 %v6913, %v7169
  %v7171 = vpop.f32.mrb[0].mxu0
  %v7172 = vpop.f32.mrb[0].mxu0
  %v7173 = vadd.f32 %v6916, %v7172
  %v7174 = vpop.f32.mrb[0].mxu0
  %7175 = vdwg.mxu0
  %7176 = vst.msk [vmem:[#allocation4] sm:$0xff] %vm6068, %v6954
  %7177 = vst.msk [vmem:[#allocation4 + $0x8] sm:$0xff] %vm6068, %v6957
  %7178 = vst.msk [vmem:[#allocation4 + $0x10] sm:$0xff] %vm6068, %v6962
  %7179 = vst.msk [vmem:[#allocation4 + $0x18] sm:$0xff] %vm6068, %v6965
  %7180 = vst.msk [vmem:[#allocation4 + $0x20] sm:$0xff] %vm6068, %v6970
  %7181 = vst.msk [vmem:[#allocation4 + $0x28] sm:$0xff] %vm6068, %v6973
  %7182 = vst.msk [vmem:[#allocation4 + $0x30] sm:$0xff] %vm6068, %v6978
  %7183 = vst.msk [vmem:[#allocation4 + $0x38] sm:$0xff] %vm6068, %v6981
  %7184 = vst.msk [vmem:[#allocation4 + $0x40] sm:$0xff] %vm6068, %v6986
  %7185 = vst.msk [vmem:[#allocation4 + $0x48] sm:$0xff] %vm6068, %v6989
  %7186 = vst.msk [vmem:[#allocation4 + $0x50] sm:$0xff] %vm6068, %v6994
  %7187 = vst.msk [vmem:[#allocation4 + $0x58] sm:$0xff] %vm6068, %v6997
  %7188 = vst.msk [vmem:[#allocation4 + $0x60] sm:$0xff] %vm6068, %v7002
  %7189 = vst.msk [vmem:[#allocation4 + $0x68] sm:$0xff] %vm6068, %v7005
  %7190 = vst.msk [vmem:[#allocation4 + $0x70] sm:$0xff] %vm6068, %v7010
  %7191 = vst.msk [vmem:[#allocation4 + $0x78] sm:$0xff] %vm6068, %v7013
  %7192 = vst.msk [vmem:[#allocation4 + $0x80] sm:$0xff] %vm6068, %v7018
  %7193 = vst.msk [vmem:[#allocation4 + $0x88] sm:$0xff] %vm6068, %v7021
  %7194 = vst.msk [vmem:[#allocation4 + $0x90] sm:$0xff] %vm6068, %v7026
  %7195 = vst.msk [vmem:[#allocation4 + $0x98] sm:$0xff] %vm6068, %v7029
  %7196 = vst.msk [vmem:[#allocation4 + $0xa0] sm:$0xff] %vm6068, %v7034
  %7197 = vst.msk [vmem:[#allocation4 + $0xa8] sm:$0xff] %vm6068, %v7037
  %7198 = vst.msk [vmem:[#allocation4 + $0xb0] sm:$0xff] %vm6068, %v7042
  %7199 = vst.msk [vmem:[#allocation4 + $0xb8] sm:$0xff] %vm6068, %v7045
  %7200 = vst.msk [vmem:[#allocation4 + $0xc0] sm:$0xff] %vm6068, %v7050
  %7201 = vst.msk [vmem:[#allocation4 + $0xc8] sm:$0xff] %vm6068, %v7053
  %7202 = vst.msk [vmem:[#allocation4 + $0xd0] sm:$0xff] %vm6068, %v7058
  %7203 = vst.msk [vmem:[#allocation4 + $0xd8] sm:$0xff] %vm6068, %v7061
  %7204 = vst.msk [vmem:[#allocation4 + $0xe0] sm:$0xff] %vm6068, %v7066
  %7205 = vst.msk [vmem:[#allocation4 + $0xe8] sm:$0xff] %vm6068, %v7069
  %7206 = vst.msk [vmem:[#allocation4 + $0xf0] sm:$0xff] %vm6068, %v7074
  %7207 = vst.msk [vmem:[#allocation4 + $0xf8] sm:$0xff] %vm6068, %v7077
  %7208 = vst.msk [vmem:[#allocation4 + $0x100] sm:$0xff] %vm6068, %v7082
  %7209 = vst.msk [vmem:[#allocation4 + $0x108] sm:$0xff] %vm6068, %v7085
  %7210 = vst.msk [vmem:[#allocation4 + $0x110] sm:$0xff] %vm6068, %v7090
  %7211 = vst.msk [vmem:[#allocation4 + $0x118] sm:$0xff] %vm6068, %v7093
  %7212 = vst.msk [vmem:[#allocation4 + $0x120] sm:$0xff] %vm6068, %v7098
  %7213 = vst.msk [vmem:[#allocation4 + $0x128] sm:$0xff] %vm6068, %v7101
  %7214 = vst.msk [vmem:[#allocation4 + $0x130] sm:$0xff] %vm6068, %v7106
  %7215 = vst.msk [vmem:[#allocation4 + $0x138] sm:$0xff] %vm6068, %v7109
  %7216 = vst.msk [vmem:[#allocation4 + $0x140] sm:$0xff] %vm6068, %v7114
  %7217 = vst.msk [vmem:[#allocation4 + $0x148] sm:$0xff] %vm6068, %v7117
  %7218 = vst.msk [vmem:[#allocation4 + $0x150] sm:$0xff] %vm6068, %v7122
  %7219 = vst.msk [vmem:[#allocation4 + $0x158] sm:$0xff] %vm6068, %v7125
  %7220 = vst.msk [vmem:[#allocation4 + $0x160] sm:$0xff] %vm6068, %v7130
  %7221 = vst.msk [vmem:[#allocation4 + $0x168] sm:$0xff] %vm6068, %v7133
  %7222 = vst.msk [vmem:[#allocation4 + $0x170] sm:$0xff] %vm6068, %v7138
  %7223 = vst.msk [vmem:[#allocation4 + $0x178] sm:$0xff] %vm6068, %v7141
  %7224 = vst.msk [vmem:[#allocation4 + $0x180] sm:$0xff] %vm6068, %v7146
  %7225 = vst.msk [vmem:[#allocation4 + $0x188] sm:$0xff] %vm6068, %v7149
  %7226 = vst.msk [vmem:[#allocation4 + $0x190] sm:$0xff] %vm6068, %v7154
  %7227 = vst.msk [vmem:[#allocation4 + $0x198] sm:$0xff] %vm6068, %v7157
  %7228 = vst.msk [vmem:[#allocation4 + $0x1a0] sm:$0xff] %vm6068, %v7162
  %7229 = vst.msk [vmem:[#allocation4 + $0x1a8] sm:$0xff] %vm6068, %v7165
  %7230 = vst.msk [vmem:[#allocation4 + $0x1b0] sm:$0xff] %vm6068, %v7170
  %7231 = vst.msk [vmem:[#allocation4 + $0x1b8] sm:$0xff] %vm6068, %v7173
  %v7232 = vld [vmem:[#allocation4] ss:$2 sm:$0x7f]
  %s7233 = scalar_lea.vmem [#allocation4], 32
  %v7234 = vld [vmem:[%s7233] ss:$2 sm:$0x7f]
  %s7235 = scalar_lea.vmem [#allocation4], 64
  %v7236 = vld [vmem:[%s7235] ss:$2 sm:$0x7f]
  %s7237 = scalar_lea.vmem [#allocation4], 96
  %v7238 = vld [vmem:[%s7237] ss:$2 sm:$0x7f]
  %s7239 = scalar_lea.vmem [#allocation4], 128
  %v7240 = vld [vmem:[%s7239] ss:$2 sm:$0x7f]
  %s7241 = scalar_lea.vmem [#allocation4], 160
  %v7242 = vld [vmem:[%s7241] ss:$2 sm:$0x7f]
  %s7243 = scalar_lea.vmem [#allocation4], 192
  %v7244 = vld [vmem:[%s7243] ss:$2 sm:$0x7f]
  %s7245 = scalar_lea.vmem [#allocation4], 224
  %v7246 = vld [vmem:[%s7245] ss:$2 sm:$0x7f]
  %s7247 = scalar_lea.vmem [#allocation4], 256
  %v7248 = vld [vmem:[%s7247] ss:$2 sm:$0x7f]
  %s7249 = scalar_lea.vmem [#allocation4], 288
  %v7250 = vld [vmem:[%s7249] ss:$2 sm:$0x7f]
  %s7251 = scalar_lea.vmem [#allocation4], 320
  %v7252 = vld [vmem:[%s7251] ss:$2 sm:$0x7f]
  %s7253 = scalar_lea.vmem [#allocation4], 352
  %v7254 = vld [vmem:[%s7253] ss:$2 sm:$0x7f]
  %s7255 = scalar_lea.vmem [#allocation4], 384
  %v7256 = vld [vmem:[%s7255] ss:$2 sm:$0x7f]
  %s7257 = scalar_lea.vmem [#allocation4], 416
  %v7258 = vld [vmem:[%s7257] ss:$2 sm:$0x7f]
  %s7259 = scalar_lea.vmem [#allocation4], 1
  %v7260 = vld [vmem:[%s7259] ss:$2 sm:$0x7f]
  %s7261 = scalar_lea.vmem [#allocation4], 33
  %v7262 = vld [vmem:[%s7261] ss:$2 sm:$0x7f]
  %s7263 = scalar_lea.vmem [#allocation4], 65
  %v7264 = vld [vmem:[%s7263] ss:$2 sm:$0x7f]
  %s7265 = scalar_lea.vmem [#allocation4], 97
  %v7266 = vld [vmem:[%s7265] ss:$2 sm:$0x7f]
  %s7267 = scalar_lea.vmem [#allocation4], 129
  %v7268 = vld [vmem:[%s7267] ss:$2 sm:$0x7f]
  %s7269 = scalar_lea.vmem [#allocation4], 161
  %v7270 = vld [vmem:[%s7269] ss:$2 sm:$0x7f]
  %s7271 = scalar_lea.vmem [#allocation4], 193
  %v7272 = vld [vmem:[%s7271] ss:$2 sm:$0x7f]
  %s7273 = scalar_lea.vmem [#allocation4], 225
  %v7274 = vld [vmem:[%s7273] ss:$2 sm:$0x7f]
  %s7275 = scalar_lea.vmem [#allocation4], 257
  %v7276 = vld [vmem:[%s7275] ss:$2 sm:$0x7f]
  %s7277 = scalar_lea.vmem [#allocation4], 289
  %v7278 = vld [vmem:[%s7277] ss:$2 sm:$0x7f]
  %s7279 = scalar_lea.vmem [#allocation4], 321
  %v7280 = vld [vmem:[%s7279] ss:$2 sm:$0x7f]
  %s7281 = scalar_lea.vmem [#allocation4], 353
  %v7282 = vld [vmem:[%s7281] ss:$2 sm:$0x7f]
  %s7283 = scalar_lea.vmem [#allocation4], 385
  %v7284 = vld [vmem:[%s7283] ss:$2 sm:$0x7f]
  %s7285 = scalar_lea.vmem [#allocation4], 417
  %v7286 = vld [vmem:[%s7285] ss:$2 sm:$0x7f]
  %v7287 = vmax.f32 %v7232, %v7260
  %v7288 = vmax.f32 %v7234, %v7262
  %v7289 = vmax.f32 %v7236, %v7264
  %v7290 = vmax.f32 %v7238, %v7266
  %v7291 = vmax.f32 %v7240, %v7268
  %v7292 = vmax.f32 %v7242, %v7270
  %v7293 = vmax.f32 %v7244, %v7272
  %v7294 = vmax.f32 %v7246, %v7274
  %v7295 = vmax.f32 %v7248, %v7276
  %v7296 = vmax.f32 %v7250, %v7278
  %v7297 = vmax.f32 %v7252, %v7280
  %v7298 = vmax.f32 %v7254, %v7282
  %v7299 = vmax.f32 %v7256, %v7284
  %v7300 = vmax.f32 %v7258, %v7286
  %s7301 = scalar_lea.vmem [#allocation4], 16
  %v7302 = vld [vmem:[%s7301] ss:$2 sm:$0x7f]
  %s7303 = scalar_lea.vmem %s7301, 32 [#allocation4]
  %v7304 = vld [vmem:[%s7303] ss:$2 sm:$0x7f]
  %s7305 = scalar_lea.vmem %s7301, 64 [#allocation4]
  %v7306 = vld [vmem:[%s7305] ss:$2 sm:$0x7f]
  %s7307 = scalar_lea.vmem %s7301, 96 [#allocation4]
  %v7308 = vld [vmem:[%s7307] ss:$2 sm:$0x7f]
  %s7309 = scalar_lea.vmem %s7301, 128 [#allocation4]
  %v7310 = vld [vmem:[%s7309] ss:$2 sm:$0x7f]
  %s7311 = scalar_lea.vmem %s7301, 160 [#allocation4]
  %v7312 = vld [vmem:[%s7311] ss:$2 sm:$0x7f]
  %s7313 = scalar_lea.vmem %s7301, 192 [#allocation4]
  %v7314 = vld [vmem:[%s7313] ss:$2 sm:$0x7f]
  %s7315 = scalar_lea.vmem %s7301, 224 [#allocation4]
  %v7316 = vld [vmem:[%s7315] ss:$2 sm:$0x7f]
  %s7317 = scalar_lea.vmem %s7301, 256 [#allocation4]
  %v7318 = vld [vmem:[%s7317] ss:$2 sm:$0x7f]
  %s7319 = scalar_lea.vmem %s7301, 288 [#allocation4]
  %v7320 = vld [vmem:[%s7319] ss:$2 sm:$0x7f]
  %s7321 = scalar_lea.vmem %s7301, 320 [#allocation4]
  %v7322 = vld [vmem:[%s7321] ss:$2 sm:$0x7f]
  %s7323 = scalar_lea.vmem %s7301, 352 [#allocation4]
  %v7324 = vld [vmem:[%s7323] ss:$2 sm:$0x7f]
  %s7325 = scalar_lea.vmem %s7301, 384 [#allocation4]
  %v7326 = vld [vmem:[%s7325] ss:$2 sm:$0x7f]
  %s7327 = scalar_lea.vmem %s7301, 416 [#allocation4]
  %v7328 = vld [vmem:[%s7327] ss:$2 sm:$0x7f]
  %v7329 = vmax.f32 %v7287, %v7302
  %v7330 = vmax.f32 %v7288, %v7304
  %v7331 = vmax.f32 %v7289, %v7306
  %v7332 = vmax.f32 %v7290, %v7308
  %v7333 = vmax.f32 %v7291, %v7310
  %v7334 = vmax.f32 %v7292, %v7312
  %v7335 = vmax.f32 %v7293, %v7314
  %v7336 = vmax.f32 %v7294, %v7316
  %v7337 = vmax.f32 %v7295, %v7318
  %v7338 = vmax.f32 %v7296, %v7320
  %v7339 = vmax.f32 %v7297, %v7322
  %v7340 = vmax.f32 %v7298, %v7324
  %v7341 = vmax.f32 %v7299, %v7326
  %v7342 = vmax.f32 %v7300, %v7328
  %s7343 = scalar_lea.vmem %s7301, 1 [#allocation4]
  %v7344 = vld [vmem:[%s7343] ss:$2 sm:$0x7f]
  %s7345 = scalar_lea.vmem %s7301, 33 [#allocation4]
  %v7346 = vld [vmem:[%s7345] ss:$2 sm:$0x7f]
  %s7347 = scalar_lea.vmem %s7301, 65 [#allocation4]
  %v7348 = vld [vmem:[%s7347] ss:$2 sm:$0x7f]
  %s7349 = scalar_lea.vmem %s7301, 97 [#allocation4]
  %v7350 = vld [vmem:[%s7349] ss:$2 sm:$0x7f]
  %s7351 = scalar_lea.vmem %s7301, 129 [#allocation4]
  %v7352 = vld [vmem:[%s7351] ss:$2 sm:$0x7f]
  %s7353 = scalar_lea.vmem %s7301, 161 [#allocation4]
  %v7354 = vld [vmem:[%s7353] ss:$2 sm:$0x7f]
  %s7355 = scalar_lea.vmem %s7301, 193 [#allocation4]
  %v7356 = vld [vmem:[%s7355] ss:$2 sm:$0x7f]
  %s7357 = scalar_lea.vmem %s7301, 225 [#allocation4]
  %v7358 = vld [vmem:[%s7357] ss:$2 sm:$0x7f]
  %s7359 = scalar_lea.vmem %s7301, 257 [#allocation4]
  %v7360 = vld [vmem:[%s7359] ss:$2 sm:$0x7f]
  %s7361 = scalar_lea.vmem %s7301, 289 [#allocation4]
  %v7362 = vld [vmem:[%s7361] ss:$2 sm:$0x7f]
  %s7363 = scalar_lea.vmem %s7301, 321 [#allocation4]
  %v7364 = vld [vmem:[%s7363] ss:$2 sm:$0x7f]
  %s7365 = scalar_lea.vmem %s7301, 353 [#allocation4]
  %v7366 = vld [vmem:[%s7365] ss:$2 sm:$0x7f]
  %s7367 = scalar_lea.vmem %s7301, 385 [#allocation4]
  %v7368 = vld [vmem:[%s7367] ss:$2 sm:$0x7f]
  %s7369 = scalar_lea.vmem %s7301, 417 [#allocation4]
  %v7370 = vld [vmem:[%s7369] ss:$2 sm:$0x7f]
  %v7371 = vmax.f32 %v7329, %v7344
  %v7372 = vmax.f32 %v7330, %v7346
  %v7373 = vmax.f32 %v7331, %v7348
  %v7374 = vmax.f32 %v7332, %v7350
  %v7375 = vmax.f32 %v7333, %v7352
  %v7376 = vmax.f32 %v7334, %v7354
  %v7377 = vmax.f32 %v7335, %v7356
  %v7378 = vmax.f32 %v7336, %v7358
  %v7379 = vmax.f32 %v7337, %v7360
  %v7380 = vmax.f32 %v7338, %v7362
  %v7381 = vmax.f32 %v7339, %v7364
  %v7382 = vmax.f32 %v7340, %v7366
  %v7383 = vmax.f32 %v7341, %v7368
  %v7384 = vmax.f32 %v7342, %v7370
  %v7385 = vld [vmem:[%s4] sm:$0x1]
  %v7387 = vlaneseq
  %v7388 = vshrl.u32 %v7387, 7
  %v7389 = vsub.s32 0, %v7388
  %v7390 = vrot.slane %v7385, %v7389
  %v7392 = vadd.f32 %v7371, %v7390
  %v7393 = vadd.f32 %v7372, %v7390
  %v7394 = vadd.f32 %v7373, %v7390
  %v7395 = vadd.f32 %v7374, %v7390
  %v7396 = vadd.f32 %v7375, %v7390
  %v7397 = vadd.f32 %v7376, %v7390
  %v7398 = vadd.f32 %v7377, %v7390
  %v7399 = vadd.f32 %v7378, %v7390
  %v7400 = vadd.f32 %v7379, %v7390
  %v7401 = vadd.f32 %v7380, %v7390
  %v7402 = vadd.f32 %v7381, %v7390
  %v7403 = vadd.f32 %v7382, %v7390
  %v7404 = vadd.f32 %v7383, %v7390
  %v7405 = vadd.f32 %v7384, %v7390
  %v7406 = vmax.f32 %v7392, 0.0
  %v7407 = vmax.f32 %v7393, 0.0
  %v7408 = vmax.f32 %v7394, 0.0
  %v7409 = vmax.f32 %v7395, 0.0
  %v7410 = vmax.f32 %v7396, 0.0
  %v7411 = vmax.f32 %v7397, 0.0
  %v7412 = vmax.f32 %v7398, 0.0
  %v7413 = vmax.f32 %v7399, 0.0
  %v7414 = vmax.f32 %v7400, 0.0
  %v7415 = vmax.f32 %v7401, 0.0
  %v7416 = vmax.f32 %v7402, 0.0
  %v7417 = vmax.f32 %v7403, 0.0
  %v7418 = vmax.f32 %v7404, 0.0
  %v7419 = vmax.f32 %v7405, 0.0
  %v7420 = vpack.c.bf16 %v7406, %v7406
  %v7421 = vpack.c.bf16 %v7407, %v7407
  %v7422 = vpack.c.bf16 %v7408, %v7408
  %v7423 = vpack.c.bf16 %v7409, %v7409
  %v7424 = vpack.c.bf16 %v7410, %v7410
  %v7425 = vpack.c.bf16 %v7411, %v7411
  %v7426 = vpack.c.bf16 %v7412, %v7412
  %v7427 = vpack.c.bf16 %v7413, %v7413
  %v7428 = vpack.c.bf16 %v7414, %v7414
  %v7429 = vpack.c.bf16 %v7415, %v7415
  %v7430 = vpack.c.bf16 %v7416, %v7416
  %v7431 = vpack.c.bf16 %v7417, %v7417
  %v7432 = vpack.c.bf16 %v7418, %v7418
  %v7433 = vpack.c.bf16 %v7419, %v7419
  %vm7434 = vcmask 519168
  %vm7435 = vsmask.f32 3328
  %vm7436 = vmand %vm7434, %vm7435
  %v7437 = vld [vmem:[%s5] sm:$0xf]
  %v7438 = vsel %vm7436, %v7420, %v7437
  %7439 = vst [vmem:[%s5] sm:$0xf] %v7438
  %v7440 = vld [vmem:[%s5 + $0x4] sm:$0xf]
  %v7441 = vsel %vm7436, %v7421, %v7440
  %7442 = vst [vmem:[%s5 + $0x4] sm:$0xf] %v7441
  %v7443 = vld [vmem:[%s5 + $0x8] sm:$0xf]
  %v7444 = vsel %vm7436, %v7422, %v7443
  %7445 = vst [vmem:[%s5 + $0x8] sm:$0xf] %v7444
  %v7446 = vld [vmem:[%s5 + $0xc] sm:$0xf]
  %v7447 = vsel %vm7436, %v7423, %v7446
  %7448 = vst [vmem:[%s5 + $0xc] sm:$0xf] %v7447
  %v7449 = vld [vmem:[%s5 + $0x10] sm:$0xf]
  %v7450 = vsel %vm7436, %v7424, %v7449
  %7451 = vst [vmem:[%s5 + $0x10] sm:$0xf] %v7450
  %v7452 = vld [vmem:[%s5 + $0x14] sm:$0xf]
  %v7453 = vsel %vm7436, %v7425, %v7452
  %7454 = vst [vmem:[%s5 + $0x14] sm:$0xf] %v7453
  %v7455 = vld [vmem:[%s5 + $0x18] sm:$0xf]
  %v7456 = vsel %vm7436, %v7426, %v7455
  %7457 = vst [vmem:[%s5 + $0x18] sm:$0xf] %v7456
  %v7458 = vld [vmem:[%s5 + $0x1c] sm:$0xf]
  %v7459 = vsel %vm7436, %v7427, %v7458
  %7460 = vst [vmem:[%s5 + $0x1c] sm:$0xf] %v7459
  %v7461 = vld [vmem:[%s5 + $0x20] sm:$0xf]
  %v7462 = vsel %vm7436, %v7428, %v7461
  %7463 = vst [vmem:[%s5 + $0x20] sm:$0xf] %v7462
  %v7464 = vld [vmem:[%s5 + $0x24] sm:$0xf]
  %v7465 = vsel %vm7436, %v7429, %v7464
  %7466 = vst [vmem:[%s5 + $0x24] sm:$0xf] %v7465
  %v7467 = vld [vmem:[%s5 + $0x28] sm:$0xf]
  %v7468 = vsel %vm7436, %v7430, %v7467
  %7469 = vst [vmem:[%s5 + $0x28] sm:$0xf] %v7468
  %v7470 = vld [vmem:[%s5 + $0x2c] sm:$0xf]
  %v7471 = vsel %vm7436, %v7431, %v7470
  %7472 = vst [vmem:[%s5 + $0x2c] sm:$0xf] %v7471
  %v7473 = vld [vmem:[%s5 + $0x30] sm:$0xf]
  %v7474 = vsel %vm7436, %v7432, %v7473
  %7475 = vst [vmem:[%s5 + $0x30] sm:$0xf] %v7474
  %v7476 = vld [vmem:[%s5 + $0x34] sm:$0xf]
  %v7477 = vsel %vm7436, %v7433, %v7476
  %7478 = vst [vmem:[%s5 + $0x34] sm:$0xf] %v7477
  // Predicated region
  $region22: #{simple_encoder_forward.2} parent=0 // pred_check
    _
  $region23: #{simple_encoder_forward.2} parent=0 // pred_check_branch
    %7480 = sbr.rel (0) target = $region25
  $region24: #{simple_encoder_forward.2} parent=0 // pred_region
    _
  $region25: #{simple_encoder_forward.2} parent=0 // pred_fallthru
    _
  // Predicated region
  $region26: #{simple_encoder_forward.2} parent=0 // pred_check
    _
  $region27: #{simple_encoder_forward.2} parent=0 // pred_check_branch
    %7482 = sbr.rel (0) target = $region29
  $region28: #{simple_encoder_forward.2} parent=0 // pred_region
    _
  $region29: #{simple_encoder_forward.2} parent=0 // pred_fallthru
    _

</llo_original>
